<compile_context>
chip_gen: v5e
topology: v5e:2x2
jax: 0.10.0
libtpu: 0.0.40
codegen_flags: <defaults>
</compile_context>

<pallas_src>
import functools

import numpy as np
import jax
import jax.numpy as jnp
from jax.experimental import pallas as pl
from jax.experimental.pallas import tpu as pltpu

NUM_FILTERS = 48   # stand-in for 192 in the reference; must be divisible by 3
JPEG_FACTOR = 0.8  # DiffJPEG quality=60 -> factor = (200 - 2*60)/100


def round_up(n, m):
    return ((n + m - 1) // m) * m


# ----------------------------------------------------------------------------
# Pallas kernel 1: (Cout, K) @ (K, pixels) + bias, optional fused GDN epilogue
# ----------------------------------------------------------------------------
def _conv_bias_kernel(w_ref, p_ref, b_ref, o_ref):
    o_ref[...] = (jnp.dot(w_ref[...], p_ref[...],
                          preferred_element_type=jnp.float32) + b_ref[...])


def _conv_bias_gdn_kernel(w_ref, p_ref, b_ref, g_ref, bt_ref, o_ref, *, inverse):
    x = jnp.dot(w_ref[...], p_ref[...],
                preferred_element_type=jnp.float32) + b_ref[...]
    # GDN: z[c] = beta[c] + sum_c' gamma[c, c'] * x[c']^2   (per pixel/lane)
    z = jnp.dot(g_ref[...], x * x,
                preferred_element_type=jnp.float32) + bt_ref[...]
    o_ref[...] = x * (jnp.sqrt(z) if inverse else jax.lax.rsqrt(z))


def pallas_conv_matmul(wm, patT, bias, gamma=None, beta=None, inverse=False,
                       lane_tile=512):
    """out[c, m] = sum_k wm[c, k] * patT[k, m] + bias[c], then optional fused GDN.

    Output is (Cout, pixels): lane-dense stores.  K is not tiled (single MXU dot,
    weights stay resident via a constant index_map), so there is no K grid axis,
    no accumulator scratch and no padding of K or Cout up to 128.
    """
    Cout, K = wm.shape
    M = patT.shape[1]
    Cp = round_up(Cout, 8)
    Kp = round_up(K, 16)        # 16-aligned sublanes for the bf16 patch operand
    tn = min(lane_tile, round_up(M, 128))
    Mp = round_up(M, tn)

    # bf16 operands, f32 accumulate / bias / GDN epilogue.
    wm_p = jnp.pad(wm, ((0, Cp - Cout), (0, Kp - K))).astype(jnp.bfloat16)
    pat_p = jnp.pad(patT, ((0, Kp - K), (0, Mp - M))).astype(jnp.bfloat16)
    bias_p = jnp.pad(bias.astype(jnp.float32).reshape(-1, 1), ((0, Cp - Cout), (0, 0)))

    args = [wm_p, pat_p, bias_p]
    in_specs = [
        pl.BlockSpec((Cp, Kp), lambda i: (0, 0)),   # weights: fetched once, stay resident
        pl.BlockSpec((Kp, tn), lambda i: (0, i)),   # patches: streamed over the lane axis
        pl.BlockSpec((Cp, 1), lambda i: (0, 0)),    # bias: fetched once
    ]
    if gamma is not None:
        gamma_p = jnp.pad(gamma.astype(jnp.float32),
                          ((0, Cp - Cout), (0, Cp - Cout)))
        # padded channels carry x == 0, beta padding of 1.0 keeps sqrt/rsqrt finite
        beta_p = jnp.pad(beta.astype(jnp.float32).reshape(-1, 1),
                         ((0, Cp - Cout), (0, 0)), constant_values=1.0)
        args += [gamma_p, beta_p]
        in_specs += [pl.BlockSpec((Cp, Cp), lambda i: (0, 0)),
                     pl.BlockSpec((Cp, 1), lambda i: (0, 0))]
        kernel = functools.partial(_conv_bias_gdn_kernel, inverse=inverse)
    else:
        kernel = _conv_bias_kernel

    out = pl.pallas_call(
        kernel,
        out_shape=jax.ShapeDtypeStruct((Cp, Mp), jnp.float32),
        grid_spec=pltpu.PrefetchScalarGridSpec(
            num_scalar_prefetch=0,
            grid=(Mp // tn,),
            in_specs=in_specs,
            out_specs=pl.BlockSpec((Cp, tn), lambda i: (0, i)),
        ),
        compiler_params=pltpu.CompilerParams(dimension_semantics=("parallel",)),
    )(*args)
    return out[:Cout, :M]


# ----------------------------------------------------------------------------
# im2col (transposed: K x pixels) + conv / deconv wrappers
# ----------------------------------------------------------------------------
def _im2col_T(x, k, s):
    """x: (B, C, Hp, Wp) already padded.  Returns (C*k*k, B*Ho*Wo); K axis ordered
    channel-major (c, kh, kw) to match torch's weight.reshape(Cout, -1)."""
    B, C, Hp, Wp = x.shape
    Ho = (Hp - k) // s + 1
    Wo = (Wp - k) // s + 1
    cols = []
    for i in range(k):
        for j in range(k):
            cols.append(x[:, :, i:i + (Ho - 1) * s + 1:s, j:j + (Wo - 1) * s + 1:s])
    p = jnp.stack(cols, axis=2)                               # (B, C, k*k, Ho, Wo)
    p = p.transpose(1, 2, 0, 3, 4).reshape(C * k * k, B * Ho * Wo)
    return p, Ho, Wo


def conv2d(x, w, b, stride, padding, gamma=None, beta=None, inverse=False):
    """torch.nn.Conv2d semantics; x NCHW, w (Cout, Cin, k, k). GDN optionally fused."""
    Cout, k = w.shape[0], w.shape[2]
    xp = jnp.pad(x, ((0, 0), (0, 0), (padding, padding), (padding, padding)))
    patT, Ho, Wo = _im2col_T(xp, k, stride)
    out = pallas_conv_matmul(w.reshape(Cout, -1), patT, b,
                             gamma=gamma, beta=beta, inverse=inverse)
    B = x.shape[0]
    return out.reshape(Cout, B, Ho, Wo).transpose(1, 0, 2, 3)


def _deconv_s2_weight(w):
    """ConvTranspose2d(k=5, stride=2, padding=2, output_padding=1) == stride-1 3x3 conv
    (padding=1) producing 4 sub-pixel phases + pixel shuffle.
    w: (Cin, Cout, 5, 5) -> (4*Cout, Cin, 3, 3), channel order (ph, pw, cout)."""
    def taps(wk, phase, axis):
        if phase == 0:          # output row 2m: kernel taps 4,2,0 at input m-1,m,m+1
            return jnp.take(wk, jnp.array([4, 2, 0]), axis=axis)
        t = jnp.take(wk, jnp.array([3, 1]), axis=axis)   # row 2m+1: taps 3,1 at m,m+1
        zshape = list(t.shape)
        zshape[axis] = 1
        return jnp.concatenate([jnp.zeros(zshape, wk.dtype), t], axis=axis)

    phases = []
    for ph in (0, 1):
        for pw in (0, 1):
            wq = taps(taps(w, ph, 2), pw, 3)              # (Cin, Cout, 3, 3)
            phases.append(wq.transpose(1, 0, 2, 3))       # (Cout, Cin, 3, 3)
    return jnp.concatenate(phases, axis=0)


def _pixel_shuffle2(x):
    """(B, 4*C, H, W) with channel index (2*ph+pw)*C + c -> (B, C, 2H, 2W)."""
    B, C4, H, W = x.shape
    C = C4 // 4
    x = x.reshape(B, 2, 2, C, H, W).transpose(0, 3, 4, 1, 5, 2)
    return x.reshape(B, C, 2 * H, 2 * W)


def conv_transpose2d_s2(x, w, b, gamma=None, beta=None, inverse=True):
    """ConvTranspose2d(Cin, Cout, 5, stride=2, padding=2, output_padding=1) via sub-pixel
    decomposition (no zero-inserted im2col).  Optional per-output-pixel GDN is fused with
    a block-diagonal gamma since each phase carries its own full channel vector."""
    w_eff = _deconv_s2_weight(w)
    b_eff = jnp.tile(b, 4)
    if gamma is not None:
        gamma = jnp.kron(jnp.eye(4, dtype=gamma.dtype), gamma)
        beta = jnp.tile(beta, 4)
    y = conv2d(x, w_eff, b_eff, stride=1, padding=1,
               gamma=gamma, beta=beta, inverse=inverse)
    return _pixel_shuffle2(y)


def conv_transpose2d_s1(x, w, b, padding):
    """ConvTranspose2d(stride=1, output_padding=0): conv with flipped, transposed kernel."""
    k = w.shape[2]
    w_conv = jnp.flip(w, axis=(2, 3)).transpose(1, 0, 2, 3)
    return conv2d(x, w_conv, b, stride=1, padding=k - 1 - padding)


def fused_cfm(params, Y, Cb, Cr):
    """conv1_y (5x5/s2 on Y) + conv1_cbcr (3x3/s1 on CbCr) + gdn1_ycbcr as ONE
    block-diagonal Pallas matmul (K = 25 + 18 = 43) with the GDN fused in the epilogue."""
    w_y, b_y = params["conv1_y"]["w"], params["conv1_y"]["b"]
    w_c, b_c = params["conv1_cbcr"]["w"], params["conv1_cbcr"]["b"]
    B = Y.shape[0]
    patY, Ho, Wo = _im2col_T(jnp.pad(Y, ((0, 0), (0, 0), (2, 2), (2, 2))), 5, 2)
    cbcr = jnp.concatenate([Cb, Cr], axis=1)
    patC, Ho2, Wo2 = _im2col_T(jnp.pad(cbcr, ((0, 0), (0, 0), (1, 1), (1, 1))), 3, 1)
    assert (Ho, Wo) == (Ho2, Wo2)
    patT = jnp.concatenate([patY, patC], axis=0)

    Cy, Ky = w_y.shape[0], w_y.shape[1] * 25
    Cc, Kc = w_c.shape[0], w_c.shape[1] * 9
    wm = jnp.zeros((Cy + Cc, Ky + Kc), jnp.float32)
    wm = wm.at[:Cy, :Ky].set(w_y.reshape(Cy, -1))
    wm = wm.at[Cy:, Ky:].set(w_c.reshape(Cc, -1))
    bias = jnp.concatenate([b_y, b_c])

    out = pallas_conv_matmul(wm, patT, bias,
                             gamma=params["gdn1_ycbcr"]["gamma"],
                             beta=params["gdn1_ycbcr"]["beta"], inverse=False)
    return out.reshape(Cy + Cc, B, Ho, Wo).transpose(1, 0, 2, 3)


# ----------------------------------------------------------------------------
# Pallas kernel 2: factorized entropy-bottleneck likelihoods
# ----------------------------------------------------------------------------
EB_FILTERS = (3, 3, 3, 3)
_EB_SIZES = (1,) + EB_FILTERS + (1,)


def _eb_param_layout():
    offs_h, offs_b, offs_a = [], [], []
    off = 0
    for k in range(len(_EB_SIZES) - 1):
        din, dout = _EB_SIZES[k], _EB_SIZES[k + 1]
        offs_h.append(off); off += din * dout
        offs_b.append(off); off += dout
        if k < len(_EB_SIZES) - 2:
            offs_a.append(off); off += dout
        else:
            offs_a.append(None)
    return offs_h, offs_b, offs_a, off


_EB_OFF_H, _EB_OFF_B, _EB_OFF_A, _EB_PARAM_COLS = _eb_param_layout()


def _transform_eb_params(p):
    """Apply the param-only nonlinearities (softplus(H), tanh(A)) once on the tiny
    (C, 58) table so the kernel only pays for the data-dependent tanh/sigmoid."""
    cols = []
    for k in range(len(_EB_SIZES) - 1):
        din, dout = _EB_SIZES[k], _EB_SIZES[k + 1]
        cols.append(jax.nn.softplus(p[:, _EB_OFF_H[k]:_EB_OFF_H[k] + din * dout]))
        cols.append(p[:, _EB_OFF_B[k]:_EB_OFF_B[k] + dout])
        if _EB_OFF_A[k] is not None:
            cols.append(jnp.tanh(p[:, _EB_OFF_A[k]:_EB_OFF_A[k] + dout]))
    return jnp.concatenate(cols, axis=1)


def _eb_kernel(y_ref, p_ref, lik_ref, *, C):
    v = y_ref[...]
    # single pass over the stacked (v+0.5 ; v-0.5) tile instead of two full passes
    x = jnp.concatenate([v + 0.5, v - 0.5], axis=0)       # (2C, tn)

    def col(off):
        return p_ref[:, off:off + 1]                      # (2C, 1), lane-broadcast

    state = [x]
    for k in range(len(_EB_SIZES) - 1):
        din, dout = _EB_SIZES[k], _EB_SIZES[k + 1]
        new = []
        for j in range(dout):
            acc = col(_EB_OFF_B[k] + j)
            for i in range(din):
                acc = acc + col(_EB_OFF_H[k] + j * din + i) * state[i]
            new.append(acc)
        if _EB_OFF_A[k] is not None:
            for j in range(dout):
                new[j] = new[j] + col(_EB_OFF_A[k] + j) * jnp.tanh(new[j])
        state = new
    sig = jax.nn.sigmoid(state[0])                        # one EUP pass on (2C, tn)
    upper, lower = sig[:C], sig[C:]
    # likelihood lower bound (compressai clamps ~1e-9) so log(likelihood) stays finite
    lik_ref[...] = jnp.maximum(jnp.abs(upper - lower), 1e-9)


def pallas_entropy_bottleneck(y_nchw, eb_params, lane_tile=512):
    B, C, H, W = y_nchw.shape
    # TODO(synk): training-mode additive U(-0.5,0.5) noise replaced by deterministic round.
    y_tilde = jnp.round(y_nchw)
    y2d = y_tilde.transpose(1, 0, 2, 3).reshape(C, B * H * W)
    M = y2d.shape[1]
    tn = min(lane_tile, round_up(M, 128))
    Mp = round_up(M, tn)
    y_p = jnp.pad(y2d, ((0, 0), (0, Mp - M)))
    p2 = jnp.tile(_transform_eb_params(eb_params), (2, 1))     # (2C, 58)

    lik = pl.pallas_call(
        functools.partial(_eb_kernel, C=C),
        out_shape=jax.ShapeDtypeStruct((C, Mp), jnp.float32),
        grid_spec=pltpu.PrefetchScalarGridSpec(
            num_scalar_prefetch=0,
            grid=(Mp // tn,),
            in_specs=[pl.BlockSpec((C, tn), lambda i: (0, i)),
                      pl.BlockSpec((2 * C, _EB_PARAM_COLS), lambda i: (0, 0))],
            out_specs=pl.BlockSpec((C, tn), lambda i: (0, i)),
        ),
        compiler_params=pltpu.CompilerParams(dimension_semantics=("parallel",)),
    )(y_p, p2)
    lik = lik[:, :M].reshape(C, B, H, W).transpose(1, 0, 2, 3)
    return y_tilde, lik


# ----------------------------------------------------------------------------
# Pallas kernel 3: JPEG decompress (dequant + 8x8 IDCT as one matmul) + YCbCr->RGB
# ----------------------------------------------------------------------------
def _make_idct_matrix():
    alpha = np.array([1.0 / np.sqrt(2.0)] + [1.0] * 7)
    m = np.zeros((64, 64), dtype=np.float32)
    for x in range(8):
        for y in range(8):
            for u in range(8):
                for v in range(8):
                    m[x * 8 + y, u * 8 + v] = (
                        0.25 * alpha[x] * alpha[y]
                        * np.cos((2 * u + 1) * x * np.pi / 16)
                        * np.cos((2 * v + 1) * y * np.pi / 16))
    return jnp.asarray(m)


IDCT_MAT = _make_idct_matrix()


def _block_merge_T(blocks_T, n, h, w):
    """blocks_T: (64, n*(h//8)*(w//8)) pixel-within-block rows -> (n, h, w)."""
    p = blocks_T.reshape(8, 8, n, h // 8, w // 8)
    return p.transpose(2, 3, 0, 4, 1).reshape(n, h, w)


def _ycbcr2rgb_kernel(y_ref, cb_ref, cr_ref, r_ref, g_ref, b_ref):
    y = y_ref[...]
    cb = cb_ref[...] - 128.0
    cr = cr_ref[...] - 128.0
    inv = 1.0 / 255.0
    r_ref[...] = jnp.clip(y + 1.402 * cr, 0.0, 255.0) * inv
    g_ref[...] = jnp.clip(y - 0.344136 * cb - 0.714136 * cr, 0.0, 255.0) * inv
    b_ref[...] = jnp.clip(y + 1.772 * cb, 0.0, 255.0) * inv


def pallas_ycbcr2rgb(y_img, cb_img, cr_img, lane=512, row_tile=64):
    """Lane-dense YCbCr->RGB: components flattened to (rows, lane) tiles so every
    load/store is a full 128-lane vector op (no masked partial stores)."""
    n, h, w = y_img.shape
    npix = n * h * w
    cols = min(lane, round_up(npix, 128))
    rows = pl.cdiv(npix, cols)
    tr = min(row_tile, round_up(rows, 8))
    rows_p = round_up(rows, tr)
    total = rows_p * cols

    def prep(a):
        return jnp.pad(a.reshape(-1), (0, total - npix)).reshape(rows_p, cols)

    spec = pl.BlockSpec((tr, cols), lambda i: (i, 0))
    r, g, b = pl.pallas_call(
        _ycbcr2rgb_kernel,
        out_shape=(jax.ShapeDtypeStruct((rows_p, cols), jnp.float32),) * 3,
        grid_spec=pltpu.PrefetchScalarGridSpec(
            num_scalar_prefetch=0,
            grid=(rows_p // tr,),
            in_specs=[spec, spec, spec],
            out_specs=(spec, spec, spec),
        ),
        compiler_params=pltpu.CompilerParams(dimension_semantics=("parallel",)),
    )(prep(y_img), prep(cb_img), prep(cr_img))

    def unpack(a):
        return a.reshape(-1)[:npix].reshape(n, h, w)

    return jnp.stack([unpack(r), unpack(g), unpack(b)], axis=1)


def pallas_jpeg_decompress(y_comp, cb_comp, cr_comp, quantization, factor, h, w):
    """Dequantize + 8x8 IDCT for Y, Cb, Cr in ONE Pallas matmul: diag(q*factor) is folded
    into the IDCT matrix per component and the Y / chroma blocks occupy disjoint halves of
    a K=128 input, so the kernel is a single lane-dense (64,128)@(128,pixels) dot + 128."""
    y_table = quantization[0].astype(jnp.float32).reshape(64)
    c_table = quantization[1].astype(jnp.float32).reshape(64)
    wy_t = ((y_table * factor)[:, None] * IDCT_MAT).T     # (64, 64)
    wc_t = ((c_table * factor)[:, None] * IDCT_MAT).T
    w_t = jnp.concatenate([wy_t, wc_t], axis=1)           # (64, 128)

    n_y, n_c = y_comp.shape[0], cb_comp.shape[0]
    xy_t = y_comp.reshape(-1, 64).T                       # (64, My)
    xc_t = jnp.concatenate([cb_comp.reshape(-1, 64),
                            cr_comp.reshape(-1, 64)], axis=0).T   # (64, Mc)
    My, Mc = xy_t.shape[1], xc_t.shape[1]
    xt = jnp.concatenate([
        jnp.concatenate([xy_t, jnp.zeros((64, Mc), xy_t.dtype)], axis=1),
        jnp.concatenate([jnp.zeros((64, My), xc_t.dtype), xc_t], axis=1)],
        axis=0)                                           # (128, My + Mc)

    pix_t = pallas_conv_matmul(w_t, xt, jnp.full((64,), 128.0, jnp.float32))

    mcb = n_c * (h // 16) * (w // 16)
    y_img = _block_merge_T(pix_t[:, :My], n_y, h, w)
    cb_img = _block_merge_T(pix_t[:, My:My + mcb], n_c, h // 2, w // 2)
    cr_img = _block_merge_T(pix_t[:, My + mcb:], n_c, h // 2, w // 2)

    # 4:2:0 chroma upsampling (nearest neighbor, as in DiffJPEG)
    cb_up = jnp.repeat(jnp.repeat(cb_img, 2, axis=1), 2, axis=2)
    cr_up = jnp.repeat(jnp.repeat(cr_img, 2, axis=1), 2, axis=2)
    return pallas_ycbcr2rgb(y_img, cb_up, cr_up)


# ----------------------------------------------------------------------------
# Parameter init (deterministic, synthetic)
# ----------------------------------------------------------------------------
def _init_eb_params(key, C, init_scale=10.0):
    scale = init_scale ** (1.0 / (len(_EB_SIZES) - 1))
    p = jnp.zeros((C, _EB_PARAM_COLS), jnp.float32)
    keys = jax.random.split(key, len(_EB_SIZES))
    for k in range(len(_EB_SIZES) - 1):
        din, dout = _EB_SIZES[k], _EB_SIZES[k + 1]
        h_init = float(np.log(np.expm1(1.0 / scale / dout)))
        p = p.at[:, _EB_OFF_H[k]:_EB_OFF_H[k] + din * dout].set(h_init)
        b_vals = jax.random.uniform(keys[k], (C, dout), minval=-0.5, maxval=0.5)
        p = p.at[:, _EB_OFF_B[k]:_EB_OFF_B[k] + dout].set(b_vals)
        # factors stay zero (compressai init)
    return p


def init_params(key, nf=NUM_FILTERS):
    ks = jax.random.split(key, 10)

    def conv_w(k, cout, cin, ksz):
        fan_in = cin * ksz * ksz
        return jax.random.normal(k, (cout, cin, ksz, ksz), jnp.float32) / np.sqrt(fan_in)

    def deconv_w(k, cin, cout, ksz):
        fan_in = cin * ksz * ksz
        return jax.random.normal(k, (cin, cout, ksz, ksz), jnp.float32) / np.sqrt(fan_in)

    def gdn_p(c):
        return dict(gamma=0.1 * jnp.eye(c, dtype=jnp.float32),
                    beta=jnp.ones((c,), jnp.float32))

    return {
        "conv1_y": dict(w=conv_w(ks[0], nf // 3, 1, 5), b=jnp.zeros(nf // 3)),
        "conv1_cbcr": dict(w=conv_w(ks[1], nf * 2 // 3, 2, 3), b=jnp.zeros(nf * 2 // 3)),
        "conv2": dict(w=conv_w(ks[2], nf, nf, 5), b=jnp.zeros(nf)),
        "conv3": dict(w=conv_w(ks[3], nf, nf, 5), b=jnp.zeros(nf)),
        "deconv1": dict(w=deconv_w(ks[4], nf, nf, 5), b=jnp.zeros(nf)),
        "deconv2": dict(w=deconv_w(ks[5], nf, nf, 5), b=jnp.zeros(nf)),
        "deconv1_y": dict(w=deconv_w(ks[6], nf // 3, 1, 5), b=jnp.zeros(1)),
        "deconv1_cbcr": dict(w=deconv_w(ks[7], nf * 2 // 3, 2, 3), b=jnp.zeros(2)),
        "gdn1_ycbcr": gdn_p(nf),
        "gdn2": gdn_p(nf),
        "igdn2": gdn_p(nf),
        "igdn1_ycbcr": gdn_p(nf),
        "eb": _init_eb_params(ks[8], nf),
    }


# ----------------------------------------------------------------------------
# Forward pass (mirrors BLS2017Model.forward)
# ----------------------------------------------------------------------------
def block_splitting(image):
    """(1, C, H, W) -> (C, num_patches, 8, 8), matching the reference squeeze(0)."""
    B, C, H, W = image.shape
    k = 8
    p = image.reshape(B, C, H // k, k, W // k, k).transpose(0, 1, 2, 4, 3, 5)
    return p.reshape(B, C, (H // k) * (W // k), k, k)[0]


def forward(params, Y, Cb, Cr, img_ori, quantization, dimensions):
    del img_ori, dimensions  # unused by the reference compute path
    # --- cfm: conv1_y + conv1_cbcr + gdn1_ycbcr as one fused matmul ---
    x = fused_cfm(params, Y, Cb, Cr)
    # --- encode (gdn2 fused into conv2 epilogue) ---
    x = conv2d(x, params["conv2"]["w"], params["conv2"]["b"], 2, 2,
               gamma=params["gdn2"]["gamma"], beta=params["gdn2"]["beta"])
    y_lat = conv2d(x, params["conv3"]["w"], params["conv3"]["b"], 2, 2)
    # TODO(synk): EntropyBottleneck.compress (arithmetic coding) + print(out) omitted.
    y_tilde, likelihoods = pallas_entropy_bottleneck(y_lat, params["eb"])
    # --- decode (igdn2 fused into deconv1, igdn1_ycbcr fused into deconv2) ---
    x = conv_transpose2d_s2(y_tilde, params["deconv1"]["w"], params["deconv1"]["b"],
                            gamma=params["igdn2"]["gamma"],
                            beta=params["igdn2"]["beta"], inverse=True)
    x = conv_transpose2d_s2(x, params["deconv2"]["w"], params["deconv2"]["b"],
                            gamma=params["igdn1_ycbcr"]["gamma"],
                            beta=params["igdn1_ycbcr"]["beta"], inverse=True)
    # --- cpsm ---
    yc, cbc, crc = jnp.split(x, 3, axis=1)
    cbcr = jnp.concatenate([cbc, crc], axis=1)
    y_rec = conv_transpose2d_s2(yc, params["deconv1_y"]["w"], params["deconv1_y"]["b"])
    cbcr_rec = conv_transpose2d_s1(cbcr, params["deconv1_cbcr"]["w"],
                                   params["deconv1_cbcr"]["b"], padding=1)
    cb_rec, cr_rec = jnp.split(cbcr_rec, 2, axis=1)
    # --- block splitting + JPEG decompress ---
    y_comp = block_splitting(y_rec)
    cb_comp = block_splitting(cb_rec)
    cr_comp = block_splitting(cr_rec)
    h, w = y_rec.shape[2], y_rec.shape[3]
    x_out = pallas_jpeg_decompress(y_comp, cb_comp, cr_comp, quantization,
                                   JPEG_FACTOR, h, w)
    return x_out, likelihoods


# ----------------------------------------------------------------------------
if __name__ == "__main__":
    key = jax.random.PRNGKey(0)
    kY, kCb, kCr, kI = jax.random.split(key, 4)
    B, H, W = 1, 16, 32  # Y at full res, Cb/Cr subsampled 2x (4:2:0)
    Y = jax.random.uniform(kY, (B, 1, H, W), jnp.float32) * 255.0
    Cb = jax.random.uniform(kCb, (B, 1, H // 2, W // 2), jnp.float32) * 255.0
    Cr = jax.random.uniform(kCr, (B, 1, H // 2, W // 2), jnp.float32) * 255.0
    img_ori = jax.random.uniform(kI, (B, 3, H, W), jnp.float32)
    quantization = jnp.stack([
        1.0 + jnp.arange(64, dtype=jnp.float32).reshape(8, 8),
        1.0 + 2.0 * jnp.arange(64, dtype=jnp.float32).reshape(8, 8),
    ])
    dimensions = jnp.array([H, W], jnp.int32)

    params = init_params(jax.random.PRNGKey(42))

    fwd = jax.jit(forward)
    x_out, likelihoods = fwd(params, Y, Cb, Cr, img_ori, quantization, dimensions)
    jax.block_until_ready((x_out, likelihoods))

    assert x_out.shape == (B, 3, H, W), x_out.shape
    assert likelihoods.shape == (B, NUM_FILTERS, H // 8, W // 8), likelihoods.shape
    assert bool(jnp.all(jnp.isfinite(x_out))) and bool(jnp.all(jnp.isfinite(likelihoods)))
    print("KERNEL_OK")
</pallas_src>

<mosaic_0001>
module attributes {stable_mosaic.version = 11 : i64} {
  func.func @_conv_bias_gdn_kernel(%arg0: i32, %arg1: memref<48x48xbf16, #tpu.memory_space<vmem>>, %arg2: memref<48x128xbf16, #tpu.memory_space<vmem>>, %arg3: memref<48x1xf32, #tpu.memory_space<vmem>>, %arg4: memref<48x48xf32, #tpu.memory_space<vmem>>, %arg5: memref<48x1xf32, #tpu.memory_space<vmem>>, %arg6: memref<48x128xf32, #tpu.memory_space<vmem>>) attributes {dimension_semantics = [#tpu.dimension_semantics<parallel>], iteration_bounds = array<i64: 1>, scalar_prefetch = 0 : i64, scratch_operands = 0 : i64, tpu.core_type = #tpu.core_type<tc>, window_params = [{pipeline_mode = #tpu.pipeline_mode<synchronous>, transform_indices = @transform_0, window_bounds = array<i64: 48, 48>}, {transform_indices = @transform_1, window_bounds = array<i64: 48, 128>}, {pipeline_mode = #tpu.pipeline_mode<synchronous>, transform_indices = @transform_2, window_bounds = array<i64: 48, 1>}, {pipeline_mode = #tpu.pipeline_mode<synchronous>, transform_indices = @transform_3, window_bounds = array<i64: 48, 48>}, {pipeline_mode = #tpu.pipeline_mode<synchronous>, transform_indices = @transform_4, window_bounds = array<i64: 48, 1>}, {transform_indices = @transform_5, window_bounds = array<i64: 48, 128>}]} {
    %c0 = arith.constant 0 : index
    %c0_0 = arith.constant 0 : index
    %0 = vector.load %arg1[%c0, %c0_0] : memref<48x48xbf16, #tpu.memory_space<vmem>>, vector<48x48xbf16>
    %c0_1 = arith.constant 0 : index
    %c0_2 = arith.constant 0 : index
    %1 = vector.load %arg2[%c0_1, %c0_2] : memref<48x128xbf16, #tpu.memory_space<vmem>>, vector<48x128xbf16>
    %cst = arith.constant dense<0.000000e+00> : vector<48x128xf32>
    %2 = tpu.matmul %0, %1, %cst {dimension_numbers = #tpu.dot_dimension_numbers<[1], [0], [0], [1], [0, 0, 1, 1], [], []>} : vector<48x48xbf16>, vector<48x128xbf16>, vector<48x128xf32> -> vector<48x128xf32>
    %c0_3 = arith.constant 0 : index
    %c0_4 = arith.constant 0 : index
    %3 = vector.load %arg3[%c0_3, %c0_4] : memref<48x1xf32, #tpu.memory_space<vmem>>, vector<48x1xf32>
    %4 = vector.broadcast %3 : vector<48x1xf32> to vector<48x128xf32>
    %5 = arith.addf %2, %4 : vector<48x128xf32>
    %c0_5 = arith.constant 0 : index
    %c0_6 = arith.constant 0 : index
    %6 = vector.load %arg4[%c0_5, %c0_6] : memref<48x48xf32, #tpu.memory_space<vmem>>, vector<48x48xf32>
    %7 = arith.mulf %5, %5 : vector<48x128xf32>
    %cst_7 = arith.constant dense<0.000000e+00> : vector<48x128xf32>
    %8 = tpu.matmul %6, %7, %cst_7 {dimension_numbers = #tpu.dot_dimension_numbers<[1], [0], [0], [1], [0, 0, 1, 1], [], []>} : vector<48x48xf32>, vector<48x128xf32>, vector<48x128xf32> -> vector<48x128xf32>
    %c0_8 = arith.constant 0 : index
    %c0_9 = arith.constant 0 : index
    %9 = vector.load %arg5[%c0_8, %c0_9] : memref<48x1xf32, #tpu.memory_space<vmem>>, vector<48x1xf32>
    %10 = vector.broadcast %9 : vector<48x1xf32> to vector<48x128xf32>
    %11 = arith.addf %8, %10 : vector<48x128xf32>
    %12 = math.rsqrt %11 : vector<48x128xf32>
    %13 = arith.mulf %5, %12 : vector<48x128xf32>
    %c0_10 = arith.constant 0 : index
    %c0_11 = arith.constant 0 : index
    %14 = vector.load %arg6[%c0_10, %c0_11] : memref<48x128xf32, #tpu.memory_space<vmem>>, vector<48x128xf32>
    tpu.vector_store %arg6[%c0_10, %c0_11], %13 {strides = array<i32>} : memref<48x128xf32, #tpu.memory_space<vmem>>, vector<48x128xf32>,
    return
  }
  func.func @transform_0(%arg0: i32) -> (i32, i32) {
    %c0_i32 = arith.constant 0 : i32
    %c0_i32_0 = arith.constant 0 : i32
    %c0_i32_1 = arith.constant 0 : i32
    return %c0_i32, %c0_i32_0 : i32, i32
  }
  func.func @transform_1(%arg0: i32) -> (i32, i32) {
    %c0_i32 = arith.constant 0 : i32
    %c0_i32_0 = arith.constant 0 : i32
    return %c0_i32, %arg0 : i32, i32
  }
  func.func @transform_2(%arg0: i32) -> (i32, i32) {
    %c0_i32 = arith.constant 0 : i32
    %c0_i32_0 = arith.constant 0 : i32
    %c0_i32_1 = arith.constant 0 : i32
    return %c0_i32, %c0_i32_0 : i32, i32
  }
  func.func @transform_3(%arg0: i32) -> (i32, i32) {
    %c0_i32 = arith.constant 0 : i32
    %c0_i32_0 = arith.constant 0 : i32
    %c0_i32_1 = arith.constant 0 : i32
    return %c0_i32, %c0_i32_0 : i32, i32
  }
  func.func @transform_4(%arg0: i32) -> (i32, i32) {
    %c0_i32 = arith.constant 0 : i32
    %c0_i32_0 = arith.constant 0 : i32
    %c0_i32_1 = arith.constant 0 : i32
    return %c0_i32, %c0_i32_0 : i32, i32
  }
  func.func @transform_5(%arg0: i32) -> (i32, i32) {
    %c0_i32 = arith.constant 0 : i32
    %c0_i32_0 = arith.constant 0 : i32
    return %c0_i32, %arg0 : i32, i32
  }
}

module attributes {stable_mosaic.version = 11 : i64} {
  func.func @_conv_bias_gdn_kernel(%arg0: i32, %arg1: memref<48x1200xbf16, #tpu.memory_space<vmem>>, %arg2: memref<1200x128xbf16, #tpu.memory_space<vmem>>, %arg3: memref<48x1xf32, #tpu.memory_space<vmem>>, %arg4: memref<48x48xf32, #tpu.memory_space<vmem>>, %arg5: memref<48x1xf32, #tpu.memory_space<vmem>>, %arg6: memref<48x128xf32, #tpu.memory_space<vmem>>) attributes {dimension_semantics = [#tpu.dimension_semantics<parallel>], iteration_bounds = array<i64: 1>, scalar_prefetch = 0 : i64, scratch_operands = 0 : i64, tpu.core_type = #tpu.core_type<tc>, window_params = [{pipeline_mode = #tpu.pipeline_mode<synchronous>, transform_indices = @transform_0, window_bounds = array<i64: 48, 1200>}, {transform_indices = @transform_1, window_bounds = array<i64: 1200, 128>}, {pipeline_mode = #tpu.pipeline_mode<synchronous>, transform_indices = @transform_2, window_bounds = array<i64: 48, 1>}, {pipeline_mode = #tpu.pipeline_mode<synchronous>, transform_indices = @transform_3, window_bounds = array<i64: 48, 48>}, {pipeline_mode = #tpu.pipeline_mode<synchronous>, transform_indices = @transform_4, window_bounds = array<i64: 48, 1>}, {transform_indices = @transform_5, window_bounds = array<i64: 48, 128>}]} {
    %c0 = arith.constant 0 : index
    %c0_0 = arith.constant 0 : index
    %0 = vector.load %arg1[%c0, %c0_0] : memref<48x1200xbf16, #tpu.memory_space<vmem>>, vector<48x1200xbf16>
    %c0_1 = arith.constant 0 : index
    %c0_2 = arith.constant 0 : index
    %1 = vector.load %arg2[%c0_1, %c0_2] : memref<1200x128xbf16, #tpu.memory_space<vmem>>, vector<1200x128xbf16>
    %cst = arith.constant dense<0.000000e+00> : vector<48x128xf32>
    %2 = tpu.matmul %0, %1, %cst {dimension_numbers = #tpu.dot_dimension_numbers<[1], [0], [0], [1], [0, 0, 1, 1], [], []>} : vector<48x1200xbf16>, vector<1200x128xbf16>, vector<48x128xf32> -> vector<48x128xf32>
    %c0_3 = arith.constant 0 : index
    %c0_4 = arith.constant 0 : index
    %3 = vector.load %arg3[%c0_3, %c0_4] : memref<48x1xf32, #tpu.memory_space<vmem>>, vector<48x1xf32>
    %4 = vector.broadcast %3 : vector<48x1xf32> to vector<48x128xf32>
    %5 = arith.addf %2, %4 : vector<48x128xf32>
    %c0_5 = arith.constant 0 : index
    %c0_6 = arith.constant 0 : index
    %6 = vector.load %arg4[%c0_5, %c0_6] : memref<48x48xf32, #tpu.memory_space<vmem>>, vector<48x48xf32>
    %7 = arith.mulf %5, %5 : vector<48x128xf32>
    %cst_7 = arith.constant dense<0.000000e+00> : vector<48x128xf32>
    %8 = tpu.matmul %6, %7, %cst_7 {dimension_numbers = #tpu.dot_dimension_numbers<[1], [0], [0], [1], [0, 0, 1, 1], [], []>} : vector<48x48xf32>, vector<48x128xf32>, vector<48x128xf32> -> vector<48x128xf32>
    %c0_8 = arith.constant 0 : index
    %c0_9 = arith.constant 0 : index
    %9 = vector.load %arg5[%c0_8, %c0_9] : memref<48x1xf32, #tpu.memory_space<vmem>>, vector<48x1xf32>
    %10 = vector.broadcast %9 : vector<48x1xf32> to vector<48x128xf32>
    %11 = arith.addf %8, %10 : vector<48x128xf32>
    %12 = math.rsqrt %11 : vector<48x128xf32>
    %13 = arith.mulf %5, %12 : vector<48x128xf32>
    %c0_10 = arith.constant 0 : index
    %c0_11 = arith.constant 0 : index
    %14 = vector.load %arg6[%c0_10, %c0_11] : memref<48x128xf32, #tpu.memory_space<vmem>>, vector<48x128xf32>
    tpu.vector_store %arg6[%c0_10, %c0_11], %13 {strides = array<i32>} : memref<48x128xf32, #tpu.memory_space<vmem>>, vector<48x128xf32>,
    return
  }
  func.func @transform_0(%arg0: i32) -> (i32, i32) {
    %c0_i32 = arith.constant 0 : i32
    %c0_i32_0 = arith.constant 0 : i32
    %c0_i32_1 = arith.constant 0 : i32
    return %c0_i32, %c0_i32_0 : i32, i32
  }
  func.func @transform_1(%arg0: i32) -> (i32, i32) {
    %c0_i32 = arith.constant 0 : i32
    %c0_i32_0 = arith.constant 0 : i32
    return %c0_i32, %arg0 : i32, i32
  }
  func.func @transform_2(%arg0: i32) -> (i32, i32) {
    %c0_i32 = arith.constant 0 : i32
    %c0_i32_0 = arith.constant 0 : i32
    %c0_i32_1 = arith.constant 0 : i32
    return %c0_i32, %c0_i32_0 : i32, i32
  }
  func.func @transform_3(%arg0: i32) -> (i32, i32) {
    %c0_i32 = arith.constant 0 : i32
    %c0_i32_0 = arith.constant 0 : i32
    %c0_i32_1 = arith.constant 0 : i32
    return %c0_i32, %c0_i32_0 : i32, i32
  }
  func.func @transform_4(%arg0: i32) -> (i32, i32) {
    %c0_i32 = arith.constant 0 : i32
    %c0_i32_0 = arith.constant 0 : i32
    %c0_i32_1 = arith.constant 0 : i32
    return %c0_i32, %c0_i32_0 : i32, i32
  }
  func.func @transform_5(%arg0: i32) -> (i32, i32) {
    %c0_i32 = arith.constant 0 : i32
    %c0_i32_0 = arith.constant 0 : i32
    return %c0_i32, %arg0 : i32, i32
  }
}

module attributes {stable_mosaic.version = 11 : i64} {
  func.func @_conv_bias_kernel(%arg0: i32, %arg1: memref<48x1200xbf16, #tpu.memory_space<vmem>>, %arg2: memref<1200x128xbf16, #tpu.memory_space<vmem>>, %arg3: memref<48x1xf32, #tpu.memory_space<vmem>>, %arg4: memref<48x128xf32, #tpu.memory_space<vmem>>) attributes {dimension_semantics = [#tpu.dimension_semantics<parallel>], iteration_bounds = array<i64: 1>, scalar_prefetch = 0 : i64, scratch_operands = 0 : i64, tpu.core_type = #tpu.core_type<tc>, window_params = [{pipeline_mode = #tpu.pipeline_mode<synchronous>, transform_indices = @transform_0, window_bounds = array<i64: 48, 1200>}, {transform_indices = @transform_1, window_bounds = array<i64: 1200, 128>}, {pipeline_mode = #tpu.pipeline_mode<synchronous>, transform_indices = @transform_2, window_bounds = array<i64: 48, 1>}, {transform_indices = @transform_3, window_bounds = array<i64: 48, 128>}]} {
    %c0 = arith.constant 0 : index
    %c0_0 = arith.constant 0 : index
    %0 = vector.load %arg1[%c0, %c0_0] : memref<48x1200xbf16, #tpu.memory_space<vmem>>, vector<48x1200xbf16>
    %c0_1 = arith.constant 0 : index
    %c0_2 = arith.constant 0 : index
    %1 = vector.load %arg2[%c0_1, %c0_2] : memref<1200x128xbf16, #tpu.memory_space<vmem>>, vector<1200x128xbf16>
    %cst = arith.constant dense<0.000000e+00> : vector<48x128xf32>
    %2 = tpu.matmul %0, %1, %cst {dimension_numbers = #tpu.dot_dimension_numbers<[1], [0], [0], [1], [0, 0, 1, 1], [], []>} : vector<48x1200xbf16>, vector<1200x128xbf16>, vector<48x128xf32> -> vector<48x128xf32>
    %c0_3 = arith.constant 0 : index
    %c0_4 = arith.constant 0 : index
    %3 = vector.load %arg3[%c0_3, %c0_4] : memref<48x1xf32, #tpu.memory_space<vmem>>, vector<48x1xf32>
    %4 = vector.broadcast %3 : vector<48x1xf32> to vector<48x128xf32>
    %5 = arith.addf %2, %4 : vector<48x128xf32>
    %c0_5 = arith.constant 0 : index
    %c0_6 = arith.constant 0 : index
    %6 = vector.load %arg4[%c0_5, %c0_6] : memref<48x128xf32, #tpu.memory_space<vmem>>, vector<48x128xf32>
    tpu.vector_store %arg4[%c0_5, %c0_6], %5 {strides = array<i32>} : memref<48x128xf32, #tpu.memory_space<vmem>>, vector<48x128xf32>,
    return
  }
  func.func @transform_0(%arg0: i32) -> (i32, i32) {
    %c0_i32 = arith.constant 0 : i32
    %c0_i32_0 = arith.constant 0 : i32
    %c0_i32_1 = arith.constant 0 : i32
    return %c0_i32, %c0_i32_0 : i32, i32
  }
  func.func @transform_1(%arg0: i32) -> (i32, i32) {
    %c0_i32 = arith.constant 0 : i32
    %c0_i32_0 = arith.constant 0 : i32
    return %c0_i32, %arg0 : i32, i32
  }
  func.func @transform_2(%arg0: i32) -> (i32, i32) {
    %c0_i32 = arith.constant 0 : i32
    %c0_i32_0 = arith.constant 0 : i32
    %c0_i32_1 = arith.constant 0 : i32
    return %c0_i32, %c0_i32_0 : i32, i32
  }
  func.func @transform_3(%arg0: i32) -> (i32, i32) {
    %c0_i32 = arith.constant 0 : i32
    %c0_i32_0 = arith.constant 0 : i32
    return %c0_i32, %arg0 : i32, i32
  }
}

module attributes {stable_mosaic.version = 11 : i64} {
  func.func @_conv_bias_gdn_kernel(%arg0: i32, %arg1: memref<192x432xbf16, #tpu.memory_space<vmem>>, %arg2: memref<432x128xbf16, #tpu.memory_space<vmem>>, %arg3: memref<192x1xf32, #tpu.memory_space<vmem>>, %arg4: memref<192x192xf32, #tpu.memory_space<vmem>>, %arg5: memref<192x1xf32, #tpu.memory_space<vmem>>, %arg6: memref<192x128xf32, #tpu.memory_space<vmem>>) attributes {dimension_semantics = [#tpu.dimension_semantics<parallel>], iteration_bounds = array<i64: 1>, scalar_prefetch = 0 : i64, scratch_operands = 0 : i64, tpu.core_type = #tpu.core_type<tc>, window_params = [{pipeline_mode = #tpu.pipeline_mode<synchronous>, transform_indices = @transform_0, window_bounds = array<i64: 192, 432>}, {transform_indices = @transform_1, window_bounds = array<i64: 432, 128>}, {pipeline_mode = #tpu.pipeline_mode<synchronous>, transform_indices = @transform_2, window_bounds = array<i64: 192, 1>}, {pipeline_mode = #tpu.pipeline_mode<synchronous>, transform_indices = @transform_3, window_bounds = array<i64: 192, 192>}, {pipeline_mode = #tpu.pipeline_mode<synchronous>, transform_indices = @transform_4, window_bounds = array<i64: 192, 1>}, {transform_indices = @transform_5, window_bounds = array<i64: 192, 128>}]} {
    %c0 = arith.constant 0 : index
    %c0_0 = arith.constant 0 : index
    %0 = vector.load %arg1[%c0, %c0_0] : memref<192x432xbf16, #tpu.memory_space<vmem>>, vector<192x432xbf16>
    %c0_1 = arith.constant 0 : index
    %c0_2 = arith.constant 0 : index
    %1 = vector.load %arg2[%c0_1, %c0_2] : memref<432x128xbf16, #tpu.memory_space<vmem>>, vector<432x128xbf16>
    %cst = arith.constant dense<0.000000e+00> : vector<192x128xf32>
    %2 = tpu.matmul %0, %1, %cst {dimension_numbers = #tpu.dot_dimension_numbers<[1], [0], [0], [1], [0, 0, 1, 1], [], []>} : vector<192x432xbf16>, vector<432x128xbf16>, vector<192x128xf32> -> vector<192x128xf32>
    %c0_3 = arith.constant 0 : index
    %c0_4 = arith.constant 0 : index
    %3 = vector.load %arg3[%c0_3, %c0_4] : memref<192x1xf32, #tpu.memory_space<vmem>>, vector<192x1xf32>
    %4 = vector.broadcast %3 : vector<192x1xf32> to vector<192x128xf32>
    %5 = arith.addf %2, %4 : vector<192x128xf32>
    %c0_5 = arith.constant 0 : index
    %c0_6 = arith.constant 0 : index
    %6 = vector.load %arg4[%c0_5, %c0_6] : memref<192x192xf32, #tpu.memory_space<vmem>>, vector<192x192xf32>
    %7 = arith.mulf %5, %5 : vector<192x128xf32>
    %cst_7 = arith.constant dense<0.000000e+00> : vector<192x128xf32>
    %8 = tpu.matmul %6, %7, %cst_7 {dimension_numbers = #tpu.dot_dimension_numbers<[1], [0], [0], [1], [0, 0, 1, 1], [], []>} : vector<192x192xf32>, vector<192x128xf32>, vector<192x128xf32> -> vector<192x128xf32>
    %c0_8 = arith.constant 0 : index
    %c0_9 = arith.constant 0 : index
    %9 = vector.load %arg5[%c0_8, %c0_9] : memref<192x1xf32, #tpu.memory_space<vmem>>, vector<192x1xf32>
    %10 = vector.broadcast %9 : vector<192x1xf32> to vector<192x128xf32>
    %11 = arith.addf %8, %10 : vector<192x128xf32>
    %12 = math.sqrt %11 : vector<192x128xf32>
    %13 = arith.mulf %5, %12 : vector<192x128xf32>
    %c0_10 = arith.constant 0 : index
    %c0_11 = arith.constant 0 : index
    %14 = vector.load %arg6[%c0_10, %c0_11] : memref<192x128xf32, #tpu.memory_space<vmem>>, vector<192x128xf32>
    tpu.vector_store %arg6[%c0_10, %c0_11], %13 {strides = array<i32>} : memref<192x128xf32, #tpu.memory_space<vmem>>, vector<192x128xf32>,
    return
  }
  func.func @transform_0(%arg0: i32) -> (i32, i32) {
    %c0_i32 = arith.constant 0 : i32
    %c0_i32_0 = arith.constant 0 : i32
    %c0_i32_1 = arith.constant 0 : i32
    return %c0_i32, %c0_i32_0 : i32, i32
  }
  func.func @transform_1(%arg0: i32) -> (i32, i32) {
    %c0_i32 = arith.constant 0 : i32
    %c0_i32_0 = arith.constant 0 : i32
    return %c0_i32, %arg0 : i32, i32
  }
  func.func @transform_2(%arg0: i32) -> (i32, i32) {
    %c0_i32 = arith.constant 0 : i32
    %c0_i32_0 = arith.constant 0 : i32
    %c0_i32_1 = arith.constant 0 : i32
    return %c0_i32, %c0_i32_0 : i32, i32
  }
  func.func @transform_3(%arg0: i32) -> (i32, i32) {
    %c0_i32 = arith.constant 0 : i32
    %c0_i32_0 = arith.constant 0 : i32
    %c0_i32_1 = arith.constant 0 : i32
    return %c0_i32, %c0_i32_0 : i32, i32
  }
  func.func @transform_4(%arg0: i32) -> (i32, i32) {
    %c0_i32 = arith.constant 0 : i32
    %c0_i32_0 = arith.constant 0 : i32
    %c0_i32_1 = arith.constant 0 : i32
    return %c0_i32, %c0_i32_0 : i32, i32
  }
  func.func @transform_5(%arg0: i32) -> (i32, i32) {
    %c0_i32 = arith.constant 0 : i32
    %c0_i32_0 = arith.constant 0 : i32
    return %c0_i32, %arg0 : i32, i32
  }
}

module attributes {stable_mosaic.version = 11 : i64} {
  func.func @_conv_bias_kernel(%arg0: i32, %arg1: memref<8x144xbf16, #tpu.memory_space<vmem>>, %arg2: memref<144x128xbf16, #tpu.memory_space<vmem>>, %arg3: memref<8x1xf32, #tpu.memory_space<vmem>>, %arg4: memref<8x128xf32, #tpu.memory_space<vmem>>) attributes {dimension_semantics = [#tpu.dimension_semantics<parallel>], iteration_bounds = array<i64: 1>, scalar_prefetch = 0 : i64, scratch_operands = 0 : i64, tpu.core_type = #tpu.core_type<tc>, window_params = [{pipeline_mode = #tpu.pipeline_mode<synchronous>, transform_indices = @transform_0, window_bounds = array<i64: 8, 144>}, {transform_indices = @transform_1, window_bounds = array<i64: 144, 128>}, {pipeline_mode = #tpu.pipeline_mode<synchronous>, transform_indices = @transform_2, window_bounds = array<i64: 8, 1>}, {transform_indices = @transform_3, window_bounds = array<i64: 8, 128>}]} {
    %c0 = arith.constant 0 : index
    %c0_0 = arith.constant 0 : index
    %0 = vector.load %arg1[%c0, %c0_0] : memref<8x144xbf16, #tpu.memory_space<vmem>>, vector<8x144xbf16>
    %c0_1 = arith.constant 0 : index
    %c0_2 = arith.constant 0 : index
    %1 = vector.load %arg2[%c0_1, %c0_2] : memref<144x128xbf16, #tpu.memory_space<vmem>>, vector<144x128xbf16>
    %cst = arith.constant dense<0.000000e+00> : vector<8x128xf32>
    %2 = tpu.matmul %0, %1, %cst {dimension_numbers = #tpu.dot_dimension_numbers<[1], [0], [0], [1], [0, 0, 1, 1], [], []>} : vector<8x144xbf16>, vector<144x128xbf16>, vector<8x128xf32> -> vector<8x128xf32>
    %c0_3 = arith.constant 0 : index
    %c0_4 = arith.constant 0 : index
    %3 = vector.load %arg3[%c0_3, %c0_4] : memref<8x1xf32, #tpu.memory_space<vmem>>, vector<8x1xf32>
    %4 = vector.broadcast %3 : vector<8x1xf32> to vector<8x128xf32>
    %5 = arith.addf %2, %4 : vector<8x128xf32>
    %c0_5 = arith.constant 0 : index
    %c0_6 = arith.constant 0 : index
    %6 = vector.load %arg4[%c0_5, %c0_6] : memref<8x128xf32, #tpu.memory_space<vmem>>, vector<8x128xf32>
    tpu.vector_store %arg4[%c0_5, %c0_6], %5 {strides = array<i32>} : memref<8x128xf32, #tpu.memory_space<vmem>>, vector<8x128xf32>,
    return
  }
  func.func @transform_0(%arg0: i32) -> (i32, i32) {
    %c0_i32 = arith.constant 0 : i32
    %c0_i32_0 = arith.constant 0 : i32
    %c0_i32_1 = arith.constant 0 : i32
    return %c0_i32, %c0_i32_0 : i32, i32
  }
  func.func @transform_1(%arg0: i32) -> (i32, i32) {
    %c0_i32 = arith.constant 0 : i32
    %c0_i32_0 = arith.constant 0 : i32
    return %c0_i32, %arg0 : i32, i32
  }
  func.func @transform_2(%arg0: i32) -> (i32, i32) {
    %c0_i32 = arith.constant 0 : i32
    %c0_i32_0 = arith.constant 0 : i32
    %c0_i32_1 = arith.constant 0 : i32
    return %c0_i32, %c0_i32_0 : i32, i32
  }
  func.func @transform_3(%arg0: i32) -> (i32, i32) {
    %c0_i32 = arith.constant 0 : i32
    %c0_i32_0 = arith.constant 0 : i32
    return %c0_i32, %arg0 : i32, i32
  }
}

module attributes {stable_mosaic.version = 11 : i64} {
  func.func @_conv_bias_kernel(%arg0: i32, %arg1: memref<8x288xbf16, #tpu.memory_space<vmem>>, %arg2: memref<288x128xbf16, #tpu.memory_space<vmem>>, %arg3: memref<8x1xf32, #tpu.memory_space<vmem>>, %arg4: memref<8x128xf32, #tpu.memory_space<vmem>>) attributes {dimension_semantics = [#tpu.dimension_semantics<parallel>], iteration_bounds = array<i64: 1>, scalar_prefetch = 0 : i64, scratch_operands = 0 : i64, tpu.core_type = #tpu.core_type<tc>, window_params = [{pipeline_mode = #tpu.pipeline_mode<synchronous>, transform_indices = @transform_0, window_bounds = array<i64: 8, 288>}, {transform_indices = @transform_1, window_bounds = array<i64: 288, 128>}, {pipeline_mode = #tpu.pipeline_mode<synchronous>, transform_indices = @transform_2, window_bounds = array<i64: 8, 1>}, {transform_indices = @transform_3, window_bounds = array<i64: 8, 128>}]} {
    %c0 = arith.constant 0 : index
    %c0_0 = arith.constant 0 : index
    %0 = vector.load %arg1[%c0, %c0_0] : memref<8x288xbf16, #tpu.memory_space<vmem>>, vector<8x288xbf16>
    %c0_1 = arith.constant 0 : index
    %c0_2 = arith.constant 0 : index
    %1 = vector.load %arg2[%c0_1, %c0_2] : memref<288x128xbf16, #tpu.memory_space<vmem>>, vector<288x128xbf16>
    %cst = arith.constant dense<0.000000e+00> : vector<8x128xf32>
    %2 = tpu.matmul %0, %1, %cst {dimension_numbers = #tpu.dot_dimension_numbers<[1], [0], [0], [1], [0, 0, 1, 1], [], []>} : vector<8x288xbf16>, vector<288x128xbf16>, vector<8x128xf32> -> vector<8x128xf32>
    %c0_3 = arith.constant 0 : index
    %c0_4 = arith.constant 0 : index
    %3 = vector.load %arg3[%c0_3, %c0_4] : memref<8x1xf32, #tpu.memory_space<vmem>>, vector<8x1xf32>
    %4 = vector.broadcast %3 : vector<8x1xf32> to vector<8x128xf32>
    %5 = arith.addf %2, %4 : vector<8x128xf32>
    %c0_5 = arith.constant 0 : index
    %c0_6 = arith.constant 0 : index
    %6 = vector.load %arg4[%c0_5, %c0_6] : memref<8x128xf32, #tpu.memory_space<vmem>>, vector<8x128xf32>
    tpu.vector_store %arg4[%c0_5, %c0_6], %5 {strides = array<i32>} : memref<8x128xf32, #tpu.memory_space<vmem>>, vector<8x128xf32>,
    return
  }
  func.func @transform_0(%arg0: i32) -> (i32, i32) {
    %c0_i32 = arith.constant 0 : i32
    %c0_i32_0 = arith.constant 0 : i32
    %c0_i32_1 = arith.constant 0 : i32
    return %c0_i32, %c0_i32_0 : i32, i32
  }
  func.func @transform_1(%arg0: i32) -> (i32, i32) {
    %c0_i32 = arith.constant 0 : i32
    %c0_i32_0 = arith.constant 0 : i32
    return %c0_i32, %arg0 : i32, i32
  }
  func.func @transform_2(%arg0: i32) -> (i32, i32) {
    %c0_i32 = arith.constant 0 : i32
    %c0_i32_0 = arith.constant 0 : i32
    %c0_i32_1 = arith.constant 0 : i32
    return %c0_i32, %c0_i32_0 : i32, i32
  }
  func.func @transform_3(%arg0: i32) -> (i32, i32) {
    %c0_i32 = arith.constant 0 : i32
    %c0_i32_0 = arith.constant 0 : i32
    return %c0_i32, %arg0 : i32, i32
  }
}

module attributes {stable_mosaic.version = 11 : i64} {
  func.func @_conv_bias_kernel(%arg0: i32, %arg1: memref<64x128xbf16, #tpu.memory_space<vmem>>, %arg2: memref<128x128xbf16, #tpu.memory_space<vmem>>, %arg3: memref<64x1xf32, #tpu.memory_space<vmem>>, %arg4: memref<64x128xf32, #tpu.memory_space<vmem>>) attributes {dimension_semantics = [#tpu.dimension_semantics<parallel>], iteration_bounds = array<i64: 1>, scalar_prefetch = 0 : i64, scratch_operands = 0 : i64, tpu.core_type = #tpu.core_type<tc>, window_params = [{pipeline_mode = #tpu.pipeline_mode<synchronous>, transform_indices = @transform_0, window_bounds = array<i64: 64, 128>}, {transform_indices = @transform_1, window_bounds = array<i64: 128, 128>}, {pipeline_mode = #tpu.pipeline_mode<synchronous>, transform_indices = @transform_2, window_bounds = array<i64: 64, 1>}, {transform_indices = @transform_3, window_bounds = array<i64: 64, 128>}]} {
    %c0 = arith.constant 0 : index
    %c0_0 = arith.constant 0 : index
    %0 = vector.load %arg1[%c0, %c0_0] : memref<64x128xbf16, #tpu.memory_space<vmem>>, vector<64x128xbf16>
    %c0_1 = arith.constant 0 : index
    %c0_2 = arith.constant 0 : index
    %1 = vector.load %arg2[%c0_1, %c0_2] : memref<128x128xbf16, #tpu.memory_space<vmem>>, vector<128x128xbf16>
    %cst = arith.constant dense<0.000000e+00> : vector<64x128xf32>
    %2 = tpu.matmul %0, %1, %cst {dimension_numbers = #tpu.dot_dimension_numbers<[1], [0], [0], [1], [0, 0, 1, 1], [], []>} : vector<64x128xbf16>, vector<128x128xbf16>, vector<64x128xf32> -> vector<64x128xf32>
    %c0_3 = arith.constant 0 : index
    %c0_4 = arith.constant 0 : index
    %3 = vector.load %arg3[%c0_3, %c0_4] : memref<64x1xf32, #tpu.memory_space<vmem>>, vector<64x1xf32>
    %4 = vector.broadcast %3 : vector<64x1xf32> to vector<64x128xf32>
    %5 = arith.addf %2, %4 : vector<64x128xf32>
    %c0_5 = arith.constant 0 : index
    %c0_6 = arith.constant 0 : index
    %6 = vector.load %arg4[%c0_5, %c0_6] : memref<64x128xf32, #tpu.memory_space<vmem>>, vector<64x128xf32>
    tpu.vector_store %arg4[%c0_5, %c0_6], %5 {strides = array<i32>} : memref<64x128xf32, #tpu.memory_space<vmem>>, vector<64x128xf32>,
    return
  }
  func.func @transform_0(%arg0: i32) -> (i32, i32) {
    %c0_i32 = arith.constant 0 : i32
    %c0_i32_0 = arith.constant 0 : i32
    %c0_i32_1 = arith.constant 0 : i32
    return %c0_i32, %c0_i32_0 : i32, i32
  }
  func.func @transform_1(%arg0: i32) -> (i32, i32) {
    %c0_i32 = arith.constant 0 : i32
    %c0_i32_0 = arith.constant 0 : i32
    return %c0_i32, %arg0 : i32, i32
  }
  func.func @transform_2(%arg0: i32) -> (i32, i32) {
    %c0_i32 = arith.constant 0 : i32
    %c0_i32_0 = arith.constant 0 : i32
    %c0_i32_1 = arith.constant 0 : i32
    return %c0_i32, %c0_i32_0 : i32, i32
  }
  func.func @transform_3(%arg0: i32) -> (i32, i32) {
    %c0_i32 = arith.constant 0 : i32
    %c0_i32_0 = arith.constant 0 : i32
    return %c0_i32, %arg0 : i32, i32
  }
}

module attributes {stable_mosaic.version = 11 : i64} {
  func.func @_ycbcr2rgb_kernel(%arg0: i32, %arg1: memref<8x512xf32, #tpu.memory_space<vmem>>, %arg2: memref<8x512xf32, #tpu.memory_space<vmem>>, %arg3: memref<8x512xf32, #tpu.memory_space<vmem>>, %arg4: memref<8x512xf32, #tpu.memory_space<vmem>>, %arg5: memref<8x512xf32, #tpu.memory_space<vmem>>, %arg6: memref<8x512xf32, #tpu.memory_space<vmem>>) attributes {dimension_semantics = [#tpu.dimension_semantics<parallel>], iteration_bounds = array<i64: 1>, scalar_prefetch = 0 : i64, scratch_operands = 0 : i64, tpu.core_type = #tpu.core_type<tc>, window_params = [{transform_indices = @transform_0, window_bounds = array<i64: 8, 512>}, {transform_indices = @transform_1, window_bounds = array<i64: 8, 512>}, {transform_indices = @transform_2, window_bounds = array<i64: 8, 512>}, {transform_indices = @transform_3, window_bounds = array<i64: 8, 512>}, {transform_indices = @transform_4, window_bounds = array<i64: 8, 512>}, {transform_indices = @transform_5, window_bounds = array<i64: 8, 512>}]} {
    %c0 = arith.constant 0 : index
    %c0_0 = arith.constant 0 : index
    %0 = vector.load %arg1[%c0, %c0_0] : memref<8x512xf32, #tpu.memory_space<vmem>>, vector<8x512xf32>
    %c0_1 = arith.constant 0 : index
    %c0_2 = arith.constant 0 : index
    %1 = vector.load %arg2[%c0_1, %c0_2] : memref<8x512xf32, #tpu.memory_space<vmem>>, vector<8x512xf32>
    %cst = arith.constant 1.280000e+02 : f32
    %2 = vector.broadcast %cst : f32 to vector<8x512xf32>
    %3 = arith.subf %1, %2 : vector<8x512xf32>
    %c0_3 = arith.constant 0 : index
    %c0_4 = arith.constant 0 : index
    %4 = vector.load %arg3[%c0_3, %c0_4] : memref<8x512xf32, #tpu.memory_space<vmem>>, vector<8x512xf32>
    %cst_5 = arith.constant 1.280000e+02 : f32
    %5 = vector.broadcast %cst_5 : f32 to vector<8x512xf32>
    %6 = arith.subf %4, %5 : vector<8x512xf32>
    %cst_6 = arith.constant 1.402000e+00 : f32
    %7 = vector.broadcast %cst_6 : f32 to vector<8x512xf32>
    %8 = arith.mulf %7, %6 : vector<8x512xf32>
    %9 = arith.addf %0, %8 : vector<8x512xf32>
    %cst_7 = arith.constant 0.000000e+00 : f32
    %cst_8 = arith.constant 2.550000e+02 : f32
    %10 = vector.broadcast %cst_7 : f32 to vector<8x512xf32>
    %11 = arith.maximumf %10, %9 : vector<8x512xf32>
    %12 = vector.broadcast %cst_8 : f32 to vector<8x512xf32>
    %13 = arith.minimumf %12, %11 : vector<8x512xf32>
    %cst_9 = arith.constant 0.00392156886 : f32
    %14 = vector.broadcast %cst_9 : f32 to vector<8x512xf32>
    %15 = arith.mulf %13, %14 : vector<8x512xf32>
    %c0_10 = arith.constant 0 : index
    %c0_11 = arith.constant 0 : index
    %16 = vector.load %arg4[%c0_10, %c0_11] : memref<8x512xf32, #tpu.memory_space<vmem>>, vector<8x512xf32>
    tpu.vector_store %arg4[%c0_10, %c0_11], %15 {strides = array<i32>} : memref<8x512xf32, #tpu.memory_space<vmem>>, vector<8x512xf32>,
    %cst_12 = arith.constant 3.441360e-01 : f32
    %17 = vector.broadcast %cst_12 : f32 to vector<8x512xf32>
    %18 = arith.mulf %17, %3 : vector<8x512xf32>
    %19 = arith.subf %0, %18 : vector<8x512xf32>
    %cst_13 = arith.constant 7.141360e-01 : f32
    %20 = vector.broadcast %cst_13 : f32 to vector<8x512xf32>
    %21 = arith.mulf %20, %6 : vector<8x512xf32>
    %22 = arith.subf %19, %21 : vector<8x512xf32>
    %cst_14 = arith.constant 0.000000e+00 : f32
    %cst_15 = arith.constant 2.550000e+02 : f32
    %23 = vector.broadcast %cst_14 : f32 to vector<8x512xf32>
    %24 = arith.maximumf %23, %22 : vector<8x512xf32>
    %25 = vector.broadcast %cst_15 : f32 to vector<8x512xf32>
    %26 = arith.minimumf %25, %24 : vector<8x512xf32>
    %cst_16 = arith.constant 0.00392156886 : f32
    %27 = vector.broadcast %cst_16 : f32 to vector<8x512xf32>
    %28 = arith.mulf %26, %27 : vector<8x512xf32>
    %c0_17 = arith.constant 0 : index
    %c0_18 = arith.constant 0 : index
    %29 = vector.load %arg5[%c0_17, %c0_18] : memref<8x512xf32, #tpu.memory_space<vmem>>, vector<8x512xf32>
    tpu.vector_store %arg5[%c0_17, %c0_18], %28 {strides = array<i32>} : memref<8x512xf32, #tpu.memory_space<vmem>>, vector<8x512xf32>,
    %cst_19 = arith.constant 1.772000e+00 : f32
    %30 = vector.broadcast %cst_19 : f32 to vector<8x512xf32>
    %31 = arith.mulf %30, %3 : vector<8x512xf32>
    %32 = arith.addf %0, %31 : vector<8x512xf32>
    %cst_20 = arith.constant 0.000000e+00 : f32
    %cst_21 = arith.constant 2.550000e+02 : f32
    %33 = vector.broadcast %cst_20 : f32 to vector<8x512xf32>
    %34 = arith.maximumf %33, %32 : vector<8x512xf32>
    %35 = vector.broadcast %cst_21 : f32 to vector<8x512xf32>
    %36 = arith.minimumf %35, %34 : vector<8x512xf32>
    %cst_22 = arith.constant 0.00392156886 : f32
    %37 = vector.broadcast %cst_22 : f32 to vector<8x512xf32>
    %38 = arith.mulf %36, %37 : vector<8x512xf32>
    %c0_23 = arith.constant 0 : index
    %c0_24 = arith.constant 0 : index
    %39 = vector.load %arg6[%c0_23, %c0_24] : memref<8x512xf32, #tpu.memory_space<vmem>>, vector<8x512xf32>
    tpu.vector_store %arg6[%c0_23, %c0_24], %38 {strides = array<i32>} : memref<8x512xf32, #tpu.memory_space<vmem>>, vector<8x512xf32>,
    return
  }
  func.func @transform_0(%arg0: i32) -> (i32, i32) {
    %c0_i32 = arith.constant 0 : i32
    %c0_i32_0 = arith.constant 0 : i32
    return %arg0, %c0_i32 : i32, i32
  }
  func.func @transform_1(%arg0: i32) -> (i32, i32) {
    %c0_i32 = arith.constant 0 : i32
    %c0_i32_0 = arith.constant 0 : i32
    return %arg0, %c0_i32 : i32, i32
  }
  func.func @transform_2(%arg0: i32) -> (i32, i32) {
    %c0_i32 = arith.constant 0 : i32
    %c0_i32_0 = arith.constant 0 : i32
    return %arg0, %c0_i32 : i32, i32
  }
  func.func @transform_3(%arg0: i32) -> (i32, i32) {
    %c0_i32 = arith.constant 0 : i32
    %c0_i32_0 = arith.constant 0 : i32
    return %arg0, %c0_i32 : i32, i32
  }
  func.func @transform_4(%arg0: i32) -> (i32, i32) {
    %c0_i32 = arith.constant 0 : i32
    %c0_i32_0 = arith.constant 0 : i32
    return %arg0, %c0_i32 : i32, i32
  }
  func.func @transform_5(%arg0: i32) -> (i32, i32) {
    %c0_i32 = arith.constant 0 : i32
    %c0_i32_0 = arith.constant 0 : i32
    return %arg0, %c0_i32 : i32, i32
  }
}

module attributes {stable_mosaic.version = 11 : i64} {
  func.func @_eb_kernel(%arg0: i32, %arg1: memref<48x128xf32, #tpu.memory_space<vmem>>, %arg2: memref<96x58xf32, #tpu.memory_space<vmem>>, %arg3: memref<48x128xf32, #tpu.memory_space<vmem>>) attributes {dimension_semantics = [#tpu.dimension_semantics<parallel>], iteration_bounds = array<i64: 1>, scalar_prefetch = 0 : i64, scratch_operands = 0 : i64, tpu.core_type = #tpu.core_type<tc>, window_params = [{transform_indices = @transform_0, window_bounds = array<i64: 48, 128>}, {pipeline_mode = #tpu.pipeline_mode<synchronous>, transform_indices = @transform_1, window_bounds = array<i64: 96, 58>}, {transform_indices = @transform_2, window_bounds = array<i64: 48, 128>}]} {
    %c0 = arith.constant 0 : index
    %c0_0 = arith.constant 0 : index
    %0 = vector.load %arg1[%c0, %c0_0] : memref<48x128xf32, #tpu.memory_space<vmem>>, vector<48x128xf32>
    %cst = arith.constant 5.000000e-01 : f32
    %1 = vector.broadcast %cst : f32 to vector<48x128xf32>
    %2 = arith.addf %0, %1 : vector<48x128xf32>
    %cst_1 = arith.constant 5.000000e-01 : f32
    %3 = vector.broadcast %cst_1 : f32 to vector<48x128xf32>
    %4 = arith.subf %0, %3 : vector<48x128xf32>
    %5 = tpu.concatenate %2, %4 in 0 : vector<48x128xf32>, vector<48x128xf32> -> vector<96x128xf32>
    %c0_2 = arith.constant 0 : index
    %c3 = arith.constant 3 : index
    %6 = vector.load %arg2[%c0_2, %c3] : memref<96x58xf32, #tpu.memory_space<vmem>>, vector<96x1xf32>
    %c0_3 = arith.constant 0 : index
    %c0_4 = arith.constant 0 : index
    %7 = vector.load %arg2[%c0_3, %c0_4] : memref<96x58xf32, #tpu.memory_space<vmem>>, vector<96x1xf32>
    %8 = vector.broadcast %7 : vector<96x1xf32> to vector<96x128xf32>
    %9 = arith.mulf %8, %5 : vector<96x128xf32>
    %10 = vector.broadcast %6 : vector<96x1xf32> to vector<96x128xf32>
    %11 = arith.addf %10, %9 : vector<96x128xf32>
    %c0_5 = arith.constant 0 : index
    %c4 = arith.constant 4 : index
    %12 = vector.load %arg2[%c0_5, %c4] : memref<96x58xf32, #tpu.memory_space<vmem>>, vector<96x1xf32>
    %c0_6 = arith.constant 0 : index
    %c1 = arith.constant 1 : index
    %13 = vector.load %arg2[%c0_6, %c1] : memref<96x58xf32, #tpu.memory_space<vmem>>, vector<96x1xf32>
    %14 = vector.broadcast %13 : vector<96x1xf32> to vector<96x128xf32>
    %15 = arith.mulf %14, %5 : vector<96x128xf32>
    %16 = vector.broadcast %12 : vector<96x1xf32> to vector<96x128xf32>
    %17 = arith.addf %16, %15 : vector<96x128xf32>
    %c0_7 = arith.constant 0 : index
    %c5 = arith.constant 5 : index
    %18 = vector.load %arg2[%c0_7, %c5] : memref<96x58xf32, #tpu.memory_space<vmem>>, vector<96x1xf32>
    %c0_8 = arith.constant 0 : index
    %c2 = arith.constant 2 : index
    %19 = vector.load %arg2[%c0_8, %c2] : memref<96x58xf32, #tpu.memory_space<vmem>>, vector<96x1xf32>
    %20 = vector.broadcast %19 : vector<96x1xf32> to vector<96x128xf32>
    %21 = arith.mulf %20, %5 : vector<96x128xf32>
    %22 = vector.broadcast %18 : vector<96x1xf32> to vector<96x128xf32>
    %23 = arith.addf %22, %21 : vector<96x128xf32>
    %c0_9 = arith.constant 0 : index
    %c6 = arith.constant 6 : index
    %24 = vector.load %arg2[%c0_9, %c6] : memref<96x58xf32, #tpu.memory_space<vmem>>, vector<96x1xf32>
    %25 = math.tanh %11 : vector<96x128xf32>
    %26 = vector.broadcast %24 : vector<96x1xf32> to vector<96x128xf32>
    %27 = arith.mulf %26, %25 : vector<96x128xf32>
    %28 = arith.addf %11, %27 : vector<96x128xf32>
    %c0_10 = arith.constant 0 : index
    %c7 = arith.constant 7 : index
    %29 = vector.load %arg2[%c0_10, %c7] : memref<96x58xf32, #tpu.memory_space<vmem>>, vector<96x1xf32>
    %30 = math.tanh %17 : vector<96x128xf32>
    %31 = vector.broadcast %29 : vector<96x1xf32> to vector<96x128xf32>
    %32 = arith.mulf %31, %30 : vector<96x128xf32>
    %33 = arith.addf %17, %32 : vector<96x128xf32>
    %c0_11 = arith.constant 0 : index
    %c8 = arith.constant 8 : index
    %34 = vector.load %arg2[%c0_11, %c8] : memref<96x58xf32, #tpu.memory_space<vmem>>, vector<96x1xf32>
    %35 = math.tanh %23 : vector<96x128xf32>
    %36 = vector.broadcast %34 : vector<96x1xf32> to vector<96x128xf32>
    %37 = arith.mulf %36, %35 : vector<96x128xf32>
    %38 = arith.addf %23, %37 : vector<96x128xf32>
    %c0_12 = arith.constant 0 : index
    %c18 = arith.constant 18 : index
    %39 = vector.load %arg2[%c0_12, %c18] : memref<96x58xf32, #tpu.memory_space<vmem>>, vector<96x1xf32>
    %c0_13 = arith.constant 0 : index
    %c9 = arith.constant 9 : index
    %40 = vector.load %arg2[%c0_13, %c9] : memref<96x58xf32, #tpu.memory_space<vmem>>, vector<96x1xf32>
    %41 = vector.broadcast %40 : vector<96x1xf32> to vector<96x128xf32>
    %42 = arith.mulf %41, %28 : vector<96x128xf32>
    %43 = vector.broadcast %39 : vector<96x1xf32> to vector<96x128xf32>
    %44 = arith.addf %43, %42 : vector<96x128xf32>
    %c0_14 = arith.constant 0 : index
    %c10 = arith.constant 10 : index
    %45 = vector.load %arg2[%c0_14, %c10] : memref<96x58xf32, #tpu.memory_space<vmem>>, vector<96x1xf32>
    %46 = vector.broadcast %45 : vector<96x1xf32> to vector<96x128xf32>
    %47 = arith.mulf %46, %33 : vector<96x128xf32>
    %48 = arith.addf %44, %47 : vector<96x128xf32>
    %c0_15 = arith.constant 0 : index
    %c11 = arith.constant 11 : index
    %49 = vector.load %arg2[%c0_15, %c11] : memref<96x58xf32, #tpu.memory_space<vmem>>, vector<96x1xf32>
    %50 = vector.broadcast %49 : vector<96x1xf32> to vector<96x128xf32>
    %51 = arith.mulf %50, %38 : vector<96x128xf32>
    %52 = arith.addf %48, %51 : vector<96x128xf32>
    %c0_16 = arith.constant 0 : index
    %c19 = arith.constant 19 : index
    %53 = vector.load %arg2[%c0_16, %c19] : memref<96x58xf32, #tpu.memory_space<vmem>>, vector<96x1xf32>
    %c0_17 = arith.constant 0 : index
    %c12 = arith.constant 12 : index
    %54 = vector.load %arg2[%c0_17, %c12] : memref<96x58xf32, #tpu.memory_space<vmem>>, vector<96x1xf32>
    %55 = vector.broadcast %54 : vector<96x1xf32> to vector<96x128xf32>
    %56 = arith.mulf %55, %28 : vector<96x128xf32>
    %57 = vector.broadcast %53 : vector<96x1xf32> to vector<96x128xf32>
    %58 = arith.addf %57, %56 : vector<96x128xf32>
    %c0_18 = arith.constant 0 : index
    %c13 = arith.constant 13 : index
    %59 = vector.load %arg2[%c0_18, %c13] : memref<96x58xf32, #tpu.memory_space<vmem>>, vector<96x1xf32>
    %60 = vector.broadcast %59 : vector<96x1xf32> to vector<96x128xf32>
    %61 = arith.mulf %60, %33 : vector<96x128xf32>
    %62 = arith.addf %58, %61 : vector<96x128xf32>
    %c0_19 = arith.constant 0 : index
    %c14 = arith.constant 14 : index
    %63 = vector.load %arg2[%c0_19, %c14] : memref<96x58xf32, #tpu.memory_space<vmem>>, vector<96x1xf32>
    %64 = vector.broadcast %63 : vector<96x1xf32> to vector<96x128xf32>
    %65 = arith.mulf %64, %38 : vector<96x128xf32>
    %66 = arith.addf %62, %65 : vector<96x128xf32>
    %c0_20 = arith.constant 0 : index
    %c20 = arith.constant 20 : index
    %67 = vector.load %arg2[%c0_20, %c20] : memref<96x58xf32, #tpu.memory_space<vmem>>, vector<96x1xf32>
    %c0_21 = arith.constant 0 : index
    %c15 = arith.constant 15 : index
    %68 = vector.load %arg2[%c0_21, %c15] : memref<96x58xf32, #tpu.memory_space<vmem>>, vector<96x1xf32>
    %69 = vector.broadcast %68 : vector<96x1xf32> to vector<96x128xf32>
    %70 = arith.mulf %69, %28 : vector<96x128xf32>
    %71 = vector.broadcast %67 : vector<96x1xf32> to vector<96x128xf32>
    %72 = arith.addf %71, %70 : vector<96x128xf32>
    %c0_22 = arith.constant 0 : index
    %c16 = arith.constant 16 : index
    %73 = vector.load %arg2[%c0_22, %c16] : memref<96x58xf32, #tpu.memory_space<vmem>>, vector<96x1xf32>
    %74 = vector.broadcast %73 : vector<96x1xf32> to vector<96x128xf32>
    %75 = arith.mulf %74, %33 : vector<96x128xf32>
    %76 = arith.addf %72, %75 : vector<96x128xf32>
    %c0_23 = arith.constant 0 : index
    %c17 = arith.constant 17 : index
    %77 = vector.load %arg2[%c0_23, %c17] : memref<96x58xf32, #tpu.memory_space<vmem>>, vector<96x1xf32>
    %78 = vector.broadcast %77 : vector<96x1xf32> to vector<96x128xf32>
    %79 = arith.mulf %78, %38 : vector<96x128xf32>
    %80 = arith.addf %76, %79 : vector<96x128xf32>
    %c0_24 = arith.constant 0 : index
    %c21 = arith.constant 21 : index
    %81 = vector.load %arg2[%c0_24, %c21] : memref<96x58xf32, #tpu.memory_space<vmem>>, vector<96x1xf32>
    %82 = math.tanh %52 : vector<96x128xf32>
    %83 = vector.broadcast %81 : vector<96x1xf32> to vector<96x128xf32>
    %84 = arith.mulf %83, %82 : vector<96x128xf32>
    %85 = arith.addf %52, %84 : vector<96x128xf32>
    %c0_25 = arith.constant 0 : index
    %c22 = arith.constant 22 : index
    %86 = vector.load %arg2[%c0_25, %c22] : memref<96x58xf32, #tpu.memory_space<vmem>>, vector<96x1xf32>
    %87 = math.tanh %66 : vector<96x128xf32>
    %88 = vector.broadcast %86 : vector<96x1xf32> to vector<96x128xf32>
    %89 = arith.mulf %88, %87 : vector<96x128xf32>
    %90 = arith.addf %66, %89 : vector<96x128xf32>
    %c0_26 = arith.constant 0 : index
    %c23 = arith.constant 23 : index
    %91 = vector.load %arg2[%c0_26, %c23] : memref<96x58xf32, #tpu.memory_space<vmem>>, vector<96x1xf32>
    %92 = math.tanh %80 : vector<96x128xf32>
    %93 = vector.broadcast %91 : vector<96x1xf32> to vector<96x128xf32>
    %94 = arith.mulf %93, %92 : vector<96x128xf32>
    %95 = arith.addf %80, %94 : vector<96x128xf32>
    %c0_27 = arith.constant 0 : index
    %c33 = arith.constant 33 : index
    %96 = vector.load %arg2[%c0_27, %c33] : memref<96x58xf32, #tpu.memory_space<vmem>>, vector<96x1xf32>
    %c0_28 = arith.constant 0 : index
    %c24 = arith.constant 24 : index
    %97 = vector.load %arg2[%c0_28, %c24] : memref<96x58xf32, #tpu.memory_space<vmem>>, vector<96x1xf32>
    %98 = vector.broadcast %97 : vector<96x1xf32> to vector<96x128xf32>
    %99 = arith.mulf %98, %85 : vector<96x128xf32>
    %100 = vector.broadcast %96 : vector<96x1xf32> to vector<96x128xf32>
    %101 = arith.addf %100, %99 : vector<96x128xf32>
    %c0_29 = arith.constant 0 : index
    %c25 = arith.constant 25 : index
    %102 = vector.load %arg2[%c0_29, %c25] : memref<96x58xf32, #tpu.memory_space<vmem>>, vector<96x1xf32>
    %103 = vector.broadcast %102 : vector<96x1xf32> to vector<96x128xf32>
    %104 = arith.mulf %103, %90 : vector<96x128xf32>
    %105 = arith.addf %101, %104 : vector<96x128xf32>
    %c0_30 = arith.constant 0 : index
    %c26 = arith.constant 26 : index
    %106 = vector.load %arg2[%c0_30, %c26] : memref<96x58xf32, #tpu.memory_space<vmem>>, vector<96x1xf32>
    %107 = vector.broadcast %106 : vector<96x1xf32> to vector<96x128xf32>
    %108 = arith.mulf %107, %95 : vector<96x128xf32>
    %109 = arith.addf %105, %108 : vector<96x128xf32>
    %c0_31 = arith.constant 0 : index
    %c34 = arith.constant 34 : index
    %110 = vector.load %arg2[%c0_31, %c34] : memref<96x58xf32, #tpu.memory_space<vmem>>, vector<96x1xf32>
    %c0_32 = arith.constant 0 : index
    %c27 = arith.constant 27 : index
    %111 = vector.load %arg2[%c0_32, %c27] : memref<96x58xf32, #tpu.memory_space<vmem>>, vector<96x1xf32>
    %112 = vector.broadcast %111 : vector<96x1xf32> to vector<96x128xf32>
    %113 = arith.mulf %112, %85 : vector<96x128xf32>
    %114 = vector.broadcast %110 : vector<96x1xf32> to vector<96x128xf32>
    %115 = arith.addf %114, %113 : vector<96x128xf32>
    %c0_33 = arith.constant 0 : index
    %c28 = arith.constant 28 : index
    %116 = vector.load %arg2[%c0_33, %c28] : memref<96x58xf32, #tpu.memory_space<vmem>>, vector<96x1xf32>
    %117 = vector.broadcast %116 : vector<96x1xf32> to vector<96x128xf32>
    %118 = arith.mulf %117, %90 : vector<96x128xf32>
    %119 = arith.addf %115, %118 : vector<96x128xf32>
    %c0_34 = arith.constant 0 : index
    %c29 = arith.constant 29 : index
    %120 = vector.load %arg2[%c0_34, %c29] : memref<96x58xf32, #tpu.memory_space<vmem>>, vector<96x1xf32>
    %121 = vector.broadcast %120 : vector<96x1xf32> to vector<96x128xf32>
    %122 = arith.mulf %121, %95 : vector<96x128xf32>
    %123 = arith.addf %119, %122 : vector<96x128xf32>
    %c0_35 = arith.constant 0 : index
    %c35 = arith.constant 35 : index
    %124 = vector.load %arg2[%c0_35, %c35] : memref<96x58xf32, #tpu.memory_space<vmem>>, vector<96x1xf32>
    %c0_36 = arith.constant 0 : index
    %c30 = arith.constant 30 : index
    %125 = vector.load %arg2[%c0_36, %c30] : memref<96x58xf32, #tpu.memory_space<vmem>>, vector<96x1xf32>
    %126 = vector.broadcast %125 : vector<96x1xf32> to vector<96x128xf32>
    %127 = arith.mulf %126, %85 : vector<96x128xf32>
    %128 = vector.broadcast %124 : vector<96x1xf32> to vector<96x128xf32>
    %129 = arith.addf %128, %127 : vector<96x128xf32>
    %c0_37 = arith.constant 0 : index
    %c31 = arith.constant 31 : index
    %130 = vector.load %arg2[%c0_37, %c31] : memref<96x58xf32, #tpu.memory_space<vmem>>, vector<96x1xf32>
    %131 = vector.broadcast %130 : vector<96x1xf32> to vector<96x128xf32>
    %132 = arith.mulf %131, %90 : vector<96x128xf32>
    %133 = arith.addf %129, %132 : vector<96x128xf32>
    %c0_38 = arith.constant 0 : index
    %c32 = arith.constant 32 : index
    %134 = vector.load %arg2[%c0_38, %c32] : memref<96x58xf32, #tpu.memory_space<vmem>>, vector<96x1xf32>
    %135 = vector.broadcast %134 : vector<96x1xf32> to vector<96x128xf32>
    %136 = arith.mulf %135, %95 : vector<96x128xf32>
    %137 = arith.addf %133, %136 : vector<96x128xf32>
    %c0_39 = arith.constant 0 : index
    %c36 = arith.constant 36 : index
    %138 = vector.load %arg2[%c0_39, %c36] : memref<96x58xf32, #tpu.memory_space<vmem>>, vector<96x1xf32>
    %139 = math.tanh %109 : vector<96x128xf32>
    %140 = vector.broadcast %138 : vector<96x1xf32> to vector<96x128xf32>
    %141 = arith.mulf %140, %139 : vector<96x128xf32>
    %142 = arith.addf %109, %141 : vector<96x128xf32>
    %c0_40 = arith.constant 0 : index
    %c37 = arith.constant 37 : index
    %143 = vector.load %arg2[%c0_40, %c37] : memref<96x58xf32, #tpu.memory_space<vmem>>, vector<96x1xf32>
    %144 = math.tanh %123 : vector<96x128xf32>
    %145 = vector.broadcast %143 : vector<96x1xf32> to vector<96x128xf32>
    %146 = arith.mulf %145, %144 : vector<96x128xf32>
    %147 = arith.addf %123, %146 : vector<96x128xf32>
    %c0_41 = arith.constant 0 : index
    %c38 = arith.constant 38 : index
    %148 = vector.load %arg2[%c0_41, %c38] : memref<96x58xf32, #tpu.memory_space<vmem>>, vector<96x1xf32>
    %149 = math.tanh %137 : vector<96x128xf32>
    %150 = vector.broadcast %148 : vector<96x1xf32> to vector<96x128xf32>
    %151 = arith.mulf %150, %149 : vector<96x128xf32>
    %152 = arith.addf %137, %151 : vector<96x128xf32>
    %c0_42 = arith.constant 0 : index
    %c48 = arith.constant 48 : index
    %153 = vector.load %arg2[%c0_42, %c48] : memref<96x58xf32, #tpu.memory_space<vmem>>, vector<96x1xf32>
    %c0_43 = arith.constant 0 : index
    %c39 = arith.constant 39 : index
    %154 = vector.load %arg2[%c0_43, %c39] : memref<96x58xf32, #tpu.memory_space<vmem>>, vector<96x1xf32>
    %155 = vector.broadcast %154 : vector<96x1xf32> to vector<96x128xf32>
    %156 = arith.mulf %155, %142 : vector<96x128xf32>
    %157 = vector.broadcast %153 : vector<96x1xf32> to vector<96x128xf32>
    %158 = arith.addf %157, %156 : vector<96x128xf32>
    %c0_44 = arith.constant 0 : index
    %c40 = arith.constant 40 : index
    %159 = vector.load %arg2[%c0_44, %c40] : memref<96x58xf32, #tpu.memory_space<vmem>>, vector<96x1xf32>
    %160 = vector.broadcast %159 : vector<96x1xf32> to vector<96x128xf32>
    %161 = arith.mulf %160, %147 : vector<96x128xf32>
    %162 = arith.addf %158, %161 : vector<96x128xf32>
    %c0_45 = arith.constant 0 : index
    %c41 = arith.constant 41 : index
    %163 = vector.load %arg2[%c0_45, %c41] : memref<96x58xf32, #tpu.memory_space<vmem>>, vector<96x1xf32>
    %164 = vector.broadcast %163 : vector<96x1xf32> to vector<96x128xf32>
    %165 = arith.mulf %164, %152 : vector<96x128xf32>
    %166 = arith.addf %162, %165 : vector<96x128xf32>
    %c0_46 = arith.constant 0 : index
    %c49 = arith.constant 49 : index
    %167 = vector.load %arg2[%c0_46, %c49] : memref<96x58xf32, #tpu.memory_space<vmem>>, vector<96x1xf32>
    %c0_47 = arith.constant 0 : index
    %c42 = arith.constant 42 : index
    %168 = vector.load %arg2[%c0_47, %c42] : memref<96x58xf32, #tpu.memory_space<vmem>>, vector<96x1xf32>
    %169 = vector.broadcast %168 : vector<96x1xf32> to vector<96x128xf32>
    %170 = arith.mulf %169, %142 : vector<96x128xf32>
    %171 = vector.broadcast %167 : vector<96x1xf32> to vector<96x128xf32>
    %172 = arith.addf %171, %170 : vector<96x128xf32>
    %c0_48 = arith.constant 0 : index
    %c43 = arith.constant 43 : index
    %173 = vector.load %arg2[%c0_48, %c43] : memref<96x58xf32, #tpu.memory_space<vmem>>, vector<96x1xf32>
    %174 = vector.broadcast %173 : vector<96x1xf32> to vector<96x128xf32>
    %175 = arith.mulf %174, %147 : vector<96x128xf32>
    %176 = arith.addf %172, %175 : vector<96x128xf32>
    %c0_49 = arith.constant 0 : index
    %c44 = arith.constant 44 : index
    %177 = vector.load %arg2[%c0_49, %c44] : memref<96x58xf32, #tpu.memory_space<vmem>>, vector<96x1xf32>
    %178 = vector.broadcast %177 : vector<96x1xf32> to vector<96x128xf32>
    %179 = arith.mulf %178, %152 : vector<96x128xf32>
    %180 = arith.addf %176, %179 : vector<96x128xf32>
    %c0_50 = arith.constant 0 : index
    %c50 = arith.constant 50 : index
    %181 = vector.load %arg2[%c0_50, %c50] : memref<96x58xf32, #tpu.memory_space<vmem>>, vector<96x1xf32>
    %c0_51 = arith.constant 0 : index
    %c45 = arith.constant 45 : index
    %182 = vector.load %arg2[%c0_51, %c45] : memref<96x58xf32, #tpu.memory_space<vmem>>, vector<96x1xf32>
    %183 = vector.broadcast %182 : vector<96x1xf32> to vector<96x128xf32>
    %184 = arith.mulf %183, %142 : vector<96x128xf32>
    %185 = vector.broadcast %181 : vector<96x1xf32> to vector<96x128xf32>
    %186 = arith.addf %185, %184 : vector<96x128xf32>
    %c0_52 = arith.constant 0 : index
    %c46 = arith.constant 46 : index
    %187 = vector.load %arg2[%c0_52, %c46] : memref<96x58xf32, #tpu.memory_space<vmem>>, vector<96x1xf32>
    %188 = vector.broadcast %187 : vector<96x1xf32> to vector<96x128xf32>
    %189 = arith.mulf %188, %147 : vector<96x128xf32>
    %190 = arith.addf %186, %189 : vector<96x128xf32>
    %c0_53 = arith.constant 0 : index
    %c47 = arith.constant 47 : index
    %191 = vector.load %arg2[%c0_53, %c47] : memref<96x58xf32, #tpu.memory_space<vmem>>, vector<96x1xf32>
    %192 = vector.broadcast %191 : vector<96x1xf32> to vector<96x128xf32>
    %193 = arith.mulf %192, %152 : vector<96x128xf32>
    %194 = arith.addf %190, %193 : vector<96x128xf32>
    %c0_54 = arith.constant 0 : index
    %c51 = arith.constant 51 : index
    %195 = vector.load %arg2[%c0_54, %c51] : memref<96x58xf32, #tpu.memory_space<vmem>>, vector<96x1xf32>
    %196 = math.tanh %166 : vector<96x128xf32>
    %197 = vector.broadcast %195 : vector<96x1xf32> to vector<96x128xf32>
    %198 = arith.mulf %197, %196 : vector<96x128xf32>
    %199 = arith.addf %166, %198 : vector<96x128xf32>
    %c0_55 = arith.constant 0 : index
    %c52 = arith.constant 52 : index
    %200 = vector.load %arg2[%c0_55, %c52] : memref<96x58xf32, #tpu.memory_space<vmem>>, vector<96x1xf32>
    %201 = math.tanh %180 : vector<96x128xf32>
    %202 = vector.broadcast %200 : vector<96x1xf32> to vector<96x128xf32>
    %203 = arith.mulf %202, %201 : vector<96x128xf32>
    %204 = arith.addf %180, %203 : vector<96x128xf32>
    %c0_56 = arith.constant 0 : index
    %c53 = arith.constant 53 : index
    %205 = vector.load %arg2[%c0_56, %c53] : memref<96x58xf32, #tpu.memory_space<vmem>>, vector<96x1xf32>
    %206 = math.tanh %194 : vector<96x128xf32>
    %207 = vector.broadcast %205 : vector<96x1xf32> to vector<96x128xf32>
    %208 = arith.mulf %207, %206 : vector<96x128xf32>
    %209 = arith.addf %194, %208 : vector<96x128xf32>
    %c0_57 = arith.constant 0 : index
    %c57 = arith.constant 57 : index
    %210 = vector.load %arg2[%c0_57, %c57] : memref<96x58xf32, #tpu.memory_space<vmem>>, vector<96x1xf32>
    %c0_58 = arith.constant 0 : index
    %c54 = arith.constant 54 : index
    %211 = vector.load %arg2[%c0_58, %c54] : memref<96x58xf32, #tpu.memory_space<vmem>>, vector<96x1xf32>
    %212 = vector.broadcast %211 : vector<96x1xf32> to vector<96x128xf32>
    %213 = arith.mulf %212, %199 : vector<96x128xf32>
    %214 = vector.broadcast %210 : vector<96x1xf32> to vector<96x128xf32>
    %215 = arith.addf %214, %213 : vector<96x128xf32>
    %c0_59 = arith.constant 0 : index
    %c55 = arith.constant 55 : index
    %216 = vector.load %arg2[%c0_59, %c55] : memref<96x58xf32, #tpu.memory_space<vmem>>, vector<96x1xf32>
    %217 = vector.broadcast %216 : vector<96x1xf32> to vector<96x128xf32>
    %218 = arith.mulf %217, %204 : vector<96x128xf32>
    %219 = arith.addf %215, %218 : vector<96x128xf32>
    %c0_60 = arith.constant 0 : index
    %c56 = arith.constant 56 : index
    %220 = vector.load %arg2[%c0_60, %c56] : memref<96x58xf32, #tpu.memory_space<vmem>>, vector<96x1xf32>
    %221 = vector.broadcast %220 : vector<96x1xf32> to vector<96x128xf32>
    %222 = arith.mulf %221, %209 : vector<96x128xf32>
    %223 = arith.addf %219, %222 : vector<96x128xf32>
    %224 = arith.negf %223 : vector<96x128xf32>
    %225 = math.exp %224 : vector<96x128xf32>
    %cst_61 = arith.constant 1.000000e+00 : f32
    %226 = vector.broadcast %cst_61 : f32 to vector<96x128xf32>
    %227 = arith.addf %226, %225 : vector<96x128xf32>
    %228 = arith.divf %226, %227 : vector<96x128xf32>
    %229 = vector.extract_strided_slice %228 {offsets = [0, 0], sizes = [48, 128], strides = [1, 1]} : vector<96x128xf32> to vector<48x128xf32>
    %230 = vector.extract_strided_slice %228 {offsets = [48, 0], sizes = [48, 128], strides = [1, 1]} : vector<96x128xf32> to vector<48x128xf32>
    %231 = arith.subf %229, %230 : vector<48x128xf32>
    %232 = math.absf %231 : vector<48x128xf32>
    %cst_62 = arith.constant 9.99999971E-10 : f32
    %233 = vector.broadcast %cst_62 : f32 to vector<48x128xf32>
    %234 = arith.maximumf %232, %233 : vector<48x128xf32>
    %c0_63 = arith.constant 0 : index
    %c0_64 = arith.constant 0 : index
    %235 = vector.load %arg3[%c0_63, %c0_64] : memref<48x128xf32, #tpu.memory_space<vmem>>, vector<48x128xf32>
    tpu.vector_store %arg3[%c0_63, %c0_64], %234 {strides = array<i32>} : memref<48x128xf32, #tpu.memory_space<vmem>>, vector<48x128xf32>,
    return
  }
  func.func @transform_0(%arg0: i32) -> (i32, i32) {
    %c0_i32 = arith.constant 0 : i32
    %c0_i32_0 = arith.constant 0 : i32
    return %c0_i32, %arg0 : i32, i32
  }
  func.func @transform_1(%arg0: i32) -> (i32, i32) {
    %c0_i32 = arith.constant 0 : i32
    %c0_i32_0 = arith.constant 0 : i32
    %c0_i32_1 = arith.constant 0 : i32
    return %c0_i32, %c0_i32_0 : i32, i32
  }
  func.func @transform_2(%arg0: i32) -> (i32, i32) {
    %c0_i32 = arith.constant 0 : i32
    %c0_i32_0 = arith.constant 0 : i32
    return %c0_i32, %arg0 : i32, i32
  }
}

</mosaic_0001>

<llo_original>
// kernel: forward.10
$region0: #{forward.10}
  #allocation0 [shape = 'u32[]', space=smem, size = 0x4, offset = 0x4, fixed_abs, tag = 'smem constant byte address 0x4 - core index']
  #allocation1 [shape = 'u32[72,128]{1,0:T(1,128)}', space=vmem, size = 0x9000, scoped, tag = 'internal scratch']
  %s0 = inlined_call_operand.vmem [shape: bf16[48,48], index: 0, kind: input, shape index: {}]
  %s1 = inlined_call_operand.vmem [shape: bf16[48,128], index: 1, kind: input, shape index: {}]
  %s2 = inlined_call_operand.vmem [shape: f32[48,1], index: 2, kind: input, shape index: {}]
  %s3 = inlined_call_operand.vmem [shape: f32[48,48], index: 3, kind: input, shape index: {}]
  %s4 = inlined_call_operand.vmem [shape: f32[48,1], index: 4, kind: input, shape index: {}]
  %s5 = inlined_call_operand.vmem [shape: f32[48,128], index: 5, kind: output, shape index: {}]
  %s6 = sld [smem:[#allocation0]]
  $region30: #{forward.10} parent=0
    _
  %s8 = ssub.s32 1, %s6
  %s9 = scalar_select 0, %s8, %s6
  // Predicated region
  $region2: #{forward.10} parent=0 // pred_check
    _
  $region3: #{forward.10} parent=0 // pred_check_branch
    %11 = sbr.rel (0) target = $region5
  $region4: #{forward.10} parent=0 // pred_region
    _
  $region5: #{forward.10} parent=0 // pred_fallthru
    _
  // Predicated region
  $region6: #{forward.10} parent=0 // pred_check
    _
  $region7: #{forward.10} parent=0 // pred_check_branch
    %13 = sbr.rel (0) target = $region9
  $region8: #{forward.10} parent=0 // pred_region
    _
  $region9: #{forward.10} parent=0 // pred_fallthru
    _
  // Predicated region
  $region10: #{forward.10} parent=0 // pred_check
    _
  $region11: #{forward.10} parent=0 // pred_check_branch
    %15 = sbr.rel (0) target = $region13
  $region12: #{forward.10} parent=0 // pred_region
    _
  $region13: #{forward.10} parent=0 // pred_fallthru
    _
  // Predicated region
  $region14: #{forward.10} parent=0 // pred_check
    _
  $region15: #{forward.10} parent=0 // pred_check_branch
    %17 = sbr.rel (0) target = $region17
  $region16: #{forward.10} parent=0 // pred_region
    _
  $region17: #{forward.10} parent=0 // pred_fallthru
    _
  // Predicated region
  $region18: #{forward.10} parent=0 // pred_check
    _
  $region19: #{forward.10} parent=0 // pred_check_branch
    %19 = sbr.rel (0) target = $region21
  $region20: #{forward.10} parent=0 // pred_region
    _
  $region21: #{forward.10} parent=0 // pred_fallthru
    _
  %v21 = vld [vmem:[%s0] sm:$0xf]
  %v22 = vld [vmem:[%s0 + $0x4] sm:$0xf]
  %v23 = vld [vmem:[%s0 + $0x8] sm:$0xf]
  %v24 = vld [vmem:[%s0 + $0xc] sm:$0xf]
  %v25 = vld [vmem:[%s0 + $0x10] sm:$0xf]
  %v26 = vld [vmem:[%s0 + $0x14] sm:$0xf]
  %v27 = vld [vmem:[%s1] sm:$0xf]
  %v28 = vld [vmem:[%s1 + $0x4] sm:$0xf]
  %v29 = vld [vmem:[%s1 + $0x8] sm:$0xf]
  %v30 = vld [vmem:[%s1 + $0xc] sm:$0xf]
  %v31 = vld [vmem:[%s1 + $0x10] sm:$0xf]
  %v32 = vld [vmem:[%s1 + $0x14] sm:$0xf]
  %v33 = vld [vmem:[%s2] sm:$0xff]
  %v34 = vld [vmem:[%s2 + $0x8] sm:$0xff]
  %v35 = vld [vmem:[%s2 + $0x10] sm:$0xff]
  %v36 = vld [vmem:[%s2 + $0x18] sm:$0xff]
  %v37 = vld [vmem:[%s2 + $0x20] sm:$0xff]
  %v38 = vld [vmem:[%s2 + $0x28] sm:$0xff]
  %40 = vset.pattern.permute.xlu0 0
  %41 = vperm.xlu0 %40, %v33
  %v42 = vpop.permute.xlu0 %41
  %45 = vset.pattern.permute.xlu0 0
  %46 = vperm.xlu0 %45, %v34
  %v47 = vpop.permute.xlu0 %46
  %50 = vset.pattern.permute.xlu0 0
  %51 = vperm.xlu0 %50, %v35
  %v52 = vpop.permute.xlu0 %51
  %55 = vset.pattern.permute.xlu0 0
  %56 = vperm.xlu0 %55, %v36
  %v57 = vpop.permute.xlu0 %56
  %60 = vset.pattern.permute.xlu0 0
  %61 = vperm.xlu0 %60, %v37
  %v62 = vpop.permute.xlu0 %61
  %65 = vset.pattern.permute.xlu0 0
  %66 = vperm.xlu0 %65, %v38
  %v67 = vpop.permute.xlu0 %66
  %v75 = vunpack.c.l.b16 %v21
  %v76 = vunpack.c.l.b16 %v22
  %v77 = vunpack.c.l.b16 %v23
  %v78 = vunpack.c.l.b16 %v24
  %v79 = vunpack.c.l.b16 %v25
  %v80 = vunpack.c.l.b16 %v26
  %v81 = vpack.c.b16 %v76, %v75
  %v82 = vpack.c.b16 %v78, %v77
  %v83 = vpack.c.b16 %v80, %v79
  %v90 = vunpack.c.l.b16 %v27
  %v91 = vunpack.c.l.b16 %v28
  %v92 = vunpack.c.l.b16 %v29
  %v93 = vunpack.c.l.b16 %v30
  %v94 = vunpack.c.l.b16 %v31
  %v95 = vunpack.c.l.b16 %v32
  %v96 = vpack.c.b16 %v91, %v90
  %v97 = vpack.c.b16 %v93, %v92
  %v98 = vpack.c.b16 %v95, %v94
  %vm102 = vcmask 392192
  %v104 = vsel %vm102, %v81, 0
  %v107 = vsel %vm102, %v82, 0
  %v110 = vsel %vm102, %v83, 0
  %112 = vmatpush.bf16.msra.mxu0 0
  %113 = vmatpush.bf16.msra.mxu0 0
  %114 = vmatpush.bf16.msra.mxu0 0
  %115 = vmatpush.bf16.msra.mxu0 0
  %116 = vmatpush.bf16.msra.mxu0 0
  %117 = vmatpush.bf16.msra.mxu0 %v98
  %118 = vmatpush.bf16.msra.mxu0 %v97
  %119 = vmatpush.bf16.msra.mxu0 %v96
  %120 = vmatmul.bf16.gmra.mxu0 %v104
  %v121 = vpop.f32.mrf.mxu0
  %v122 = vadd.f32 %v42, %v121
  %v123 = vpop.f32.mrf.mxu0
  %v124 = vadd.f32 %v47, %v123
  %125 = vmatmul.bf16.gmra.mxu0 %v107
  %v126 = vpop.f32.mrf.mxu0
  %v127 = vadd.f32 %v52, %v126
  %v128 = vpop.f32.mrf.mxu0
  %v129 = vadd.f32 %v57, %v128
  %130 = vmatmul.bf16.gmra.mxu0 %v110
  %v131 = vpop.f32.mrf.mxu0
  %v132 = vadd.f32 %v62, %v131
  %v133 = vpop.f32.mrf.mxu0
  %v134 = vadd.f32 %v67, %v133
  %135 = vdwg.mxu0
  %v136 = vld [vmem:[%s3] sm:$0xff]
  %v137 = vld [vmem:[%s3 + $0x8] sm:$0xff]
  %v138 = vld [vmem:[%s3 + $0x10] sm:$0xff]
  %v139 = vld [vmem:[%s3 + $0x18] sm:$0xff]
  %v140 = vld [vmem:[%s3 + $0x20] sm:$0xff]
  %v141 = vld [vmem:[%s3 + $0x28] sm:$0xff]
  %v142 = vmul.f32 %v122, %v122
  %v143 = vmul.f32 %v124, %v124
  %v144 = vmul.f32 %v127, %v127
  %v145 = vmul.f32 %v129, %v129
  %v146 = vmul.f32 %v132, %v132
  %v147 = vmul.f32 %v134, %v134
  %v148 = vld [vmem:[%s4] sm:$0xff]
  %v149 = vld [vmem:[%s4 + $0x8] sm:$0xff]
  %v150 = vld [vmem:[%s4 + $0x10] sm:$0xff]
  %v151 = vld [vmem:[%s4 + $0x18] sm:$0xff]
  %v152 = vld [vmem:[%s4 + $0x20] sm:$0xff]
  %v153 = vld [vmem:[%s4 + $0x28] sm:$0xff]
  %155 = vset.pattern.permute.xlu0 0
  %156 = vperm.xlu0 %155, %v148
  %v157 = vpop.permute.xlu0 %156
  %160 = vset.pattern.permute.xlu0 0
  %161 = vperm.xlu0 %160, %v149
  %v162 = vpop.permute.xlu0 %161
  %165 = vset.pattern.permute.xlu0 0
  %166 = vperm.xlu0 %165, %v150
  %v167 = vpop.permute.xlu0 %166
  %170 = vset.pattern.permute.xlu0 0
  %171 = vperm.xlu0 %170, %v151
  %v172 = vpop.permute.xlu0 %171
  %175 = vset.pattern.permute.xlu0 0
  %176 = vperm.xlu0 %175, %v152
  %v177 = vpop.permute.xlu0 %176
  %180 = vset.pattern.permute.xlu0 0
  %181 = vperm.xlu0 %180, %v153
  %v182 = vpop.permute.xlu0 %181
  %v185 = vsel %vm102, %v136, 0
  %v188 = vsel %vm102, %v137, 0
  %v191 = vsel %vm102, %v138, 0
  %v194 = vsel %vm102, %v139, 0
  %v197 = vsel %vm102, %v140, 0
  %v200 = vsel %vm102, %v141, 0
  %202 = vmatpush.msra.mxu0 0.0
  %203 = vmatpush.msra.mxu0 0.0
  %204 = vmatpush.msra.mxu0 0.0
  %205 = vmatpush.msra.mxu0 0.0
  %206 = vmatpush.msra.mxu0 0.0
  %207 = vmatpush.msra.mxu0 0.0
  %208 = vmatpush.msra.mxu0 0.0
  %209 = vmatpush.msra.mxu0 0.0
  %210 = vmatpush.msra.mxu0 0.0
  %211 = vmatpush.msra.mxu0 0.0
  %212 = vmatpush.msra.mxu0 %v147
  %213 = vmatpush.msra.mxu0 %v146
  %214 = vmatpush.msra.mxu0 %v145
  %215 = vmatpush.msra.mxu0 %v144
  %216 = vmatpush.msra.mxu0 %v143
  %217 = vmatpush.msra.mxu0 %v142
  %218 = vmatmul.f32.gmra.mxu0 %v185
  %v219 = vpop.f32.mrf.mxu0
  %v220 = vadd.f32 %v157, %v219
  %221 = vmatmul.f32.gmra.mxu0 %v188
  %v222 = vpop.f32.mrf.mxu0
  %v223 = vadd.f32 %v162, %v222
  %224 = vmatmul.f32.gmra.mxu0 %v191
  %v225 = vpop.f32.mrf.mxu0
  %v226 = vadd.f32 %v167, %v225
  %227 = vmatmul.f32.gmra.mxu0 %v194
  %v228 = vpop.f32.mrf.mxu0
  %v229 = vadd.f32 %v172, %v228
  %230 = vmatmul.f32.gmra.mxu0 %v197
  %v231 = vpop.f32.mrf.mxu0
  %v232 = vadd.f32 %v177, %v231
  %233 = vmatmul.f32.gmra.mxu0 %v200
  %v234 = vpop.f32.mrf.mxu0
  %v235 = vadd.f32 %v182, %v234
  %236 = vdwg.mxu0
  %v237 = vrsqrt.pop %v220
  %v238 = vmul.f32 %v237, %v220
  %v239 = vmul.f32 %v238, %v237
  %v240 = vmul.f32 0.5, %v239
  %v241 = vsub.f32 1.5, %v240
  %v242 = vmul.f32 %v237, %v241
  %vm243 = vweird.f32 %v220
  %vm244 = vweird.f32 %v237
  %vm245 = vmor %vm243, %vm244
  %v246 = vsel %vm245, %v237, %v242
  %v247 = vrsqrt.pop %v223
  %v248 = vmul.f32 %v247, %v223
  %v249 = vmul.f32 %v248, %v247
  %v250 = vmul.f32 0.5, %v249
  %v251 = vsub.f32 1.5, %v250
  %v252 = vmul.f32 %v247, %v251
  %vm253 = vweird.f32 %v223
  %vm254 = vweird.f32 %v247
  %vm255 = vmor %vm253, %vm254
  %v256 = vsel %vm255, %v247, %v252
  %v257 = vrsqrt.pop %v226
  %v258 = vmul.f32 %v257, %v226
  %v259 = vmul.f32 %v258, %v257
  %v260 = vmul.f32 0.5, %v259
  %v261 = vsub.f32 1.5, %v260
  %v262 = vmul.f32 %v257, %v261
  %vm263 = vweird.f32 %v226
  %vm264 = vweird.f32 %v257
  %vm265 = vmor %vm263, %vm264
  %v266 = vsel %vm265, %v257, %v262
  %v267 = vrsqrt.pop %v229
  %v268 = vmul.f32 %v267, %v229
  %v269 = vmul.f32 %v268, %v267
  %v270 = vmul.f32 0.5, %v269
  %v271 = vsub.f32 1.5, %v270
  %v272 = vmul.f32 %v267, %v271
  %vm273 = vweird.f32 %v229
  %vm274 = vweird.f32 %v267
  %vm275 = vmor %vm273, %vm274
  %v276 = vsel %vm275, %v267, %v272
  %v277 = vrsqrt.pop %v232
  %v278 = vmul.f32 %v277, %v232
  %v279 = vmul.f32 %v278, %v277
  %v280 = vmul.f32 0.5, %v279
  %v281 = vsub.f32 1.5, %v280
  %v282 = vmul.f32 %v277, %v281
  %vm283 = vweird.f32 %v232
  %vm284 = vweird.f32 %v277
  %vm285 = vmor %vm283, %vm284
  %v286 = vsel %vm285, %v277, %v282
  %v287 = vrsqrt.pop %v235
  %v288 = vmul.f32 %v287, %v235
  %v289 = vmul.f32 %v288, %v287
  %v290 = vmul.f32 0.5, %v289
  %v291 = vsub.f32 1.5, %v290
  %v292 = vmul.f32 %v287, %v291
  %vm293 = vweird.f32 %v235
  %vm294 = vweird.f32 %v287
  %vm295 = vmor %vm293, %vm294
  %v296 = vsel %vm295, %v287, %v292
  %v297 = vmul.f32 %v122, %v246
  %v298 = vmul.f32 %v124, %v256
  %v299 = vmul.f32 %v127, %v266
  %v300 = vmul.f32 %v129, %v276
  %v301 = vmul.f32 %v132, %v286
  %v302 = vmul.f32 %v134, %v296
  %303 = vst [vmem:[%s5] sm:$0xff] %v297
  %304 = vst [vmem:[%s5 + $0x8] sm:$0xff] %v298
  %305 = vst [vmem:[%s5 + $0x10] sm:$0xff] %v299
  %306 = vst [vmem:[%s5 + $0x18] sm:$0xff] %v300
  %307 = vst [vmem:[%s5 + $0x20] sm:$0xff] %v301
  %308 = vst [vmem:[%s5 + $0x28] sm:$0xff] %v302
  // Predicated region
  $region22: #{forward.10} parent=0 // pred_check
    _
  $region23: #{forward.10} parent=0 // pred_check_branch
    %310 = sbr.rel (0) target = $region25
  $region24: #{forward.10} parent=0 // pred_region
    _
  $region25: #{forward.10} parent=0 // pred_fallthru
    _
  // Predicated region
  $region26: #{forward.10} parent=0 // pred_check
    _
  $region27: #{forward.10} parent=0 // pred_check_branch
    %312 = sbr.rel (0) target = $region29
  $region28: #{forward.10} parent=0 // pred_region
    _
  $region29: #{forward.10} parent=0 // pred_fallthru
    _

// kernel: forward.11
$region0: #{forward.11}
  #allocation0 [shape = 'u32[]', space=smem, size = 0x4, offset = 0x4, fixed_abs, tag = 'smem constant byte address 0x4 - core index']
  #allocation1 [shape = 'u32[72,128]{1,0:T(1,128)}', space=vmem, size = 0x9000, scoped, tag = 'internal scratch']
  %s0 = inlined_call_operand.vmem [shape: bf16[48,1200], index: 0, kind: input, shape index: {}]
  %s1 = inlined_call_operand.vmem [shape: bf16[1200,128], index: 1, kind: input, shape index: {}]
  %s2 = inlined_call_operand.vmem [shape: f32[48,1], index: 2, kind: input, shape index: {}]
  %s3 = inlined_call_operand.vmem [shape: f32[48,48], index: 3, kind: input, shape index: {}]
  %s4 = inlined_call_operand.vmem [shape: f32[48,1], index: 4, kind: input, shape index: {}]
  %s5 = inlined_call_operand.vmem [shape: f32[48,128], index: 5, kind: output, shape index: {}]
  %s6 = sld [smem:[#allocation0]]
  $region30: #{forward.11} parent=0
    _
  %s8 = ssub.s32 1, %s6
  %s9 = scalar_select 0, %s8, %s6
  // Predicated region
  $region2: #{forward.11} parent=0 // pred_check
    _
  $region3: #{forward.11} parent=0 // pred_check_branch
    %11 = sbr.rel (0) target = $region5
  $region4: #{forward.11} parent=0 // pred_region
    _
  $region5: #{forward.11} parent=0 // pred_fallthru
    _
  // Predicated region
  $region6: #{forward.11} parent=0 // pred_check
    _
  $region7: #{forward.11} parent=0 // pred_check_branch
    %13 = sbr.rel (0) target = $region9
  $region8: #{forward.11} parent=0 // pred_region
    _
  $region9: #{forward.11} parent=0 // pred_fallthru
    _
  // Predicated region
  $region10: #{forward.11} parent=0 // pred_check
    _
  $region11: #{forward.11} parent=0 // pred_check_branch
    %15 = sbr.rel (0) target = $region13
  $region12: #{forward.11} parent=0 // pred_region
    _
  $region13: #{forward.11} parent=0 // pred_fallthru
    _
  // Predicated region
  $region14: #{forward.11} parent=0 // pred_check
    _
  $region15: #{forward.11} parent=0 // pred_check_branch
    %17 = sbr.rel (0) target = $region17
  $region16: #{forward.11} parent=0 // pred_region
    _
  $region17: #{forward.11} parent=0 // pred_fallthru
    _
  // Predicated region
  $region18: #{forward.11} parent=0 // pred_check
    _
  $region19: #{forward.11} parent=0 // pred_check_branch
    %19 = sbr.rel (0) target = $region21
  $region20: #{forward.11} parent=0 // pred_region
    _
  $region21: #{forward.11} parent=0 // pred_fallthru
    _
  %v21 = vld [vmem:[%s0] sm:$0xff]
  %v22 = vld [vmem:[%s0 + $0x8] sm:$0xff]
  %v23 = vld [vmem:[%s0 + $0x10] sm:$0xff]
  %v24 = vld [vmem:[%s0 + $0x18] sm:$0xff]
  %v25 = vld [vmem:[%s0 + $0x20] sm:$0xff]
  %v26 = vld [vmem:[%s0 + $0x28] sm:$0xff]
  %v27 = vld [vmem:[%s0 + $0x30] sm:$0xff]
  %v28 = vld [vmem:[%s0 + $0x38] sm:$0xff]
  %v29 = vld [vmem:[%s0 + $0x40] sm:$0xff]
  %v30 = vld [vmem:[%s0 + $0x48] sm:$0xff]
  %v31 = vld [vmem:[%s0 + $0x50] sm:$0xff]
  %v32 = vld [vmem:[%s0 + $0x58] sm:$0xff]
  %v33 = vld [vmem:[%s0 + $0x60] sm:$0xff]
  %v34 = vld [vmem:[%s0 + $0x68] sm:$0xff]
  %v35 = vld [vmem:[%s0 + $0x70] sm:$0xff]
  %v36 = vld [vmem:[%s0 + $0x78] sm:$0xff]
  %v37 = vld [vmem:[%s0 + $0x80] sm:$0xff]
  %v38 = vld [vmem:[%s0 + $0x88] sm:$0xff]
  %v39 = vld [vmem:[%s0 + $0x90] sm:$0xff]
  %v40 = vld [vmem:[%s0 + $0x98] sm:$0xff]
  %v41 = vld [vmem:[%s0 + $0xa0] sm:$0xff]
  %v42 = vld [vmem:[%s0 + $0xa8] sm:$0xff]
  %v43 = vld [vmem:[%s0 + $0xb0] sm:$0xff]
  %v44 = vld [vmem:[%s0 + $0xb8] sm:$0xff]
  %v45 = vld [vmem:[%s0 + $0xc0] sm:$0xff]
  %v46 = vld [vmem:[%s0 + $0xc8] sm:$0xff]
  %v47 = vld [vmem:[%s0 + $0xd0] sm:$0xff]
  %v48 = vld [vmem:[%s0 + $0xd8] sm:$0xff]
  %v49 = vld [vmem:[%s0 + $0xe0] sm:$0xff]
  %v50 = vld [vmem:[%s0 + $0xe8] sm:$0xff]
  %v51 = vld [vmem:[%s1] sm:$0xf]
  %v52 = vld [vmem:[%s1 + $0x4] sm:$0xf]
  %v53 = vld [vmem:[%s1 + $0x8] sm:$0xf]
  %v54 = vld [vmem:[%s1 + $0xc] sm:$0xf]
  %v55 = vld [vmem:[%s1 + $0x10] sm:$0xf]
  %v56 = vld [vmem:[%s1 + $0x14] sm:$0xf]
  %v57 = vld [vmem:[%s1 + $0x18] sm:$0xf]
  %v58 = vld [vmem:[%s1 + $0x1c] sm:$0xf]
  %v59 = vld [vmem:[%s1 + $0x20] sm:$0xf]
  %v60 = vld [vmem:[%s1 + $0x24] sm:$0xf]
  %v61 = vld [vmem:[%s1 + $0x28] sm:$0xf]
  %v62 = vld [vmem:[%s1 + $0x2c] sm:$0xf]
  %v63 = vld [vmem:[%s1 + $0x30] sm:$0xf]
  %v64 = vld [vmem:[%s1 + $0x34] sm:$0xf]
  %v65 = vld [vmem:[%s1 + $0x38] sm:$0xf]
  %v66 = vld [vmem:[%s1 + $0x3c] sm:$0xf]
  %v67 = vld [vmem:[%s1 + $0x40] sm:$0xf]
  %v68 = vld [vmem:[%s1 + $0x44] sm:$0xf]
  %v69 = vld [vmem:[%s1 + $0x48] sm:$0xf]
  %v70 = vld [vmem:[%s1 + $0x4c] sm:$0xf]
  %v71 = vld [vmem:[%s1 + $0x50] sm:$0xf]
  %v72 = vld [vmem:[%s1 + $0x54] sm:$0xf]
  %v73 = vld [vmem:[%s1 + $0x58] sm:$0xf]
  %v74 = vld [vmem:[%s1 + $0x5c] sm:$0xf]
  %v75 = vld [vmem:[%s1 + $0x60] sm:$0xf]
  %v76 = vld [vmem:[%s1 + $0x64] sm:$0xf]
  %v77 = vld [vmem:[%s1 + $0x68] sm:$0xf]
  %v78 = vld [vmem:[%s1 + $0x6c] sm:$0xf]
  %v79 = vld [vmem:[%s1 + $0x70] sm:$0xf]
  %v80 = vld [vmem:[%s1 + $0x74] sm:$0xf]
  %v81 = vld [vmem:[%s1 + $0x78] sm:$0xf]
  %v82 = vld [vmem:[%s1 + $0x7c] sm:$0xf]
  %v83 = vld [vmem:[%s1 + $0x80] sm:$0xf]
  %v84 = vld [vmem:[%s1 + $0x84] sm:$0xf]
  %v85 = vld [vmem:[%s1 + $0x88] sm:$0xf]
  %v86 = vld [vmem:[%s1 + $0x8c] sm:$0xf]
  %v87 = vld [vmem:[%s1 + $0x90] sm:$0xf]
  %v88 = vld [vmem:[%s1 + $0x94] sm:$0xf]
  %v89 = vld [vmem:[%s1 + $0x98] sm:$0xf]
  %v90 = vld [vmem:[%s1 + $0x9c] sm:$0xf]
  %v91 = vld [vmem:[%s1 + $0xa0] sm:$0xf]
  %v92 = vld [vmem:[%s1 + $0xa4] sm:$0xf]
  %v93 = vld [vmem:[%s1 + $0xa8] sm:$0xf]
  %v94 = vld [vmem:[%s1 + $0xac] sm:$0xf]
  %v95 = vld [vmem:[%s1 + $0xb0] sm:$0xf]
  %v96 = vld [vmem:[%s1 + $0xb4] sm:$0xf]
  %v97 = vld [vmem:[%s1 + $0xb8] sm:$0xf]
  %v98 = vld [vmem:[%s1 + $0xbc] sm:$0xf]
  %v99 = vld [vmem:[%s1 + $0xc0] sm:$0xf]
  %v100 = vld [vmem:[%s1 + $0xc4] sm:$0xf]
  %v101 = vld [vmem:[%s1 + $0xc8] sm:$0xf]
  %v102 = vld [vmem:[%s1 + $0xcc] sm:$0xf]
  %v103 = vld [vmem:[%s1 + $0xd0] sm:$0xf]
  %v104 = vld [vmem:[%s1 + $0xd4] sm:$0xf]
  %v105 = vld [vmem:[%s1 + $0xd8] sm:$0xf]
  %v106 = vld [vmem:[%s1 + $0xdc] sm:$0xf]
  %v107 = vld [vmem:[%s1 + $0xe0] sm:$0xf]
  %v108 = vld [vmem:[%s1 + $0xe4] sm:$0xf]
  %v109 = vld [vmem:[%s1 + $0xe8] sm:$0xf]
  %v110 = vld [vmem:[%s1 + $0xec] sm:$0xf]
  %v111 = vld [vmem:[%s1 + $0xf0] sm:$0xf]
  %v112 = vld [vmem:[%s1 + $0xf4] sm:$0xf]
  %v113 = vld [vmem:[%s1 + $0xf8] sm:$0xf]
  %v114 = vld [vmem:[%s1 + $0xfc] sm:$0xf]
  %v115 = vld [vmem:[%s1 + $0x100] sm:$0xf]
  %v116 = vld [vmem:[%s1 + $0x104] sm:$0xf]
  %v117 = vld [vmem:[%s1 + $0x108] sm:$0xf]
  %v118 = vld [vmem:[%s1 + $0x10c] sm:$0xf]
  %v119 = vld [vmem:[%s1 + $0x110] sm:$0xf]
  %v120 = vld [vmem:[%s1 + $0x114] sm:$0xf]
  %v121 = vld [vmem:[%s1 + $0x118] sm:$0xf]
  %v122 = vld [vmem:[%s1 + $0x11c] sm:$0xf]
  %v123 = vld [vmem:[%s1 + $0x120] sm:$0xf]
  %v124 = vld [vmem:[%s1 + $0x124] sm:$0xf]
  %v125 = vld [vmem:[%s1 + $0x128] sm:$0xf]
  %v126 = vld [vmem:[%s1 + $0x12c] sm:$0xf]
  %v127 = vld [vmem:[%s1 + $0x130] sm:$0xf]
  %v128 = vld [vmem:[%s1 + $0x134] sm:$0xf]
  %v129 = vld [vmem:[%s1 + $0x138] sm:$0xf]
  %v130 = vld [vmem:[%s1 + $0x13c] sm:$0xf]
  %v131 = vld [vmem:[%s1 + $0x140] sm:$0xf]
  %v132 = vld [vmem:[%s1 + $0x144] sm:$0xf]
  %v133 = vld [vmem:[%s1 + $0x148] sm:$0xf]
  %v134 = vld [vmem:[%s1 + $0x14c] sm:$0xf]
  %v135 = vld [vmem:[%s1 + $0x150] sm:$0xf]
  %v136 = vld [vmem:[%s1 + $0x154] sm:$0xf]
  %v137 = vld [vmem:[%s1 + $0x158] sm:$0xf]
  %v138 = vld [vmem:[%s1 + $0x15c] sm:$0xf]
  %v139 = vld [vmem:[%s1 + $0x160] sm:$0xf]
  %v140 = vld [vmem:[%s1 + $0x164] sm:$0xf]
  %v141 = vld [vmem:[%s1 + $0x168] sm:$0xf]
  %v142 = vld [vmem:[%s1 + $0x16c] sm:$0xf]
  %v143 = vld [vmem:[%s1 + $0x170] sm:$0xf]
  %v144 = vld [vmem:[%s1 + $0x174] sm:$0xf]
  %v145 = vld [vmem:[%s1 + $0x178] sm:$0xf]
  %v146 = vld [vmem:[%s1 + $0x17c] sm:$0xf]
  %v147 = vld [vmem:[%s1 + $0x180] sm:$0xf]
  %v148 = vld [vmem:[%s1 + $0x184] sm:$0xf]
  %v149 = vld [vmem:[%s1 + $0x188] sm:$0xf]
  %v150 = vld [vmem:[%s1 + $0x18c] sm:$0xf]
  %v151 = vld [vmem:[%s1 + $0x190] sm:$0xf]
  %v152 = vld [vmem:[%s1 + $0x194] sm:$0xf]
  %v153 = vld [vmem:[%s1 + $0x198] sm:$0xf]
  %v154 = vld [vmem:[%s1 + $0x19c] sm:$0xf]
  %v155 = vld [vmem:[%s1 + $0x1a0] sm:$0xf]
  %v156 = vld [vmem:[%s1 + $0x1a4] sm:$0xf]
  %v157 = vld [vmem:[%s1 + $0x1a8] sm:$0xf]
  %v158 = vld [vmem:[%s1 + $0x1ac] sm:$0xf]
  %v159 = vld [vmem:[%s1 + $0x1b0] sm:$0xf]
  %v160 = vld [vmem:[%s1 + $0x1b4] sm:$0xf]
  %v161 = vld [vmem:[%s1 + $0x1b8] sm:$0xf]
  %v162 = vld [vmem:[%s1 + $0x1bc] sm:$0xf]
  %v163 = vld [vmem:[%s1 + $0x1c0] sm:$0xf]
  %v164 = vld [vmem:[%s1 + $0x1c4] sm:$0xf]
  %v165 = vld [vmem:[%s1 + $0x1c8] sm:$0xf]
  %v166 = vld [vmem:[%s1 + $0x1cc] sm:$0xf]
  %v167 = vld [vmem:[%s1 + $0x1d0] sm:$0xf]
  %v168 = vld [vmem:[%s1 + $0x1d4] sm:$0xf]
  %v169 = vld [vmem:[%s1 + $0x1d8] sm:$0xf]
  %v170 = vld [vmem:[%s1 + $0x1dc] sm:$0xf]
  %v171 = vld [vmem:[%s1 + $0x1e0] sm:$0xf]
  %v172 = vld [vmem:[%s1 + $0x1e4] sm:$0xf]
  %v173 = vld [vmem:[%s1 + $0x1e8] sm:$0xf]
  %v174 = vld [vmem:[%s1 + $0x1ec] sm:$0xf]
  %v175 = vld [vmem:[%s1 + $0x1f0] sm:$0xf]
  %v176 = vld [vmem:[%s1 + $0x1f4] sm:$0xf]
  %v177 = vld [vmem:[%s1 + $0x1f8] sm:$0xf]
  %v178 = vld [vmem:[%s1 + $0x1fc] sm:$0xf]
  %v179 = vld [vmem:[%s1 + $0x200] sm:$0xf]
  %v180 = vld [vmem:[%s1 + $0x204] sm:$0xf]
  %v181 = vld [vmem:[%s1 + $0x208] sm:$0xf]
  %v182 = vld [vmem:[%s1 + $0x20c] sm:$0xf]
  %v183 = vld [vmem:[%s1 + $0x210] sm:$0xf]
  %v184 = vld [vmem:[%s1 + $0x214] sm:$0xf]
  %v185 = vld [vmem:[%s1 + $0x218] sm:$0xf]
  %v186 = vld [vmem:[%s1 + $0x21c] sm:$0xf]
  %v187 = vld [vmem:[%s1 + $0x220] sm:$0xf]
  %v188 = vld [vmem:[%s1 + $0x224] sm:$0xf]
  %v189 = vld [vmem:[%s1 + $0x228] sm:$0xf]
  %v190 = vld [vmem:[%s1 + $0x22c] sm:$0xf]
  %v191 = vld [vmem:[%s1 + $0x230] sm:$0xf]
  %v192 = vld [vmem:[%s1 + $0x234] sm:$0xf]
  %v193 = vld [vmem:[%s1 + $0x238] sm:$0xf]
  %v194 = vld [vmem:[%s1 + $0x23c] sm:$0xf]
  %v195 = vld [vmem:[%s1 + $0x240] sm:$0xf]
  %v196 = vld [vmem:[%s1 + $0x244] sm:$0xf]
  %v197 = vld [vmem:[%s1 + $0x248] sm:$0xf]
  %v198 = vld [vmem:[%s1 + $0x24c] sm:$0xf]
  %v199 = vld [vmem:[%s1 + $0x250] sm:$0xf]
  %v200 = vld [vmem:[%s1 + $0x254] sm:$0xf]
  %v201 = vld [vmem:[%s2] sm:$0xff]
  %v202 = vld [vmem:[%s2 + $0x8] sm:$0xff]
  %v203 = vld [vmem:[%s2 + $0x10] sm:$0xff]
  %v204 = vld [vmem:[%s2 + $0x18] sm:$0xff]
  %v205 = vld [vmem:[%s2 + $0x20] sm:$0xff]
  %v206 = vld [vmem:[%s2 + $0x28] sm:$0xff]
  %208 = vset.pattern.permute.xlu0 0
  %209 = vperm.xlu0 %208, %v201
  %v210 = vpop.permute.xlu0 %209
  %213 = vset.pattern.permute.xlu0 0
  %214 = vperm.xlu0 %213, %v202
  %v215 = vpop.permute.xlu0 %214
  %218 = vset.pattern.permute.xlu0 0
  %219 = vperm.xlu0 %218, %v203
  %v220 = vpop.permute.xlu0 %219
  %223 = vset.pattern.permute.xlu0 0
  %224 = vperm.xlu0 %223, %v204
  %v225 = vpop.permute.xlu0 %224
  %228 = vset.pattern.permute.xlu0 0
  %229 = vperm.xlu0 %228, %v205
  %v230 = vpop.permute.xlu0 %229
  %233 = vset.pattern.permute.xlu0 0
  %234 = vperm.xlu0 %233, %v206
  %v235 = vpop.permute.xlu0 %234
  %v267 = vunpack.c.l.b16 %v21
  %v268 = vunpack.c.h.b16 %v21
  %v269 = vunpack.c.l.b16 %v22
  %v270 = vunpack.c.h.b16 %v22
  %v271 = vunpack.c.l.b16 %v23
  %v272 = vunpack.c.h.b16 %v23
  %v273 = vunpack.c.l.b16 %v24
  %v274 = vunpack.c.h.b16 %v24
  %v275 = vunpack.c.l.b16 %v25
  %v276 = vunpack.c.h.b16 %v25
  %v277 = vunpack.c.l.b16 %v26
  %v278 = vunpack.c.h.b16 %v26
  %v279 = vunpack.c.l.b16 %v27
  %v280 = vunpack.c.h.b16 %v27
  %v281 = vunpack.c.l.b16 %v28
  %v282 = vunpack.c.h.b16 %v28
  %v283 = vunpack.c.l.b16 %v29
  %v284 = vunpack.c.h.b16 %v29
  %v285 = vunpack.c.l.b16 %v30
  %v286 = vunpack.c.h.b16 %v30
  %v287 = vunpack.c.l.b16 %v31
  %v288 = vunpack.c.h.b16 %v31
  %v289 = vunpack.c.l.b16 %v32
  %v290 = vunpack.c.h.b16 %v32
  %v291 = vunpack.c.l.b16 %v33
  %v292 = vunpack.c.h.b16 %v33
  %v293 = vunpack.c.l.b16 %v34
  %v294 = vunpack.c.h.b16 %v34
  %v295 = vunpack.c.l.b16 %v35
  %v296 = vunpack.c.h.b16 %v35
  %v297 = vunpack.c.l.b16 %v36
  %v298 = vunpack.c.h.b16 %v36
  %v299 = vunpack.c.l.b16 %v37
  %v300 = vunpack.c.h.b16 %v37
  %v301 = vunpack.c.l.b16 %v38
  %v302 = vunpack.c.h.b16 %v38
  %v303 = vunpack.c.l.b16 %v39
  %v304 = vunpack.c.h.b16 %v39
  %v305 = vunpack.c.l.b16 %v40
  %v306 = vunpack.c.h.b16 %v40
  %v307 = vunpack.c.l.b16 %v41
  %v308 = vunpack.c.h.b16 %v41
  %v309 = vunpack.c.l.b16 %v42
  %v310 = vunpack.c.h.b16 %v42
  %v311 = vunpack.c.l.b16 %v43
  %v312 = vunpack.c.h.b16 %v43
  %v313 = vunpack.c.l.b16 %v44
  %v314 = vunpack.c.h.b16 %v44
  %v315 = vunpack.c.l.b16 %v45
  %v316 = vunpack.c.h.b16 %v45
  %v317 = vunpack.c.l.b16 %v46
  %v318 = vunpack.c.h.b16 %v46
  %v319 = vunpack.c.l.b16 %v47
  %v320 = vunpack.c.h.b16 %v47
  %v321 = vunpack.c.l.b16 %v48
  %v322 = vunpack.c.h.b16 %v48
  %v323 = vunpack.c.l.b16 %v49
  %v324 = vunpack.c.h.b16 %v49
  %v325 = vunpack.c.l.b16 %v50
  %v326 = vunpack.c.h.b16 %v50
  %v327 = vpack.c.b16 %v277, %v267
  %v328 = vpack.c.b16 %v278, %v268
  %v329 = vpack.c.b16 %v279, %v269
  %v330 = vpack.c.b16 %v280, %v270
  %v331 = vpack.c.b16 %v281, %v271
  %v332 = vpack.c.b16 %v282, %v272
  %v333 = vpack.c.b16 %v283, %v273
  %v334 = vpack.c.b16 %v284, %v274
  %v335 = vpack.c.b16 %v285, %v275
  %v336 = vpack.c.b16 %v286, %v276
  %v337 = vpack.c.b16 %v297, %v287
  %v338 = vpack.c.b16 %v298, %v288
  %v339 = vpack.c.b16 %v299, %v289
  %v340 = vpack.c.b16 %v300, %v290
  %v341 = vpack.c.b16 %v301, %v291
  %v342 = vpack.c.b16 %v302, %v292
  %v343 = vpack.c.b16 %v303, %v293
  %v344 = vpack.c.b16 %v304, %v294
  %v345 = vpack.c.b16 %v305, %v295
  %v346 = vpack.c.b16 %v306, %v296
  %v347 = vpack.c.b16 %v317, %v307
  %v348 = vpack.c.b16 %v318, %v308
  %v349 = vpack.c.b16 %v319, %v309
  %v350 = vpack.c.b16 %v320, %v310
  %v351 = vpack.c.b16 %v321, %v311
  %v352 = vpack.c.b16 %v322, %v312
  %v353 = vpack.c.b16 %v323, %v313
  %v354 = vpack.c.b16 %v324, %v314
  %v355 = vpack.c.b16 %v325, %v315
  %v356 = vpack.c.b16 %v326, %v316
  %v534 = vunpack.c.l.b16 %v51
  %v535 = vunpack.c.l.b16 %v52
  %v536 = vunpack.c.l.b16 %v53
  %v537 = vunpack.c.l.b16 %v54
  %v538 = vunpack.c.l.b16 %v55
  %v539 = vunpack.c.l.b16 %v56
  %v540 = vunpack.c.l.b16 %v57
  %v541 = vunpack.c.l.b16 %v58
  %v542 = vunpack.c.l.b16 %v59
  %v543 = vunpack.c.l.b16 %v60
  %v544 = vunpack.c.l.b16 %v61
  %v545 = vunpack.c.l.b16 %v62
  %v546 = vunpack.c.l.b16 %v63
  %v547 = vunpack.c.l.b16 %v64
  %v548 = vunpack.c.l.b16 %v65
  %v549 = vunpack.c.l.b16 %v66
  %v550 = vunpack.c.l.b16 %v67
  %v551 = vunpack.c.l.b16 %v68
  %v552 = vunpack.c.l.b16 %v69
  %v553 = vunpack.c.l.b16 %v70
  %v554 = vunpack.c.l.b16 %v71
  %v555 = vunpack.c.l.b16 %v72
  %v556 = vunpack.c.l.b16 %v73
  %v557 = vunpack.c.l.b16 %v74
  %v558 = vunpack.c.l.b16 %v75
  %v559 = vunpack.c.l.b16 %v76
  %v560 = vunpack.c.l.b16 %v77
  %v561 = vunpack.c.l.b16 %v78
  %v562 = vunpack.c.l.b16 %v79
  %v563 = vunpack.c.l.b16 %v80
  %v564 = vunpack.c.l.b16 %v81
  %v565 = vunpack.c.l.b16 %v82
  %v566 = vunpack.c.l.b16 %v83
  %v567 = vunpack.c.l.b16 %v84
  %v568 = vunpack.c.l.b16 %v85
  %v569 = vunpack.c.l.b16 %v86
  %v570 = vunpack.c.l.b16 %v87
  %v571 = vunpack.c.l.b16 %v88
  %v572 = vunpack.c.l.b16 %v89
  %v573 = vunpack.c.l.b16 %v90
  %v574 = vunpack.c.l.b16 %v91
  %v575 = vunpack.c.l.b16 %v92
  %v576 = vunpack.c.l.b16 %v93
  %v577 = vunpack.c.l.b16 %v94
  %v578 = vunpack.c.l.b16 %v95
  %v579 = vunpack.c.l.b16 %v96
  %v580 = vunpack.c.l.b16 %v97
  %v581 = vunpack.c.l.b16 %v98
  %v582 = vunpack.c.l.b16 %v99
  %v583 = vunpack.c.l.b16 %v100
  %v584 = vunpack.c.l.b16 %v101
  %v585 = vunpack.c.l.b16 %v102
  %v586 = vunpack.c.l.b16 %v103
  %v587 = vunpack.c.l.b16 %v104
  %v588 = vunpack.c.l.b16 %v105
  %v589 = vunpack.c.l.b16 %v106
  %v590 = vunpack.c.l.b16 %v107
  %v591 = vunpack.c.l.b16 %v108
  %v592 = vunpack.c.l.b16 %v109
  %v593 = vunpack.c.l.b16 %v110
  %v594 = vunpack.c.l.b16 %v111
  %v595 = vunpack.c.l.b16 %v112
  %v596 = vunpack.c.l.b16 %v113
  %v597 = vunpack.c.l.b16 %v114
  %v598 = vunpack.c.l.b16 %v115
  %v599 = vunpack.c.l.b16 %v116
  %v600 = vunpack.c.l.b16 %v117
  %v601 = vunpack.c.l.b16 %v118
  %v602 = vunpack.c.l.b16 %v119
  %v603 = vunpack.c.l.b16 %v120
  %v604 = vunpack.c.l.b16 %v121
  %v605 = vunpack.c.l.b16 %v122
  %v606 = vunpack.c.l.b16 %v123
  %v607 = vunpack.c.l.b16 %v124
  %v608 = vunpack.c.l.b16 %v125
  %v609 = vunpack.c.l.b16 %v126
  %v610 = vunpack.c.l.b16 %v127
  %v611 = vunpack.c.l.b16 %v128
  %v612 = vunpack.c.l.b16 %v129
  %v613 = vunpack.c.l.b16 %v130
  %v614 = vunpack.c.l.b16 %v131
  %v615 = vunpack.c.l.b16 %v132
  %v616 = vunpack.c.l.b16 %v133
  %v617 = vunpack.c.l.b16 %v134
  %v618 = vunpack.c.l.b16 %v135
  %v619 = vunpack.c.l.b16 %v136
  %v620 = vunpack.c.l.b16 %v137
  %v621 = vunpack.c.l.b16 %v138
  %v622 = vunpack.c.l.b16 %v139
  %v623 = vunpack.c.l.b16 %v140
  %v624 = vunpack.c.l.b16 %v141
  %v625 = vunpack.c.l.b16 %v142
  %v626 = vunpack.c.l.b16 %v143
  %v627 = vunpack.c.l.b16 %v144
  %v628 = vunpack.c.l.b16 %v145
  %v629 = vunpack.c.l.b16 %v146
  %v630 = vunpack.c.l.b16 %v147
  %v631 = vunpack.c.l.b16 %v148
  %v632 = vunpack.c.l.b16 %v149
  %v633 = vunpack.c.l.b16 %v150
  %v634 = vunpack.c.l.b16 %v151
  %v635 = vunpack.c.l.b16 %v152
  %v636 = vunpack.c.l.b16 %v153
  %v637 = vunpack.c.l.b16 %v154
  %v638 = vunpack.c.l.b16 %v155
  %v639 = vunpack.c.l.b16 %v156
  %v640 = vunpack.c.l.b16 %v157
  %v641 = vunpack.c.l.b16 %v158
  %v642 = vunpack.c.l.b16 %v159
  %v643 = vunpack.c.l.b16 %v160
  %v644 = vunpack.c.l.b16 %v161
  %v645 = vunpack.c.l.b16 %v162
  %v646 = vunpack.c.l.b16 %v163
  %v647 = vunpack.c.l.b16 %v164
  %v648 = vunpack.c.l.b16 %v165
  %v649 = vunpack.c.l.b16 %v166
  %v650 = vunpack.c.l.b16 %v167
  %v651 = vunpack.c.l.b16 %v168
  %v652 = vunpack.c.l.b16 %v169
  %v653 = vunpack.c.l.b16 %v170
  %v654 = vunpack.c.l.b16 %v171
  %v655 = vunpack.c.l.b16 %v172
  %v656 = vunpack.c.l.b16 %v173
  %v657 = vunpack.c.l.b16 %v174
  %v658 = vunpack.c.l.b16 %v175
  %v659 = vunpack.c.l.b16 %v176
  %v660 = vunpack.c.l.b16 %v177
  %v661 = vunpack.c.l.b16 %v178
  %v662 = vunpack.c.l.b16 %v179
  %v663 = vunpack.c.l.b16 %v180
  %v664 = vunpack.c.l.b16 %v181
  %v665 = vunpack.c.l.b16 %v182
  %v666 = vunpack.c.l.b16 %v183
  %v667 = vunpack.c.l.b16 %v184
  %v668 = vunpack.c.l.b16 %v185
  %v669 = vunpack.c.l.b16 %v186
  %v670 = vunpack.c.l.b16 %v187
  %v671 = vunpack.c.l.b16 %v188
  %v672 = vunpack.c.l.b16 %v189
  %v673 = vunpack.c.l.b16 %v190
  %v674 = vunpack.c.l.b16 %v191
  %v675 = vunpack.c.l.b16 %v192
  %v676 = vunpack.c.l.b16 %v193
  %v677 = vunpack.c.l.b16 %v194
  %v678 = vunpack.c.l.b16 %v195
  %v679 = vunpack.c.l.b16 %v196
  %v680 = vunpack.c.l.b16 %v197
  %v681 = vunpack.c.l.b16 %v198
  %v682 = vunpack.c.l.b16 %v199
  %v683 = vunpack.c.l.b16 %v200
  %v684 = vpack.c.b16 %v535, %v534
  %v685 = vpack.c.b16 %v537, %v536
  %v686 = vpack.c.b16 %v539, %v538
  %v687 = vpack.c.b16 %v541, %v540
  %v688 = vpack.c.b16 %v543, %v542
  %v689 = vpack.c.b16 %v545, %v544
  %v690 = vpack.c.b16 %v547, %v546
  %v691 = vpack.c.b16 %v549, %v548
  %v692 = vpack.c.b16 %v551, %v550
  %v693 = vpack.c.b16 %v553, %v552
  %v694 = vpack.c.b16 %v555, %v554
  %v695 = vpack.c.b16 %v557, %v556
  %v696 = vpack.c.b16 %v559, %v558
  %v697 = vpack.c.b16 %v561, %v560
  %v698 = vpack.c.b16 %v563, %v562
  %v699 = vpack.c.b16 %v565, %v564
  %v700 = vpack.c.b16 %v567, %v566
  %v701 = vpack.c.b16 %v569, %v568
  %v702 = vpack.c.b16 %v571, %v570
  %v703 = vpack.c.b16 %v573, %v572
  %v704 = vpack.c.b16 %v575, %v574
  %v705 = vpack.c.b16 %v577, %v576
  %v706 = vpack.c.b16 %v579, %v578
  %v707 = vpack.c.b16 %v581, %v580
  %v708 = vpack.c.b16 %v583, %v582
  %v709 = vpack.c.b16 %v585, %v584
  %v710 = vpack.c.b16 %v587, %v586
  %v711 = vpack.c.b16 %v589, %v588
  %v712 = vpack.c.b16 %v591, %v590
  %v713 = vpack.c.b16 %v593, %v592
  %v714 = vpack.c.b16 %v595, %v594
  %v715 = vpack.c.b16 %v597, %v596
  %v716 = vpack.c.b16 %v599, %v598
  %v717 = vpack.c.b16 %v601, %v600
  %v718 = vpack.c.b16 %v603, %v602
  %v719 = vpack.c.b16 %v605, %v604
  %v720 = vpack.c.b16 %v607, %v606
  %v721 = vpack.c.b16 %v609, %v608
  %v722 = vpack.c.b16 %v611, %v610
  %v723 = vpack.c.b16 %v613, %v612
  %v724 = vpack.c.b16 %v615, %v614
  %v725 = vpack.c.b16 %v617, %v616
  %v726 = vpack.c.b16 %v619, %v618
  %v727 = vpack.c.b16 %v621, %v620
  %v728 = vpack.c.b16 %v623, %v622
  %v729 = vpack.c.b16 %v625, %v624
  %v730 = vpack.c.b16 %v627, %v626
  %v731 = vpack.c.b16 %v629, %v628
  %v732 = vpack.c.b16 %v631, %v630
  %v733 = vpack.c.b16 %v633, %v632
  %v734 = vpack.c.b16 %v635, %v634
  %v735 = vpack.c.b16 %v637, %v636
  %v736 = vpack.c.b16 %v639, %v638
  %v737 = vpack.c.b16 %v641, %v640
  %v738 = vpack.c.b16 %v643, %v642
  %v739 = vpack.c.b16 %v645, %v644
  %v740 = vpack.c.b16 %v647, %v646
  %v741 = vpack.c.b16 %v649, %v648
  %v742 = vpack.c.b16 %v651, %v650
  %v743 = vpack.c.b16 %v653, %v652
  %v744 = vpack.c.b16 %v655, %v654
  %v745 = vpack.c.b16 %v657, %v656
  %v746 = vpack.c.b16 %v659, %v658
  %v747 = vpack.c.b16 %v661, %v660
  %v748 = vpack.c.b16 %v663, %v662
  %v749 = vpack.c.b16 %v665, %v664
  %v750 = vpack.c.b16 %v667, %v666
  %v751 = vpack.c.b16 %v669, %v668
  %v752 = vpack.c.b16 %v671, %v670
  %v753 = vpack.c.b16 %v673, %v672
  %v754 = vpack.c.b16 %v675, %v674
  %v755 = vpack.c.b16 %v677, %v676
  %v756 = vpack.c.b16 %v679, %v678
  %v757 = vpack.c.b16 %v681, %v680
  %v758 = vpack.c.b16 %v683, %v682
  %vm834 = vcmask 392192
  %v836 = vsel %vm834, %v336, 0
  %v839 = vsel %vm834, %v346, 0
  %v842 = vsel %vm834, %v356, 0
  %844 = vmatpush.bf16.msra.mxu0 %v691
  %845 = vmatpush.bf16.msra.mxu0 %v690
  %846 = vmatpush.bf16.msra.mxu0 %v689
  %847 = vmatpush.bf16.msra.mxu0 %v688
  %848 = vmatpush.bf16.msra.mxu0 %v687
  %849 = vmatpush.bf16.msra.mxu0 %v686
  %850 = vmatpush.bf16.msra.mxu0 %v685
  %851 = vmatpush.bf16.msra.mxu0 %v684
  %852 = vmatmul.bf16.gmra.mxu0 %v327
  %v853 = vpop.f32.mrf.mxu0
  %v854 = vadd.f32 %v210, %v853
  %v855 = vpop.f32.mrf.mxu0
  %v856 = vadd.f32 %v215, %v855
  %857 = vmatmul.bf16.gmra.mxu0 %v337
  %v858 = vpop.f32.mrf.mxu0
  %v859 = vadd.f32 %v220, %v858
  %v860 = vpop.f32.mrf.mxu0
  %v861 = vadd.f32 %v225, %v860
  %862 = vmatmul.bf16.gmra.mxu0 %v347
  %v863 = vpop.f32.mrf.mxu0
  %v864 = vadd.f32 %v230, %v863
  %v865 = vpop.f32.mrf.mxu0
  %v866 = vadd.f32 %v235, %v865
  %867 = vdwg.mxu0
  %868 = vmatpush.bf16.msra.mxu0 %v699
  %869 = vmatpush.bf16.msra.mxu0 %v698
  %870 = vmatpush.bf16.msra.mxu0 %v697
  %871 = vmatpush.bf16.msra.mxu0 %v696
  %872 = vmatpush.bf16.msra.mxu0 %v695
  %873 = vmatpush.bf16.msra.mxu0 %v694
  %874 = vmatpush.bf16.msra.mxu0 %v693
  %875 = vmatpush.bf16.msra.mxu0 %v692
  %876 = vmatmul.bf16.gmra.mxu0 %v328
  %v877 = vpop.f32.mrf.mxu0
  %v878 = vadd.f32 %v854, %v877
  %v879 = vpop.f32.mrf.mxu0
  %v880 = vadd.f32 %v856, %v879
  %881 = vmatmul.bf16.gmra.mxu0 %v338
  %v882 = vpop.f32.mrf.mxu0
  %v883 = vadd.f32 %v859, %v882
  %v884 = vpop.f32.mrf.mxu0
  %v885 = vadd.f32 %v861, %v884
  %886 = vmatmul.bf16.gmra.mxu0 %v348
  %v887 = vpop.f32.mrf.mxu0
  %v888 = vadd.f32 %v864, %v887
  %v889 = vpop.f32.mrf.mxu0
  %v890 = vadd.f32 %v866, %v889
  %891 = vdwg.mxu0
  %892 = vmatpush.bf16.msra.mxu0 %v707
  %893 = vmatpush.bf16.msra.mxu0 %v706
  %894 = vmatpush.bf16.msra.mxu0 %v705
  %895 = vmatpush.bf16.msra.mxu0 %v704
  %896 = vmatpush.bf16.msra.mxu0 %v703
  %897 = vmatpush.bf16.msra.mxu0 %v702
  %898 = vmatpush.bf16.msra.mxu0 %v701
  %899 = vmatpush.bf16.msra.mxu0 %v700
  %900 = vmatmul.bf16.gmra.mxu0 %v329
  %v901 = vpop.f32.mrf.mxu0
  %v902 = vadd.f32 %v878, %v901
  %v903 = vpop.f32.mrf.mxu0
  %v904 = vadd.f32 %v880, %v903
  %905 = vmatmul.bf16.gmra.mxu0 %v339
  %v906 = vpop.f32.mrf.mxu0
  %v907 = vadd.f32 %v883, %v906
  %v908 = vpop.f32.mrf.mxu0
  %v909 = vadd.f32 %v885, %v908
  %910 = vmatmul.bf16.gmra.mxu0 %v349
  %v911 = vpop.f32.mrf.mxu0
  %v912 = vadd.f32 %v888, %v911
  %v913 = vpop.f32.mrf.mxu0
  %v914 = vadd.f32 %v890, %v913
  %915 = vdwg.mxu0
  %916 = vmatpush.bf16.msra.mxu0 %v715
  %917 = vmatpush.bf16.msra.mxu0 %v714
  %918 = vmatpush.bf16.msra.mxu0 %v713
  %919 = vmatpush.bf16.msra.mxu0 %v712
  %920 = vmatpush.bf16.msra.mxu0 %v711
  %921 = vmatpush.bf16.msra.mxu0 %v710
  %922 = vmatpush.bf16.msra.mxu0 %v709
  %923 = vmatpush.bf16.msra.mxu0 %v708
  %924 = vmatmul.bf16.gmra.mxu0 %v330
  %v925 = vpop.f32.mrf.mxu0
  %v926 = vadd.f32 %v902, %v925
  %v927 = vpop.f32.mrf.mxu0
  %v928 = vadd.f32 %v904, %v927
  %929 = vmatmul.bf16.gmra.mxu0 %v340
  %v930 = vpop.f32.mrf.mxu0
  %v931 = vadd.f32 %v907, %v930
  %v932 = vpop.f32.mrf.mxu0
  %v933 = vadd.f32 %v909, %v932
  %934 = vmatmul.bf16.gmra.mxu0 %v350
  %v935 = vpop.f32.mrf.mxu0
  %v936 = vadd.f32 %v912, %v935
  %v937 = vpop.f32.mrf.mxu0
  %v938 = vadd.f32 %v914, %v937
  %939 = vdwg.mxu0
  %940 = vmatpush.bf16.msra.mxu0 %v723
  %941 = vmatpush.bf16.msra.mxu0 %v722
  %942 = vmatpush.bf16.msra.mxu0 %v721
  %943 = vmatpush.bf16.msra.mxu0 %v720
  %944 = vmatpush.bf16.msra.mxu0 %v719
  %945 = vmatpush.bf16.msra.mxu0 %v718
  %946 = vmatpush.bf16.msra.mxu0 %v717
  %947 = vmatpush.bf16.msra.mxu0 %v716
  %948 = vmatmul.bf16.gmra.mxu0 %v331
  %v949 = vpop.f32.mrf.mxu0
  %v950 = vadd.f32 %v926, %v949
  %v951 = vpop.f32.mrf.mxu0
  %v952 = vadd.f32 %v928, %v951
  %953 = vmatmul.bf16.gmra.mxu0 %v341
  %v954 = vpop.f32.mrf.mxu0
  %v955 = vadd.f32 %v931, %v954
  %v956 = vpop.f32.mrf.mxu0
  %v957 = vadd.f32 %v933, %v956
  %958 = vmatmul.bf16.gmra.mxu0 %v351
  %v959 = vpop.f32.mrf.mxu0
  %v960 = vadd.f32 %v936, %v959
  %v961 = vpop.f32.mrf.mxu0
  %v962 = vadd.f32 %v938, %v961
  %963 = vdwg.mxu0
  %964 = vmatpush.bf16.msra.mxu0 %v731
  %965 = vmatpush.bf16.msra.mxu0 %v730
  %966 = vmatpush.bf16.msra.mxu0 %v729
  %967 = vmatpush.bf16.msra.mxu0 %v728
  %968 = vmatpush.bf16.msra.mxu0 %v727
  %969 = vmatpush.bf16.msra.mxu0 %v726
  %970 = vmatpush.bf16.msra.mxu0 %v725
  %971 = vmatpush.bf16.msra.mxu0 %v724
  %972 = vmatmul.bf16.gmra.mxu0 %v332
  %v973 = vpop.f32.mrf.mxu0
  %v974 = vadd.f32 %v950, %v973
  %v975 = vpop.f32.mrf.mxu0
  %v976 = vadd.f32 %v952, %v975
  %977 = vmatmul.bf16.gmra.mxu0 %v342
  %v978 = vpop.f32.mrf.mxu0
  %v979 = vadd.f32 %v955, %v978
  %v980 = vpop.f32.mrf.mxu0
  %v981 = vadd.f32 %v957, %v980
  %982 = vmatmul.bf16.gmra.mxu0 %v352
  %v983 = vpop.f32.mrf.mxu0
  %v984 = vadd.f32 %v960, %v983
  %v985 = vpop.f32.mrf.mxu0
  %v986 = vadd.f32 %v962, %v985
  %987 = vdwg.mxu0
  %988 = vmatpush.bf16.msra.mxu0 %v739
  %989 = vmatpush.bf16.msra.mxu0 %v738
  %990 = vmatpush.bf16.msra.mxu0 %v737
  %991 = vmatpush.bf16.msra.mxu0 %v736
  %992 = vmatpush.bf16.msra.mxu0 %v735
  %993 = vmatpush.bf16.msra.mxu0 %v734
  %994 = vmatpush.bf16.msra.mxu0 %v733
  %995 = vmatpush.bf16.msra.mxu0 %v732
  %996 = vmatmul.bf16.gmra.mxu0 %v333
  %v997 = vpop.f32.mrf.mxu0
  %v998 = vadd.f32 %v974, %v997
  %v999 = vpop.f32.mrf.mxu0
  %v1000 = vadd.f32 %v976, %v999
  %1001 = vmatmul.bf16.gmra.mxu0 %v343
  %v1002 = vpop.f32.mrf.mxu0
  %v1003 = vadd.f32 %v979, %v1002
  %v1004 = vpop.f32.mrf.mxu0
  %v1005 = vadd.f32 %v981, %v1004
  %1006 = vmatmul.bf16.gmra.mxu0 %v353
  %v1007 = vpop.f32.mrf.mxu0
  %v1008 = vadd.f32 %v984, %v1007
  %v1009 = vpop.f32.mrf.mxu0
  %v1010 = vadd.f32 %v986, %v1009
  %1011 = vdwg.mxu0
  %1012 = vmatpush.bf16.msra.mxu0 %v747
  %1013 = vmatpush.bf16.msra.mxu0 %v746
  %1014 = vmatpush.bf16.msra.mxu0 %v745
  %1015 = vmatpush.bf16.msra.mxu0 %v744
  %1016 = vmatpush.bf16.msra.mxu0 %v743
  %1017 = vmatpush.bf16.msra.mxu0 %v742
  %1018 = vmatpush.bf16.msra.mxu0 %v741
  %1019 = vmatpush.bf16.msra.mxu0 %v740
  %1020 = vmatmul.bf16.gmra.mxu0 %v334
  %v1021 = vpop.f32.mrf.mxu0
  %v1022 = vadd.f32 %v998, %v1021
  %v1023 = vpop.f32.mrf.mxu0
  %v1024 = vadd.f32 %v1000, %v1023
  %1025 = vmatmul.bf16.gmra.mxu0 %v344
  %v1026 = vpop.f32.mrf.mxu0
  %v1027 = vadd.f32 %v1003, %v1026
  %v1028 = vpop.f32.mrf.mxu0
  %v1029 = vadd.f32 %v1005, %v1028
  %1030 = vmatmul.bf16.gmra.mxu0 %v354
  %v1031 = vpop.f32.mrf.mxu0
  %v1032 = vadd.f32 %v1008, %v1031
  %v1033 = vpop.f32.mrf.mxu0
  %v1034 = vadd.f32 %v1010, %v1033
  %1035 = vdwg.mxu0
  %1036 = vmatpush.bf16.msra.mxu0 %v755
  %1037 = vmatpush.bf16.msra.mxu0 %v754
  %1038 = vmatpush.bf16.msra.mxu0 %v753
  %1039 = vmatpush.bf16.msra.mxu0 %v752
  %1040 = vmatpush.bf16.msra.mxu0 %v751
  %1041 = vmatpush.bf16.msra.mxu0 %v750
  %1042 = vmatpush.bf16.msra.mxu0 %v749
  %1043 = vmatpush.bf16.msra.mxu0 %v748
  %1044 = vmatmul.bf16.gmra.mxu0 %v335
  %v1045 = vpop.f32.mrf.mxu0
  %v1046 = vadd.f32 %v1022, %v1045
  %v1047 = vpop.f32.mrf.mxu0
  %v1048 = vadd.f32 %v1024, %v1047
  %1049 = vmatmul.bf16.gmra.mxu0 %v345
  %v1050 = vpop.f32.mrf.mxu0
  %v1051 = vadd.f32 %v1027, %v1050
  %v1052 = vpop.f32.mrf.mxu0
  %v1053 = vadd.f32 %v1029, %v1052
  %1054 = vmatmul.bf16.gmra.mxu0 %v355
  %v1055 = vpop.f32.mrf.mxu0
  %v1056 = vadd.f32 %v1032, %v1055
  %v1057 = vpop.f32.mrf.mxu0
  %v1058 = vadd.f32 %v1034, %v1057
  %1059 = vdwg.mxu0
  %1060 = vmatpush.bf16.msra.mxu0 0
  %1061 = vmatpush.bf16.msra.mxu0 0
  %1062 = vmatpush.bf16.msra.mxu0 0
  %1063 = vmatpush.bf16.msra.mxu0 0
  %1064 = vmatpush.bf16.msra.mxu0 0
  %1065 = vmatpush.bf16.msra.mxu0 %v758
  %1066 = vmatpush.bf16.msra.mxu0 %v757
  %1067 = vmatpush.bf16.msra.mxu0 %v756
  %1068 = vmatmul.bf16.gmra.mxu0 %v836
  %v1069 = vpop.f32.mrf.mxu0
  %v1070 = vadd.f32 %v1046, %v1069
  %v1071 = vpop.f32.mrf.mxu0
  %v1072 = vadd.f32 %v1048, %v1071
  %1073 = vmatmul.bf16.gmra.mxu0 %v839
  %v1074 = vpop.f32.mrf.mxu0
  %v1075 = vadd.f32 %v1051, %v1074
  %v1076 = vpop.f32.mrf.mxu0
  %v1077 = vadd.f32 %v1053, %v1076
  %1078 = vmatmul.bf16.gmra.mxu0 %v842
  %v1079 = vpop.f32.mrf.mxu0
  %v1080 = vadd.f32 %v1056, %v1079
  %v1081 = vpop.f32.mrf.mxu0
  %v1082 = vadd.f32 %v1058, %v1081
  %1083 = vdwg.mxu0
  %v1084 = vld [vmem:[%s3] sm:$0xff]
  %v1085 = vld [vmem:[%s3 + $0x8] sm:$0xff]
  %v1086 = vld [vmem:[%s3 + $0x10] sm:$0xff]
  %v1087 = vld [vmem:[%s3 + $0x18] sm:$0xff]
  %v1088 = vld [vmem:[%s3 + $0x20] sm:$0xff]
  %v1089 = vld [vmem:[%s3 + $0x28] sm:$0xff]
  %v1090 = vmul.f32 %v1070, %v1070
  %v1091 = vmul.f32 %v1072, %v1072
  %v1092 = vmul.f32 %v1075, %v1075
  %v1093 = vmul.f32 %v1077, %v1077
  %v1094 = vmul.f32 %v1080, %v1080
  %v1095 = vmul.f32 %v1082, %v1082
  %v1096 = vld [vmem:[%s4] sm:$0xff]
  %v1097 = vld [vmem:[%s4 + $0x8] sm:$0xff]
  %v1098 = vld [vmem:[%s4 + $0x10] sm:$0xff]
  %v1099 = vld [vmem:[%s4 + $0x18] sm:$0xff]
  %v1100 = vld [vmem:[%s4 + $0x20] sm:$0xff]
  %v1101 = vld [vmem:[%s4 + $0x28] sm:$0xff]
  %1103 = vset.pattern.permute.xlu0 0
  %1104 = vperm.xlu0 %1103, %v1096
  %v1105 = vpop.permute.xlu0 %1104
  %1108 = vset.pattern.permute.xlu0 0
  %1109 = vperm.xlu0 %1108, %v1097
  %v1110 = vpop.permute.xlu0 %1109
  %1113 = vset.pattern.permute.xlu0 0
  %1114 = vperm.xlu0 %1113, %v1098
  %v1115 = vpop.permute.xlu0 %1114
  %1118 = vset.pattern.permute.xlu0 0
  %1119 = vperm.xlu0 %1118, %v1099
  %v1120 = vpop.permute.xlu0 %1119
  %1123 = vset.pattern.permute.xlu0 0
  %1124 = vperm.xlu0 %1123, %v1100
  %v1125 = vpop.permute.xlu0 %1124
  %1128 = vset.pattern.permute.xlu0 0
  %1129 = vperm.xlu0 %1128, %v1101
  %v1130 = vpop.permute.xlu0 %1129
  %v1133 = vsel %vm834, %v1084, 0
  %v1136 = vsel %vm834, %v1085, 0
  %v1139 = vsel %vm834, %v1086, 0
  %v1142 = vsel %vm834, %v1087, 0
  %v1145 = vsel %vm834, %v1088, 0
  %v1148 = vsel %vm834, %v1089, 0
  %1150 = vmatpush.msra.mxu0 0.0
  %1151 = vmatpush.msra.mxu0 0.0
  %1152 = vmatpush.msra.mxu0 0.0
  %1153 = vmatpush.msra.mxu0 0.0
  %1154 = vmatpush.msra.mxu0 0.0
  %1155 = vmatpush.msra.mxu0 0.0
  %1156 = vmatpush.msra.mxu0 0.0
  %1157 = vmatpush.msra.mxu0 0.0
  %1158 = vmatpush.msra.mxu0 0.0
  %1159 = vmatpush.msra.mxu0 0.0
  %1160 = vmatpush.msra.mxu0 %v1095
  %1161 = vmatpush.msra.mxu0 %v1094
  %1162 = vmatpush.msra.mxu0 %v1093
  %1163 = vmatpush.msra.mxu0 %v1092
  %1164 = vmatpush.msra.mxu0 %v1091
  %1165 = vmatpush.msra.mxu0 %v1090
  %1166 = vmatmul.f32.gmra.mxu0 %v1133
  %v1167 = vpop.f32.mrf.mxu0
  %v1168 = vadd.f32 %v1105, %v1167
  %1169 = vmatmul.f32.gmra.mxu0 %v1136
  %v1170 = vpop.f32.mrf.mxu0
  %v1171 = vadd.f32 %v1110, %v1170
  %1172 = vmatmul.f32.gmra.mxu0 %v1139
  %v1173 = vpop.f32.mrf.mxu0
  %v1174 = vadd.f32 %v1115, %v1173
  %1175 = vmatmul.f32.gmra.mxu0 %v1142
  %v1176 = vpop.f32.mrf.mxu0
  %v1177 = vadd.f32 %v1120, %v1176
  %1178 = vmatmul.f32.gmra.mxu0 %v1145
  %v1179 = vpop.f32.mrf.mxu0
  %v1180 = vadd.f32 %v1125, %v1179
  %1181 = vmatmul.f32.gmra.mxu0 %v1148
  %v1182 = vpop.f32.mrf.mxu0
  %v1183 = vadd.f32 %v1130, %v1182
  %1184 = vdwg.mxu0
  %v1185 = vrsqrt.pop %v1168
  %v1186 = vmul.f32 %v1185, %v1168
  %v1187 = vmul.f32 %v1186, %v1185
  %v1188 = vmul.f32 0.5, %v1187
  %v1189 = vsub.f32 1.5, %v1188
  %v1190 = vmul.f32 %v1185, %v1189
  %vm1191 = vweird.f32 %v1168
  %vm1192 = vweird.f32 %v1185
  %vm1193 = vmor %vm1191, %vm1192
  %v1194 = vsel %vm1193, %v1185, %v1190
  %v1195 = vrsqrt.pop %v1171
  %v1196 = vmul.f32 %v1195, %v1171
  %v1197 = vmul.f32 %v1196, %v1195
  %v1198 = vmul.f32 0.5, %v1197
  %v1199 = vsub.f32 1.5, %v1198
  %v1200 = vmul.f32 %v1195, %v1199
  %vm1201 = vweird.f32 %v1171
  %vm1202 = vweird.f32 %v1195
  %vm1203 = vmor %vm1201, %vm1202
  %v1204 = vsel %vm1203, %v1195, %v1200
  %v1205 = vrsqrt.pop %v1174
  %v1206 = vmul.f32 %v1205, %v1174
  %v1207 = vmul.f32 %v1206, %v1205
  %v1208 = vmul.f32 0.5, %v1207
  %v1209 = vsub.f32 1.5, %v1208
  %v1210 = vmul.f32 %v1205, %v1209
  %vm1211 = vweird.f32 %v1174
  %vm1212 = vweird.f32 %v1205
  %vm1213 = vmor %vm1211, %vm1212
  %v1214 = vsel %vm1213, %v1205, %v1210
  %v1215 = vrsqrt.pop %v1177
  %v1216 = vmul.f32 %v1215, %v1177
  %v1217 = vmul.f32 %v1216, %v1215
  %v1218 = vmul.f32 0.5, %v1217
  %v1219 = vsub.f32 1.5, %v1218
  %v1220 = vmul.f32 %v1215, %v1219
  %vm1221 = vweird.f32 %v1177
  %vm1222 = vweird.f32 %v1215
  %vm1223 = vmor %vm1221, %vm1222
  %v1224 = vsel %vm1223, %v1215, %v1220
  %v1225 = vrsqrt.pop %v1180
  %v1226 = vmul.f32 %v1225, %v1180
  %v1227 = vmul.f32 %v1226, %v1225
  %v1228 = vmul.f32 0.5, %v1227
  %v1229 = vsub.f32 1.5, %v1228
  %v1230 = vmul.f32 %v1225, %v1229
  %vm1231 = vweird.f32 %v1180
  %vm1232 = vweird.f32 %v1225
  %vm1233 = vmor %vm1231, %vm1232
  %v1234 = vsel %vm1233, %v1225, %v1230
  %v1235 = vrsqrt.pop %v1183
  %v1236 = vmul.f32 %v1235, %v1183
  %v1237 = vmul.f32 %v1236, %v1235
  %v1238 = vmul.f32 0.5, %v1237
  %v1239 = vsub.f32 1.5, %v1238
  %v1240 = vmul.f32 %v1235, %v1239
  %vm1241 = vweird.f32 %v1183
  %vm1242 = vweird.f32 %v1235
  %vm1243 = vmor %vm1241, %vm1242
  %v1244 = vsel %vm1243, %v1235, %v1240
  %v1245 = vmul.f32 %v1070, %v1194
  %v1246 = vmul.f32 %v1072, %v1204
  %v1247 = vmul.f32 %v1075, %v1214
  %v1248 = vmul.f32 %v1077, %v1224
  %v1249 = vmul.f32 %v1080, %v1234
  %v1250 = vmul.f32 %v1082, %v1244
  %1251 = vst [vmem:[%s5] sm:$0xff] %v1245
  %1252 = vst [vmem:[%s5 + $0x8] sm:$0xff] %v1246
  %1253 = vst [vmem:[%s5 + $0x10] sm:$0xff] %v1247
  %1254 = vst [vmem:[%s5 + $0x18] sm:$0xff] %v1248
  %1255 = vst [vmem:[%s5 + $0x20] sm:$0xff] %v1249
  %1256 = vst [vmem:[%s5 + $0x28] sm:$0xff] %v1250
  // Predicated region
  $region22: #{forward.11} parent=0 // pred_check
    _
  $region23: #{forward.11} parent=0 // pred_check_branch
    %1258 = sbr.rel (0) target = $region25
  $region24: #{forward.11} parent=0 // pred_region
    _
  $region25: #{forward.11} parent=0 // pred_fallthru
    _
  // Predicated region
  $region26: #{forward.11} parent=0 // pred_check
    _
  $region27: #{forward.11} parent=0 // pred_check_branch
    %1260 = sbr.rel (0) target = $region29
  $region28: #{forward.11} parent=0 // pred_region
    _
  $region29: #{forward.11} parent=0 // pred_fallthru
    _

// kernel: forward.12
$region0: #{forward.12}
  #allocation0 [shape = 'u32[]', space=smem, size = 0x4, offset = 0x4, fixed_abs, tag = 'smem constant byte address 0x4 - core index']
  #allocation1 [shape = 'u32[72,128]{1,0:T(1,128)}', space=vmem, size = 0x9000, scoped, tag = 'internal scratch']
  %s0 = inlined_call_operand.vmem [shape: bf16[48,1200], index: 0, kind: input, shape index: {}]
  %s1 = inlined_call_operand.vmem [shape: bf16[1200,128], index: 1, kind: input, shape index: {}]
  %s2 = inlined_call_operand.vmem [shape: f32[48,1], index: 2, kind: input, shape index: {}]
  %s3 = inlined_call_operand.vmem [shape: f32[48,128], index: 3, kind: output, shape index: {}]
  %s4 = sld [smem:[#allocation0]]
  $region22: #{forward.12} parent=0
    _
  %s6 = ssub.s32 1, %s4
  %s7 = scalar_select 0, %s6, %s4
  // Predicated region
  $region2: #{forward.12} parent=0 // pred_check
    _
  $region3: #{forward.12} parent=0 // pred_check_branch
    %9 = sbr.rel (0) target = $region5
  $region4: #{forward.12} parent=0 // pred_region
    _
  $region5: #{forward.12} parent=0 // pred_fallthru
    _
  // Predicated region
  $region6: #{forward.12} parent=0 // pred_check
    _
  $region7: #{forward.12} parent=0 // pred_check_branch
    %11 = sbr.rel (0) target = $region9
  $region8: #{forward.12} parent=0 // pred_region
    _
  $region9: #{forward.12} parent=0 // pred_fallthru
    _
  // Predicated region
  $region10: #{forward.12} parent=0 // pred_check
    _
  $region11: #{forward.12} parent=0 // pred_check_branch
    %13 = sbr.rel (0) target = $region13
  $region12: #{forward.12} parent=0 // pred_region
    _
  $region13: #{forward.12} parent=0 // pred_fallthru
    _
  %v15 = vld [vmem:[%s0] sm:$0xff]
  %v16 = vld [vmem:[%s0 + $0x8] sm:$0xff]
  %v17 = vld [vmem:[%s0 + $0x10] sm:$0xff]
  %v18 = vld [vmem:[%s0 + $0x18] sm:$0xff]
  %v19 = vld [vmem:[%s0 + $0x20] sm:$0xff]
  %v20 = vld [vmem:[%s0 + $0x28] sm:$0xff]
  %v21 = vld [vmem:[%s0 + $0x30] sm:$0xff]
  %v22 = vld [vmem:[%s0 + $0x38] sm:$0xff]
  %v23 = vld [vmem:[%s0 + $0x40] sm:$0xff]
  %v24 = vld [vmem:[%s0 + $0x48] sm:$0xff]
  %v25 = vld [vmem:[%s0 + $0x50] sm:$0xff]
  %v26 = vld [vmem:[%s0 + $0x58] sm:$0xff]
  %v27 = vld [vmem:[%s0 + $0x60] sm:$0xff]
  %v28 = vld [vmem:[%s0 + $0x68] sm:$0xff]
  %v29 = vld [vmem:[%s0 + $0x70] sm:$0xff]
  %v30 = vld [vmem:[%s0 + $0x78] sm:$0xff]
  %v31 = vld [vmem:[%s0 + $0x80] sm:$0xff]
  %v32 = vld [vmem:[%s0 + $0x88] sm:$0xff]
  %v33 = vld [vmem:[%s0 + $0x90] sm:$0xff]
  %v34 = vld [vmem:[%s0 + $0x98] sm:$0xff]
  %v35 = vld [vmem:[%s0 + $0xa0] sm:$0xff]
  %v36 = vld [vmem:[%s0 + $0xa8] sm:$0xff]
  %v37 = vld [vmem:[%s0 + $0xb0] sm:$0xff]
  %v38 = vld [vmem:[%s0 + $0xb8] sm:$0xff]
  %v39 = vld [vmem:[%s0 + $0xc0] sm:$0xff]
  %v40 = vld [vmem:[%s0 + $0xc8] sm:$0xff]
  %v41 = vld [vmem:[%s0 + $0xd0] sm:$0xff]
  %v42 = vld [vmem:[%s0 + $0xd8] sm:$0xff]
  %v43 = vld [vmem:[%s0 + $0xe0] sm:$0xff]
  %v44 = vld [vmem:[%s0 + $0xe8] sm:$0xff]
  %v45 = vld [vmem:[%s1] sm:$0xf]
  %v46 = vld [vmem:[%s1 + $0x4] sm:$0xf]
  %v47 = vld [vmem:[%s1 + $0x8] sm:$0xf]
  %v48 = vld [vmem:[%s1 + $0xc] sm:$0xf]
  %v49 = vld [vmem:[%s1 + $0x10] sm:$0xf]
  %v50 = vld [vmem:[%s1 + $0x14] sm:$0xf]
  %v51 = vld [vmem:[%s1 + $0x18] sm:$0xf]
  %v52 = vld [vmem:[%s1 + $0x1c] sm:$0xf]
  %v53 = vld [vmem:[%s1 + $0x20] sm:$0xf]
  %v54 = vld [vmem:[%s1 + $0x24] sm:$0xf]
  %v55 = vld [vmem:[%s1 + $0x28] sm:$0xf]
  %v56 = vld [vmem:[%s1 + $0x2c] sm:$0xf]
  %v57 = vld [vmem:[%s1 + $0x30] sm:$0xf]
  %v58 = vld [vmem:[%s1 + $0x34] sm:$0xf]
  %v59 = vld [vmem:[%s1 + $0x38] sm:$0xf]
  %v60 = vld [vmem:[%s1 + $0x3c] sm:$0xf]
  %v61 = vld [vmem:[%s1 + $0x40] sm:$0xf]
  %v62 = vld [vmem:[%s1 + $0x44] sm:$0xf]
  %v63 = vld [vmem:[%s1 + $0x48] sm:$0xf]
  %v64 = vld [vmem:[%s1 + $0x4c] sm:$0xf]
  %v65 = vld [vmem:[%s1 + $0x50] sm:$0xf]
  %v66 = vld [vmem:[%s1 + $0x54] sm:$0xf]
  %v67 = vld [vmem:[%s1 + $0x58] sm:$0xf]
  %v68 = vld [vmem:[%s1 + $0x5c] sm:$0xf]
  %v69 = vld [vmem:[%s1 + $0x60] sm:$0xf]
  %v70 = vld [vmem:[%s1 + $0x64] sm:$0xf]
  %v71 = vld [vmem:[%s1 + $0x68] sm:$0xf]
  %v72 = vld [vmem:[%s1 + $0x6c] sm:$0xf]
  %v73 = vld [vmem:[%s1 + $0x70] sm:$0xf]
  %v74 = vld [vmem:[%s1 + $0x74] sm:$0xf]
  %v75 = vld [vmem:[%s1 + $0x78] sm:$0xf]
  %v76 = vld [vmem:[%s1 + $0x7c] sm:$0xf]
  %v77 = vld [vmem:[%s1 + $0x80] sm:$0xf]
  %v78 = vld [vmem:[%s1 + $0x84] sm:$0xf]
  %v79 = vld [vmem:[%s1 + $0x88] sm:$0xf]
  %v80 = vld [vmem:[%s1 + $0x8c] sm:$0xf]
  %v81 = vld [vmem:[%s1 + $0x90] sm:$0xf]
  %v82 = vld [vmem:[%s1 + $0x94] sm:$0xf]
  %v83 = vld [vmem:[%s1 + $0x98] sm:$0xf]
  %v84 = vld [vmem:[%s1 + $0x9c] sm:$0xf]
  %v85 = vld [vmem:[%s1 + $0xa0] sm:$0xf]
  %v86 = vld [vmem:[%s1 + $0xa4] sm:$0xf]
  %v87 = vld [vmem:[%s1 + $0xa8] sm:$0xf]
  %v88 = vld [vmem:[%s1 + $0xac] sm:$0xf]
  %v89 = vld [vmem:[%s1 + $0xb0] sm:$0xf]
  %v90 = vld [vmem:[%s1 + $0xb4] sm:$0xf]
  %v91 = vld [vmem:[%s1 + $0xb8] sm:$0xf]
  %v92 = vld [vmem:[%s1 + $0xbc] sm:$0xf]
  %v93 = vld [vmem:[%s1 + $0xc0] sm:$0xf]
  %v94 = vld [vmem:[%s1 + $0xc4] sm:$0xf]
  %v95 = vld [vmem:[%s1 + $0xc8] sm:$0xf]
  %v96 = vld [vmem:[%s1 + $0xcc] sm:$0xf]
  %v97 = vld [vmem:[%s1 + $0xd0] sm:$0xf]
  %v98 = vld [vmem:[%s1 + $0xd4] sm:$0xf]
  %v99 = vld [vmem:[%s1 + $0xd8] sm:$0xf]
  %v100 = vld [vmem:[%s1 + $0xdc] sm:$0xf]
  %v101 = vld [vmem:[%s1 + $0xe0] sm:$0xf]
  %v102 = vld [vmem:[%s1 + $0xe4] sm:$0xf]
  %v103 = vld [vmem:[%s1 + $0xe8] sm:$0xf]
  %v104 = vld [vmem:[%s1 + $0xec] sm:$0xf]
  %v105 = vld [vmem:[%s1 + $0xf0] sm:$0xf]
  %v106 = vld [vmem:[%s1 + $0xf4] sm:$0xf]
  %v107 = vld [vmem:[%s1 + $0xf8] sm:$0xf]
  %v108 = vld [vmem:[%s1 + $0xfc] sm:$0xf]
  %v109 = vld [vmem:[%s1 + $0x100] sm:$0xf]
  %v110 = vld [vmem:[%s1 + $0x104] sm:$0xf]
  %v111 = vld [vmem:[%s1 + $0x108] sm:$0xf]
  %v112 = vld [vmem:[%s1 + $0x10c] sm:$0xf]
  %v113 = vld [vmem:[%s1 + $0x110] sm:$0xf]
  %v114 = vld [vmem:[%s1 + $0x114] sm:$0xf]
  %v115 = vld [vmem:[%s1 + $0x118] sm:$0xf]
  %v116 = vld [vmem:[%s1 + $0x11c] sm:$0xf]
  %v117 = vld [vmem:[%s1 + $0x120] sm:$0xf]
  %v118 = vld [vmem:[%s1 + $0x124] sm:$0xf]
  %v119 = vld [vmem:[%s1 + $0x128] sm:$0xf]
  %v120 = vld [vmem:[%s1 + $0x12c] sm:$0xf]
  %v121 = vld [vmem:[%s1 + $0x130] sm:$0xf]
  %v122 = vld [vmem:[%s1 + $0x134] sm:$0xf]
  %v123 = vld [vmem:[%s1 + $0x138] sm:$0xf]
  %v124 = vld [vmem:[%s1 + $0x13c] sm:$0xf]
  %v125 = vld [vmem:[%s1 + $0x140] sm:$0xf]
  %v126 = vld [vmem:[%s1 + $0x144] sm:$0xf]
  %v127 = vld [vmem:[%s1 + $0x148] sm:$0xf]
  %v128 = vld [vmem:[%s1 + $0x14c] sm:$0xf]
  %v129 = vld [vmem:[%s1 + $0x150] sm:$0xf]
  %v130 = vld [vmem:[%s1 + $0x154] sm:$0xf]
  %v131 = vld [vmem:[%s1 + $0x158] sm:$0xf]
  %v132 = vld [vmem:[%s1 + $0x15c] sm:$0xf]
  %v133 = vld [vmem:[%s1 + $0x160] sm:$0xf]
  %v134 = vld [vmem:[%s1 + $0x164] sm:$0xf]
  %v135 = vld [vmem:[%s1 + $0x168] sm:$0xf]
  %v136 = vld [vmem:[%s1 + $0x16c] sm:$0xf]
  %v137 = vld [vmem:[%s1 + $0x170] sm:$0xf]
  %v138 = vld [vmem:[%s1 + $0x174] sm:$0xf]
  %v139 = vld [vmem:[%s1 + $0x178] sm:$0xf]
  %v140 = vld [vmem:[%s1 + $0x17c] sm:$0xf]
  %v141 = vld [vmem:[%s1 + $0x180] sm:$0xf]
  %v142 = vld [vmem:[%s1 + $0x184] sm:$0xf]
  %v143 = vld [vmem:[%s1 + $0x188] sm:$0xf]
  %v144 = vld [vmem:[%s1 + $0x18c] sm:$0xf]
  %v145 = vld [vmem:[%s1 + $0x190] sm:$0xf]
  %v146 = vld [vmem:[%s1 + $0x194] sm:$0xf]
  %v147 = vld [vmem:[%s1 + $0x198] sm:$0xf]
  %v148 = vld [vmem:[%s1 + $0x19c] sm:$0xf]
  %v149 = vld [vmem:[%s1 + $0x1a0] sm:$0xf]
  %v150 = vld [vmem:[%s1 + $0x1a4] sm:$0xf]
  %v151 = vld [vmem:[%s1 + $0x1a8] sm:$0xf]
  %v152 = vld [vmem:[%s1 + $0x1ac] sm:$0xf]
  %v153 = vld [vmem:[%s1 + $0x1b0] sm:$0xf]
  %v154 = vld [vmem:[%s1 + $0x1b4] sm:$0xf]
  %v155 = vld [vmem:[%s1 + $0x1b8] sm:$0xf]
  %v156 = vld [vmem:[%s1 + $0x1bc] sm:$0xf]
  %v157 = vld [vmem:[%s1 + $0x1c0] sm:$0xf]
  %v158 = vld [vmem:[%s1 + $0x1c4] sm:$0xf]
  %v159 = vld [vmem:[%s1 + $0x1c8] sm:$0xf]
  %v160 = vld [vmem:[%s1 + $0x1cc] sm:$0xf]
  %v161 = vld [vmem:[%s1 + $0x1d0] sm:$0xf]
  %v162 = vld [vmem:[%s1 + $0x1d4] sm:$0xf]
  %v163 = vld [vmem:[%s1 + $0x1d8] sm:$0xf]
  %v164 = vld [vmem:[%s1 + $0x1dc] sm:$0xf]
  %v165 = vld [vmem:[%s1 + $0x1e0] sm:$0xf]
  %v166 = vld [vmem:[%s1 + $0x1e4] sm:$0xf]
  %v167 = vld [vmem:[%s1 + $0x1e8] sm:$0xf]
  %v168 = vld [vmem:[%s1 + $0x1ec] sm:$0xf]
  %v169 = vld [vmem:[%s1 + $0x1f0] sm:$0xf]
  %v170 = vld [vmem:[%s1 + $0x1f4] sm:$0xf]
  %v171 = vld [vmem:[%s1 + $0x1f8] sm:$0xf]
  %v172 = vld [vmem:[%s1 + $0x1fc] sm:$0xf]
  %v173 = vld [vmem:[%s1 + $0x200] sm:$0xf]
  %v174 = vld [vmem:[%s1 + $0x204] sm:$0xf]
  %v175 = vld [vmem:[%s1 + $0x208] sm:$0xf]
  %v176 = vld [vmem:[%s1 + $0x20c] sm:$0xf]
  %v177 = vld [vmem:[%s1 + $0x210] sm:$0xf]
  %v178 = vld [vmem:[%s1 + $0x214] sm:$0xf]
  %v179 = vld [vmem:[%s1 + $0x218] sm:$0xf]
  %v180 = vld [vmem:[%s1 + $0x21c] sm:$0xf]
  %v181 = vld [vmem:[%s1 + $0x220] sm:$0xf]
  %v182 = vld [vmem:[%s1 + $0x224] sm:$0xf]
  %v183 = vld [vmem:[%s1 + $0x228] sm:$0xf]
  %v184 = vld [vmem:[%s1 + $0x22c] sm:$0xf]
  %v185 = vld [vmem:[%s1 + $0x230] sm:$0xf]
  %v186 = vld [vmem:[%s1 + $0x234] sm:$0xf]
  %v187 = vld [vmem:[%s1 + $0x238] sm:$0xf]
  %v188 = vld [vmem:[%s1 + $0x23c] sm:$0xf]
  %v189 = vld [vmem:[%s1 + $0x240] sm:$0xf]
  %v190 = vld [vmem:[%s1 + $0x244] sm:$0xf]
  %v191 = vld [vmem:[%s1 + $0x248] sm:$0xf]
  %v192 = vld [vmem:[%s1 + $0x24c] sm:$0xf]
  %v193 = vld [vmem:[%s1 + $0x250] sm:$0xf]
  %v194 = vld [vmem:[%s1 + $0x254] sm:$0xf]
  %v195 = vld [vmem:[%s2] sm:$0xff]
  %v196 = vld [vmem:[%s2 + $0x8] sm:$0xff]
  %v197 = vld [vmem:[%s2 + $0x10] sm:$0xff]
  %v198 = vld [vmem:[%s2 + $0x18] sm:$0xff]
  %v199 = vld [vmem:[%s2 + $0x20] sm:$0xff]
  %v200 = vld [vmem:[%s2 + $0x28] sm:$0xff]
  %202 = vset.pattern.permute.xlu0 0
  %203 = vperm.xlu0 %202, %v195
  %v204 = vpop.permute.xlu0 %203
  %207 = vset.pattern.permute.xlu0 0
  %208 = vperm.xlu0 %207, %v196
  %v209 = vpop.permute.xlu0 %208
  %212 = vset.pattern.permute.xlu0 0
  %213 = vperm.xlu0 %212, %v197
  %v214 = vpop.permute.xlu0 %213
  %217 = vset.pattern.permute.xlu0 0
  %218 = vperm.xlu0 %217, %v198
  %v219 = vpop.permute.xlu0 %218
  %222 = vset.pattern.permute.xlu0 0
  %223 = vperm.xlu0 %222, %v199
  %v224 = vpop.permute.xlu0 %223
  %227 = vset.pattern.permute.xlu0 0
  %228 = vperm.xlu0 %227, %v200
  %v229 = vpop.permute.xlu0 %228
  %v261 = vunpack.c.l.b16 %v15
  %v262 = vunpack.c.h.b16 %v15
  %v263 = vunpack.c.l.b16 %v16
  %v264 = vunpack.c.h.b16 %v16
  %v265 = vunpack.c.l.b16 %v17
  %v266 = vunpack.c.h.b16 %v17
  %v267 = vunpack.c.l.b16 %v18
  %v268 = vunpack.c.h.b16 %v18
  %v269 = vunpack.c.l.b16 %v19
  %v270 = vunpack.c.h.b16 %v19
  %v271 = vunpack.c.l.b16 %v20
  %v272 = vunpack.c.h.b16 %v20
  %v273 = vunpack.c.l.b16 %v21
  %v274 = vunpack.c.h.b16 %v21
  %v275 = vunpack.c.l.b16 %v22
  %v276 = vunpack.c.h.b16 %v22
  %v277 = vunpack.c.l.b16 %v23
  %v278 = vunpack.c.h.b16 %v23
  %v279 = vunpack.c.l.b16 %v24
  %v280 = vunpack.c.h.b16 %v24
  %v281 = vunpack.c.l.b16 %v25
  %v282 = vunpack.c.h.b16 %v25
  %v283 = vunpack.c.l.b16 %v26
  %v284 = vunpack.c.h.b16 %v26
  %v285 = vunpack.c.l.b16 %v27
  %v286 = vunpack.c.h.b16 %v27
  %v287 = vunpack.c.l.b16 %v28
  %v288 = vunpack.c.h.b16 %v28
  %v289 = vunpack.c.l.b16 %v29
  %v290 = vunpack.c.h.b16 %v29
  %v291 = vunpack.c.l.b16 %v30
  %v292 = vunpack.c.h.b16 %v30
  %v293 = vunpack.c.l.b16 %v31
  %v294 = vunpack.c.h.b16 %v31
  %v295 = vunpack.c.l.b16 %v32
  %v296 = vunpack.c.h.b16 %v32
  %v297 = vunpack.c.l.b16 %v33
  %v298 = vunpack.c.h.b16 %v33
  %v299 = vunpack.c.l.b16 %v34
  %v300 = vunpack.c.h.b16 %v34
  %v301 = vunpack.c.l.b16 %v35
  %v302 = vunpack.c.h.b16 %v35
  %v303 = vunpack.c.l.b16 %v36
  %v304 = vunpack.c.h.b16 %v36
  %v305 = vunpack.c.l.b16 %v37
  %v306 = vunpack.c.h.b16 %v37
  %v307 = vunpack.c.l.b16 %v38
  %v308 = vunpack.c.h.b16 %v38
  %v309 = vunpack.c.l.b16 %v39
  %v310 = vunpack.c.h.b16 %v39
  %v311 = vunpack.c.l.b16 %v40
  %v312 = vunpack.c.h.b16 %v40
  %v313 = vunpack.c.l.b16 %v41
  %v314 = vunpack.c.h.b16 %v41
  %v315 = vunpack.c.l.b16 %v42
  %v316 = vunpack.c.h.b16 %v42
  %v317 = vunpack.c.l.b16 %v43
  %v318 = vunpack.c.h.b16 %v43
  %v319 = vunpack.c.l.b16 %v44
  %v320 = vunpack.c.h.b16 %v44
  %v321 = vpack.c.b16 %v271, %v261
  %v322 = vpack.c.b16 %v272, %v262
  %v323 = vpack.c.b16 %v273, %v263
  %v324 = vpack.c.b16 %v274, %v264
  %v325 = vpack.c.b16 %v275, %v265
  %v326 = vpack.c.b16 %v276, %v266
  %v327 = vpack.c.b16 %v277, %v267
  %v328 = vpack.c.b16 %v278, %v268
  %v329 = vpack.c.b16 %v279, %v269
  %v330 = vpack.c.b16 %v280, %v270
  %v331 = vpack.c.b16 %v291, %v281
  %v332 = vpack.c.b16 %v292, %v282
  %v333 = vpack.c.b16 %v293, %v283
  %v334 = vpack.c.b16 %v294, %v284
  %v335 = vpack.c.b16 %v295, %v285
  %v336 = vpack.c.b16 %v296, %v286
  %v337 = vpack.c.b16 %v297, %v287
  %v338 = vpack.c.b16 %v298, %v288
  %v339 = vpack.c.b16 %v299, %v289
  %v340 = vpack.c.b16 %v300, %v290
  %v341 = vpack.c.b16 %v311, %v301
  %v342 = vpack.c.b16 %v312, %v302
  %v343 = vpack.c.b16 %v313, %v303
  %v344 = vpack.c.b16 %v314, %v304
  %v345 = vpack.c.b16 %v315, %v305
  %v346 = vpack.c.b16 %v316, %v306
  %v347 = vpack.c.b16 %v317, %v307
  %v348 = vpack.c.b16 %v318, %v308
  %v349 = vpack.c.b16 %v319, %v309
  %v350 = vpack.c.b16 %v320, %v310
  %v528 = vunpack.c.l.b16 %v45
  %v529 = vunpack.c.l.b16 %v46
  %v530 = vunpack.c.l.b16 %v47
  %v531 = vunpack.c.l.b16 %v48
  %v532 = vunpack.c.l.b16 %v49
  %v533 = vunpack.c.l.b16 %v50
  %v534 = vunpack.c.l.b16 %v51
  %v535 = vunpack.c.l.b16 %v52
  %v536 = vunpack.c.l.b16 %v53
  %v537 = vunpack.c.l.b16 %v54
  %v538 = vunpack.c.l.b16 %v55
  %v539 = vunpack.c.l.b16 %v56
  %v540 = vunpack.c.l.b16 %v57
  %v541 = vunpack.c.l.b16 %v58
  %v542 = vunpack.c.l.b16 %v59
  %v543 = vunpack.c.l.b16 %v60
  %v544 = vunpack.c.l.b16 %v61
  %v545 = vunpack.c.l.b16 %v62
  %v546 = vunpack.c.l.b16 %v63
  %v547 = vunpack.c.l.b16 %v64
  %v548 = vunpack.c.l.b16 %v65
  %v549 = vunpack.c.l.b16 %v66
  %v550 = vunpack.c.l.b16 %v67
  %v551 = vunpack.c.l.b16 %v68
  %v552 = vunpack.c.l.b16 %v69
  %v553 = vunpack.c.l.b16 %v70
  %v554 = vunpack.c.l.b16 %v71
  %v555 = vunpack.c.l.b16 %v72
  %v556 = vunpack.c.l.b16 %v73
  %v557 = vunpack.c.l.b16 %v74
  %v558 = vunpack.c.l.b16 %v75
  %v559 = vunpack.c.l.b16 %v76
  %v560 = vunpack.c.l.b16 %v77
  %v561 = vunpack.c.l.b16 %v78
  %v562 = vunpack.c.l.b16 %v79
  %v563 = vunpack.c.l.b16 %v80
  %v564 = vunpack.c.l.b16 %v81
  %v565 = vunpack.c.l.b16 %v82
  %v566 = vunpack.c.l.b16 %v83
  %v567 = vunpack.c.l.b16 %v84
  %v568 = vunpack.c.l.b16 %v85
  %v569 = vunpack.c.l.b16 %v86
  %v570 = vunpack.c.l.b16 %v87
  %v571 = vunpack.c.l.b16 %v88
  %v572 = vunpack.c.l.b16 %v89
  %v573 = vunpack.c.l.b16 %v90
  %v574 = vunpack.c.l.b16 %v91
  %v575 = vunpack.c.l.b16 %v92
  %v576 = vunpack.c.l.b16 %v93
  %v577 = vunpack.c.l.b16 %v94
  %v578 = vunpack.c.l.b16 %v95
  %v579 = vunpack.c.l.b16 %v96
  %v580 = vunpack.c.l.b16 %v97
  %v581 = vunpack.c.l.b16 %v98
  %v582 = vunpack.c.l.b16 %v99
  %v583 = vunpack.c.l.b16 %v100
  %v584 = vunpack.c.l.b16 %v101
  %v585 = vunpack.c.l.b16 %v102
  %v586 = vunpack.c.l.b16 %v103
  %v587 = vunpack.c.l.b16 %v104
  %v588 = vunpack.c.l.b16 %v105
  %v589 = vunpack.c.l.b16 %v106
  %v590 = vunpack.c.l.b16 %v107
  %v591 = vunpack.c.l.b16 %v108
  %v592 = vunpack.c.l.b16 %v109
  %v593 = vunpack.c.l.b16 %v110
  %v594 = vunpack.c.l.b16 %v111
  %v595 = vunpack.c.l.b16 %v112
  %v596 = vunpack.c.l.b16 %v113
  %v597 = vunpack.c.l.b16 %v114
  %v598 = vunpack.c.l.b16 %v115
  %v599 = vunpack.c.l.b16 %v116
  %v600 = vunpack.c.l.b16 %v117
  %v601 = vunpack.c.l.b16 %v118
  %v602 = vunpack.c.l.b16 %v119
  %v603 = vunpack.c.l.b16 %v120
  %v604 = vunpack.c.l.b16 %v121
  %v605 = vunpack.c.l.b16 %v122
  %v606 = vunpack.c.l.b16 %v123
  %v607 = vunpack.c.l.b16 %v124
  %v608 = vunpack.c.l.b16 %v125
  %v609 = vunpack.c.l.b16 %v126
  %v610 = vunpack.c.l.b16 %v127
  %v611 = vunpack.c.l.b16 %v128
  %v612 = vunpack.c.l.b16 %v129
  %v613 = vunpack.c.l.b16 %v130
  %v614 = vunpack.c.l.b16 %v131
  %v615 = vunpack.c.l.b16 %v132
  %v616 = vunpack.c.l.b16 %v133
  %v617 = vunpack.c.l.b16 %v134
  %v618 = vunpack.c.l.b16 %v135
  %v619 = vunpack.c.l.b16 %v136
  %v620 = vunpack.c.l.b16 %v137
  %v621 = vunpack.c.l.b16 %v138
  %v622 = vunpack.c.l.b16 %v139
  %v623 = vunpack.c.l.b16 %v140
  %v624 = vunpack.c.l.b16 %v141
  %v625 = vunpack.c.l.b16 %v142
  %v626 = vunpack.c.l.b16 %v143
  %v627 = vunpack.c.l.b16 %v144
  %v628 = vunpack.c.l.b16 %v145
  %v629 = vunpack.c.l.b16 %v146
  %v630 = vunpack.c.l.b16 %v147
  %v631 = vunpack.c.l.b16 %v148
  %v632 = vunpack.c.l.b16 %v149
  %v633 = vunpack.c.l.b16 %v150
  %v634 = vunpack.c.l.b16 %v151
  %v635 = vunpack.c.l.b16 %v152
  %v636 = vunpack.c.l.b16 %v153
  %v637 = vunpack.c.l.b16 %v154
  %v638 = vunpack.c.l.b16 %v155
  %v639 = vunpack.c.l.b16 %v156
  %v640 = vunpack.c.l.b16 %v157
  %v641 = vunpack.c.l.b16 %v158
  %v642 = vunpack.c.l.b16 %v159
  %v643 = vunpack.c.l.b16 %v160
  %v644 = vunpack.c.l.b16 %v161
  %v645 = vunpack.c.l.b16 %v162
  %v646 = vunpack.c.l.b16 %v163
  %v647 = vunpack.c.l.b16 %v164
  %v648 = vunpack.c.l.b16 %v165
  %v649 = vunpack.c.l.b16 %v166
  %v650 = vunpack.c.l.b16 %v167
  %v651 = vunpack.c.l.b16 %v168
  %v652 = vunpack.c.l.b16 %v169
  %v653 = vunpack.c.l.b16 %v170
  %v654 = vunpack.c.l.b16 %v171
  %v655 = vunpack.c.l.b16 %v172
  %v656 = vunpack.c.l.b16 %v173
  %v657 = vunpack.c.l.b16 %v174
  %v658 = vunpack.c.l.b16 %v175
  %v659 = vunpack.c.l.b16 %v176
  %v660 = vunpack.c.l.b16 %v177
  %v661 = vunpack.c.l.b16 %v178
  %v662 = vunpack.c.l.b16 %v179
  %v663 = vunpack.c.l.b16 %v180
  %v664 = vunpack.c.l.b16 %v181
  %v665 = vunpack.c.l.b16 %v182
  %v666 = vunpack.c.l.b16 %v183
  %v667 = vunpack.c.l.b16 %v184
  %v668 = vunpack.c.l.b16 %v185
  %v669 = vunpack.c.l.b16 %v186
  %v670 = vunpack.c.l.b16 %v187
  %v671 = vunpack.c.l.b16 %v188
  %v672 = vunpack.c.l.b16 %v189
  %v673 = vunpack.c.l.b16 %v190
  %v674 = vunpack.c.l.b16 %v191
  %v675 = vunpack.c.l.b16 %v192
  %v676 = vunpack.c.l.b16 %v193
  %v677 = vunpack.c.l.b16 %v194
  %v678 = vpack.c.b16 %v529, %v528
  %v679 = vpack.c.b16 %v531, %v530
  %v680 = vpack.c.b16 %v533, %v532
  %v681 = vpack.c.b16 %v535, %v534
  %v682 = vpack.c.b16 %v537, %v536
  %v683 = vpack.c.b16 %v539, %v538
  %v684 = vpack.c.b16 %v541, %v540
  %v685 = vpack.c.b16 %v543, %v542
  %v686 = vpack.c.b16 %v545, %v544
  %v687 = vpack.c.b16 %v547, %v546
  %v688 = vpack.c.b16 %v549, %v548
  %v689 = vpack.c.b16 %v551, %v550
  %v690 = vpack.c.b16 %v553, %v552
  %v691 = vpack.c.b16 %v555, %v554
  %v692 = vpack.c.b16 %v557, %v556
  %v693 = vpack.c.b16 %v559, %v558
  %v694 = vpack.c.b16 %v561, %v560
  %v695 = vpack.c.b16 %v563, %v562
  %v696 = vpack.c.b16 %v565, %v564
  %v697 = vpack.c.b16 %v567, %v566
  %v698 = vpack.c.b16 %v569, %v568
  %v699 = vpack.c.b16 %v571, %v570
  %v700 = vpack.c.b16 %v573, %v572
  %v701 = vpack.c.b16 %v575, %v574
  %v702 = vpack.c.b16 %v577, %v576
  %v703 = vpack.c.b16 %v579, %v578
  %v704 = vpack.c.b16 %v581, %v580
  %v705 = vpack.c.b16 %v583, %v582
  %v706 = vpack.c.b16 %v585, %v584
  %v707 = vpack.c.b16 %v587, %v586
  %v708 = vpack.c.b16 %v589, %v588
  %v709 = vpack.c.b16 %v591, %v590
  %v710 = vpack.c.b16 %v593, %v592
  %v711 = vpack.c.b16 %v595, %v594
  %v712 = vpack.c.b16 %v597, %v596
  %v713 = vpack.c.b16 %v599, %v598
  %v714 = vpack.c.b16 %v601, %v600
  %v715 = vpack.c.b16 %v603, %v602
  %v716 = vpack.c.b16 %v605, %v604
  %v717 = vpack.c.b16 %v607, %v606
  %v718 = vpack.c.b16 %v609, %v608
  %v719 = vpack.c.b16 %v611, %v610
  %v720 = vpack.c.b16 %v613, %v612
  %v721 = vpack.c.b16 %v615, %v614
  %v722 = vpack.c.b16 %v617, %v616
  %v723 = vpack.c.b16 %v619, %v618
  %v724 = vpack.c.b16 %v621, %v620
  %v725 = vpack.c.b16 %v623, %v622
  %v726 = vpack.c.b16 %v625, %v624
  %v727 = vpack.c.b16 %v627, %v626
  %v728 = vpack.c.b16 %v629, %v628
  %v729 = vpack.c.b16 %v631, %v630
  %v730 = vpack.c.b16 %v633, %v632
  %v731 = vpack.c.b16 %v635, %v634
  %v732 = vpack.c.b16 %v637, %v636
  %v733 = vpack.c.b16 %v639, %v638
  %v734 = vpack.c.b16 %v641, %v640
  %v735 = vpack.c.b16 %v643, %v642
  %v736 = vpack.c.b16 %v645, %v644
  %v737 = vpack.c.b16 %v647, %v646
  %v738 = vpack.c.b16 %v649, %v648
  %v739 = vpack.c.b16 %v651, %v650
  %v740 = vpack.c.b16 %v653, %v652
  %v741 = vpack.c.b16 %v655, %v654
  %v742 = vpack.c.b16 %v657, %v656
  %v743 = vpack.c.b16 %v659, %v658
  %v744 = vpack.c.b16 %v661, %v660
  %v745 = vpack.c.b16 %v663, %v662
  %v746 = vpack.c.b16 %v665, %v664
  %v747 = vpack.c.b16 %v667, %v666
  %v748 = vpack.c.b16 %v669, %v668
  %v749 = vpack.c.b16 %v671, %v670
  %v750 = vpack.c.b16 %v673, %v672
  %v751 = vpack.c.b16 %v675, %v674
  %v752 = vpack.c.b16 %v677, %v676
  %vm828 = vcmask 392192
  %v830 = vsel %vm828, %v330, 0
  %v833 = vsel %vm828, %v340, 0
  %v836 = vsel %vm828, %v350, 0
  %838 = vmatpush.bf16.msra.mxu0 %v685
  %839 = vmatpush.bf16.msra.mxu0 %v684
  %840 = vmatpush.bf16.msra.mxu0 %v683
  %841 = vmatpush.bf16.msra.mxu0 %v682
  %842 = vmatpush.bf16.msra.mxu0 %v681
  %843 = vmatpush.bf16.msra.mxu0 %v680
  %844 = vmatpush.bf16.msra.mxu0 %v679
  %845 = vmatpush.bf16.msra.mxu0 %v678
  %846 = vmatmul.bf16.gmra.mxu0 %v321
  %v847 = vpop.f32.mrf.mxu0
  %v848 = vadd.f32 %v204, %v847
  %v849 = vpop.f32.mrf.mxu0
  %v850 = vadd.f32 %v209, %v849
  %851 = vmatmul.bf16.gmra.mxu0 %v331
  %v852 = vpop.f32.mrf.mxu0
  %v853 = vadd.f32 %v214, %v852
  %v854 = vpop.f32.mrf.mxu0
  %v855 = vadd.f32 %v219, %v854
  %856 = vmatmul.bf16.gmra.mxu0 %v341
  %v857 = vpop.f32.mrf.mxu0
  %v858 = vadd.f32 %v224, %v857
  %v859 = vpop.f32.mrf.mxu0
  %v860 = vadd.f32 %v229, %v859
  %861 = vdwg.mxu0
  %862 = vmatpush.bf16.msra.mxu0 %v693
  %863 = vmatpush.bf16.msra.mxu0 %v692
  %864 = vmatpush.bf16.msra.mxu0 %v691
  %865 = vmatpush.bf16.msra.mxu0 %v690
  %866 = vmatpush.bf16.msra.mxu0 %v689
  %867 = vmatpush.bf16.msra.mxu0 %v688
  %868 = vmatpush.bf16.msra.mxu0 %v687
  %869 = vmatpush.bf16.msra.mxu0 %v686
  %870 = vmatmul.bf16.gmra.mxu0 %v322
  %v871 = vpop.f32.mrf.mxu0
  %v872 = vadd.f32 %v848, %v871
  %v873 = vpop.f32.mrf.mxu0
  %v874 = vadd.f32 %v850, %v873
  %875 = vmatmul.bf16.gmra.mxu0 %v332
  %v876 = vpop.f32.mrf.mxu0
  %v877 = vadd.f32 %v853, %v876
  %v878 = vpop.f32.mrf.mxu0
  %v879 = vadd.f32 %v855, %v878
  %880 = vmatmul.bf16.gmra.mxu0 %v342
  %v881 = vpop.f32.mrf.mxu0
  %v882 = vadd.f32 %v858, %v881
  %v883 = vpop.f32.mrf.mxu0
  %v884 = vadd.f32 %v860, %v883
  %885 = vdwg.mxu0
  %886 = vmatpush.bf16.msra.mxu0 %v701
  %887 = vmatpush.bf16.msra.mxu0 %v700
  %888 = vmatpush.bf16.msra.mxu0 %v699
  %889 = vmatpush.bf16.msra.mxu0 %v698
  %890 = vmatpush.bf16.msra.mxu0 %v697
  %891 = vmatpush.bf16.msra.mxu0 %v696
  %892 = vmatpush.bf16.msra.mxu0 %v695
  %893 = vmatpush.bf16.msra.mxu0 %v694
  %894 = vmatmul.bf16.gmra.mxu0 %v323
  %v895 = vpop.f32.mrf.mxu0
  %v896 = vadd.f32 %v872, %v895
  %v897 = vpop.f32.mrf.mxu0
  %v898 = vadd.f32 %v874, %v897
  %899 = vmatmul.bf16.gmra.mxu0 %v333
  %v900 = vpop.f32.mrf.mxu0
  %v901 = vadd.f32 %v877, %v900
  %v902 = vpop.f32.mrf.mxu0
  %v903 = vadd.f32 %v879, %v902
  %904 = vmatmul.bf16.gmra.mxu0 %v343
  %v905 = vpop.f32.mrf.mxu0
  %v906 = vadd.f32 %v882, %v905
  %v907 = vpop.f32.mrf.mxu0
  %v908 = vadd.f32 %v884, %v907
  %909 = vdwg.mxu0
  %910 = vmatpush.bf16.msra.mxu0 %v709
  %911 = vmatpush.bf16.msra.mxu0 %v708
  %912 = vmatpush.bf16.msra.mxu0 %v707
  %913 = vmatpush.bf16.msra.mxu0 %v706
  %914 = vmatpush.bf16.msra.mxu0 %v705
  %915 = vmatpush.bf16.msra.mxu0 %v704
  %916 = vmatpush.bf16.msra.mxu0 %v703
  %917 = vmatpush.bf16.msra.mxu0 %v702
  %918 = vmatmul.bf16.gmra.mxu0 %v324
  %v919 = vpop.f32.mrf.mxu0
  %v920 = vadd.f32 %v896, %v919
  %v921 = vpop.f32.mrf.mxu0
  %v922 = vadd.f32 %v898, %v921
  %923 = vmatmul.bf16.gmra.mxu0 %v334
  %v924 = vpop.f32.mrf.mxu0
  %v925 = vadd.f32 %v901, %v924
  %v926 = vpop.f32.mrf.mxu0
  %v927 = vadd.f32 %v903, %v926
  %928 = vmatmul.bf16.gmra.mxu0 %v344
  %v929 = vpop.f32.mrf.mxu0
  %v930 = vadd.f32 %v906, %v929
  %v931 = vpop.f32.mrf.mxu0
  %v932 = vadd.f32 %v908, %v931
  %933 = vdwg.mxu0
  %934 = vmatpush.bf16.msra.mxu0 %v717
  %935 = vmatpush.bf16.msra.mxu0 %v716
  %936 = vmatpush.bf16.msra.mxu0 %v715
  %937 = vmatpush.bf16.msra.mxu0 %v714
  %938 = vmatpush.bf16.msra.mxu0 %v713
  %939 = vmatpush.bf16.msra.mxu0 %v712
  %940 = vmatpush.bf16.msra.mxu0 %v711
  %941 = vmatpush.bf16.msra.mxu0 %v710
  %942 = vmatmul.bf16.gmra.mxu0 %v325
  %v943 = vpop.f32.mrf.mxu0
  %v944 = vadd.f32 %v920, %v943
  %v945 = vpop.f32.mrf.mxu0
  %v946 = vadd.f32 %v922, %v945
  %947 = vmatmul.bf16.gmra.mxu0 %v335
  %v948 = vpop.f32.mrf.mxu0
  %v949 = vadd.f32 %v925, %v948
  %v950 = vpop.f32.mrf.mxu0
  %v951 = vadd.f32 %v927, %v950
  %952 = vmatmul.bf16.gmra.mxu0 %v345
  %v953 = vpop.f32.mrf.mxu0
  %v954 = vadd.f32 %v930, %v953
  %v955 = vpop.f32.mrf.mxu0
  %v956 = vadd.f32 %v932, %v955
  %957 = vdwg.mxu0
  %958 = vmatpush.bf16.msra.mxu0 %v725
  %959 = vmatpush.bf16.msra.mxu0 %v724
  %960 = vmatpush.bf16.msra.mxu0 %v723
  %961 = vmatpush.bf16.msra.mxu0 %v722
  %962 = vmatpush.bf16.msra.mxu0 %v721
  %963 = vmatpush.bf16.msra.mxu0 %v720
  %964 = vmatpush.bf16.msra.mxu0 %v719
  %965 = vmatpush.bf16.msra.mxu0 %v718
  %966 = vmatmul.bf16.gmra.mxu0 %v326
  %v967 = vpop.f32.mrf.mxu0
  %v968 = vadd.f32 %v944, %v967
  %v969 = vpop.f32.mrf.mxu0
  %v970 = vadd.f32 %v946, %v969
  %971 = vmatmul.bf16.gmra.mxu0 %v336
  %v972 = vpop.f32.mrf.mxu0
  %v973 = vadd.f32 %v949, %v972
  %v974 = vpop.f32.mrf.mxu0
  %v975 = vadd.f32 %v951, %v974
  %976 = vmatmul.bf16.gmra.mxu0 %v346
  %v977 = vpop.f32.mrf.mxu0
  %v978 = vadd.f32 %v954, %v977
  %v979 = vpop.f32.mrf.mxu0
  %v980 = vadd.f32 %v956, %v979
  %981 = vdwg.mxu0
  %982 = vmatpush.bf16.msra.mxu0 %v733
  %983 = vmatpush.bf16.msra.mxu0 %v732
  %984 = vmatpush.bf16.msra.mxu0 %v731
  %985 = vmatpush.bf16.msra.mxu0 %v730
  %986 = vmatpush.bf16.msra.mxu0 %v729
  %987 = vmatpush.bf16.msra.mxu0 %v728
  %988 = vmatpush.bf16.msra.mxu0 %v727
  %989 = vmatpush.bf16.msra.mxu0 %v726
  %990 = vmatmul.bf16.gmra.mxu0 %v327
  %v991 = vpop.f32.mrf.mxu0
  %v992 = vadd.f32 %v968, %v991
  %v993 = vpop.f32.mrf.mxu0
  %v994 = vadd.f32 %v970, %v993
  %995 = vmatmul.bf16.gmra.mxu0 %v337
  %v996 = vpop.f32.mrf.mxu0
  %v997 = vadd.f32 %v973, %v996
  %v998 = vpop.f32.mrf.mxu0
  %v999 = vadd.f32 %v975, %v998
  %1000 = vmatmul.bf16.gmra.mxu0 %v347
  %v1001 = vpop.f32.mrf.mxu0
  %v1002 = vadd.f32 %v978, %v1001
  %v1003 = vpop.f32.mrf.mxu0
  %v1004 = vadd.f32 %v980, %v1003
  %1005 = vdwg.mxu0
  %1006 = vmatpush.bf16.msra.mxu0 %v741
  %1007 = vmatpush.bf16.msra.mxu0 %v740
  %1008 = vmatpush.bf16.msra.mxu0 %v739
  %1009 = vmatpush.bf16.msra.mxu0 %v738
  %1010 = vmatpush.bf16.msra.mxu0 %v737
  %1011 = vmatpush.bf16.msra.mxu0 %v736
  %1012 = vmatpush.bf16.msra.mxu0 %v735
  %1013 = vmatpush.bf16.msra.mxu0 %v734
  %1014 = vmatmul.bf16.gmra.mxu0 %v328
  %v1015 = vpop.f32.mrf.mxu0
  %v1016 = vadd.f32 %v992, %v1015
  %v1017 = vpop.f32.mrf.mxu0
  %v1018 = vadd.f32 %v994, %v1017
  %1019 = vmatmul.bf16.gmra.mxu0 %v338
  %v1020 = vpop.f32.mrf.mxu0
  %v1021 = vadd.f32 %v997, %v1020
  %v1022 = vpop.f32.mrf.mxu0
  %v1023 = vadd.f32 %v999, %v1022
  %1024 = vmatmul.bf16.gmra.mxu0 %v348
  %v1025 = vpop.f32.mrf.mxu0
  %v1026 = vadd.f32 %v1002, %v1025
  %v1027 = vpop.f32.mrf.mxu0
  %v1028 = vadd.f32 %v1004, %v1027
  %1029 = vdwg.mxu0
  %1030 = vmatpush.bf16.msra.mxu0 %v749
  %1031 = vmatpush.bf16.msra.mxu0 %v748
  %1032 = vmatpush.bf16.msra.mxu0 %v747
  %1033 = vmatpush.bf16.msra.mxu0 %v746
  %1034 = vmatpush.bf16.msra.mxu0 %v745
  %1035 = vmatpush.bf16.msra.mxu0 %v744
  %1036 = vmatpush.bf16.msra.mxu0 %v743
  %1037 = vmatpush.bf16.msra.mxu0 %v742
  %1038 = vmatmul.bf16.gmra.mxu0 %v329
  %v1039 = vpop.f32.mrf.mxu0
  %v1040 = vadd.f32 %v1016, %v1039
  %v1041 = vpop.f32.mrf.mxu0
  %v1042 = vadd.f32 %v1018, %v1041
  %1043 = vmatmul.bf16.gmra.mxu0 %v339
  %v1044 = vpop.f32.mrf.mxu0
  %v1045 = vadd.f32 %v1021, %v1044
  %v1046 = vpop.f32.mrf.mxu0
  %v1047 = vadd.f32 %v1023, %v1046
  %1048 = vmatmul.bf16.gmra.mxu0 %v349
  %v1049 = vpop.f32.mrf.mxu0
  %v1050 = vadd.f32 %v1026, %v1049
  %v1051 = vpop.f32.mrf.mxu0
  %v1052 = vadd.f32 %v1028, %v1051
  %1053 = vdwg.mxu0
  %1054 = vmatpush.bf16.msra.mxu0 0
  %1055 = vmatpush.bf16.msra.mxu0 0
  %1056 = vmatpush.bf16.msra.mxu0 0
  %1057 = vmatpush.bf16.msra.mxu0 0
  %1058 = vmatpush.bf16.msra.mxu0 0
  %1059 = vmatpush.bf16.msra.mxu0 %v752
  %1060 = vmatpush.bf16.msra.mxu0 %v751
  %1061 = vmatpush.bf16.msra.mxu0 %v750
  %1062 = vmatmul.bf16.gmra.mxu0 %v830
  %v1063 = vpop.f32.mrf.mxu0
  %v1064 = vadd.f32 %v1040, %v1063
  %v1065 = vpop.f32.mrf.mxu0
  %v1066 = vadd.f32 %v1042, %v1065
  %1067 = vmatmul.bf16.gmra.mxu0 %v833
  %v1068 = vpop.f32.mrf.mxu0
  %v1069 = vadd.f32 %v1045, %v1068
  %v1070 = vpop.f32.mrf.mxu0
  %v1071 = vadd.f32 %v1047, %v1070
  %1072 = vmatmul.bf16.gmra.mxu0 %v836
  %v1073 = vpop.f32.mrf.mxu0
  %v1074 = vadd.f32 %v1050, %v1073
  %v1075 = vpop.f32.mrf.mxu0
  %v1076 = vadd.f32 %v1052, %v1075
  %1077 = vdwg.mxu0
  %1078 = vst [vmem:[%s3] sm:$0xff] %v1064
  %1079 = vst [vmem:[%s3 + $0x8] sm:$0xff] %v1066
  %1080 = vst [vmem:[%s3 + $0x10] sm:$0xff] %v1069
  %1081 = vst [vmem:[%s3 + $0x18] sm:$0xff] %v1071
  %1082 = vst [vmem:[%s3 + $0x20] sm:$0xff] %v1074
  %1083 = vst [vmem:[%s3 + $0x28] sm:$0xff] %v1076
  // Predicated region
  $region14: #{forward.12} parent=0 // pred_check
    _
  $region15: #{forward.12} parent=0 // pred_check_branch
    %1085 = sbr.rel (0) target = $region17
  $region16: #{forward.12} parent=0 // pred_region
    _
  $region17: #{forward.12} parent=0 // pred_fallthru
    _
  // Predicated region
  $region18: #{forward.12} parent=0 // pred_check
    _
  $region19: #{forward.12} parent=0 // pred_check_branch
    %1087 = sbr.rel (0) target = $region21
  $region20: #{forward.12} parent=0 // pred_region
    _
  $region21: #{forward.12} parent=0 // pred_fallthru
    _

// kernel: tile.37
$region0: #{tile.37}
  #allocation0 [shape = 's32[1]{0}', space=sflag, size = 0x4, scoped, tag = 'scoped memory for tile.37']
  %s0 = inlined_call_operand.vmem [shape: f32[48], index: 0, kind: input, shape index: {}]
  %s1 = inlined_call_operand.vmem [shape: f32[4,48], index: 1, kind: output, shape index: {}]
  // Predicated region
  $region2: #{tile.37} parent=0 // pred_check
    _
  $region3: #{tile.37} parent=0 // pred_check_branch
    %3 = sbr.rel (0) target = $region5
  $region4: #{tile.37} parent=0 // pred_region
    _
  $region5: #{tile.37} parent=0 // pred_fallthru
    _
  %v4 = vld [vmem:[%s0] ss:$0 sm:$0xff]
  %5 = vst [vmem:[%s1] sm:$0xf] %v4

// kernel: tile.0
$region0: #{tile.0}
  %s0 = inlined_call_operand.vmem [shape: f32[4,48], index: 0, kind: input, shape index: {}]
  %s1 = inlined_call_operand.vmem [shape: f32[192,1], index: 1, kind: output, shape index: {}]
  $region1: #{tile.0} parent=0
    #allocation0 [shape = 'u8[4096]{0}', space=vmem, size = 0x1000, scoped, tag = 'scoped mem for input reshape']
    %s3 = ssub.s32 16, 1
    %v4 = vld [vmem:[%s0] sm:%s3]
    %5 = vst [vmem:[#allocation0] sm:%s3] %v4
    %v6 = vld [vmem:[#allocation0] sm:$0xf]
    %vm7 = vcmask 7168
    %8 = vst.msk [vmem:[%s1] ss:$48 sm:$0x3] %vm7, %v6
    %9 = vst.msk [vmem:[%s1] ss:$48 sm:$0xc] %vm7, %v6
    %v10 = vld [vmem:[#allocation0] sm:$0xf]
    %11 = vrot.lane.b32.xlu0 %v10, 127
    %v12 = vpop.permute.xlu0 %11
    %vm13 = vcmask 7168
    %s14 = scalar_lea.vmem %s1, 1
    %15 = vst.msk [vmem:[%s14] ss:$48 sm:$0x3] %vm13, %v12
    %s16 = scalar_lea.vmem %s1, 1
    %17 = vst.msk [vmem:[%s16] ss:$48 sm:$0xc] %vm13, %v12
    %v18 = vld [vmem:[#allocation0] sm:$0xf]
    %19 = vrot.lane.b32.xlu0 %v18, 126
    %v20 = vpop.permute.xlu0 %19
    %vm21 = vcmask 7168
    %s22 = scalar_lea.vmem %s1, 2
    %23 = vst.msk [vmem:[%s22] ss:$48 sm:$0x3] %vm21, %v20
    %s24 = scalar_lea.vmem %s1, 2
    %25 = vst.msk [vmem:[%s24] ss:$48 sm:$0xc] %vm21, %v20
    %v26 = vld [vmem:[#allocation0] sm:$0xf]
    %27 = vrot.lane.b32.xlu0 %v26, 125
    %v28 = vpop.permute.xlu0 %27
    %vm29 = vcmask 7168
    %s30 = scalar_lea.vmem %s1, 3
    %31 = vst.msk [vmem:[%s30] ss:$48 sm:$0x3] %vm29, %v28
    %s32 = scalar_lea.vmem %s1, 3
    %33 = vst.msk [vmem:[%s32] ss:$48 sm:$0xc] %vm29, %v28
    %v34 = vld [vmem:[#allocation0] sm:$0xf]
    %35 = vrot.lane.b32.xlu0 %v34, 124
    %v36 = vpop.permute.xlu0 %35
    %vm37 = vcmask 7168
    %s38 = scalar_lea.vmem %s1, 4
    %39 = vst.msk [vmem:[%s38] ss:$48 sm:$0x3] %vm37, %v36
    %s40 = scalar_lea.vmem %s1, 4
    %41 = vst.msk [vmem:[%s40] ss:$48 sm:$0xc] %vm37, %v36
    %v42 = vld [vmem:[#allocation0] sm:$0xf]
    %43 = vrot.lane.b32.xlu0 %v42, 123
    %v44 = vpop.permute.xlu0 %43
    %vm45 = vcmask 7168
    %s46 = scalar_lea.vmem %s1, 5
    %47 = vst.msk [vmem:[%s46] ss:$48 sm:$0x3] %vm45, %v44
    %s48 = scalar_lea.vmem %s1, 5
    %49 = vst.msk [vmem:[%s48] ss:$48 sm:$0xc] %vm45, %v44
    %v50 = vld [vmem:[#allocation0] sm:$0xf]
    %51 = vrot.lane.b32.xlu0 %v50, 122
    %v52 = vpop.permute.xlu0 %51
    %vm53 = vcmask 7168
    %s54 = scalar_lea.vmem %s1, 6
    %55 = vst.msk [vmem:[%s54] ss:$48 sm:$0x3] %vm53, %v52
    %s56 = scalar_lea.vmem %s1, 6
    %57 = vst.msk [vmem:[%s56] ss:$48 sm:$0xc] %vm53, %v52
    %v58 = vld [vmem:[#allocation0] sm:$0xf]
    %59 = vrot.lane.b32.xlu0 %v58, 121
    %v60 = vpop.permute.xlu0 %59
    %vm61 = vcmask 7168
    %s62 = scalar_lea.vmem %s1, 7
    %63 = vst.msk [vmem:[%s62] ss:$48 sm:$0x3] %vm61, %v60
    %s64 = scalar_lea.vmem %s1, 7
    %65 = vst.msk [vmem:[%s64] ss:$48 sm:$0xc] %vm61, %v60
    %v66 = vld [vmem:[#allocation0] sm:$0xf]
    %67 = vrot.lane.b32.xlu0 %v66, 120
    %v68 = vpop.permute.xlu0 %67
    %vm69 = vcmask 7168
    %s70 = scalar_lea.vmem %s1, 8
    %71 = vst.msk [vmem:[%s70] ss:$48 sm:$0x3] %vm69, %v68
    %s72 = scalar_lea.vmem %s1, 8
    %73 = vst.msk [vmem:[%s72] ss:$48 sm:$0xc] %vm69, %v68
    %v74 = vld [vmem:[#allocation0] sm:$0xf]
    %75 = vrot.lane.b32.xlu0 %v74, 119
    %v76 = vpop.permute.xlu0 %75
    %vm77 = vcmask 7168
    %s78 = scalar_lea.vmem %s1, 9
    %79 = vst.msk [vmem:[%s78] ss:$48 sm:$0x3] %vm77, %v76
    %s80 = scalar_lea.vmem %s1, 9
    %81 = vst.msk [vmem:[%s80] ss:$48 sm:$0xc] %vm77, %v76
    %v82 = vld [vmem:[#allocation0] sm:$0xf]
    %83 = vrot.lane.b32.xlu0 %v82, 118
    %v84 = vpop.permute.xlu0 %83
    %vm85 = vcmask 7168
    %s86 = scalar_lea.vmem %s1, 10
    %87 = vst.msk [vmem:[%s86] ss:$48 sm:$0x3] %vm85, %v84
    %s88 = scalar_lea.vmem %s1, 10
    %89 = vst.msk [vmem:[%s88] ss:$48 sm:$0xc] %vm85, %v84
    %v90 = vld [vmem:[#allocation0] sm:$0xf]
    %91 = vrot.lane.b32.xlu0 %v90, 117
    %v92 = vpop.permute.xlu0 %91
    %vm93 = vcmask 7168
    %s94 = scalar_lea.vmem %s1, 11
    %95 = vst.msk [vmem:[%s94] ss:$48 sm:$0x3] %vm93, %v92
    %s96 = scalar_lea.vmem %s1, 11
    %97 = vst.msk [vmem:[%s96] ss:$48 sm:$0xc] %vm93, %v92
    %v98 = vld [vmem:[#allocation0] sm:$0xf]
    %99 = vrot.lane.b32.xlu0 %v98, 116
    %v100 = vpop.permute.xlu0 %99
    %vm101 = vcmask 7168
    %s102 = scalar_lea.vmem %s1, 12
    %103 = vst.msk [vmem:[%s102] ss:$48 sm:$0x3] %vm101, %v100
    %s104 = scalar_lea.vmem %s1, 12
    %105 = vst.msk [vmem:[%s104] ss:$48 sm:$0xc] %vm101, %v100
    %v106 = vld [vmem:[#allocation0] sm:$0xf]
    %107 = vrot.lane.b32.xlu0 %v106, 115
    %v108 = vpop.permute.xlu0 %107
    %vm109 = vcmask 7168
    %s110 = scalar_lea.vmem %s1, 13
    %111 = vst.msk [vmem:[%s110] ss:$48 sm:$0x3] %vm109, %v108
    %s112 = scalar_lea.vmem %s1, 13
    %113 = vst.msk [vmem:[%s112] ss:$48 sm:$0xc] %vm109, %v108
    %v114 = vld [vmem:[#allocation0] sm:$0xf]
    %115 = vrot.lane.b32.xlu0 %v114, 114
    %v116 = vpop.permute.xlu0 %115
    %vm117 = vcmask 7168
    %s118 = scalar_lea.vmem %s1, 14
    %119 = vst.msk [vmem:[%s118] ss:$48 sm:$0x3] %vm117, %v116
    %s120 = scalar_lea.vmem %s1, 14
    %121 = vst.msk [vmem:[%s120] ss:$48 sm:$0xc] %vm117, %v116
    %v122 = vld [vmem:[#allocation0] sm:$0xf]
    %123 = vrot.lane.b32.xlu0 %v122, 113
    %v124 = vpop.permute.xlu0 %123
    %vm125 = vcmask 7168
    %s126 = scalar_lea.vmem %s1, 15
    %127 = vst.msk [vmem:[%s126] ss:$48 sm:$0x3] %vm125, %v124
    %s128 = scalar_lea.vmem %s1, 15
    %129 = vst.msk [vmem:[%s128] ss:$48 sm:$0xc] %vm125, %v124
    %v130 = vld.sshfl [vmem:[#allocation0] sm:$0xff pattern:$0x22222301]
    %131 = vrot.lane.b32.xlu0 %v130, 112
    %v132 = vpop.permute.xlu0 %131
    %vm133 = vcmask 7168
    %s134 = scalar_lea.vmem %s1, 64
    %135 = vst.msk [vmem:[%s134] ss:$-48 sm:$0x3] %vm133, %v132
    %s136 = scalar_lea.vmem %s1, 256
    %137 = vst.msk [vmem:[%s136] ss:$-48 sm:$0xc] %vm133, %v132
    %v138 = vld.sshfl [vmem:[#allocation0] sm:$0xff pattern:$0x22222301]
    %139 = vrot.lane.b32.xlu0 %v138, 111
    %v140 = vpop.permute.xlu0 %139
    %vm141 = vcmask 7168
    %s142 = scalar_lea.vmem %s1, 65
    %143 = vst.msk [vmem:[%s142] ss:$-48 sm:$0x3] %vm141, %v140
    %s144 = scalar_lea.vmem %s1, 257
    %145 = vst.msk [vmem:[%s144] ss:$-48 sm:$0xc] %vm141, %v140
    %v146 = vld.sshfl [vmem:[#allocation0] sm:$0xff pattern:$0x22222301]
    %147 = vrot.lane.b32.xlu0 %v146, 110
    %v148 = vpop.permute.xlu0 %147
    %vm149 = vcmask 7168
    %s150 = scalar_lea.vmem %s1, 66
    %151 = vst.msk [vmem:[%s150] ss:$-48 sm:$0x3] %vm149, %v148
    %s152 = scalar_lea.vmem %s1, 258
    %153 = vst.msk [vmem:[%s152] ss:$-48 sm:$0xc] %vm149, %v148
    %v154 = vld.sshfl [vmem:[#allocation0] sm:$0xff pattern:$0x22222301]
    %155 = vrot.lane.b32.xlu0 %v154, 109
    %v156 = vpop.permute.xlu0 %155
    %vm157 = vcmask 7168
    %s158 = scalar_lea.vmem %s1, 67
    %159 = vst.msk [vmem:[%s158] ss:$-48 sm:$0x3] %vm157, %v156
    %s160 = scalar_lea.vmem %s1, 259
    %161 = vst.msk [vmem:[%s160] ss:$-48 sm:$0xc] %vm157, %v156
    %v162 = vld.sshfl [vmem:[#allocation0] sm:$0xff pattern:$0x22222301]
    %163 = vrot.lane.b32.xlu0 %v162, 108
    %v164 = vpop.permute.xlu0 %163
    %vm165 = vcmask 7168
    %s166 = scalar_lea.vmem %s1, 68
    %167 = vst.msk [vmem:[%s166] ss:$-48 sm:$0x3] %vm165, %v164
    %s168 = scalar_lea.vmem %s1, 260
    %169 = vst.msk [vmem:[%s168] ss:$-48 sm:$0xc] %vm165, %v164
    %v170 = vld.sshfl [vmem:[#allocation0] sm:$0xff pattern:$0x22222301]
    %171 = vrot.lane.b32.xlu0 %v170, 107
    %v172 = vpop.permute.xlu0 %171
    %vm173 = vcmask 7168
    %s174 = scalar_lea.vmem %s1, 69
    %175 = vst.msk [vmem:[%s174] ss:$-48 sm:$0x3] %vm173, %v172
    %s176 = scalar_lea.vmem %s1, 261
    %177 = vst.msk [vmem:[%s176] ss:$-48 sm:$0xc] %vm173, %v172
    %v178 = vld.sshfl [vmem:[#allocation0] sm:$0xff pattern:$0x22222301]
    %179 = vrot.lane.b32.xlu0 %v178, 106
    %v180 = vpop.permute.xlu0 %179
    %vm181 = vcmask 7168
    %s182 = scalar_lea.vmem %s1, 70
    %183 = vst.msk [vmem:[%s182] ss:$-48 sm:$0x3] %vm181, %v180
    %s184 = scalar_lea.vmem %s1, 262
    %185 = vst.msk [vmem:[%s184] ss:$-48 sm:$0xc] %vm181, %v180
    %v186 = vld.sshfl [vmem:[#allocation0] sm:$0xff pattern:$0x22222301]
    %187 = vrot.lane.b32.xlu0 %v186, 105
    %v188 = vpop.permute.xlu0 %187
    %vm189 = vcmask 7168
    %s190 = scalar_lea.vmem %s1, 71
    %191 = vst.msk [vmem:[%s190] ss:$-48 sm:$0x3] %vm189, %v188
    %s192 = scalar_lea.vmem %s1, 263
    %193 = vst.msk [vmem:[%s192] ss:$-48 sm:$0xc] %vm189, %v188
    %v194 = vld.sshfl [vmem:[#allocation0] sm:$0xff pattern:$0x22222301]
    %195 = vrot.lane.b32.xlu0 %v194, 104
    %v196 = vpop.permute.xlu0 %195
    %vm197 = vcmask 7168
    %s198 = scalar_lea.vmem %s1, 72
    %199 = vst.msk [vmem:[%s198] ss:$-48 sm:$0x3] %vm197, %v196
    %s200 = scalar_lea.vmem %s1, 264
    %201 = vst.msk [vmem:[%s200] ss:$-48 sm:$0xc] %vm197, %v196
    %v202 = vld.sshfl [vmem:[#allocation0] sm:$0xff pattern:$0x22222301]
    %203 = vrot.lane.b32.xlu0 %v202, 103
    %v204 = vpop.permute.xlu0 %203
    %vm205 = vcmask 7168
    %s206 = scalar_lea.vmem %s1, 73
    %207 = vst.msk [vmem:[%s206] ss:$-48 sm:$0x3] %vm205, %v204
    %s208 = scalar_lea.vmem %s1, 265
    %209 = vst.msk [vmem:[%s208] ss:$-48 sm:$0xc] %vm205, %v204
    %v210 = vld.sshfl [vmem:[#allocation0] sm:$0xff pattern:$0x22222301]
    %211 = vrot.lane.b32.xlu0 %v210, 102
    %v212 = vpop.permute.xlu0 %211
    %vm213 = vcmask 7168
    %s214 = scalar_lea.vmem %s1, 74
    %215 = vst.msk [vmem:[%s214] ss:$-48 sm:$0x3] %vm213, %v212
    %s216 = scalar_lea.vmem %s1, 266
    %217 = vst.msk [vmem:[%s216] ss:$-48 sm:$0xc] %vm213, %v212
    %v218 = vld.sshfl [vmem:[#allocation0] sm:$0xff pattern:$0x22222301]
    %219 = vrot.lane.b32.xlu0 %v218, 101
    %v220 = vpop.permute.xlu0 %219
    %vm221 = vcmask 7168
    %s222 = scalar_lea.vmem %s1, 75
    %223 = vst.msk [vmem:[%s222] ss:$-48 sm:$0x3] %vm221, %v220
    %s224 = scalar_lea.vmem %s1, 267
    %225 = vst.msk [vmem:[%s224] ss:$-48 sm:$0xc] %vm221, %v220
    %v226 = vld.sshfl [vmem:[#allocation0] sm:$0xff pattern:$0x22222301]
    %227 = vrot.lane.b32.xlu0 %v226, 100
    %v228 = vpop.permute.xlu0 %227
    %vm229 = vcmask 7168
    %s230 = scalar_lea.vmem %s1, 76
    %231 = vst.msk [vmem:[%s230] ss:$-48 sm:$0x3] %vm229, %v228
    %s232 = scalar_lea.vmem %s1, 268
    %233 = vst.msk [vmem:[%s232] ss:$-48 sm:$0xc] %vm229, %v228
    %v234 = vld.sshfl [vmem:[#allocation0] sm:$0xff pattern:$0x22222301]
    %235 = vrot.lane.b32.xlu0 %v234, 99
    %v236 = vpop.permute.xlu0 %235
    %vm237 = vcmask 7168
    %s238 = scalar_lea.vmem %s1, 77
    %239 = vst.msk [vmem:[%s238] ss:$-48 sm:$0x3] %vm237, %v236
    %s240 = scalar_lea.vmem %s1, 269
    %241 = vst.msk [vmem:[%s240] ss:$-48 sm:$0xc] %vm237, %v236
    %v242 = vld.sshfl [vmem:[#allocation0] sm:$0xff pattern:$0x22222301]
    %243 = vrot.lane.b32.xlu0 %v242, 98
    %v244 = vpop.permute.xlu0 %243
    %vm245 = vcmask 7168
    %s246 = scalar_lea.vmem %s1, 78
    %247 = vst.msk [vmem:[%s246] ss:$-48 sm:$0x3] %vm245, %v244
    %s248 = scalar_lea.vmem %s1, 270
    %249 = vst.msk [vmem:[%s248] ss:$-48 sm:$0xc] %vm245, %v244
    %v250 = vld.sshfl [vmem:[#allocation0] sm:$0xff pattern:$0x22222301]
    %251 = vrot.lane.b32.xlu0 %v250, 97
    %v252 = vpop.permute.xlu0 %251
    %vm253 = vcmask 7168
    %s254 = scalar_lea.vmem %s1, 79
    %255 = vst.msk [vmem:[%s254] ss:$-48 sm:$0x3] %vm253, %v252
    %s256 = scalar_lea.vmem %s1, 271
    %257 = vst.msk [vmem:[%s256] ss:$-48 sm:$0xc] %vm253, %v252
    %v258 = vld [vmem:[#allocation0] sm:$0xf]
    %259 = vrot.lane.b32.xlu0 %v258, 96
    %v260 = vpop.permute.xlu0 %259
    %vm261 = vcmask 7168
    %s262 = scalar_lea.vmem %s1, 32
    %263 = vst.msk [vmem:[%s262] ss:$48 sm:$0x3] %vm261, %v260
    %s264 = scalar_lea.vmem %s1, 32
    %265 = vst.msk [vmem:[%s264] ss:$48 sm:$0xc] %vm261, %v260
    %v266 = vld [vmem:[#allocation0] sm:$0xf]
    %267 = vrot.lane.b32.xlu0 %v266, 95
    %v268 = vpop.permute.xlu0 %267
    %vm269 = vcmask 7168
    %s270 = scalar_lea.vmem %s1, 33
    %271 = vst.msk [vmem:[%s270] ss:$48 sm:$0x3] %vm269, %v268
    %s272 = scalar_lea.vmem %s1, 33
    %273 = vst.msk [vmem:[%s272] ss:$48 sm:$0xc] %vm269, %v268
    %v274 = vld [vmem:[#allocation0] sm:$0xf]
    %275 = vrot.lane.b32.xlu0 %v274, 94
    %v276 = vpop.permute.xlu0 %275
    %vm277 = vcmask 7168
    %s278 = scalar_lea.vmem %s1, 34
    %279 = vst.msk [vmem:[%s278] ss:$48 sm:$0x3] %vm277, %v276
    %s280 = scalar_lea.vmem %s1, 34
    %281 = vst.msk [vmem:[%s280] ss:$48 sm:$0xc] %vm277, %v276
    %v282 = vld [vmem:[#allocation0] sm:$0xf]
    %283 = vrot.lane.b32.xlu0 %v282, 93
    %v284 = vpop.permute.xlu0 %283
    %vm285 = vcmask 7168
    %s286 = scalar_lea.vmem %s1, 35
    %287 = vst.msk [vmem:[%s286] ss:$48 sm:$0x3] %vm285, %v284
    %s288 = scalar_lea.vmem %s1, 35
    %289 = vst.msk [vmem:[%s288] ss:$48 sm:$0xc] %vm285, %v284
    %v290 = vld [vmem:[#allocation0] sm:$0xf]
    %291 = vrot.lane.b32.xlu0 %v290, 92
    %v292 = vpop.permute.xlu0 %291
    %vm293 = vcmask 7168
    %s294 = scalar_lea.vmem %s1, 36
    %295 = vst.msk [vmem:[%s294] ss:$48 sm:$0x3] %vm293, %v292
    %s296 = scalar_lea.vmem %s1, 36
    %297 = vst.msk [vmem:[%s296] ss:$48 sm:$0xc] %vm293, %v292
    %v298 = vld [vmem:[#allocation0] sm:$0xf]
    %299 = vrot.lane.b32.xlu0 %v298, 91
    %v300 = vpop.permute.xlu0 %299
    %vm301 = vcmask 7168
    %s302 = scalar_lea.vmem %s1, 37
    %303 = vst.msk [vmem:[%s302] ss:$48 sm:$0x3] %vm301, %v300
    %s304 = scalar_lea.vmem %s1, 37
    %305 = vst.msk [vmem:[%s304] ss:$48 sm:$0xc] %vm301, %v300
    %v306 = vld [vmem:[#allocation0] sm:$0xf]
    %307 = vrot.lane.b32.xlu0 %v306, 90
    %v308 = vpop.permute.xlu0 %307
    %vm309 = vcmask 7168
    %s310 = scalar_lea.vmem %s1, 38
    %311 = vst.msk [vmem:[%s310] ss:$48 sm:$0x3] %vm309, %v308
    %s312 = scalar_lea.vmem %s1, 38
    %313 = vst.msk [vmem:[%s312] ss:$48 sm:$0xc] %vm309, %v308
    %v314 = vld [vmem:[#allocation0] sm:$0xf]
    %315 = vrot.lane.b32.xlu0 %v314, 89
    %v316 = vpop.permute.xlu0 %315
    %vm317 = vcmask 7168
    %s318 = scalar_lea.vmem %s1, 39
    %319 = vst.msk [vmem:[%s318] ss:$48 sm:$0x3] %vm317, %v316
    %s320 = scalar_lea.vmem %s1, 39
    %321 = vst.msk [vmem:[%s320] ss:$48 sm:$0xc] %vm317, %v316
    %v322 = vld [vmem:[#allocation0] sm:$0xf]
    %323 = vrot.lane.b32.xlu0 %v322, 88
    %v324 = vpop.permute.xlu0 %323
    %vm325 = vcmask 7168
    %s326 = scalar_lea.vmem %s1, 40
    %327 = vst.msk [vmem:[%s326] ss:$48 sm:$0x3] %vm325, %v324
    %s328 = scalar_lea.vmem %s1, 40
    %329 = vst.msk [vmem:[%s328] ss:$48 sm:$0xc] %vm325, %v324
    %v330 = vld [vmem:[#allocation0] sm:$0xf]
    %331 = vrot.lane.b32.xlu0 %v330, 87
    %v332 = vpop.permute.xlu0 %331
    %vm333 = vcmask 7168
    %s334 = scalar_lea.vmem %s1, 41
    %335 = vst.msk [vmem:[%s334] ss:$48 sm:$0x3] %vm333, %v332
    %s336 = scalar_lea.vmem %s1, 41
    %337 = vst.msk [vmem:[%s336] ss:$48 sm:$0xc] %vm333, %v332
    %v338 = vld [vmem:[#allocation0] sm:$0xf]
    %339 = vrot.lane.b32.xlu0 %v338, 86
    %v340 = vpop.permute.xlu0 %339
    %vm341 = vcmask 7168
    %s342 = scalar_lea.vmem %s1, 42
    %343 = vst.msk [vmem:[%s342] ss:$48 sm:$0x3] %vm341, %v340
    %s344 = scalar_lea.vmem %s1, 42
    %345 = vst.msk [vmem:[%s344] ss:$48 sm:$0xc] %vm341, %v340
    %v346 = vld [vmem:[#allocation0] sm:$0xf]
    %347 = vrot.lane.b32.xlu0 %v346, 85
    %v348 = vpop.permute.xlu0 %347
    %vm349 = vcmask 7168
    %s350 = scalar_lea.vmem %s1, 43
    %351 = vst.msk [vmem:[%s350] ss:$48 sm:$0x3] %vm349, %v348
    %s352 = scalar_lea.vmem %s1, 43
    %353 = vst.msk [vmem:[%s352] ss:$48 sm:$0xc] %vm349, %v348
    %v354 = vld [vmem:[#allocation0] sm:$0xf]
    %355 = vrot.lane.b32.xlu0 %v354, 84
    %v356 = vpop.permute.xlu0 %355
    %vm357 = vcmask 7168
    %s358 = scalar_lea.vmem %s1, 44
    %359 = vst.msk [vmem:[%s358] ss:$48 sm:$0x3] %vm357, %v356
    %s360 = scalar_lea.vmem %s1, 44
    %361 = vst.msk [vmem:[%s360] ss:$48 sm:$0xc] %vm357, %v356
    %v362 = vld [vmem:[#allocation0] sm:$0xf]
    %363 = vrot.lane.b32.xlu0 %v362, 83
    %v364 = vpop.permute.xlu0 %363
    %vm365 = vcmask 7168
    %s366 = scalar_lea.vmem %s1, 45
    %367 = vst.msk [vmem:[%s366] ss:$48 sm:$0x3] %vm365, %v364
    %s368 = scalar_lea.vmem %s1, 45
    %369 = vst.msk [vmem:[%s368] ss:$48 sm:$0xc] %vm365, %v364
    %v370 = vld [vmem:[#allocation0] sm:$0xf]
    %371 = vrot.lane.b32.xlu0 %v370, 82
    %v372 = vpop.permute.xlu0 %371
    %vm373 = vcmask 7168
    %s374 = scalar_lea.vmem %s1, 46
    %375 = vst.msk [vmem:[%s374] ss:$48 sm:$0x3] %vm373, %v372
    %s376 = scalar_lea.vmem %s1, 46
    %377 = vst.msk [vmem:[%s376] ss:$48 sm:$0xc] %vm373, %v372
    %v378 = vld [vmem:[#allocation0] sm:$0xf]
    %379 = vrot.lane.b32.xlu0 %v378, 81
    %v380 = vpop.permute.xlu0 %379
    %vm381 = vcmask 7168
    %s382 = scalar_lea.vmem %s1, 47
    %383 = vst.msk [vmem:[%s382] ss:$48 sm:$0x3] %vm381, %v380
    %s384 = scalar_lea.vmem %s1, 47
    %385 = vst.msk [vmem:[%s384] ss:$48 sm:$0xc] %vm381, %v380

// kernel: forward.14
$region0: #{forward.14}
  #allocation0 [shape = 'u32[]', space=smem, size = 0x4, offset = 0x4, fixed_abs, tag = 'smem constant byte address 0x4 - core index']
  #allocation1 [shape = 'u32[72,128]{1,0:T(1,128)}', space=vmem, size = 0x9000, scoped, tag = 'internal scratch']
  %s0 = inlined_call_operand.vmem [shape: bf16[192,432], index: 0, kind: input, shape index: {}]
  %s1 = inlined_call_operand.vmem [shape: bf16[432,128], index: 1, kind: input, shape index: {}]
  %s2 = inlined_call_operand.vmem [shape: f32[192,1], index: 2, kind: input, shape index: {}]
  %s3 = inlined_call_operand.vmem [shape: f32[192,192], index: 3, kind: input, shape index: {}]
  %s4 = inlined_call_operand.vmem [shape: f32[192,1], index: 4, kind: input, shape index: {}]
  %s5 = inlined_call_operand.vmem [shape: f32[192,128], index: 5, kind: output, shape index: {}]
  %s6 = sld [smem:[#allocation0]]
  $region30: #{forward.14} parent=0
    _
  %s8 = ssub.s32 1, %s6
  %s9 = scalar_select 0, %s8, %s6
  // Predicated region
  $region2: #{forward.14} parent=0 // pred_check
    _
  $region3: #{forward.14} parent=0 // pred_check_branch
    %11 = sbr.rel (0) target = $region5
  $region4: #{forward.14} parent=0 // pred_region
    _
  $region5: #{forward.14} parent=0 // pred_fallthru
    _
  // Predicated region
  $region6: #{forward.14} parent=0 // pred_check
    _
  $region7: #{forward.14} parent=0 // pred_check_branch
    %13 = sbr.rel (0) target = $region9
  $region8: #{forward.14} parent=0 // pred_region
    _
  $region9: #{forward.14} parent=0 // pred_fallthru
    _
  // Predicated region
  $region10: #{forward.14} parent=0 // pred_check
    _
  $region11: #{forward.14} parent=0 // pred_check_branch
    %15 = sbr.rel (0) target = $region13
  $region12: #{forward.14} parent=0 // pred_region
    _
  $region13: #{forward.14} parent=0 // pred_fallthru
    _
  // Predicated region
  $region14: #{forward.14} parent=0 // pred_check
    _
  $region15: #{forward.14} parent=0 // pred_check_branch
    %17 = sbr.rel (0) target = $region17
  $region16: #{forward.14} parent=0 // pred_region
    _
  $region17: #{forward.14} parent=0 // pred_fallthru
    _
  // Predicated region
  $region18: #{forward.14} parent=0 // pred_check
    _
  $region19: #{forward.14} parent=0 // pred_check_branch
    %19 = sbr.rel (0) target = $region21
  $region20: #{forward.14} parent=0 // pred_region
    _
  $region21: #{forward.14} parent=0 // pred_fallthru
    _
  %v21 = vld [vmem:[%s0] sm:$0xff]
  %v22 = vld [vmem:[%s0 + $0x8] sm:$0xff]
  %v23 = vld [vmem:[%s0 + $0x10] sm:$0xff]
  %v24 = vld [vmem:[%s0 + $0x18] sm:$0xff]
  %v25 = vld [vmem:[%s0 + $0x20] sm:$0xff]
  %v26 = vld [vmem:[%s0 + $0x28] sm:$0xff]
  %v27 = vld [vmem:[%s0 + $0x30] sm:$0xff]
  %v28 = vld [vmem:[%s0 + $0x38] sm:$0xff]
  %v29 = vld [vmem:[%s0 + $0x40] sm:$0xff]
  %v30 = vld [vmem:[%s0 + $0x48] sm:$0xff]
  %v31 = vld [vmem:[%s0 + $0x50] sm:$0xff]
  %v32 = vld [vmem:[%s0 + $0x58] sm:$0xff]
  %v33 = vld [vmem:[%s0 + $0x60] sm:$0xff]
  %v34 = vld [vmem:[%s0 + $0x68] sm:$0xff]
  %v35 = vld [vmem:[%s0 + $0x70] sm:$0xff]
  %v36 = vld [vmem:[%s0 + $0x78] sm:$0xff]
  %v37 = vld [vmem:[%s0 + $0x80] sm:$0xff]
  %v38 = vld [vmem:[%s0 + $0x88] sm:$0xff]
  %v39 = vld [vmem:[%s0 + $0x90] sm:$0xff]
  %v40 = vld [vmem:[%s0 + $0x98] sm:$0xff]
  %v41 = vld [vmem:[%s0 + $0xa0] sm:$0xff]
  %v42 = vld [vmem:[%s0 + $0xa8] sm:$0xff]
  %v43 = vld [vmem:[%s0 + $0xb0] sm:$0xff]
  %v44 = vld [vmem:[%s0 + $0xb8] sm:$0xff]
  %v45 = vld [vmem:[%s0 + $0xc0] sm:$0xff]
  %v46 = vld [vmem:[%s0 + $0xc8] sm:$0xff]
  %v47 = vld [vmem:[%s0 + $0xd0] sm:$0xff]
  %v48 = vld [vmem:[%s0 + $0xd8] sm:$0xff]
  %v49 = vld [vmem:[%s0 + $0xe0] sm:$0xff]
  %v50 = vld [vmem:[%s0 + $0xe8] sm:$0xff]
  %v51 = vld [vmem:[%s0 + $0xf0] sm:$0xff]
  %v52 = vld [vmem:[%s0 + $0xf8] sm:$0xff]
  %v53 = vld [vmem:[%s0 + $0x100] sm:$0xff]
  %v54 = vld [vmem:[%s0 + $0x108] sm:$0xff]
  %v55 = vld [vmem:[%s0 + $0x110] sm:$0xff]
  %v56 = vld [vmem:[%s0 + $0x118] sm:$0xff]
  %v57 = vld [vmem:[%s0 + $0x120] sm:$0xff]
  %v58 = vld [vmem:[%s0 + $0x128] sm:$0xff]
  %v59 = vld [vmem:[%s0 + $0x130] sm:$0xff]
  %v60 = vld [vmem:[%s0 + $0x138] sm:$0xff]
  %v61 = vld [vmem:[%s0 + $0x140] sm:$0xff]
  %v62 = vld [vmem:[%s0 + $0x148] sm:$0xff]
  %v63 = vld [vmem:[%s0 + $0x150] sm:$0xff]
  %v64 = vld [vmem:[%s0 + $0x158] sm:$0xff]
  %v65 = vld [vmem:[%s0 + $0x160] sm:$0xff]
  %v66 = vld [vmem:[%s0 + $0x168] sm:$0xff]
  %v67 = vld [vmem:[%s0 + $0x170] sm:$0xff]
  %v68 = vld [vmem:[%s0 + $0x178] sm:$0xff]
  %v69 = vld [vmem:[%s1] sm:$0xf]
  %v70 = vld [vmem:[%s1 + $0x4] sm:$0xf]
  %v71 = vld [vmem:[%s1 + $0x8] sm:$0xf]
  %v72 = vld [vmem:[%s1 + $0xc] sm:$0xf]
  %v73 = vld [vmem:[%s1 + $0x10] sm:$0xf]
  %v74 = vld [vmem:[%s1 + $0x14] sm:$0xf]
  %v75 = vld [vmem:[%s1 + $0x18] sm:$0xf]
  %v76 = vld [vmem:[%s1 + $0x1c] sm:$0xf]
  %v77 = vld [vmem:[%s1 + $0x20] sm:$0xf]
  %v78 = vld [vmem:[%s1 + $0x24] sm:$0xf]
  %v79 = vld [vmem:[%s1 + $0x28] sm:$0xf]
  %v80 = vld [vmem:[%s1 + $0x2c] sm:$0xf]
  %v81 = vld [vmem:[%s1 + $0x30] sm:$0xf]
  %v82 = vld [vmem:[%s1 + $0x34] sm:$0xf]
  %v83 = vld [vmem:[%s1 + $0x38] sm:$0xf]
  %v84 = vld [vmem:[%s1 + $0x3c] sm:$0xf]
  %v85 = vld [vmem:[%s1 + $0x40] sm:$0xf]
  %v86 = vld [vmem:[%s1 + $0x44] sm:$0xf]
  %v87 = vld [vmem:[%s1 + $0x48] sm:$0xf]
  %v88 = vld [vmem:[%s1 + $0x4c] sm:$0xf]
  %v89 = vld [vmem:[%s1 + $0x50] sm:$0xf]
  %v90 = vld [vmem:[%s1 + $0x54] sm:$0xf]
  %v91 = vld [vmem:[%s1 + $0x58] sm:$0xf]
  %v92 = vld [vmem:[%s1 + $0x5c] sm:$0xf]
  %v93 = vld [vmem:[%s1 + $0x60] sm:$0xf]
  %v94 = vld [vmem:[%s1 + $0x64] sm:$0xf]
  %v95 = vld [vmem:[%s1 + $0x68] sm:$0xf]
  %v96 = vld [vmem:[%s1 + $0x6c] sm:$0xf]
  %v97 = vld [vmem:[%s1 + $0x70] sm:$0xf]
  %v98 = vld [vmem:[%s1 + $0x74] sm:$0xf]
  %v99 = vld [vmem:[%s1 + $0x78] sm:$0xf]
  %v100 = vld [vmem:[%s1 + $0x7c] sm:$0xf]
  %v101 = vld [vmem:[%s1 + $0x80] sm:$0xf]
  %v102 = vld [vmem:[%s1 + $0x84] sm:$0xf]
  %v103 = vld [vmem:[%s1 + $0x88] sm:$0xf]
  %v104 = vld [vmem:[%s1 + $0x8c] sm:$0xf]
  %v105 = vld [vmem:[%s1 + $0x90] sm:$0xf]
  %v106 = vld [vmem:[%s1 + $0x94] sm:$0xf]
  %v107 = vld [vmem:[%s1 + $0x98] sm:$0xf]
  %v108 = vld [vmem:[%s1 + $0x9c] sm:$0xf]
  %v109 = vld [vmem:[%s1 + $0xa0] sm:$0xf]
  %v110 = vld [vmem:[%s1 + $0xa4] sm:$0xf]
  %v111 = vld [vmem:[%s1 + $0xa8] sm:$0xf]
  %v112 = vld [vmem:[%s1 + $0xac] sm:$0xf]
  %v113 = vld [vmem:[%s1 + $0xb0] sm:$0xf]
  %v114 = vld [vmem:[%s1 + $0xb4] sm:$0xf]
  %v115 = vld [vmem:[%s1 + $0xb8] sm:$0xf]
  %v116 = vld [vmem:[%s1 + $0xbc] sm:$0xf]
  %v117 = vld [vmem:[%s1 + $0xc0] sm:$0xf]
  %v118 = vld [vmem:[%s1 + $0xc4] sm:$0xf]
  %v119 = vld [vmem:[%s1 + $0xc8] sm:$0xf]
  %v120 = vld [vmem:[%s1 + $0xcc] sm:$0xf]
  %v121 = vld [vmem:[%s1 + $0xd0] sm:$0xf]
  %v122 = vld [vmem:[%s1 + $0xd4] sm:$0xf]
  %v123 = vld [vmem:[%s2] sm:$0xff]
  %v124 = vld [vmem:[%s2 + $0x8] sm:$0xff]
  %v125 = vld [vmem:[%s2 + $0x10] sm:$0xff]
  %v126 = vld [vmem:[%s2 + $0x18] sm:$0xff]
  %v127 = vld [vmem:[%s2 + $0x20] sm:$0xff]
  %v128 = vld [vmem:[%s2 + $0x28] sm:$0xff]
  %v129 = vld [vmem:[%s2 + $0x30] sm:$0xff]
  %v130 = vld [vmem:[%s2 + $0x38] sm:$0xff]
  %v131 = vld [vmem:[%s2 + $0x40] sm:$0xff]
  %v132 = vld [vmem:[%s2 + $0x48] sm:$0xff]
  %v133 = vld [vmem:[%s2 + $0x50] sm:$0xff]
  %v134 = vld [vmem:[%s2 + $0x58] sm:$0xff]
  %v135 = vld [vmem:[%s2 + $0x60] sm:$0xff]
  %v136 = vld [vmem:[%s2 + $0x68] sm:$0xff]
  %v137 = vld [vmem:[%s2 + $0x70] sm:$0xff]
  %v138 = vld [vmem:[%s2 + $0x78] sm:$0xff]
  %v139 = vld [vmem:[%s2 + $0x80] sm:$0xff]
  %v140 = vld [vmem:[%s2 + $0x88] sm:$0xff]
  %v141 = vld [vmem:[%s2 + $0x90] sm:$0xff]
  %v142 = vld [vmem:[%s2 + $0x98] sm:$0xff]
  %v143 = vld [vmem:[%s2 + $0xa0] sm:$0xff]
  %v144 = vld [vmem:[%s2 + $0xa8] sm:$0xff]
  %v145 = vld [vmem:[%s2 + $0xb0] sm:$0xff]
  %v146 = vld [vmem:[%s2 + $0xb8] sm:$0xff]
  %148 = vset.pattern.permute.xlu0 0
  %149 = vperm.xlu0 %148, %v123
  %v150 = vpop.permute.xlu0 %149
  %153 = vset.pattern.permute.xlu0 0
  %154 = vperm.xlu0 %153, %v124
  %v155 = vpop.permute.xlu0 %154
  %158 = vset.pattern.permute.xlu0 0
  %159 = vperm.xlu0 %158, %v125
  %v160 = vpop.permute.xlu0 %159
  %163 = vset.pattern.permute.xlu0 0
  %164 = vperm.xlu0 %163, %v126
  %v165 = vpop.permute.xlu0 %164
  %168 = vset.pattern.permute.xlu0 0
  %169 = vperm.xlu0 %168, %v127
  %v170 = vpop.permute.xlu0 %169
  %173 = vset.pattern.permute.xlu0 0
  %174 = vperm.xlu0 %173, %v128
  %v175 = vpop.permute.xlu0 %174
  %178 = vset.pattern.permute.xlu0 0
  %179 = vperm.xlu0 %178, %v129
  %v180 = vpop.permute.xlu0 %179
  %183 = vset.pattern.permute.xlu0 0
  %184 = vperm.xlu0 %183, %v130
  %v185 = vpop.permute.xlu0 %184
  %188 = vset.pattern.permute.xlu0 0
  %189 = vperm.xlu0 %188, %v131
  %v190 = vpop.permute.xlu0 %189
  %193 = vset.pattern.permute.xlu0 0
  %194 = vperm.xlu0 %193, %v132
  %v195 = vpop.permute.xlu0 %194
  %198 = vset.pattern.permute.xlu0 0
  %199 = vperm.xlu0 %198, %v133
  %v200 = vpop.permute.xlu0 %199
  %203 = vset.pattern.permute.xlu0 0
  %204 = vperm.xlu0 %203, %v134
  %v205 = vpop.permute.xlu0 %204
  %208 = vset.pattern.permute.xlu0 0
  %209 = vperm.xlu0 %208, %v135
  %v210 = vpop.permute.xlu0 %209
  %213 = vset.pattern.permute.xlu0 0
  %214 = vperm.xlu0 %213, %v136
  %v215 = vpop.permute.xlu0 %214
  %218 = vset.pattern.permute.xlu0 0
  %219 = vperm.xlu0 %218, %v137
  %v220 = vpop.permute.xlu0 %219
  %223 = vset.pattern.permute.xlu0 0
  %224 = vperm.xlu0 %223, %v138
  %v225 = vpop.permute.xlu0 %224
  %228 = vset.pattern.permute.xlu0 0
  %229 = vperm.xlu0 %228, %v139
  %v230 = vpop.permute.xlu0 %229
  %233 = vset.pattern.permute.xlu0 0
  %234 = vperm.xlu0 %233, %v140
  %v235 = vpop.permute.xlu0 %234
  %238 = vset.pattern.permute.xlu0 0
  %239 = vperm.xlu0 %238, %v141
  %v240 = vpop.permute.xlu0 %239
  %243 = vset.pattern.permute.xlu0 0
  %244 = vperm.xlu0 %243, %v142
  %v245 = vpop.permute.xlu0 %244
  %248 = vset.pattern.permute.xlu0 0
  %249 = vperm.xlu0 %248, %v143
  %v250 = vpop.permute.xlu0 %249
  %253 = vset.pattern.permute.xlu0 0
  %254 = vperm.xlu0 %253, %v144
  %v255 = vpop.permute.xlu0 %254
  %258 = vset.pattern.permute.xlu0 0
  %259 = vperm.xlu0 %258, %v145
  %v260 = vpop.permute.xlu0 %259
  %263 = vset.pattern.permute.xlu0 0
  %264 = vperm.xlu0 %263, %v146
  %v265 = vpop.permute.xlu0 %264
  %v315 = vunpack.c.l.b16 %v21
  %v316 = vunpack.c.h.b16 %v21
  %v317 = vunpack.c.l.b16 %v22
  %v318 = vunpack.c.h.b16 %v22
  %v319 = vunpack.c.l.b16 %v23
  %v320 = vunpack.c.h.b16 %v23
  %v321 = vunpack.c.l.b16 %v24
  %v322 = vunpack.c.h.b16 %v24
  %v323 = vunpack.c.l.b16 %v25
  %v324 = vunpack.c.h.b16 %v25
  %v325 = vunpack.c.l.b16 %v26
  %v326 = vunpack.c.h.b16 %v26
  %v327 = vunpack.c.l.b16 %v27
  %v328 = vunpack.c.h.b16 %v27
  %v329 = vunpack.c.l.b16 %v28
  %v330 = vunpack.c.h.b16 %v28
  %v331 = vunpack.c.l.b16 %v29
  %v332 = vunpack.c.h.b16 %v29
  %v333 = vunpack.c.l.b16 %v30
  %v334 = vunpack.c.h.b16 %v30
  %v335 = vunpack.c.l.b16 %v31
  %v336 = vunpack.c.h.b16 %v31
  %v337 = vunpack.c.l.b16 %v32
  %v338 = vunpack.c.h.b16 %v32
  %v339 = vunpack.c.l.b16 %v33
  %v340 = vunpack.c.h.b16 %v33
  %v341 = vunpack.c.l.b16 %v34
  %v342 = vunpack.c.h.b16 %v34
  %v343 = vunpack.c.l.b16 %v35
  %v344 = vunpack.c.h.b16 %v35
  %v345 = vunpack.c.l.b16 %v36
  %v346 = vunpack.c.h.b16 %v36
  %v347 = vunpack.c.l.b16 %v37
  %v348 = vunpack.c.h.b16 %v37
  %v349 = vunpack.c.l.b16 %v38
  %v350 = vunpack.c.h.b16 %v38
  %v351 = vunpack.c.l.b16 %v39
  %v352 = vunpack.c.h.b16 %v39
  %v353 = vunpack.c.l.b16 %v40
  %v354 = vunpack.c.h.b16 %v40
  %v355 = vunpack.c.l.b16 %v41
  %v356 = vunpack.c.h.b16 %v41
  %v357 = vunpack.c.l.b16 %v42
  %v358 = vunpack.c.h.b16 %v42
  %v359 = vunpack.c.l.b16 %v43
  %v360 = vunpack.c.h.b16 %v43
  %v361 = vunpack.c.l.b16 %v44
  %v362 = vunpack.c.h.b16 %v44
  %v363 = vunpack.c.l.b16 %v45
  %v364 = vunpack.c.h.b16 %v45
  %v365 = vunpack.c.l.b16 %v46
  %v366 = vunpack.c.h.b16 %v46
  %v367 = vunpack.c.l.b16 %v47
  %v368 = vunpack.c.h.b16 %v47
  %v369 = vunpack.c.l.b16 %v48
  %v370 = vunpack.c.h.b16 %v48
  %v371 = vunpack.c.l.b16 %v49
  %v372 = vunpack.c.h.b16 %v49
  %v373 = vunpack.c.l.b16 %v50
  %v374 = vunpack.c.h.b16 %v50
  %v375 = vunpack.c.l.b16 %v51
  %v376 = vunpack.c.h.b16 %v51
  %v377 = vunpack.c.l.b16 %v52
  %v378 = vunpack.c.h.b16 %v52
  %v379 = vunpack.c.l.b16 %v53
  %v380 = vunpack.c.h.b16 %v53
  %v381 = vunpack.c.l.b16 %v54
  %v382 = vunpack.c.h.b16 %v54
  %v383 = vunpack.c.l.b16 %v55
  %v384 = vunpack.c.h.b16 %v55
  %v385 = vunpack.c.l.b16 %v56
  %v386 = vunpack.c.h.b16 %v56
  %v387 = vunpack.c.l.b16 %v57
  %v388 = vunpack.c.h.b16 %v57
  %v389 = vunpack.c.l.b16 %v58
  %v390 = vunpack.c.h.b16 %v58
  %v391 = vunpack.c.l.b16 %v59
  %v392 = vunpack.c.h.b16 %v59
  %v393 = vunpack.c.l.b16 %v60
  %v394 = vunpack.c.h.b16 %v60
  %v395 = vunpack.c.l.b16 %v61
  %v396 = vunpack.c.h.b16 %v61
  %v397 = vunpack.c.l.b16 %v62
  %v398 = vunpack.c.h.b16 %v62
  %v399 = vunpack.c.l.b16 %v63
  %v400 = vunpack.c.h.b16 %v63
  %v401 = vunpack.c.l.b16 %v64
  %v402 = vunpack.c.h.b16 %v64
  %v403 = vunpack.c.l.b16 %v65
  %v404 = vunpack.c.h.b16 %v65
  %v405 = vunpack.c.l.b16 %v66
  %v406 = vunpack.c.h.b16 %v66
  %v407 = vunpack.c.l.b16 %v67
  %v408 = vunpack.c.h.b16 %v67
  %v409 = vunpack.c.l.b16 %v68
  %v410 = vunpack.c.h.b16 %v68
  %v411 = vpack.c.b16 %v319, %v315
  %v412 = vpack.c.b16 %v320, %v316
  %v413 = vpack.c.b16 %v321, %v317
  %v414 = vpack.c.b16 %v322, %v318
  %v415 = vpack.c.b16 %v327, %v323
  %v416 = vpack.c.b16 %v328, %v324
  %v417 = vpack.c.b16 %v329, %v325
  %v418 = vpack.c.b16 %v330, %v326
  %v419 = vpack.c.b16 %v335, %v331
  %v420 = vpack.c.b16 %v336, %v332
  %v421 = vpack.c.b16 %v337, %v333
  %v422 = vpack.c.b16 %v338, %v334
  %v423 = vpack.c.b16 %v343, %v339
  %v424 = vpack.c.b16 %v344, %v340
  %v425 = vpack.c.b16 %v345, %v341
  %v426 = vpack.c.b16 %v346, %v342
  %v427 = vpack.c.b16 %v351, %v347
  %v428 = vpack.c.b16 %v352, %v348
  %v429 = vpack.c.b16 %v353, %v349
  %v430 = vpack.c.b16 %v354, %v350
  %v431 = vpack.c.b16 %v359, %v355
  %v432 = vpack.c.b16 %v360, %v356
  %v433 = vpack.c.b16 %v361, %v357
  %v434 = vpack.c.b16 %v362, %v358
  %v435 = vpack.c.b16 %v367, %v363
  %v436 = vpack.c.b16 %v368, %v364
  %v437 = vpack.c.b16 %v369, %v365
  %v438 = vpack.c.b16 %v370, %v366
  %v439 = vpack.c.b16 %v375, %v371
  %v440 = vpack.c.b16 %v376, %v372
  %v441 = vpack.c.b16 %v377, %v373
  %v442 = vpack.c.b16 %v378, %v374
  %v443 = vpack.c.b16 %v383, %v379
  %v444 = vpack.c.b16 %v384, %v380
  %v445 = vpack.c.b16 %v385, %v381
  %v446 = vpack.c.b16 %v386, %v382
  %v447 = vpack.c.b16 %v391, %v387
  %v448 = vpack.c.b16 %v392, %v388
  %v449 = vpack.c.b16 %v393, %v389
  %v450 = vpack.c.b16 %v394, %v390
  %v451 = vpack.c.b16 %v399, %v395
  %v452 = vpack.c.b16 %v400, %v396
  %v453 = vpack.c.b16 %v401, %v397
  %v454 = vpack.c.b16 %v402, %v398
  %v455 = vpack.c.b16 %v407, %v403
  %v456 = vpack.c.b16 %v408, %v404
  %v457 = vpack.c.b16 %v409, %v405
  %v458 = vpack.c.b16 %v410, %v406
  %v549 = vunpack.c.l.b16 %v69
  %v550 = vunpack.c.l.b16 %v70
  %v551 = vunpack.c.l.b16 %v71
  %v552 = vunpack.c.l.b16 %v72
  %v553 = vunpack.c.l.b16 %v73
  %v554 = vunpack.c.l.b16 %v74
  %v555 = vunpack.c.l.b16 %v75
  %v556 = vunpack.c.l.b16 %v76
  %v557 = vunpack.c.l.b16 %v77
  %v558 = vunpack.c.l.b16 %v78
  %v559 = vunpack.c.l.b16 %v79
  %v560 = vunpack.c.l.b16 %v80
  %v561 = vunpack.c.l.b16 %v81
  %v562 = vunpack.c.l.b16 %v82
  %v563 = vunpack.c.l.b16 %v83
  %v564 = vunpack.c.l.b16 %v84
  %v565 = vunpack.c.l.b16 %v85
  %v566 = vunpack.c.l.b16 %v86
  %v567 = vunpack.c.l.b16 %v87
  %v568 = vunpack.c.l.b16 %v88
  %v569 = vunpack.c.l.b16 %v89
  %v570 = vunpack.c.l.b16 %v90
  %v571 = vunpack.c.l.b16 %v91
  %v572 = vunpack.c.l.b16 %v92
  %v573 = vunpack.c.l.b16 %v93
  %v574 = vunpack.c.l.b16 %v94
  %v575 = vunpack.c.l.b16 %v95
  %v576 = vunpack.c.l.b16 %v96
  %v577 = vunpack.c.l.b16 %v97
  %v578 = vunpack.c.l.b16 %v98
  %v579 = vunpack.c.l.b16 %v99
  %v580 = vunpack.c.l.b16 %v100
  %v581 = vunpack.c.l.b16 %v101
  %v582 = vunpack.c.l.b16 %v102
  %v583 = vunpack.c.l.b16 %v103
  %v584 = vunpack.c.l.b16 %v104
  %v585 = vunpack.c.l.b16 %v105
  %v586 = vunpack.c.l.b16 %v106
  %v587 = vunpack.c.l.b16 %v107
  %v588 = vunpack.c.l.b16 %v108
  %v589 = vunpack.c.l.b16 %v109
  %v590 = vunpack.c.l.b16 %v110
  %v591 = vunpack.c.l.b16 %v111
  %v592 = vunpack.c.l.b16 %v112
  %v593 = vunpack.c.l.b16 %v113
  %v594 = vunpack.c.l.b16 %v114
  %v595 = vunpack.c.l.b16 %v115
  %v596 = vunpack.c.l.b16 %v116
  %v597 = vunpack.c.l.b16 %v117
  %v598 = vunpack.c.l.b16 %v118
  %v599 = vunpack.c.l.b16 %v119
  %v600 = vunpack.c.l.b16 %v120
  %v601 = vunpack.c.l.b16 %v121
  %v602 = vunpack.c.l.b16 %v122
  %v603 = vpack.c.b16 %v550, %v549
  %v604 = vpack.c.b16 %v552, %v551
  %v605 = vpack.c.b16 %v554, %v553
  %v606 = vpack.c.b16 %v556, %v555
  %v607 = vpack.c.b16 %v558, %v557
  %v608 = vpack.c.b16 %v560, %v559
  %v609 = vpack.c.b16 %v562, %v561
  %v610 = vpack.c.b16 %v564, %v563
  %v611 = vpack.c.b16 %v566, %v565
  %v612 = vpack.c.b16 %v568, %v567
  %v613 = vpack.c.b16 %v570, %v569
  %v614 = vpack.c.b16 %v572, %v571
  %v615 = vpack.c.b16 %v574, %v573
  %v616 = vpack.c.b16 %v576, %v575
  %v617 = vpack.c.b16 %v578, %v577
  %v618 = vpack.c.b16 %v580, %v579
  %v619 = vpack.c.b16 %v582, %v581
  %v620 = vpack.c.b16 %v584, %v583
  %v621 = vpack.c.b16 %v586, %v585
  %v622 = vpack.c.b16 %v588, %v587
  %v623 = vpack.c.b16 %v590, %v589
  %v624 = vpack.c.b16 %v592, %v591
  %v625 = vpack.c.b16 %v594, %v593
  %v626 = vpack.c.b16 %v596, %v595
  %v627 = vpack.c.b16 %v598, %v597
  %v628 = vpack.c.b16 %v600, %v599
  %v629 = vpack.c.b16 %v602, %v601
  %vm657 = vcmask 392192
  %v659 = vsel %vm657, %v414, 0
  %v662 = vsel %vm657, %v418, 0
  %v665 = vsel %vm657, %v422, 0
  %v668 = vsel %vm657, %v426, 0
  %v671 = vsel %vm657, %v430, 0
  %v674 = vsel %vm657, %v434, 0
  %v677 = vsel %vm657, %v438, 0
  %v680 = vsel %vm657, %v442, 0
  %v683 = vsel %vm657, %v446, 0
  %v686 = vsel %vm657, %v450, 0
  %v689 = vsel %vm657, %v454, 0
  %v692 = vsel %vm657, %v458, 0
  %694 = vmatpush.bf16.msra.mxu0 %v610
  %695 = vmatpush.bf16.msra.mxu0 %v609
  %696 = vmatpush.bf16.msra.mxu0 %v608
  %697 = vmatpush.bf16.msra.mxu0 %v607
  %698 = vmatpush.bf16.msra.mxu0 %v606
  %699 = vmatpush.bf16.msra.mxu0 %v605
  %700 = vmatpush.bf16.msra.mxu0 %v604
  %701 = vmatpush.bf16.msra.mxu0 %v603
  %702 = vmatmul.bf16.gmra.mxu0 %v411
  %v703 = vpop.f32.mrf.mxu0
  %v704 = vadd.f32 %v150, %v703
  %v705 = vpop.f32.mrf.mxu0
  %v706 = vadd.f32 %v155, %v705
  %707 = vmatmul.bf16.gmra.mxu0 %v415
  %v708 = vpop.f32.mrf.mxu0
  %v709 = vadd.f32 %v160, %v708
  %v710 = vpop.f32.mrf.mxu0
  %v711 = vadd.f32 %v165, %v710
  %712 = vmatmul.bf16.gmra.mxu0 %v419
  %v713 = vpop.f32.mrf.mxu0
  %v714 = vadd.f32 %v170, %v713
  %v715 = vpop.f32.mrf.mxu0
  %v716 = vadd.f32 %v175, %v715
  %717 = vmatmul.bf16.gmra.mxu0 %v423
  %v718 = vpop.f32.mrf.mxu0
  %v719 = vadd.f32 %v180, %v718
  %v720 = vpop.f32.mrf.mxu0
  %v721 = vadd.f32 %v185, %v720
  %722 = vmatmul.bf16.gmra.mxu0 %v427
  %v723 = vpop.f32.mrf.mxu0
  %v724 = vadd.f32 %v190, %v723
  %v725 = vpop.f32.mrf.mxu0
  %v726 = vadd.f32 %v195, %v725
  %727 = vmatmul.bf16.gmra.mxu0 %v431
  %v728 = vpop.f32.mrf.mxu0
  %v729 = vadd.f32 %v200, %v728
  %v730 = vpop.f32.mrf.mxu0
  %v731 = vadd.f32 %v205, %v730
  %732 = vmatmul.bf16.gmra.mxu0 %v435
  %v733 = vpop.f32.mrf.mxu0
  %v734 = vadd.f32 %v210, %v733
  %v735 = vpop.f32.mrf.mxu0
  %v736 = vadd.f32 %v215, %v735
  %737 = vmatmul.bf16.gmra.mxu0 %v439
  %v738 = vpop.f32.mrf.mxu0
  %v739 = vadd.f32 %v220, %v738
  %v740 = vpop.f32.mrf.mxu0
  %v741 = vadd.f32 %v225, %v740
  %742 = vmatmul.bf16.gmra.mxu0 %v443
  %v743 = vpop.f32.mrf.mxu0
  %v744 = vadd.f32 %v230, %v743
  %v745 = vpop.f32.mrf.mxu0
  %v746 = vadd.f32 %v235, %v745
  %747 = vmatmul.bf16.gmra.mxu0 %v447
  %v748 = vpop.f32.mrf.mxu0
  %v749 = vadd.f32 %v240, %v748
  %v750 = vpop.f32.mrf.mxu0
  %v751 = vadd.f32 %v245, %v750
  %752 = vmatmul.bf16.gmra.mxu0 %v451
  %v753 = vpop.f32.mrf.mxu0
  %v754 = vadd.f32 %v250, %v753
  %v755 = vpop.f32.mrf.mxu0
  %v756 = vadd.f32 %v255, %v755
  %757 = vmatmul.bf16.gmra.mxu0 %v455
  %v758 = vpop.f32.mrf.mxu0
  %v759 = vadd.f32 %v260, %v758
  %v760 = vpop.f32.mrf.mxu0
  %v761 = vadd.f32 %v265, %v760
  %762 = vdwg.mxu0
  %763 = vmatpush.bf16.msra.mxu0 %v618
  %764 = vmatpush.bf16.msra.mxu0 %v617
  %765 = vmatpush.bf16.msra.mxu0 %v616
  %766 = vmatpush.bf16.msra.mxu0 %v615
  %767 = vmatpush.bf16.msra.mxu0 %v614
  %768 = vmatpush.bf16.msra.mxu0 %v613
  %769 = vmatpush.bf16.msra.mxu0 %v612
  %770 = vmatpush.bf16.msra.mxu0 %v611
  %771 = vmatmul.bf16.gmra.mxu0 %v412
  %v772 = vpop.f32.mrf.mxu0
  %v773 = vadd.f32 %v704, %v772
  %v774 = vpop.f32.mrf.mxu0
  %v775 = vadd.f32 %v706, %v774
  %776 = vmatmul.bf16.gmra.mxu0 %v416
  %v777 = vpop.f32.mrf.mxu0
  %v778 = vadd.f32 %v709, %v777
  %v779 = vpop.f32.mrf.mxu0
  %v780 = vadd.f32 %v711, %v779
  %781 = vmatmul.bf16.gmra.mxu0 %v420
  %v782 = vpop.f32.mrf.mxu0
  %v783 = vadd.f32 %v714, %v782
  %v784 = vpop.f32.mrf.mxu0
  %v785 = vadd.f32 %v716, %v784
  %786 = vmatmul.bf16.gmra.mxu0 %v424
  %v787 = vpop.f32.mrf.mxu0
  %v788 = vadd.f32 %v719, %v787
  %v789 = vpop.f32.mrf.mxu0
  %v790 = vadd.f32 %v721, %v789
  %791 = vmatmul.bf16.gmra.mxu0 %v428
  %v792 = vpop.f32.mrf.mxu0
  %v793 = vadd.f32 %v724, %v792
  %v794 = vpop.f32.mrf.mxu0
  %v795 = vadd.f32 %v726, %v794
  %796 = vmatmul.bf16.gmra.mxu0 %v432
  %v797 = vpop.f32.mrf.mxu0
  %v798 = vadd.f32 %v729, %v797
  %v799 = vpop.f32.mrf.mxu0
  %v800 = vadd.f32 %v731, %v799
  %801 = vmatmul.bf16.gmra.mxu0 %v436
  %v802 = vpop.f32.mrf.mxu0
  %v803 = vadd.f32 %v734, %v802
  %v804 = vpop.f32.mrf.mxu0
  %v805 = vadd.f32 %v736, %v804
  %806 = vmatmul.bf16.gmra.mxu0 %v440
  %v807 = vpop.f32.mrf.mxu0
  %v808 = vadd.f32 %v739, %v807
  %v809 = vpop.f32.mrf.mxu0
  %v810 = vadd.f32 %v741, %v809
  %811 = vmatmul.bf16.gmra.mxu0 %v444
  %v812 = vpop.f32.mrf.mxu0
  %v813 = vadd.f32 %v744, %v812
  %v814 = vpop.f32.mrf.mxu0
  %v815 = vadd.f32 %v746, %v814
  %816 = vmatmul.bf16.gmra.mxu0 %v448
  %v817 = vpop.f32.mrf.mxu0
  %v818 = vadd.f32 %v749, %v817
  %v819 = vpop.f32.mrf.mxu0
  %v820 = vadd.f32 %v751, %v819
  %821 = vmatmul.bf16.gmra.mxu0 %v452
  %v822 = vpop.f32.mrf.mxu0
  %v823 = vadd.f32 %v754, %v822
  %v824 = vpop.f32.mrf.mxu0
  %v825 = vadd.f32 %v756, %v824
  %826 = vmatmul.bf16.gmra.mxu0 %v456
  %v827 = vpop.f32.mrf.mxu0
  %v828 = vadd.f32 %v759, %v827
  %v829 = vpop.f32.mrf.mxu0
  %v830 = vadd.f32 %v761, %v829
  %831 = vdwg.mxu0
  %832 = vmatpush.bf16.msra.mxu0 %v626
  %833 = vmatpush.bf16.msra.mxu0 %v625
  %834 = vmatpush.bf16.msra.mxu0 %v624
  %835 = vmatpush.bf16.msra.mxu0 %v623
  %836 = vmatpush.bf16.msra.mxu0 %v622
  %837 = vmatpush.bf16.msra.mxu0 %v621
  %838 = vmatpush.bf16.msra.mxu0 %v620
  %839 = vmatpush.bf16.msra.mxu0 %v619
  %840 = vmatmul.bf16.gmra.mxu0 %v413
  %v841 = vpop.f32.mrf.mxu0
  %v842 = vadd.f32 %v773, %v841
  %v843 = vpop.f32.mrf.mxu0
  %v844 = vadd.f32 %v775, %v843
  %845 = vmatmul.bf16.gmra.mxu0 %v417
  %v846 = vpop.f32.mrf.mxu0
  %v847 = vadd.f32 %v778, %v846
  %v848 = vpop.f32.mrf.mxu0
  %v849 = vadd.f32 %v780, %v848
  %850 = vmatmul.bf16.gmra.mxu0 %v421
  %v851 = vpop.f32.mrf.mxu0
  %v852 = vadd.f32 %v783, %v851
  %v853 = vpop.f32.mrf.mxu0
  %v854 = vadd.f32 %v785, %v853
  %855 = vmatmul.bf16.gmra.mxu0 %v425
  %v856 = vpop.f32.mrf.mxu0
  %v857 = vadd.f32 %v788, %v856
  %v858 = vpop.f32.mrf.mxu0
  %v859 = vadd.f32 %v790, %v858
  %860 = vmatmul.bf16.gmra.mxu0 %v429
  %v861 = vpop.f32.mrf.mxu0
  %v862 = vadd.f32 %v793, %v861
  %v863 = vpop.f32.mrf.mxu0
  %v864 = vadd.f32 %v795, %v863
  %865 = vmatmul.bf16.gmra.mxu0 %v433
  %v866 = vpop.f32.mrf.mxu0
  %v867 = vadd.f32 %v798, %v866
  %v868 = vpop.f32.mrf.mxu0
  %v869 = vadd.f32 %v800, %v868
  %870 = vmatmul.bf16.gmra.mxu0 %v437
  %v871 = vpop.f32.mrf.mxu0
  %v872 = vadd.f32 %v803, %v871
  %v873 = vpop.f32.mrf.mxu0
  %v874 = vadd.f32 %v805, %v873
  %875 = vmatmul.bf16.gmra.mxu0 %v441
  %v876 = vpop.f32.mrf.mxu0
  %v877 = vadd.f32 %v808, %v876
  %v878 = vpop.f32.mrf.mxu0
  %v879 = vadd.f32 %v810, %v878
  %880 = vmatmul.bf16.gmra.mxu0 %v445
  %v881 = vpop.f32.mrf.mxu0
  %v882 = vadd.f32 %v813, %v881
  %v883 = vpop.f32.mrf.mxu0
  %v884 = vadd.f32 %v815, %v883
  %885 = vmatmul.bf16.gmra.mxu0 %v449
  %v886 = vpop.f32.mrf.mxu0
  %v887 = vadd.f32 %v818, %v886
  %v888 = vpop.f32.mrf.mxu0
  %v889 = vadd.f32 %v820, %v888
  %890 = vmatmul.bf16.gmra.mxu0 %v453
  %v891 = vpop.f32.mrf.mxu0
  %v892 = vadd.f32 %v823, %v891
  %v893 = vpop.f32.mrf.mxu0
  %v894 = vadd.f32 %v825, %v893
  %895 = vmatmul.bf16.gmra.mxu0 %v457
  %v896 = vpop.f32.mrf.mxu0
  %v897 = vadd.f32 %v828, %v896
  %v898 = vpop.f32.mrf.mxu0
  %v899 = vadd.f32 %v830, %v898
  %900 = vdwg.mxu0
  %901 = vmatpush.bf16.msra.mxu0 0
  %902 = vmatpush.bf16.msra.mxu0 0
  %903 = vmatpush.bf16.msra.mxu0 0
  %904 = vmatpush.bf16.msra.mxu0 0
  %905 = vmatpush.bf16.msra.mxu0 0
  %906 = vmatpush.bf16.msra.mxu0 %v629
  %907 = vmatpush.bf16.msra.mxu0 %v628
  %908 = vmatpush.bf16.msra.mxu0 %v627
  %909 = vmatmul.bf16.gmra.mxu0 %v659
  %v910 = vpop.f32.mrf.mxu0
  %v911 = vadd.f32 %v842, %v910
  %v912 = vpop.f32.mrf.mxu0
  %v913 = vadd.f32 %v844, %v912
  %914 = vmatmul.bf16.gmra.mxu0 %v662
  %v915 = vpop.f32.mrf.mxu0
  %v916 = vadd.f32 %v847, %v915
  %v917 = vpop.f32.mrf.mxu0
  %v918 = vadd.f32 %v849, %v917
  %919 = vmatmul.bf16.gmra.mxu0 %v665
  %v920 = vpop.f32.mrf.mxu0
  %v921 = vadd.f32 %v852, %v920
  %v922 = vpop.f32.mrf.mxu0
  %v923 = vadd.f32 %v854, %v922
  %924 = vmatmul.bf16.gmra.mxu0 %v668
  %v925 = vpop.f32.mrf.mxu0
  %v926 = vadd.f32 %v857, %v925
  %v927 = vpop.f32.mrf.mxu0
  %v928 = vadd.f32 %v859, %v927
  %929 = vmatmul.bf16.gmra.mxu0 %v671
  %v930 = vpop.f32.mrf.mxu0
  %v931 = vadd.f32 %v862, %v930
  %v932 = vpop.f32.mrf.mxu0
  %v933 = vadd.f32 %v864, %v932
  %934 = vmatmul.bf16.gmra.mxu0 %v674
  %v935 = vpop.f32.mrf.mxu0
  %v936 = vadd.f32 %v867, %v935
  %v937 = vpop.f32.mrf.mxu0
  %v938 = vadd.f32 %v869, %v937
  %939 = vmatmul.bf16.gmra.mxu0 %v677
  %v940 = vpop.f32.mrf.mxu0
  %v941 = vadd.f32 %v872, %v940
  %v942 = vpop.f32.mrf.mxu0
  %v943 = vadd.f32 %v874, %v942
  %944 = vmatmul.bf16.gmra.mxu0 %v680
  %v945 = vpop.f32.mrf.mxu0
  %v946 = vadd.f32 %v877, %v945
  %v947 = vpop.f32.mrf.mxu0
  %v948 = vadd.f32 %v879, %v947
  %949 = vmatmul.bf16.gmra.mxu0 %v683
  %v950 = vpop.f32.mrf.mxu0
  %v951 = vadd.f32 %v882, %v950
  %v952 = vpop.f32.mrf.mxu0
  %v953 = vadd.f32 %v884, %v952
  %954 = vmatmul.bf16.gmra.mxu0 %v686
  %v955 = vpop.f32.mrf.mxu0
  %v956 = vadd.f32 %v887, %v955
  %v957 = vpop.f32.mrf.mxu0
  %v958 = vadd.f32 %v889, %v957
  %959 = vmatmul.bf16.gmra.mxu0 %v689
  %v960 = vpop.f32.mrf.mxu0
  %v961 = vadd.f32 %v892, %v960
  %v962 = vpop.f32.mrf.mxu0
  %v963 = vadd.f32 %v894, %v962
  %964 = vmatmul.bf16.gmra.mxu0 %v692
  %v965 = vpop.f32.mrf.mxu0
  %v966 = vadd.f32 %v897, %v965
  %v967 = vpop.f32.mrf.mxu0
  %v968 = vadd.f32 %v899, %v967
  %969 = vdwg.mxu0
  %v970 = vld [vmem:[%s3] sm:$0xff]
  %v971 = vld [vmem:[%s3 + $0x8] sm:$0xff]
  %v972 = vld [vmem:[%s3 + $0x10] sm:$0xff]
  %v973 = vld [vmem:[%s3 + $0x18] sm:$0xff]
  %v974 = vld [vmem:[%s3 + $0x20] sm:$0xff]
  %v975 = vld [vmem:[%s3 + $0x28] sm:$0xff]
  %v976 = vld [vmem:[%s3 + $0x30] sm:$0xff]
  %v977 = vld [vmem:[%s3 + $0x38] sm:$0xff]
  %v978 = vld [vmem:[%s3 + $0x40] sm:$0xff]
  %v979 = vld [vmem:[%s3 + $0x48] sm:$0xff]
  %v980 = vld [vmem:[%s3 + $0x50] sm:$0xff]
  %v981 = vld [vmem:[%s3 + $0x58] sm:$0xff]
  %v982 = vld [vmem:[%s3 + $0x60] sm:$0xff]
  %v983 = vld [vmem:[%s3 + $0x68] sm:$0xff]
  %v984 = vld [vmem:[%s3 + $0x70] sm:$0xff]
  %v985 = vld [vmem:[%s3 + $0x78] sm:$0xff]
  %v986 = vld [vmem:[%s3 + $0x80] sm:$0xff]
  %v987 = vld [vmem:[%s3 + $0x88] sm:$0xff]
  %v988 = vld [vmem:[%s3 + $0x90] sm:$0xff]
  %v989 = vld [vmem:[%s3 + $0x98] sm:$0xff]
  %v990 = vld [vmem:[%s3 + $0xa0] sm:$0xff]
  %v991 = vld [vmem:[%s3 + $0xa8] sm:$0xff]
  %v992 = vld [vmem:[%s3 + $0xb0] sm:$0xff]
  %v993 = vld [vmem:[%s3 + $0xb8] sm:$0xff]
  %v994 = vld [vmem:[%s3 + $0xc0] sm:$0xff]
  %v995 = vld [vmem:[%s3 + $0xc8] sm:$0xff]
  %v996 = vld [vmem:[%s3 + $0xd0] sm:$0xff]
  %v997 = vld [vmem:[%s3 + $0xd8] sm:$0xff]
  %v998 = vld [vmem:[%s3 + $0xe0] sm:$0xff]
  %v999 = vld [vmem:[%s3 + $0xe8] sm:$0xff]
  %v1000 = vld [vmem:[%s3 + $0xf0] sm:$0xff]
  %v1001 = vld [vmem:[%s3 + $0xf8] sm:$0xff]
  %v1002 = vld [vmem:[%s3 + $0x100] sm:$0xff]
  %v1003 = vld [vmem:[%s3 + $0x108] sm:$0xff]
  %v1004 = vld [vmem:[%s3 + $0x110] sm:$0xff]
  %v1005 = vld [vmem:[%s3 + $0x118] sm:$0xff]
  %v1006 = vld [vmem:[%s3 + $0x120] sm:$0xff]
  %v1007 = vld [vmem:[%s3 + $0x128] sm:$0xff]
  %v1008 = vld [vmem:[%s3 + $0x130] sm:$0xff]
  %v1009 = vld [vmem:[%s3 + $0x138] sm:$0xff]
  %v1010 = vld [vmem:[%s3 + $0x140] sm:$0xff]
  %v1011 = vld [vmem:[%s3 + $0x148] sm:$0xff]
  %v1012 = vld [vmem:[%s3 + $0x150] sm:$0xff]
  %v1013 = vld [vmem:[%s3 + $0x158] sm:$0xff]
  %v1014 = vld [vmem:[%s3 + $0x160] sm:$0xff]
  %v1015 = vld [vmem:[%s3 + $0x168] sm:$0xff]
  %v1016 = vld [vmem:[%s3 + $0x170] sm:$0xff]
  %v1017 = vld [vmem:[%s3 + $0x178] sm:$0xff]
  %v1018 = vmul.f32 %v911, %v911
  %v1019 = vmul.f32 %v913, %v913
  %v1020 = vmul.f32 %v916, %v916
  %v1021 = vmul.f32 %v918, %v918
  %v1022 = vmul.f32 %v921, %v921
  %v1023 = vmul.f32 %v923, %v923
  %v1024 = vmul.f32 %v926, %v926
  %v1025 = vmul.f32 %v928, %v928
  %v1026 = vmul.f32 %v931, %v931
  %v1027 = vmul.f32 %v933, %v933
  %v1028 = vmul.f32 %v936, %v936
  %v1029 = vmul.f32 %v938, %v938
  %v1030 = vmul.f32 %v941, %v941
  %v1031 = vmul.f32 %v943, %v943
  %v1032 = vmul.f32 %v946, %v946
  %v1033 = vmul.f32 %v948, %v948
  %v1034 = vmul.f32 %v951, %v951
  %v1035 = vmul.f32 %v953, %v953
  %v1036 = vmul.f32 %v956, %v956
  %v1037 = vmul.f32 %v958, %v958
  %v1038 = vmul.f32 %v961, %v961
  %v1039 = vmul.f32 %v963, %v963
  %v1040 = vmul.f32 %v966, %v966
  %v1041 = vmul.f32 %v968, %v968
  %v1042 = vld [vmem:[%s4] sm:$0xff]
  %v1043 = vld [vmem:[%s4 + $0x8] sm:$0xff]
  %v1044 = vld [vmem:[%s4 + $0x10] sm:$0xff]
  %v1045 = vld [vmem:[%s4 + $0x18] sm:$0xff]
  %v1046 = vld [vmem:[%s4 + $0x20] sm:$0xff]
  %v1047 = vld [vmem:[%s4 + $0x28] sm:$0xff]
  %v1048 = vld [vmem:[%s4 + $0x30] sm:$0xff]
  %v1049 = vld [vmem:[%s4 + $0x38] sm:$0xff]
  %v1050 = vld [vmem:[%s4 + $0x40] sm:$0xff]
  %v1051 = vld [vmem:[%s4 + $0x48] sm:$0xff]
  %v1052 = vld [vmem:[%s4 + $0x50] sm:$0xff]
  %v1053 = vld [vmem:[%s4 + $0x58] sm:$0xff]
  %v1054 = vld [vmem:[%s4 + $0x60] sm:$0xff]
  %v1055 = vld [vmem:[%s4 + $0x68] sm:$0xff]
  %v1056 = vld [vmem:[%s4 + $0x70] sm:$0xff]
  %v1057 = vld [vmem:[%s4 + $0x78] sm:$0xff]
  %v1058 = vld [vmem:[%s4 + $0x80] sm:$0xff]
  %v1059 = vld [vmem:[%s4 + $0x88] sm:$0xff]
  %v1060 = vld [vmem:[%s4 + $0x90] sm:$0xff]
  %v1061 = vld [vmem:[%s4 + $0x98] sm:$0xff]
  %v1062 = vld [vmem:[%s4 + $0xa0] sm:$0xff]
  %v1063 = vld [vmem:[%s4 + $0xa8] sm:$0xff]
  %v1064 = vld [vmem:[%s4 + $0xb0] sm:$0xff]
  %v1065 = vld [vmem:[%s4 + $0xb8] sm:$0xff]
  %1067 = vset.pattern.permute.xlu0 0
  %1068 = vperm.xlu0 %1067, %v1042
  %v1069 = vpop.permute.xlu0 %1068
  %1072 = vset.pattern.permute.xlu0 0
  %1073 = vperm.xlu0 %1072, %v1043
  %v1074 = vpop.permute.xlu0 %1073
  %1077 = vset.pattern.permute.xlu0 0
  %1078 = vperm.xlu0 %1077, %v1044
  %v1079 = vpop.permute.xlu0 %1078
  %1082 = vset.pattern.permute.xlu0 0
  %1083 = vperm.xlu0 %1082, %v1045
  %v1084 = vpop.permute.xlu0 %1083
  %1087 = vset.pattern.permute.xlu0 0
  %1088 = vperm.xlu0 %1087, %v1046
  %v1089 = vpop.permute.xlu0 %1088
  %1092 = vset.pattern.permute.xlu0 0
  %1093 = vperm.xlu0 %1092, %v1047
  %v1094 = vpop.permute.xlu0 %1093
  %1097 = vset.pattern.permute.xlu0 0
  %1098 = vperm.xlu0 %1097, %v1048
  %v1099 = vpop.permute.xlu0 %1098
  %1102 = vset.pattern.permute.xlu0 0
  %1103 = vperm.xlu0 %1102, %v1049
  %v1104 = vpop.permute.xlu0 %1103
  %1107 = vset.pattern.permute.xlu0 0
  %1108 = vperm.xlu0 %1107, %v1050
  %v1109 = vpop.permute.xlu0 %1108
  %1112 = vset.pattern.permute.xlu0 0
  %1113 = vperm.xlu0 %1112, %v1051
  %v1114 = vpop.permute.xlu0 %1113
  %1117 = vset.pattern.permute.xlu0 0
  %1118 = vperm.xlu0 %1117, %v1052
  %v1119 = vpop.permute.xlu0 %1118
  %1122 = vset.pattern.permute.xlu0 0
  %1123 = vperm.xlu0 %1122, %v1053
  %v1124 = vpop.permute.xlu0 %1123
  %1127 = vset.pattern.permute.xlu0 0
  %1128 = vperm.xlu0 %1127, %v1054
  %v1129 = vpop.permute.xlu0 %1128
  %1132 = vset.pattern.permute.xlu0 0
  %1133 = vperm.xlu0 %1132, %v1055
  %v1134 = vpop.permute.xlu0 %1133
  %1137 = vset.pattern.permute.xlu0 0
  %1138 = vperm.xlu0 %1137, %v1056
  %v1139 = vpop.permute.xlu0 %1138
  %1142 = vset.pattern.permute.xlu0 0
  %1143 = vperm.xlu0 %1142, %v1057
  %v1144 = vpop.permute.xlu0 %1143
  %1147 = vset.pattern.permute.xlu0 0
  %1148 = vperm.xlu0 %1147, %v1058
  %v1149 = vpop.permute.xlu0 %1148
  %1152 = vset.pattern.permute.xlu0 0
  %1153 = vperm.xlu0 %1152, %v1059
  %v1154 = vpop.permute.xlu0 %1153
  %1157 = vset.pattern.permute.xlu0 0
  %1158 = vperm.xlu0 %1157, %v1060
  %v1159 = vpop.permute.xlu0 %1158
  %1162 = vset.pattern.permute.xlu0 0
  %1163 = vperm.xlu0 %1162, %v1061
  %v1164 = vpop.permute.xlu0 %1163
  %1167 = vset.pattern.permute.xlu0 0
  %1168 = vperm.xlu0 %1167, %v1062
  %v1169 = vpop.permute.xlu0 %1168
  %1172 = vset.pattern.permute.xlu0 0
  %1173 = vperm.xlu0 %1172, %v1063
  %v1174 = vpop.permute.xlu0 %1173
  %1177 = vset.pattern.permute.xlu0 0
  %1178 = vperm.xlu0 %1177, %v1064
  %v1179 = vpop.permute.xlu0 %1178
  %1182 = vset.pattern.permute.xlu0 0
  %1183 = vperm.xlu0 %1182, %v1065
  %v1184 = vpop.permute.xlu0 %1183
  %vm1186 = vcmask 523264
  %v1188 = vsel %vm1186, %v971, 0
  %v1191 = vsel %vm1186, %v973, 0
  %v1194 = vsel %vm1186, %v975, 0
  %v1197 = vsel %vm1186, %v977, 0
  %v1200 = vsel %vm1186, %v979, 0
  %v1203 = vsel %vm1186, %v981, 0
  %v1206 = vsel %vm1186, %v983, 0
  %v1209 = vsel %vm1186, %v985, 0
  %v1212 = vsel %vm1186, %v987, 0
  %v1215 = vsel %vm1186, %v989, 0
  %v1218 = vsel %vm1186, %v991, 0
  %v1221 = vsel %vm1186, %v993, 0
  %v1224 = vsel %vm1186, %v995, 0
  %v1227 = vsel %vm1186, %v997, 0
  %v1230 = vsel %vm1186, %v999, 0
  %v1233 = vsel %vm1186, %v1001, 0
  %v1236 = vsel %vm1186, %v1003, 0
  %v1239 = vsel %vm1186, %v1005, 0
  %v1242 = vsel %vm1186, %v1007, 0
  %v1245 = vsel %vm1186, %v1009, 0
  %v1248 = vsel %vm1186, %v1011, 0
  %v1251 = vsel %vm1186, %v1013, 0
  %v1254 = vsel %vm1186, %v1015, 0
  %v1257 = vsel %vm1186, %v1017, 0
  %1259 = vmatpush.msra.mxu0 %v1033
  %1260 = vmatpush.msra.mxu0 %v1032
  %1261 = vmatpush.msra.mxu0 %v1031
  %1262 = vmatpush.msra.mxu0 %v1030
  %1263 = vmatpush.msra.mxu0 %v1029
  %1264 = vmatpush.msra.mxu0 %v1028
  %1265 = vmatpush.msra.mxu0 %v1027
  %1266 = vmatpush.msra.mxu0 %v1026
  %1267 = vmatpush.msra.mxu0 %v1025
  %1268 = vmatpush.msra.mxu0 %v1024
  %1269 = vmatpush.msra.mxu0 %v1023
  %1270 = vmatpush.msra.mxu0 %v1022
  %1271 = vmatpush.msra.mxu0 %v1021
  %1272 = vmatpush.msra.mxu0 %v1020
  %1273 = vmatpush.msra.mxu0 %v1019
  %1274 = vmatpush.msra.mxu0 %v1018
  %1275 = vmatmul.f32.gmra.mxu0 %v970
  %v1276 = vpop.f32.mrf.mxu0
  %v1277 = vadd.f32 %v1069, %v1276
  %1278 = vmatmul.f32.gmra.mxu0 %v972
  %v1279 = vpop.f32.mrf.mxu0
  %v1280 = vadd.f32 %v1074, %v1279
  %1281 = vmatmul.f32.gmra.mxu0 %v974
  %v1282 = vpop.f32.mrf.mxu0
  %v1283 = vadd.f32 %v1079, %v1282
  %1284 = vmatmul.f32.gmra.mxu0 %v976
  %v1285 = vpop.f32.mrf.mxu0
  %v1286 = vadd.f32 %v1084, %v1285
  %1287 = vmatmul.f32.gmra.mxu0 %v978
  %v1288 = vpop.f32.mrf.mxu0
  %v1289 = vadd.f32 %v1089, %v1288
  %1290 = vmatmul.f32.gmra.mxu0 %v980
  %v1291 = vpop.f32.mrf.mxu0
  %v1292 = vadd.f32 %v1094, %v1291
  %1293 = vmatmul.f32.gmra.mxu0 %v982
  %v1294 = vpop.f32.mrf.mxu0
  %v1295 = vadd.f32 %v1099, %v1294
  %1296 = vmatmul.f32.gmra.mxu0 %v984
  %v1297 = vpop.f32.mrf.mxu0
  %v1298 = vadd.f32 %v1104, %v1297
  %1299 = vmatmul.f32.gmra.mxu0 %v986
  %v1300 = vpop.f32.mrf.mxu0
  %v1301 = vadd.f32 %v1109, %v1300
  %1302 = vmatmul.f32.gmra.mxu0 %v988
  %v1303 = vpop.f32.mrf.mxu0
  %v1304 = vadd.f32 %v1114, %v1303
  %1305 = vmatmul.f32.gmra.mxu0 %v990
  %v1306 = vpop.f32.mrf.mxu0
  %v1307 = vadd.f32 %v1119, %v1306
  %1308 = vmatmul.f32.gmra.mxu0 %v992
  %v1309 = vpop.f32.mrf.mxu0
  %v1310 = vadd.f32 %v1124, %v1309
  %1311 = vmatmul.f32.gmra.mxu0 %v994
  %v1312 = vpop.f32.mrf.mxu0
  %v1313 = vadd.f32 %v1129, %v1312
  %1314 = vmatmul.f32.gmra.mxu0 %v996
  %v1315 = vpop.f32.mrf.mxu0
  %v1316 = vadd.f32 %v1134, %v1315
  %1317 = vmatmul.f32.gmra.mxu0 %v998
  %v1318 = vpop.f32.mrf.mxu0
  %v1319 = vadd.f32 %v1139, %v1318
  %1320 = vmatmul.f32.gmra.mxu0 %v1000
  %v1321 = vpop.f32.mrf.mxu0
  %v1322 = vadd.f32 %v1144, %v1321
  %1323 = vmatmul.f32.gmra.mxu0 %v1002
  %v1324 = vpop.f32.mrf.mxu0
  %v1325 = vadd.f32 %v1149, %v1324
  %1326 = vmatmul.f32.gmra.mxu0 %v1004
  %v1327 = vpop.f32.mrf.mxu0
  %v1328 = vadd.f32 %v1154, %v1327
  %1329 = vmatmul.f32.gmra.mxu0 %v1006
  %v1330 = vpop.f32.mrf.mxu0
  %v1331 = vadd.f32 %v1159, %v1330
  %1332 = vmatmul.f32.gmra.mxu0 %v1008
  %v1333 = vpop.f32.mrf.mxu0
  %v1334 = vadd.f32 %v1164, %v1333
  %1335 = vmatmul.f32.gmra.mxu0 %v1010
  %v1336 = vpop.f32.mrf.mxu0
  %v1337 = vadd.f32 %v1169, %v1336
  %1338 = vmatmul.f32.gmra.mxu0 %v1012
  %v1339 = vpop.f32.mrf.mxu0
  %v1340 = vadd.f32 %v1174, %v1339
  %1341 = vmatmul.f32.gmra.mxu0 %v1014
  %v1342 = vpop.f32.mrf.mxu0
  %v1343 = vadd.f32 %v1179, %v1342
  %1344 = vmatmul.f32.gmra.mxu0 %v1016
  %v1345 = vpop.f32.mrf.mxu0
  %v1346 = vadd.f32 %v1184, %v1345
  %1347 = vdwg.mxu0
  %1348 = vmatpush.msra.mxu0 0.0
  %1349 = vmatpush.msra.mxu0 0.0
  %1350 = vmatpush.msra.mxu0 0.0
  %1351 = vmatpush.msra.mxu0 0.0
  %1352 = vmatpush.msra.mxu0 0.0
  %1353 = vmatpush.msra.mxu0 0.0
  %1354 = vmatpush.msra.mxu0 0.0
  %1355 = vmatpush.msra.mxu0 0.0
  %1356 = vmatpush.msra.mxu0 %v1041
  %1357 = vmatpush.msra.mxu0 %v1040
  %1358 = vmatpush.msra.mxu0 %v1039
  %1359 = vmatpush.msra.mxu0 %v1038
  %1360 = vmatpush.msra.mxu0 %v1037
  %1361 = vmatpush.msra.mxu0 %v1036
  %1362 = vmatpush.msra.mxu0 %v1035
  %1363 = vmatpush.msra.mxu0 %v1034
  %1364 = vmatmul.f32.gmra.mxu0 %v1188
  %v1365 = vpop.f32.mrf.mxu0
  %v1366 = vadd.f32 %v1277, %v1365
  %1367 = vmatmul.f32.gmra.mxu0 %v1191
  %v1368 = vpop.f32.mrf.mxu0
  %v1369 = vadd.f32 %v1280, %v1368
  %1370 = vmatmul.f32.gmra.mxu0 %v1194
  %v1371 = vpop.f32.mrf.mxu0
  %v1372 = vadd.f32 %v1283, %v1371
  %1373 = vmatmul.f32.gmra.mxu0 %v1197
  %v1374 = vpop.f32.mrf.mxu0
  %v1375 = vadd.f32 %v1286, %v1374
  %1376 = vmatmul.f32.gmra.mxu0 %v1200
  %v1377 = vpop.f32.mrf.mxu0
  %v1378 = vadd.f32 %v1289, %v1377
  %1379 = vmatmul.f32.gmra.mxu0 %v1203
  %v1380 = vpop.f32.mrf.mxu0
  %v1381 = vadd.f32 %v1292, %v1380
  %1382 = vmatmul.f32.gmra.mxu0 %v1206
  %v1383 = vpop.f32.mrf.mxu0
  %v1384 = vadd.f32 %v1295, %v1383
  %1385 = vmatmul.f32.gmra.mxu0 %v1209
  %v1386 = vpop.f32.mrf.mxu0
  %v1387 = vadd.f32 %v1298, %v1386
  %1388 = vmatmul.f32.gmra.mxu0 %v1212
  %v1389 = vpop.f32.mrf.mxu0
  %v1390 = vadd.f32 %v1301, %v1389
  %1391 = vmatmul.f32.gmra.mxu0 %v1215
  %v1392 = vpop.f32.mrf.mxu0
  %v1393 = vadd.f32 %v1304, %v1392
  %1394 = vmatmul.f32.gmra.mxu0 %v1218
  %v1395 = vpop.f32.mrf.mxu0
  %v1396 = vadd.f32 %v1307, %v1395
  %1397 = vmatmul.f32.gmra.mxu0 %v1221
  %v1398 = vpop.f32.mrf.mxu0
  %v1399 = vadd.f32 %v1310, %v1398
  %1400 = vmatmul.f32.gmra.mxu0 %v1224
  %v1401 = vpop.f32.mrf.mxu0
  %v1402 = vadd.f32 %v1313, %v1401
  %1403 = vmatmul.f32.gmra.mxu0 %v1227
  %v1404 = vpop.f32.mrf.mxu0
  %v1405 = vadd.f32 %v1316, %v1404
  %1406 = vmatmul.f32.gmra.mxu0 %v1230
  %v1407 = vpop.f32.mrf.mxu0
  %v1408 = vadd.f32 %v1319, %v1407
  %1409 = vmatmul.f32.gmra.mxu0 %v1233
  %v1410 = vpop.f32.mrf.mxu0
  %v1411 = vadd.f32 %v1322, %v1410
  %1412 = vmatmul.f32.gmra.mxu0 %v1236
  %v1413 = vpop.f32.mrf.mxu0
  %v1414 = vadd.f32 %v1325, %v1413
  %1415 = vmatmul.f32.gmra.mxu0 %v1239
  %v1416 = vpop.f32.mrf.mxu0
  %v1417 = vadd.f32 %v1328, %v1416
  %1418 = vmatmul.f32.gmra.mxu0 %v1242
  %v1419 = vpop.f32.mrf.mxu0
  %v1420 = vadd.f32 %v1331, %v1419
  %1421 = vmatmul.f32.gmra.mxu0 %v1245
  %v1422 = vpop.f32.mrf.mxu0
  %v1423 = vadd.f32 %v1334, %v1422
  %1424 = vmatmul.f32.gmra.mxu0 %v1248
  %v1425 = vpop.f32.mrf.mxu0
  %v1426 = vadd.f32 %v1337, %v1425
  %1427 = vmatmul.f32.gmra.mxu0 %v1251
  %v1428 = vpop.f32.mrf.mxu0
  %v1429 = vadd.f32 %v1340, %v1428
  %1430 = vmatmul.f32.gmra.mxu0 %v1254
  %v1431 = vpop.f32.mrf.mxu0
  %v1432 = vadd.f32 %v1343, %v1431
  %1433 = vmatmul.f32.gmra.mxu0 %v1257
  %v1434 = vpop.f32.mrf.mxu0
  %v1435 = vadd.f32 %v1346, %v1434
  %1436 = vdwg.mxu0
  %v1437 = vrsqrt.pop %v1366
  %v1438 = vmul.f32 %v1437, %v1366
  %v1439 = vmul.f32 %v1438, %v1437
  %v1440 = vmul.f32 0.5, %v1439
  %v1441 = vsub.f32 1.5, %v1440
  %v1442 = vmul.f32 %v1437, %v1441
  %v1443 = vmul.f32 %v1366, %v1442
  %vm1444 = vcmp.eq.f32.partialorder %v1366, inf
  %v1445 = vsel %vm1444, %v1366, %v1443
  %vm1446 = vcmp.eq.f32.partialorder %v1366, 0.0
  %v1447 = vand.u32 %v1366, 2147483648
  %v1448 = vsel %vm1446, %v1447, %v1445
  %v1449 = vrsqrt.pop %v1369
  %v1450 = vmul.f32 %v1449, %v1369
  %v1451 = vmul.f32 %v1450, %v1449
  %v1452 = vmul.f32 0.5, %v1451
  %v1453 = vsub.f32 1.5, %v1452
  %v1454 = vmul.f32 %v1449, %v1453
  %v1455 = vmul.f32 %v1369, %v1454
  %vm1456 = vcmp.eq.f32.partialorder %v1369, inf
  %v1457 = vsel %vm1456, %v1369, %v1455
  %vm1458 = vcmp.eq.f32.partialorder %v1369, 0.0
  %v1459 = vand.u32 %v1369, 2147483648
  %v1460 = vsel %vm1458, %v1459, %v1457
  %v1461 = vrsqrt.pop %v1372
  %v1462 = vmul.f32 %v1461, %v1372
  %v1463 = vmul.f32 %v1462, %v1461
  %v1464 = vmul.f32 0.5, %v1463
  %v1465 = vsub.f32 1.5, %v1464
  %v1466 = vmul.f32 %v1461, %v1465
  %v1467 = vmul.f32 %v1372, %v1466
  %vm1468 = vcmp.eq.f32.partialorder %v1372, inf
  %v1469 = vsel %vm1468, %v1372, %v1467
  %vm1470 = vcmp.eq.f32.partialorder %v1372, 0.0
  %v1471 = vand.u32 %v1372, 2147483648
  %v1472 = vsel %vm1470, %v1471, %v1469
  %v1473 = vrsqrt.pop %v1375
  %v1474 = vmul.f32 %v1473, %v1375
  %v1475 = vmul.f32 %v1474, %v1473
  %v1476 = vmul.f32 0.5, %v1475
  %v1477 = vsub.f32 1.5, %v1476
  %v1478 = vmul.f32 %v1473, %v1477
  %v1479 = vmul.f32 %v1375, %v1478
  %vm1480 = vcmp.eq.f32.partialorder %v1375, inf
  %v1481 = vsel %vm1480, %v1375, %v1479
  %vm1482 = vcmp.eq.f32.partialorder %v1375, 0.0
  %v1483 = vand.u32 %v1375, 2147483648
  %v1484 = vsel %vm1482, %v1483, %v1481
  %v1485 = vrsqrt.pop %v1378
  %v1486 = vmul.f32 %v1485, %v1378
  %v1487 = vmul.f32 %v1486, %v1485
  %v1488 = vmul.f32 0.5, %v1487
  %v1489 = vsub.f32 1.5, %v1488
  %v1490 = vmul.f32 %v1485, %v1489
  %v1491 = vmul.f32 %v1378, %v1490
  %vm1492 = vcmp.eq.f32.partialorder %v1378, inf
  %v1493 = vsel %vm1492, %v1378, %v1491
  %vm1494 = vcmp.eq.f32.partialorder %v1378, 0.0
  %v1495 = vand.u32 %v1378, 2147483648
  %v1496 = vsel %vm1494, %v1495, %v1493
  %v1497 = vrsqrt.pop %v1381
  %v1498 = vmul.f32 %v1497, %v1381
  %v1499 = vmul.f32 %v1498, %v1497
  %v1500 = vmul.f32 0.5, %v1499
  %v1501 = vsub.f32 1.5, %v1500
  %v1502 = vmul.f32 %v1497, %v1501
  %v1503 = vmul.f32 %v1381, %v1502
  %vm1504 = vcmp.eq.f32.partialorder %v1381, inf
  %v1505 = vsel %vm1504, %v1381, %v1503
  %vm1506 = vcmp.eq.f32.partialorder %v1381, 0.0
  %v1507 = vand.u32 %v1381, 2147483648
  %v1508 = vsel %vm1506, %v1507, %v1505
  %v1509 = vrsqrt.pop %v1384
  %v1510 = vmul.f32 %v1509, %v1384
  %v1511 = vmul.f32 %v1510, %v1509
  %v1512 = vmul.f32 0.5, %v1511
  %v1513 = vsub.f32 1.5, %v1512
  %v1514 = vmul.f32 %v1509, %v1513
  %v1515 = vmul.f32 %v1384, %v1514
  %vm1516 = vcmp.eq.f32.partialorder %v1384, inf
  %v1517 = vsel %vm1516, %v1384, %v1515
  %vm1518 = vcmp.eq.f32.partialorder %v1384, 0.0
  %v1519 = vand.u32 %v1384, 2147483648
  %v1520 = vsel %vm1518, %v1519, %v1517
  %v1521 = vrsqrt.pop %v1387
  %v1522 = vmul.f32 %v1521, %v1387
  %v1523 = vmul.f32 %v1522, %v1521
  %v1524 = vmul.f32 0.5, %v1523
  %v1525 = vsub.f32 1.5, %v1524
  %v1526 = vmul.f32 %v1521, %v1525
  %v1527 = vmul.f32 %v1387, %v1526
  %vm1528 = vcmp.eq.f32.partialorder %v1387, inf
  %v1529 = vsel %vm1528, %v1387, %v1527
  %vm1530 = vcmp.eq.f32.partialorder %v1387, 0.0
  %v1531 = vand.u32 %v1387, 2147483648
  %v1532 = vsel %vm1530, %v1531, %v1529
  %v1533 = vrsqrt.pop %v1390
  %v1534 = vmul.f32 %v1533, %v1390
  %v1535 = vmul.f32 %v1534, %v1533
  %v1536 = vmul.f32 0.5, %v1535
  %v1537 = vsub.f32 1.5, %v1536
  %v1538 = vmul.f32 %v1533, %v1537
  %v1539 = vmul.f32 %v1390, %v1538
  %vm1540 = vcmp.eq.f32.partialorder %v1390, inf
  %v1541 = vsel %vm1540, %v1390, %v1539
  %vm1542 = vcmp.eq.f32.partialorder %v1390, 0.0
  %v1543 = vand.u32 %v1390, 2147483648
  %v1544 = vsel %vm1542, %v1543, %v1541
  %v1545 = vrsqrt.pop %v1393
  %v1546 = vmul.f32 %v1545, %v1393
  %v1547 = vmul.f32 %v1546, %v1545
  %v1548 = vmul.f32 0.5, %v1547
  %v1549 = vsub.f32 1.5, %v1548
  %v1550 = vmul.f32 %v1545, %v1549
  %v1551 = vmul.f32 %v1393, %v1550
  %vm1552 = vcmp.eq.f32.partialorder %v1393, inf
  %v1553 = vsel %vm1552, %v1393, %v1551
  %vm1554 = vcmp.eq.f32.partialorder %v1393, 0.0
  %v1555 = vand.u32 %v1393, 2147483648
  %v1556 = vsel %vm1554, %v1555, %v1553
  %v1557 = vrsqrt.pop %v1396
  %v1558 = vmul.f32 %v1557, %v1396
  %v1559 = vmul.f32 %v1558, %v1557
  %v1560 = vmul.f32 0.5, %v1559
  %v1561 = vsub.f32 1.5, %v1560
  %v1562 = vmul.f32 %v1557, %v1561
  %v1563 = vmul.f32 %v1396, %v1562
  %vm1564 = vcmp.eq.f32.partialorder %v1396, inf
  %v1565 = vsel %vm1564, %v1396, %v1563
  %vm1566 = vcmp.eq.f32.partialorder %v1396, 0.0
  %v1567 = vand.u32 %v1396, 2147483648
  %v1568 = vsel %vm1566, %v1567, %v1565
  %v1569 = vrsqrt.pop %v1399
  %v1570 = vmul.f32 %v1569, %v1399
  %v1571 = vmul.f32 %v1570, %v1569
  %v1572 = vmul.f32 0.5, %v1571
  %v1573 = vsub.f32 1.5, %v1572
  %v1574 = vmul.f32 %v1569, %v1573
  %v1575 = vmul.f32 %v1399, %v1574
  %vm1576 = vcmp.eq.f32.partialorder %v1399, inf
  %v1577 = vsel %vm1576, %v1399, %v1575
  %vm1578 = vcmp.eq.f32.partialorder %v1399, 0.0
  %v1579 = vand.u32 %v1399, 2147483648
  %v1580 = vsel %vm1578, %v1579, %v1577
  %v1581 = vrsqrt.pop %v1402
  %v1582 = vmul.f32 %v1581, %v1402
  %v1583 = vmul.f32 %v1582, %v1581
  %v1584 = vmul.f32 0.5, %v1583
  %v1585 = vsub.f32 1.5, %v1584
  %v1586 = vmul.f32 %v1581, %v1585
  %v1587 = vmul.f32 %v1402, %v1586
  %vm1588 = vcmp.eq.f32.partialorder %v1402, inf
  %v1589 = vsel %vm1588, %v1402, %v1587
  %vm1590 = vcmp.eq.f32.partialorder %v1402, 0.0
  %v1591 = vand.u32 %v1402, 2147483648
  %v1592 = vsel %vm1590, %v1591, %v1589
  %v1593 = vrsqrt.pop %v1405
  %v1594 = vmul.f32 %v1593, %v1405
  %v1595 = vmul.f32 %v1594, %v1593
  %v1596 = vmul.f32 0.5, %v1595
  %v1597 = vsub.f32 1.5, %v1596
  %v1598 = vmul.f32 %v1593, %v1597
  %v1599 = vmul.f32 %v1405, %v1598
  %vm1600 = vcmp.eq.f32.partialorder %v1405, inf
  %v1601 = vsel %vm1600, %v1405, %v1599
  %vm1602 = vcmp.eq.f32.partialorder %v1405, 0.0
  %v1603 = vand.u32 %v1405, 2147483648
  %v1604 = vsel %vm1602, %v1603, %v1601
  %v1605 = vrsqrt.pop %v1408
  %v1606 = vmul.f32 %v1605, %v1408
  %v1607 = vmul.f32 %v1606, %v1605
  %v1608 = vmul.f32 0.5, %v1607
  %v1609 = vsub.f32 1.5, %v1608
  %v1610 = vmul.f32 %v1605, %v1609
  %v1611 = vmul.f32 %v1408, %v1610
  %vm1612 = vcmp.eq.f32.partialorder %v1408, inf
  %v1613 = vsel %vm1612, %v1408, %v1611
  %vm1614 = vcmp.eq.f32.partialorder %v1408, 0.0
  %v1615 = vand.u32 %v1408, 2147483648
  %v1616 = vsel %vm1614, %v1615, %v1613
  %v1617 = vrsqrt.pop %v1411
  %v1618 = vmul.f32 %v1617, %v1411
  %v1619 = vmul.f32 %v1618, %v1617
  %v1620 = vmul.f32 0.5, %v1619
  %v1621 = vsub.f32 1.5, %v1620
  %v1622 = vmul.f32 %v1617, %v1621
  %v1623 = vmul.f32 %v1411, %v1622
  %vm1624 = vcmp.eq.f32.partialorder %v1411, inf
  %v1625 = vsel %vm1624, %v1411, %v1623
  %vm1626 = vcmp.eq.f32.partialorder %v1411, 0.0
  %v1627 = vand.u32 %v1411, 2147483648
  %v1628 = vsel %vm1626, %v1627, %v1625
  %v1629 = vrsqrt.pop %v1414
  %v1630 = vmul.f32 %v1629, %v1414
  %v1631 = vmul.f32 %v1630, %v1629
  %v1632 = vmul.f32 0.5, %v1631
  %v1633 = vsub.f32 1.5, %v1632
  %v1634 = vmul.f32 %v1629, %v1633
  %v1635 = vmul.f32 %v1414, %v1634
  %vm1636 = vcmp.eq.f32.partialorder %v1414, inf
  %v1637 = vsel %vm1636, %v1414, %v1635
  %vm1638 = vcmp.eq.f32.partialorder %v1414, 0.0
  %v1639 = vand.u32 %v1414, 2147483648
  %v1640 = vsel %vm1638, %v1639, %v1637
  %v1641 = vrsqrt.pop %v1417
  %v1642 = vmul.f32 %v1641, %v1417
  %v1643 = vmul.f32 %v1642, %v1641
  %v1644 = vmul.f32 0.5, %v1643
  %v1645 = vsub.f32 1.5, %v1644
  %v1646 = vmul.f32 %v1641, %v1645
  %v1647 = vmul.f32 %v1417, %v1646
  %vm1648 = vcmp.eq.f32.partialorder %v1417, inf
  %v1649 = vsel %vm1648, %v1417, %v1647
  %vm1650 = vcmp.eq.f32.partialorder %v1417, 0.0
  %v1651 = vand.u32 %v1417, 2147483648
  %v1652 = vsel %vm1650, %v1651, %v1649
  %v1653 = vrsqrt.pop %v1420
  %v1654 = vmul.f32 %v1653, %v1420
  %v1655 = vmul.f32 %v1654, %v1653
  %v1656 = vmul.f32 0.5, %v1655
  %v1657 = vsub.f32 1.5, %v1656
  %v1658 = vmul.f32 %v1653, %v1657
  %v1659 = vmul.f32 %v1420, %v1658
  %vm1660 = vcmp.eq.f32.partialorder %v1420, inf
  %v1661 = vsel %vm1660, %v1420, %v1659
  %vm1662 = vcmp.eq.f32.partialorder %v1420, 0.0
  %v1663 = vand.u32 %v1420, 2147483648
  %v1664 = vsel %vm1662, %v1663, %v1661
  %v1665 = vrsqrt.pop %v1423
  %v1666 = vmul.f32 %v1665, %v1423
  %v1667 = vmul.f32 %v1666, %v1665
  %v1668 = vmul.f32 0.5, %v1667
  %v1669 = vsub.f32 1.5, %v1668
  %v1670 = vmul.f32 %v1665, %v1669
  %v1671 = vmul.f32 %v1423, %v1670
  %vm1672 = vcmp.eq.f32.partialorder %v1423, inf
  %v1673 = vsel %vm1672, %v1423, %v1671
  %vm1674 = vcmp.eq.f32.partialorder %v1423, 0.0
  %v1675 = vand.u32 %v1423, 2147483648
  %v1676 = vsel %vm1674, %v1675, %v1673
  %v1677 = vrsqrt.pop %v1426
  %v1678 = vmul.f32 %v1677, %v1426
  %v1679 = vmul.f32 %v1678, %v1677
  %v1680 = vmul.f32 0.5, %v1679
  %v1681 = vsub.f32 1.5, %v1680
  %v1682 = vmul.f32 %v1677, %v1681
  %v1683 = vmul.f32 %v1426, %v1682
  %vm1684 = vcmp.eq.f32.partialorder %v1426, inf
  %v1685 = vsel %vm1684, %v1426, %v1683
  %vm1686 = vcmp.eq.f32.partialorder %v1426, 0.0
  %v1687 = vand.u32 %v1426, 2147483648
  %v1688 = vsel %vm1686, %v1687, %v1685
  %v1689 = vrsqrt.pop %v1429
  %v1690 = vmul.f32 %v1689, %v1429
  %v1691 = vmul.f32 %v1690, %v1689
  %v1692 = vmul.f32 0.5, %v1691
  %v1693 = vsub.f32 1.5, %v1692
  %v1694 = vmul.f32 %v1689, %v1693
  %v1695 = vmul.f32 %v1429, %v1694
  %vm1696 = vcmp.eq.f32.partialorder %v1429, inf
  %v1697 = vsel %vm1696, %v1429, %v1695
  %vm1698 = vcmp.eq.f32.partialorder %v1429, 0.0
  %v1699 = vand.u32 %v1429, 2147483648
  %v1700 = vsel %vm1698, %v1699, %v1697
  %v1701 = vrsqrt.pop %v1432
  %v1702 = vmul.f32 %v1701, %v1432
  %v1703 = vmul.f32 %v1702, %v1701
  %v1704 = vmul.f32 0.5, %v1703
  %v1705 = vsub.f32 1.5, %v1704
  %v1706 = vmul.f32 %v1701, %v1705
  %v1707 = vmul.f32 %v1432, %v1706
  %vm1708 = vcmp.eq.f32.partialorder %v1432, inf
  %v1709 = vsel %vm1708, %v1432, %v1707
  %vm1710 = vcmp.eq.f32.partialorder %v1432, 0.0
  %v1711 = vand.u32 %v1432, 2147483648
  %v1712 = vsel %vm1710, %v1711, %v1709
  %v1713 = vrsqrt.pop %v1435
  %v1714 = vmul.f32 %v1713, %v1435
  %v1715 = vmul.f32 %v1714, %v1713
  %v1716 = vmul.f32 0.5, %v1715
  %v1717 = vsub.f32 1.5, %v1716
  %v1718 = vmul.f32 %v1713, %v1717
  %v1719 = vmul.f32 %v1435, %v1718
  %vm1720 = vcmp.eq.f32.partialorder %v1435, inf
  %v1721 = vsel %vm1720, %v1435, %v1719
  %vm1722 = vcmp.eq.f32.partialorder %v1435, 0.0
  %v1723 = vand.u32 %v1435, 2147483648
  %v1724 = vsel %vm1722, %v1723, %v1721
  %v1725 = vmul.f32 %v911, %v1448
  %v1726 = vmul.f32 %v913, %v1460
  %v1727 = vmul.f32 %v916, %v1472
  %v1728 = vmul.f32 %v918, %v1484
  %v1729 = vmul.f32 %v921, %v1496
  %v1730 = vmul.f32 %v923, %v1508
  %v1731 = vmul.f32 %v926, %v1520
  %v1732 = vmul.f32 %v928, %v1532
  %v1733 = vmul.f32 %v931, %v1544
  %v1734 = vmul.f32 %v933, %v1556
  %v1735 = vmul.f32 %v936, %v1568
  %v1736 = vmul.f32 %v938, %v1580
  %v1737 = vmul.f32 %v941, %v1592
  %v1738 = vmul.f32 %v943, %v1604
  %v1739 = vmul.f32 %v946, %v1616
  %v1740 = vmul.f32 %v948, %v1628
  %v1741 = vmul.f32 %v951, %v1640
  %v1742 = vmul.f32 %v953, %v1652
  %v1743 = vmul.f32 %v956, %v1664
  %v1744 = vmul.f32 %v958, %v1676
  %v1745 = vmul.f32 %v961, %v1688
  %v1746 = vmul.f32 %v963, %v1700
  %v1747 = vmul.f32 %v966, %v1712
  %v1748 = vmul.f32 %v968, %v1724
  %1749 = vst [vmem:[%s5] sm:$0xff] %v1725
  %1750 = vst [vmem:[%s5 + $0x8] sm:$0xff] %v1726
  %1751 = vst [vmem:[%s5 + $0x10] sm:$0xff] %v1727
  %1752 = vst [vmem:[%s5 + $0x18] sm:$0xff] %v1728
  %1753 = vst [vmem:[%s5 + $0x20] sm:$0xff] %v1729
  %1754 = vst [vmem:[%s5 + $0x28] sm:$0xff] %v1730
  %1755 = vst [vmem:[%s5 + $0x30] sm:$0xff] %v1731
  %1756 = vst [vmem:[%s5 + $0x38] sm:$0xff] %v1732
  %1757 = vst [vmem:[%s5 + $0x40] sm:$0xff] %v1733
  %1758 = vst [vmem:[%s5 + $0x48] sm:$0xff] %v1734
  %1759 = vst [vmem:[%s5 + $0x50] sm:$0xff] %v1735
  %1760 = vst [vmem:[%s5 + $0x58] sm:$0xff] %v1736
  %1761 = vst [vmem:[%s5 + $0x60] sm:$0xff] %v1737
  %1762 = vst [vmem:[%s5 + $0x68] sm:$0xff] %v1738
  %1763 = vst [vmem:[%s5 + $0x70] sm:$0xff] %v1739
  %1764 = vst [vmem:[%s5 + $0x78] sm:$0xff] %v1740
  %1765 = vst [vmem:[%s5 + $0x80] sm:$0xff] %v1741
  %1766 = vst [vmem:[%s5 + $0x88] sm:$0xff] %v1742
  %1767 = vst [vmem:[%s5 + $0x90] sm:$0xff] %v1743
  %1768 = vst [vmem:[%s5 + $0x98] sm:$0xff] %v1744
  %1769 = vst [vmem:[%s5 + $0xa0] sm:$0xff] %v1745
  %1770 = vst [vmem:[%s5 + $0xa8] sm:$0xff] %v1746
  %1771 = vst [vmem:[%s5 + $0xb0] sm:$0xff] %v1747
  %1772 = vst [vmem:[%s5 + $0xb8] sm:$0xff] %v1748
  // Predicated region
  $region22: #{forward.14} parent=0 // pred_check
    _
  $region23: #{forward.14} parent=0 // pred_check_branch
    %1774 = sbr.rel (0) target = $region25
  $region24: #{forward.14} parent=0 // pred_region
    _
  $region25: #{forward.14} parent=0 // pred_fallthru
    _
  // Predicated region
  $region26: #{forward.14} parent=0 // pred_check
    _
  $region27: #{forward.14} parent=0 // pred_check_branch
    %1776 = sbr.rel (0) target = $region29
  $region28: #{forward.14} parent=0 // pred_region
    _
  $region29: #{forward.14} parent=0 // pred_fallthru
    _

// kernel: tile.57
$region0: #{tile.57}
  #allocation0 [shape = 's32[1]{0}', space=sflag, size = 0x4, scoped, tag = 'scoped memory for tile.57']
  %s0 = inlined_call_operand.<no memory space> [shape: f32[], index: 0, kind: input, shape index: {}]
  %s1 = inlined_call_operand.vmem [shape: f32[4], index: 1, kind: output, shape index: {}]
  %v2 = vstv %s0
  %3 = vst [vmem:[%s1] sm:$0x1] %v2

// kernel: forward.16
$region0: #{forward.16}
  #allocation0 [shape = 'u32[]', space=smem, size = 0x4, offset = 0x4, fixed_abs, tag = 'smem constant byte address 0x4 - core index']
  #allocation1 [shape = 'u32[72,128]{1,0:T(1,128)}', space=vmem, size = 0x9000, scoped, tag = 'internal scratch']
  %s0 = inlined_call_operand.vmem [shape: bf16[8,144], index: 0, kind: input, shape index: {}]
  %s1 = inlined_call_operand.vmem [shape: bf16[144,128], index: 1, kind: input, shape index: {}]
  %s2 = inlined_call_operand.vmem [shape: f32[8,1], index: 2, kind: input, shape index: {}]
  %s3 = inlined_call_operand.vmem [shape: f32[8,128], index: 3, kind: output, shape index: {}]
  %s4 = sld [smem:[#allocation0]]
  $region22: #{forward.16} parent=0
    _
  %s6 = ssub.s32 1, %s4
  %s7 = scalar_select 0, %s6, %s4
  // Predicated region
  $region2: #{forward.16} parent=0 // pred_check
    _
  $region3: #{forward.16} parent=0 // pred_check_branch
    %9 = sbr.rel (0) target = $region5
  $region4: #{forward.16} parent=0 // pred_region
    _
  $region5: #{forward.16} parent=0 // pred_fallthru
    _
  // Predicated region
  $region6: #{forward.16} parent=0 // pred_check
    _
  $region7: #{forward.16} parent=0 // pred_check_branch
    %11 = sbr.rel (0) target = $region9
  $region8: #{forward.16} parent=0 // pred_region
    _
  $region9: #{forward.16} parent=0 // pred_fallthru
    _
  // Predicated region
  $region10: #{forward.16} parent=0 // pred_check
    _
  $region11: #{forward.16} parent=0 // pred_check_branch
    %13 = sbr.rel (0) target = $region13
  $region12: #{forward.16} parent=0 // pred_region
    _
  $region13: #{forward.16} parent=0 // pred_fallthru
    _
  %v15 = vld [vmem:[%s0] sm:$0xff]
  %v16 = vld [vmem:[%s1] sm:$0xf]
  %v17 = vld [vmem:[%s1 + $0x4] sm:$0xf]
  %v18 = vld [vmem:[%s1 + $0x8] sm:$0xf]
  %v19 = vld [vmem:[%s1 + $0xc] sm:$0xf]
  %v20 = vld [vmem:[%s1 + $0x10] sm:$0xf]
  %v21 = vld [vmem:[%s1 + $0x14] sm:$0xf]
  %v22 = vld [vmem:[%s1 + $0x18] sm:$0xf]
  %v23 = vld [vmem:[%s1 + $0x1c] sm:$0xf]
  %v24 = vld [vmem:[%s1 + $0x20] sm:$0xf]
  %v25 = vld [vmem:[%s1 + $0x24] sm:$0xf]
  %v26 = vld [vmem:[%s1 + $0x28] sm:$0xf]
  %v27 = vld [vmem:[%s1 + $0x2c] sm:$0xf]
  %v28 = vld [vmem:[%s1 + $0x30] sm:$0xf]
  %v29 = vld [vmem:[%s1 + $0x34] sm:$0xf]
  %v30 = vld [vmem:[%s1 + $0x38] sm:$0xf]
  %v31 = vld [vmem:[%s1 + $0x3c] sm:$0xf]
  %v32 = vld [vmem:[%s1 + $0x40] sm:$0xf]
  %v33 = vld [vmem:[%s1 + $0x44] sm:$0xf]
  %v34 = vld [vmem:[%s2] sm:$0xff]
  %36 = vset.pattern.permute.xlu0 0
  %37 = vperm.xlu0 %36, %v34
  %v38 = vpop.permute.xlu0 %37
  %v41 = vunpack.c.l.b16 %v15
  %v42 = vunpack.c.h.b16 %v15
  %v43 = vpack.c.b16 %v41, %v41
  %v44 = vpack.c.b16 %v42, %v42
  %v64 = vunpack.c.l.b16 %v16
  %v65 = vunpack.c.l.b16 %v17
  %v66 = vunpack.c.l.b16 %v18
  %v67 = vunpack.c.l.b16 %v19
  %v68 = vunpack.c.l.b16 %v20
  %v69 = vunpack.c.l.b16 %v21
  %v70 = vunpack.c.l.b16 %v22
  %v71 = vunpack.c.l.b16 %v23
  %v72 = vunpack.c.l.b16 %v24
  %v73 = vunpack.c.l.b16 %v25
  %v74 = vunpack.c.l.b16 %v26
  %v75 = vunpack.c.l.b16 %v27
  %v76 = vunpack.c.l.b16 %v28
  %v77 = vunpack.c.l.b16 %v29
  %v78 = vunpack.c.l.b16 %v30
  %v79 = vunpack.c.l.b16 %v31
  %v80 = vunpack.c.l.b16 %v32
  %v81 = vunpack.c.l.b16 %v33
  %v82 = vpack.c.b16 %v65, %v64
  %v83 = vpack.c.b16 %v67, %v66
  %v84 = vpack.c.b16 %v69, %v68
  %v85 = vpack.c.b16 %v71, %v70
  %v86 = vpack.c.b16 %v73, %v72
  %v87 = vpack.c.b16 %v75, %v74
  %v88 = vpack.c.b16 %v77, %v76
  %v89 = vpack.c.b16 %v79, %v78
  %v90 = vpack.c.b16 %v81, %v80
  %vm100 = vcmask 130048
  %v102 = vsel %vm100, %v44, 0
  %104 = vmatpush.bf16.msra.mxu0 %v89
  %105 = vmatpush.bf16.msra.mxu0 %v88
  %106 = vmatpush.bf16.msra.mxu0 %v87
  %107 = vmatpush.bf16.msra.mxu0 %v86
  %108 = vmatpush.bf16.msra.mxu0 %v85
  %109 = vmatpush.bf16.msra.mxu0 %v84
  %110 = vmatpush.bf16.msra.mxu0 %v83
  %111 = vmatpush.bf16.msra.mxu0 %v82
  %112 = vmatmul.bf16.gmra.mxu0 %v43
  %v113 = vpop.f32.mrf.mxu0
  %v114 = vadd.f32 %v38, %v113
  %v115 = vpop.f32.mrf.mxu0
  %116 = vdwg.mxu0
  %117 = vmatpush.bf16.msra.mxu0 0
  %118 = vmatpush.bf16.msra.mxu0 0
  %119 = vmatpush.bf16.msra.mxu0 0
  %120 = vmatpush.bf16.msra.mxu0 0
  %121 = vmatpush.bf16.msra.mxu0 0
  %122 = vmatpush.bf16.msra.mxu0 0
  %123 = vmatpush.bf16.msra.mxu0 0
  %124 = vmatpush.bf16.msra.mxu0 %v90
  %125 = vmatmul.bf16.gmra.mxu0 %v102
  %v126 = vpop.f32.mrf.mxu0
  %v127 = vadd.f32 %v114, %v126
  %v128 = vpop.f32.mrf.mxu0
  %129 = vdwg.mxu0
  %130 = vst [vmem:[%s3] sm:$0xff] %v127
  // Predicated region
  $region14: #{forward.16} parent=0 // pred_check
    _
  $region15: #{forward.16} parent=0 // pred_check_branch
    %132 = sbr.rel (0) target = $region17
  $region16: #{forward.16} parent=0 // pred_region
    _
  $region17: #{forward.16} parent=0 // pred_fallthru
    _
  // Predicated region
  $region18: #{forward.16} parent=0 // pred_check
    _
  $region19: #{forward.16} parent=0 // pred_check_branch
    %134 = sbr.rel (0) target = $region21
  $region20: #{forward.16} parent=0 // pred_region
    _
  $region21: #{forward.16} parent=0 // pred_fallthru
    _

// kernel: forward.17
$region0: #{forward.17}
  #allocation0 [shape = 'u32[]', space=smem, size = 0x4, offset = 0x4, fixed_abs, tag = 'smem constant byte address 0x4 - core index']
  #allocation1 [shape = 'u32[72,128]{1,0:T(1,128)}', space=vmem, size = 0x9000, scoped, tag = 'internal scratch']
  %s0 = inlined_call_operand.vmem [shape: bf16[8,288], index: 0, kind: input, shape index: {}]
  %s1 = inlined_call_operand.vmem [shape: bf16[288,128], index: 1, kind: input, shape index: {}]
  %s2 = inlined_call_operand.vmem [shape: f32[8,1], index: 2, kind: input, shape index: {}]
  %s3 = inlined_call_operand.vmem [shape: f32[8,128], index: 3, kind: output, shape index: {}]
  %s4 = sld [smem:[#allocation0]]
  $region22: #{forward.17} parent=0
    _
  %s6 = ssub.s32 1, %s4
  %s7 = scalar_select 0, %s6, %s4
  // Predicated region
  $region2: #{forward.17} parent=0 // pred_check
    _
  $region3: #{forward.17} parent=0 // pred_check_branch
    %9 = sbr.rel (0) target = $region5
  $region4: #{forward.17} parent=0 // pred_region
    _
  $region5: #{forward.17} parent=0 // pred_fallthru
    _
  // Predicated region
  $region6: #{forward.17} parent=0 // pred_check
    _
  $region7: #{forward.17} parent=0 // pred_check_branch
    %11 = sbr.rel (0) target = $region9
  $region8: #{forward.17} parent=0 // pred_region
    _
  $region9: #{forward.17} parent=0 // pred_fallthru
    _
  // Predicated region
  $region10: #{forward.17} parent=0 // pred_check
    _
  $region11: #{forward.17} parent=0 // pred_check_branch
    %13 = sbr.rel (0) target = $region13
  $region12: #{forward.17} parent=0 // pred_region
    _
  $region13: #{forward.17} parent=0 // pred_fallthru
    _
  %v15 = vld [vmem:[%s0] sm:$0xff]
  %v16 = vld [vmem:[%s0 + $0x8] sm:$0xf]
  %v17 = vld [vmem:[%s1] sm:$0xf]
  %v18 = vld [vmem:[%s1 + $0x4] sm:$0xf]
  %v19 = vld [vmem:[%s1 + $0x8] sm:$0xf]
  %v20 = vld [vmem:[%s1 + $0xc] sm:$0xf]
  %v21 = vld [vmem:[%s1 + $0x10] sm:$0xf]
  %v22 = vld [vmem:[%s1 + $0x14] sm:$0xf]
  %v23 = vld [vmem:[%s1 + $0x18] sm:$0xf]
  %v24 = vld [vmem:[%s1 + $0x1c] sm:$0xf]
  %v25 = vld [vmem:[%s1 + $0x20] sm:$0xf]
  %v26 = vld [vmem:[%s1 + $0x24] sm:$0xf]
  %v27 = vld [vmem:[%s1 + $0x28] sm:$0xf]
  %v28 = vld [vmem:[%s1 + $0x2c] sm:$0xf]
  %v29 = vld [vmem:[%s1 + $0x30] sm:$0xf]
  %v30 = vld [vmem:[%s1 + $0x34] sm:$0xf]
  %v31 = vld [vmem:[%s1 + $0x38] sm:$0xf]
  %v32 = vld [vmem:[%s1 + $0x3c] sm:$0xf]
  %v33 = vld [vmem:[%s1 + $0x40] sm:$0xf]
  %v34 = vld [vmem:[%s1 + $0x44] sm:$0xf]
  %v35 = vld [vmem:[%s1 + $0x48] sm:$0xf]
  %v36 = vld [vmem:[%s1 + $0x4c] sm:$0xf]
  %v37 = vld [vmem:[%s1 + $0x50] sm:$0xf]
  %v38 = vld [vmem:[%s1 + $0x54] sm:$0xf]
  %v39 = vld [vmem:[%s1 + $0x58] sm:$0xf]
  %v40 = vld [vmem:[%s1 + $0x5c] sm:$0xf]
  %v41 = vld [vmem:[%s1 + $0x60] sm:$0xf]
  %v42 = vld [vmem:[%s1 + $0x64] sm:$0xf]
  %v43 = vld [vmem:[%s1 + $0x68] sm:$0xf]
  %v44 = vld [vmem:[%s1 + $0x6c] sm:$0xf]
  %v45 = vld [vmem:[%s1 + $0x70] sm:$0xf]
  %v46 = vld [vmem:[%s1 + $0x74] sm:$0xf]
  %v47 = vld [vmem:[%s1 + $0x78] sm:$0xf]
  %v48 = vld [vmem:[%s1 + $0x7c] sm:$0xf]
  %v49 = vld [vmem:[%s1 + $0x80] sm:$0xf]
  %v50 = vld [vmem:[%s1 + $0x84] sm:$0xf]
  %v51 = vld [vmem:[%s1 + $0x88] sm:$0xf]
  %v52 = vld [vmem:[%s1 + $0x8c] sm:$0xf]
  %v53 = vld [vmem:[%s2] sm:$0xff]
  %55 = vset.pattern.permute.xlu0 0
  %56 = vperm.xlu0 %55, %v53
  %v57 = vpop.permute.xlu0 %56
  %v61 = vunpack.c.l.b16 %v15
  %v62 = vunpack.c.h.b16 %v15
  %v63 = vunpack.c.l.b16 %v16
  %v64 = vpack.c.b16 %v61, %v61
  %v65 = vpack.c.b16 %v62, %v62
  %v66 = vpack.c.b16 %v63, %v63
  %v105 = vunpack.c.l.b16 %v17
  %v106 = vunpack.c.l.b16 %v18
  %v107 = vunpack.c.l.b16 %v19
  %v108 = vunpack.c.l.b16 %v20
  %v109 = vunpack.c.l.b16 %v21
  %v110 = vunpack.c.l.b16 %v22
  %v111 = vunpack.c.l.b16 %v23
  %v112 = vunpack.c.l.b16 %v24
  %v113 = vunpack.c.l.b16 %v25
  %v114 = vunpack.c.l.b16 %v26
  %v115 = vunpack.c.l.b16 %v27
  %v116 = vunpack.c.l.b16 %v28
  %v117 = vunpack.c.l.b16 %v29
  %v118 = vunpack.c.l.b16 %v30
  %v119 = vunpack.c.l.b16 %v31
  %v120 = vunpack.c.l.b16 %v32
  %v121 = vunpack.c.l.b16 %v33
  %v122 = vunpack.c.l.b16 %v34
  %v123 = vunpack.c.l.b16 %v35
  %v124 = vunpack.c.l.b16 %v36
  %v125 = vunpack.c.l.b16 %v37
  %v126 = vunpack.c.l.b16 %v38
  %v127 = vunpack.c.l.b16 %v39
  %v128 = vunpack.c.l.b16 %v40
  %v129 = vunpack.c.l.b16 %v41
  %v130 = vunpack.c.l.b16 %v42
  %v131 = vunpack.c.l.b16 %v43
  %v132 = vunpack.c.l.b16 %v44
  %v133 = vunpack.c.l.b16 %v45
  %v134 = vunpack.c.l.b16 %v46
  %v135 = vunpack.c.l.b16 %v47
  %v136 = vunpack.c.l.b16 %v48
  %v137 = vunpack.c.l.b16 %v49
  %v138 = vunpack.c.l.b16 %v50
  %v139 = vunpack.c.l.b16 %v51
  %v140 = vunpack.c.l.b16 %v52
  %v141 = vpack.c.b16 %v106, %v105
  %v142 = vpack.c.b16 %v108, %v107
  %v143 = vpack.c.b16 %v110, %v109
  %v144 = vpack.c.b16 %v112, %v111
  %v145 = vpack.c.b16 %v114, %v113
  %v146 = vpack.c.b16 %v116, %v115
  %v147 = vpack.c.b16 %v118, %v117
  %v148 = vpack.c.b16 %v120, %v119
  %v149 = vpack.c.b16 %v122, %v121
  %v150 = vpack.c.b16 %v124, %v123
  %v151 = vpack.c.b16 %v126, %v125
  %v152 = vpack.c.b16 %v128, %v127
  %v153 = vpack.c.b16 %v130, %v129
  %v154 = vpack.c.b16 %v132, %v131
  %v155 = vpack.c.b16 %v134, %v133
  %v156 = vpack.c.b16 %v136, %v135
  %v157 = vpack.c.b16 %v138, %v137
  %v158 = vpack.c.b16 %v140, %v139
  %vm177 = vcmask 261120
  %v179 = vsel %vm177, %v66, 0
  %181 = vmatpush.bf16.msra.mxu0 %v148
  %182 = vmatpush.bf16.msra.mxu0 %v147
  %183 = vmatpush.bf16.msra.mxu0 %v146
  %184 = vmatpush.bf16.msra.mxu0 %v145
  %185 = vmatpush.bf16.msra.mxu0 %v144
  %186 = vmatpush.bf16.msra.mxu0 %v143
  %187 = vmatpush.bf16.msra.mxu0 %v142
  %188 = vmatpush.bf16.msra.mxu0 %v141
  %189 = vmatmul.bf16.gmra.mxu0 %v64
  %v190 = vpop.f32.mrf.mxu0
  %v191 = vadd.f32 %v57, %v190
  %v192 = vpop.f32.mrf.mxu0
  %193 = vdwg.mxu0
  %194 = vmatpush.bf16.msra.mxu0 %v156
  %195 = vmatpush.bf16.msra.mxu0 %v155
  %196 = vmatpush.bf16.msra.mxu0 %v154
  %197 = vmatpush.bf16.msra.mxu0 %v153
  %198 = vmatpush.bf16.msra.mxu0 %v152
  %199 = vmatpush.bf16.msra.mxu0 %v151
  %200 = vmatpush.bf16.msra.mxu0 %v150
  %201 = vmatpush.bf16.msra.mxu0 %v149
  %202 = vmatmul.bf16.gmra.mxu0 %v65
  %v203 = vpop.f32.mrf.mxu0
  %v204 = vadd.f32 %v191, %v203
  %v205 = vpop.f32.mrf.mxu0
  %206 = vdwg.mxu0
  %207 = vmatpush.bf16.msra.mxu0 0
  %208 = vmatpush.bf16.msra.mxu0 0
  %209 = vmatpush.bf16.msra.mxu0 0
  %210 = vmatpush.bf16.msra.mxu0 0
  %211 = vmatpush.bf16.msra.mxu0 0
  %212 = vmatpush.bf16.msra.mxu0 0
  %213 = vmatpush.bf16.msra.mxu0 %v158
  %214 = vmatpush.bf16.msra.mxu0 %v157
  %215 = vmatmul.bf16.gmra.mxu0 %v179
  %v216 = vpop.f32.mrf.mxu0
  %v217 = vadd.f32 %v204, %v216
  %v218 = vpop.f32.mrf.mxu0
  %219 = vdwg.mxu0
  %220 = vst [vmem:[%s3] sm:$0xff] %v217
  // Predicated region
  $region14: #{forward.17} parent=0 // pred_check
    _
  $region15: #{forward.17} parent=0 // pred_check_branch
    %222 = sbr.rel (0) target = $region17
  $region16: #{forward.17} parent=0 // pred_region
    _
  $region17: #{forward.17} parent=0 // pred_fallthru
    _
  // Predicated region
  $region18: #{forward.17} parent=0 // pred_check
    _
  $region19: #{forward.17} parent=0 // pred_check_branch
    %224 = sbr.rel (0) target = $region21
  $region20: #{forward.17} parent=0 // pred_region
    _
  $region21: #{forward.17} parent=0 // pred_fallthru
    _

// kernel: forward.18
$region0: #{forward.18}
  #allocation0 [shape = 'u32[]', space=smem, size = 0x4, offset = 0x4, fixed_abs, tag = 'smem constant byte address 0x4 - core index']
  #allocation1 [shape = 'u32[72,128]{1,0:T(1,128)}', space=vmem, size = 0x9000, scoped, tag = 'internal scratch']
  %s0 = inlined_call_operand.vmem [shape: bf16[64,128], index: 0, kind: input, shape index: {}]
  %s1 = inlined_call_operand.vmem [shape: bf16[128,128], index: 1, kind: input, shape index: {}]
  %s2 = inlined_call_operand.vmem [shape: f32[64,1], index: 2, kind: input, shape index: {}]
  %s3 = inlined_call_operand.vmem [shape: f32[64,128], index: 3, kind: output, shape index: {}]
  %s4 = sld [smem:[#allocation0]]
  $region22: #{forward.18} parent=0
    _
  %s6 = ssub.s32 1, %s4
  %s7 = scalar_select 0, %s6, %s4
  // Predicated region
  $region2: #{forward.18} parent=0 // pred_check
    _
  $region3: #{forward.18} parent=0 // pred_check_branch
    %9 = sbr.rel (0) target = $region5
  $region4: #{forward.18} parent=0 // pred_region
    _
  $region5: #{forward.18} parent=0 // pred_fallthru
    _
  // Predicated region
  $region6: #{forward.18} parent=0 // pred_check
    _
  $region7: #{forward.18} parent=0 // pred_check_branch
    %11 = sbr.rel (0) target = $region9
  $region8: #{forward.18} parent=0 // pred_region
    _
  $region9: #{forward.18} parent=0 // pred_fallthru
    _
  // Predicated region
  $region10: #{forward.18} parent=0 // pred_check
    _
  $region11: #{forward.18} parent=0 // pred_check_branch
    %13 = sbr.rel (0) target = $region13
  $region12: #{forward.18} parent=0 // pred_region
    _
  $region13: #{forward.18} parent=0 // pred_fallthru
    _
  %v14 = vld [vmem:[%s0] sm:$0xf]
  %v15 = vld [vmem:[%s0 + $0x4] sm:$0xf]
  %v16 = vld [vmem:[%s0 + $0x8] sm:$0xf]
  %v17 = vld [vmem:[%s0 + $0xc] sm:$0xf]
  %v18 = vld [vmem:[%s0 + $0x10] sm:$0xf]
  %v19 = vld [vmem:[%s0 + $0x14] sm:$0xf]
  %v20 = vld [vmem:[%s0 + $0x18] sm:$0xf]
  %v21 = vld [vmem:[%s0 + $0x1c] sm:$0xf]
  %v22 = vld [vmem:[%s1] sm:$0xf]
  %v23 = vld [vmem:[%s1 + $0x4] sm:$0xf]
  %v24 = vld [vmem:[%s1 + $0x8] sm:$0xf]
  %v25 = vld [vmem:[%s1 + $0xc] sm:$0xf]
  %v26 = vld [vmem:[%s1 + $0x10] sm:$0xf]
  %v27 = vld [vmem:[%s1 + $0x14] sm:$0xf]
  %v28 = vld [vmem:[%s1 + $0x18] sm:$0xf]
  %v29 = vld [vmem:[%s1 + $0x1c] sm:$0xf]
  %v30 = vld [vmem:[%s1 + $0x20] sm:$0xf]
  %v31 = vld [vmem:[%s1 + $0x24] sm:$0xf]
  %v32 = vld [vmem:[%s1 + $0x28] sm:$0xf]
  %v33 = vld [vmem:[%s1 + $0x2c] sm:$0xf]
  %v34 = vld [vmem:[%s1 + $0x30] sm:$0xf]
  %v35 = vld [vmem:[%s1 + $0x34] sm:$0xf]
  %v36 = vld [vmem:[%s1 + $0x38] sm:$0xf]
  %v37 = vld [vmem:[%s1 + $0x3c] sm:$0xf]
  %v38 = vld [vmem:[%s2] sm:$0xff]
  %v39 = vld [vmem:[%s2 + $0x8] sm:$0xff]
  %v40 = vld [vmem:[%s2 + $0x10] sm:$0xff]
  %v41 = vld [vmem:[%s2 + $0x18] sm:$0xff]
  %v42 = vld [vmem:[%s2 + $0x20] sm:$0xff]
  %v43 = vld [vmem:[%s2 + $0x28] sm:$0xff]
  %v44 = vld [vmem:[%s2 + $0x30] sm:$0xff]
  %v45 = vld [vmem:[%s2 + $0x38] sm:$0xff]
  %47 = vset.pattern.permute.xlu0 0
  %48 = vperm.xlu0 %47, %v38
  %v49 = vpop.permute.xlu0 %48
  %52 = vset.pattern.permute.xlu0 0
  %53 = vperm.xlu0 %52, %v39
  %v54 = vpop.permute.xlu0 %53
  %57 = vset.pattern.permute.xlu0 0
  %58 = vperm.xlu0 %57, %v40
  %v59 = vpop.permute.xlu0 %58
  %62 = vset.pattern.permute.xlu0 0
  %63 = vperm.xlu0 %62, %v41
  %v64 = vpop.permute.xlu0 %63
  %67 = vset.pattern.permute.xlu0 0
  %68 = vperm.xlu0 %67, %v42
  %v69 = vpop.permute.xlu0 %68
  %72 = vset.pattern.permute.xlu0 0
  %73 = vperm.xlu0 %72, %v43
  %v74 = vpop.permute.xlu0 %73
  %77 = vset.pattern.permute.xlu0 0
  %78 = vperm.xlu0 %77, %v44
  %v79 = vpop.permute.xlu0 %78
  %82 = vset.pattern.permute.xlu0 0
  %83 = vperm.xlu0 %82, %v45
  %v84 = vpop.permute.xlu0 %83
  %v94 = vunpack.c.l.b16 %v14
  %v95 = vunpack.c.l.b16 %v15
  %v96 = vunpack.c.l.b16 %v16
  %v97 = vunpack.c.l.b16 %v17
  %v98 = vunpack.c.l.b16 %v18
  %v99 = vunpack.c.l.b16 %v19
  %v100 = vunpack.c.l.b16 %v20
  %v101 = vunpack.c.l.b16 %v21
  %v102 = vpack.c.b16 %v95, %v94
  %v103 = vpack.c.b16 %v97, %v96
  %v104 = vpack.c.b16 %v99, %v98
  %v105 = vpack.c.b16 %v101, %v100
  %v126 = vunpack.c.l.b16 %v22
  %v127 = vunpack.c.l.b16 %v23
  %v128 = vunpack.c.l.b16 %v24
  %v129 = vunpack.c.l.b16 %v25
  %v130 = vunpack.c.l.b16 %v26
  %v131 = vunpack.c.l.b16 %v27
  %v132 = vunpack.c.l.b16 %v28
  %v133 = vunpack.c.l.b16 %v29
  %v134 = vunpack.c.l.b16 %v30
  %v135 = vunpack.c.l.b16 %v31
  %v136 = vunpack.c.l.b16 %v32
  %v137 = vunpack.c.l.b16 %v33
  %v138 = vunpack.c.l.b16 %v34
  %v139 = vunpack.c.l.b16 %v35
  %v140 = vunpack.c.l.b16 %v36
  %v141 = vunpack.c.l.b16 %v37
  %v142 = vpack.c.b16 %v127, %v126
  %v143 = vpack.c.b16 %v129, %v128
  %v144 = vpack.c.b16 %v131, %v130
  %v145 = vpack.c.b16 %v133, %v132
  %v146 = vpack.c.b16 %v135, %v134
  %v147 = vpack.c.b16 %v137, %v136
  %v148 = vpack.c.b16 %v139, %v138
  %v149 = vpack.c.b16 %v141, %v140
  %158 = vmatpush.bf16.msra.mxu0 %v149
  %159 = vmatpush.bf16.msra.mxu0 %v148
  %160 = vmatpush.bf16.msra.mxu0 %v147
  %161 = vmatpush.bf16.msra.mxu0 %v146
  %162 = vmatpush.bf16.msra.mxu0 %v145
  %163 = vmatpush.bf16.msra.mxu0 %v144
  %164 = vmatpush.bf16.msra.mxu0 %v143
  %165 = vmatpush.bf16.msra.mxu0 %v142
  %166 = vmatmul.bf16.gmra.mxu0 %v102
  %v167 = vpop.f32.mrf.mxu0
  %v168 = vadd.f32 %v49, %v167
  %v169 = vpop.f32.mrf.mxu0
  %v170 = vadd.f32 %v54, %v169
  %171 = vmatmul.bf16.gmra.mxu0 %v103
  %v172 = vpop.f32.mrf.mxu0
  %v173 = vadd.f32 %v59, %v172
  %v174 = vpop.f32.mrf.mxu0
  %v175 = vadd.f32 %v64, %v174
  %176 = vmatmul.bf16.gmra.mxu0 %v104
  %v177 = vpop.f32.mrf.mxu0
  %v178 = vadd.f32 %v69, %v177
  %v179 = vpop.f32.mrf.mxu0
  %v180 = vadd.f32 %v74, %v179
  %181 = vmatmul.bf16.gmra.mxu0 %v105
  %v182 = vpop.f32.mrf.mxu0
  %v183 = vadd.f32 %v79, %v182
  %v184 = vpop.f32.mrf.mxu0
  %v185 = vadd.f32 %v84, %v184
  %186 = vdwg.mxu0
  %187 = vst [vmem:[%s3] sm:$0xff] %v168
  %188 = vst [vmem:[%s3 + $0x8] sm:$0xff] %v170
  %189 = vst [vmem:[%s3 + $0x10] sm:$0xff] %v173
  %190 = vst [vmem:[%s3 + $0x18] sm:$0xff] %v175
  %191 = vst [vmem:[%s3 + $0x20] sm:$0xff] %v178
  %192 = vst [vmem:[%s3 + $0x28] sm:$0xff] %v180
  %193 = vst [vmem:[%s3 + $0x30] sm:$0xff] %v183
  %194 = vst [vmem:[%s3 + $0x38] sm:$0xff] %v185
  // Predicated region
  $region14: #{forward.18} parent=0 // pred_check
    _
  $region15: #{forward.18} parent=0 // pred_check_branch
    %196 = sbr.rel (0) target = $region17
  $region16: #{forward.18} parent=0 // pred_region
    _
  $region17: #{forward.18} parent=0 // pred_fallthru
    _
  // Predicated region
  $region18: #{forward.18} parent=0 // pred_check
    _
  $region19: #{forward.18} parent=0 // pred_check_branch
    %198 = sbr.rel (0) target = $region21
  $region20: #{forward.18} parent=0 // pred_region
    _
  $region21: #{forward.18} parent=0 // pred_fallthru
    _

// kernel: forward.19
$region0: #{forward.19}
  #allocation0 [shape = 'u32[]', space=smem, size = 0x4, offset = 0x4, fixed_abs, tag = 'smem constant byte address 0x4 - core index']
  #allocation1 [shape = 'u32[72,128]{1,0:T(1,128)}', space=vmem, size = 0x9000, scoped, tag = 'internal scratch']
  %s0 = inlined_call_operand.vmem [shape: f32[8,512], index: 0, kind: input, shape index: {}]
  %s1 = inlined_call_operand.vmem [shape: f32[8,512], index: 1, kind: input, shape index: {}]
  %s2 = inlined_call_operand.vmem [shape: f32[8,512], index: 2, kind: input, shape index: {}]
  %s3 = inlined_call_operand.vmem [shape: f32[8,512], index: 3, kind: output, shape index: {0}]
  %s4 = inlined_call_operand.vmem [shape: f32[8,512], index: 4, kind: output, shape index: {1}]
  %s5 = inlined_call_operand.vmem [shape: f32[8,512], index: 5, kind: output, shape index: {2}]
  %6 = xla_tuple %s3, %s4, %s5
  %s7 = sld [smem:[#allocation0]]
  $region38: #{forward.19} parent=0
    _
  %s9 = ssub.s32 1, %s7
  %s10 = scalar_select 0, %s9, %s7
  // Predicated region
  $region2: #{forward.19} parent=0 // pred_check
    _
  $region3: #{forward.19} parent=0 // pred_check_branch
    %12 = sbr.rel (0) target = $region5
  $region4: #{forward.19} parent=0 // pred_region
    _
  $region5: #{forward.19} parent=0 // pred_fallthru
    _
  // Predicated region
  $region6: #{forward.19} parent=0 // pred_check
    _
  $region7: #{forward.19} parent=0 // pred_check_branch
    %14 = sbr.rel (0) target = $region9
  $region8: #{forward.19} parent=0 // pred_region
    _
  $region9: #{forward.19} parent=0 // pred_fallthru
    _
  // Predicated region
  $region10: #{forward.19} parent=0 // pred_check
    _
  $region11: #{forward.19} parent=0 // pred_check_branch
    %16 = sbr.rel (0) target = $region13
  $region12: #{forward.19} parent=0 // pred_region
    _
  $region13: #{forward.19} parent=0 // pred_fallthru
    _
  %v17 = vld [vmem:[%s0] sm:$0xff]
  %v18 = vld [vmem:[%s0 + $0x8] sm:$0xff]
  %v19 = vld [vmem:[%s0 + $0x10] sm:$0xff]
  %v20 = vld [vmem:[%s0 + $0x18] sm:$0xff]
  %v21 = vld [vmem:[%s1] sm:$0xff]
  %v22 = vld [vmem:[%s1 + $0x8] sm:$0xff]
  %v23 = vld [vmem:[%s1 + $0x10] sm:$0xff]
  %v24 = vld [vmem:[%s1 + $0x18] sm:$0xff]
  %v25 = vsub.f32 %v21, 128.0
  %v26 = vsub.f32 %v22, 128.0
  %v27 = vsub.f32 %v23, 128.0
  %v28 = vsub.f32 %v24, 128.0
  %v29 = vld [vmem:[%s2] sm:$0xff]
  %v30 = vld [vmem:[%s2 + $0x8] sm:$0xff]
  %v31 = vld [vmem:[%s2 + $0x10] sm:$0xff]
  %v32 = vld [vmem:[%s2 + $0x18] sm:$0xff]
  %v33 = vsub.f32 %v29, 128.0
  %v34 = vsub.f32 %v30, 128.0
  %v35 = vsub.f32 %v31, 128.0
  %v36 = vsub.f32 %v32, 128.0
  %v37 = vmul.f32 %v33, 1.402
  %v38 = vmul.f32 %v34, 1.402
  %v39 = vmul.f32 %v35, 1.402
  %v40 = vmul.f32 %v36, 1.402
  %v41 = vadd.f32 %v17, %v37
  %v42 = vadd.f32 %v18, %v38
  %v43 = vadd.f32 %v19, %v39
  %v44 = vadd.f32 %v20, %v40
  %v45 = vmax.f32 %v41, 0.0
  %v46 = vmax.f32 %v42, 0.0
  %v47 = vmax.f32 %v43, 0.0
  %v48 = vmax.f32 %v44, 0.0
  %v49 = vmin.f32 %v45, 255.0
  %v50 = vmin.f32 %v46, 255.0
  %v51 = vmin.f32 %v47, 255.0
  %v52 = vmin.f32 %v48, 255.0
  %v53 = vmul.f32 %v49, 0.003921569
  %v54 = vmul.f32 %v50, 0.003921569
  %v55 = vmul.f32 %v51, 0.003921569
  %v56 = vmul.f32 %v52, 0.003921569
  %57 = vst [vmem:[%s3] sm:$0xff] %v53
  %58 = vst [vmem:[%s3 + $0x8] sm:$0xff] %v54
  %59 = vst [vmem:[%s3 + $0x10] sm:$0xff] %v55
  %60 = vst [vmem:[%s3 + $0x18] sm:$0xff] %v56
  %v61 = vmul.f32 %v25, 0.344136
  %v62 = vmul.f32 %v26, 0.344136
  %v63 = vmul.f32 %v27, 0.344136
  %v64 = vmul.f32 %v28, 0.344136
  %v65 = vsub.f32 %v17, %v61
  %v66 = vsub.f32 %v18, %v62
  %v67 = vsub.f32 %v19, %v63
  %v68 = vsub.f32 %v20, %v64
  %v69 = vmul.f32 %v33, 0.714136
  %v70 = vmul.f32 %v34, 0.714136
  %v71 = vmul.f32 %v35, 0.714136
  %v72 = vmul.f32 %v36, 0.714136
  %v73 = vsub.f32 %v65, %v69
  %v74 = vsub.f32 %v66, %v70
  %v75 = vsub.f32 %v67, %v71
  %v76 = vsub.f32 %v68, %v72
  %v77 = vmax.f32 %v73, 0.0
  %v78 = vmax.f32 %v74, 0.0
  %v79 = vmax.f32 %v75, 0.0
  %v80 = vmax.f32 %v76, 0.0
  %v81 = vmin.f32 %v77, 255.0
  %v82 = vmin.f32 %v78, 255.0
  %v83 = vmin.f32 %v79, 255.0
  %v84 = vmin.f32 %v80, 255.0
  %v85 = vmul.f32 %v81, 0.003921569
  %v86 = vmul.f32 %v82, 0.003921569
  %v87 = vmul.f32 %v83, 0.003921569
  %v88 = vmul.f32 %v84, 0.003921569
  %89 = vst [vmem:[%s4] sm:$0xff] %v85
  %90 = vst [vmem:[%s4 + $0x8] sm:$0xff] %v86
  %91 = vst [vmem:[%s4 + $0x10] sm:$0xff] %v87
  %92 = vst [vmem:[%s4 + $0x18] sm:$0xff] %v88
  %v93 = vmul.f32 %v25, 1.772
  %v94 = vmul.f32 %v26, 1.772
  %v95 = vmul.f32 %v27, 1.772
  %v96 = vmul.f32 %v28, 1.772
  %v97 = vadd.f32 %v17, %v93
  %v98 = vadd.f32 %v18, %v94
  %v99 = vadd.f32 %v19, %v95
  %v100 = vadd.f32 %v20, %v96
  %v101 = vmax.f32 %v97, 0.0
  %v102 = vmax.f32 %v98, 0.0
  %v103 = vmax.f32 %v99, 0.0
  %v104 = vmax.f32 %v100, 0.0
  %v105 = vmin.f32 %v101, 255.0
  %v106 = vmin.f32 %v102, 255.0
  %v107 = vmin.f32 %v103, 255.0
  %v108 = vmin.f32 %v104, 255.0
  %v109 = vmul.f32 %v105, 0.003921569
  %v110 = vmul.f32 %v106, 0.003921569
  %v111 = vmul.f32 %v107, 0.003921569
  %v112 = vmul.f32 %v108, 0.003921569
  %113 = vst [vmem:[%s5] sm:$0xff] %v109
  %114 = vst [vmem:[%s5 + $0x8] sm:$0xff] %v110
  %115 = vst [vmem:[%s5 + $0x10] sm:$0xff] %v111
  %116 = vst [vmem:[%s5 + $0x18] sm:$0xff] %v112
  // Predicated region
  $region14: #{forward.19} parent=0 // pred_check
    _
  $region15: #{forward.19} parent=0 // pred_check_branch
    %118 = sbr.rel (0) target = $region17
  $region16: #{forward.19} parent=0 // pred_region
    _
  $region17: #{forward.19} parent=0 // pred_fallthru
    _
  // Predicated region
  $region18: #{forward.19} parent=0 // pred_check
    _
  $region19: #{forward.19} parent=0 // pred_check_branch
    %120 = sbr.rel (0) target = $region21
  $region20: #{forward.19} parent=0 // pred_region
    _
  $region21: #{forward.19} parent=0 // pred_fallthru
    _
  // Predicated region
  $region22: #{forward.19} parent=0 // pred_check
    _
  $region23: #{forward.19} parent=0 // pred_check_branch
    %122 = sbr.rel (0) target = $region25
  $region24: #{forward.19} parent=0 // pred_region
    _
  $region25: #{forward.19} parent=0 // pred_fallthru
    _
  // Predicated region
  $region26: #{forward.19} parent=0 // pred_check
    _
  $region27: #{forward.19} parent=0 // pred_check_branch
    %124 = sbr.rel (0) target = $region29
  $region28: #{forward.19} parent=0 // pred_region
    _
  $region29: #{forward.19} parent=0 // pred_fallthru
    _
  // Predicated region
  $region30: #{forward.19} parent=0 // pred_check
    _
  $region31: #{forward.19} parent=0 // pred_check_branch
    %126 = sbr.rel (0) target = $region33
  $region32: #{forward.19} parent=0 // pred_region
    _
  $region33: #{forward.19} parent=0 // pred_fallthru
    _
  // Predicated region
  $region34: #{forward.19} parent=0 // pred_check
    _
  $region35: #{forward.19} parent=0 // pred_check_branch
    %128 = sbr.rel (0) target = $region37
  $region36: #{forward.19} parent=0 // pred_region
    _
  $region37: #{forward.19} parent=0 // pred_fallthru
    _

// kernel: forward.13
$region0: #{forward.13}
  #allocation0 [shape = 'u32[]', space=smem, size = 0x4, offset = 0x4, fixed_abs, tag = 'smem constant byte address 0x4 - core index']
  #allocation1 [shape = 'u32[72,128]{1,0:T(1,128)}', space=vmem, size = 0x9000, scoped, tag = 'internal scratch']
  %s0 = inlined_call_operand.vmem [shape: f32[48,128], index: 0, kind: input, shape index: {}]
  %s1 = inlined_call_operand.vmem [shape: f32[96,58], index: 1, kind: input, shape index: {}]
  %s2 = inlined_call_operand.vmem [shape: f32[48,128], index: 2, kind: output, shape index: {}]
  %s3 = sld [smem:[#allocation0]]
  $region18: #{forward.13} parent=0
    _
  %s5 = ssub.s32 1, %s3
  %s6 = scalar_select 0, %s5, %s3
  // Predicated region
  $region2: #{forward.13} parent=0 // pred_check
    _
  $region3: #{forward.13} parent=0 // pred_check_branch
    %8 = sbr.rel (0) target = $region5
  $region4: #{forward.13} parent=0 // pred_region
    _
  $region5: #{forward.13} parent=0 // pred_fallthru
    _
  // Predicated region
  $region6: #{forward.13} parent=0 // pred_check
    _
  $region7: #{forward.13} parent=0 // pred_check_branch
    %10 = sbr.rel (0) target = $region9
  $region8: #{forward.13} parent=0 // pred_region
    _
  $region9: #{forward.13} parent=0 // pred_fallthru
    _
  %v11 = vld [vmem:[%s0] sm:$0xff]
  %v12 = vld [vmem:[%s0 + $0x8] sm:$0xff]
  %v13 = vld [vmem:[%s0 + $0x10] sm:$0xff]
  %v14 = vld [vmem:[%s0 + $0x18] sm:$0xff]
  %v15 = vld [vmem:[%s0 + $0x20] sm:$0xff]
  %v16 = vld [vmem:[%s0 + $0x28] sm:$0xff]
  %v17 = vadd.f32 %v11, 0.5
  %v18 = vadd.f32 %v12, 0.5
  %v19 = vadd.f32 %v13, 0.5
  %v20 = vadd.f32 %v14, 0.5
  %v21 = vadd.f32 %v15, 0.5
  %v22 = vadd.f32 %v16, 0.5
  %v23 = vsub.f32 %v11, 0.5
  %v24 = vsub.f32 %v12, 0.5
  %v25 = vsub.f32 %v13, 0.5
  %v26 = vsub.f32 %v14, 0.5
  %v27 = vsub.f32 %v15, 0.5
  %v28 = vsub.f32 %v16, 0.5
  %v29 = vld [vmem:[%s1] sm:$0xff]
  %v30 = vld [vmem:[%s1 + $0x8] sm:$0xff]
  %v31 = vld [vmem:[%s1 + $0x10] sm:$0xff]
  %v32 = vld [vmem:[%s1 + $0x18] sm:$0xff]
  %v33 = vld [vmem:[%s1 + $0x20] sm:$0xff]
  %v34 = vld [vmem:[%s1 + $0x28] sm:$0xff]
  %v35 = vld [vmem:[%s1 + $0x30] sm:$0xff]
  %v36 = vld [vmem:[%s1 + $0x38] sm:$0xff]
  %v37 = vld [vmem:[%s1 + $0x40] sm:$0xff]
  %v38 = vld [vmem:[%s1 + $0x48] sm:$0xff]
  %v39 = vld [vmem:[%s1 + $0x50] sm:$0xff]
  %v40 = vld [vmem:[%s1 + $0x58] sm:$0xff]
  %42 = vset.pattern.permute.xlu0 0
  %43 = vperm.xlu0 %42, %v29
  %v44 = vpop.permute.xlu0 %43
  %47 = vset.pattern.permute.xlu0 0
  %48 = vperm.xlu0 %47, %v30
  %v49 = vpop.permute.xlu0 %48
  %52 = vset.pattern.permute.xlu0 0
  %53 = vperm.xlu0 %52, %v31
  %v54 = vpop.permute.xlu0 %53
  %57 = vset.pattern.permute.xlu0 0
  %58 = vperm.xlu0 %57, %v32
  %v59 = vpop.permute.xlu0 %58
  %62 = vset.pattern.permute.xlu0 0
  %63 = vperm.xlu0 %62, %v33
  %v64 = vpop.permute.xlu0 %63
  %67 = vset.pattern.permute.xlu0 0
  %68 = vperm.xlu0 %67, %v34
  %v69 = vpop.permute.xlu0 %68
  %72 = vset.pattern.permute.xlu0 0
  %73 = vperm.xlu0 %72, %v35
  %v74 = vpop.permute.xlu0 %73
  %77 = vset.pattern.permute.xlu0 0
  %78 = vperm.xlu0 %77, %v36
  %v79 = vpop.permute.xlu0 %78
  %82 = vset.pattern.permute.xlu0 0
  %83 = vperm.xlu0 %82, %v37
  %v84 = vpop.permute.xlu0 %83
  %87 = vset.pattern.permute.xlu0 0
  %88 = vperm.xlu0 %87, %v38
  %v89 = vpop.permute.xlu0 %88
  %92 = vset.pattern.permute.xlu0 0
  %93 = vperm.xlu0 %92, %v39
  %v94 = vpop.permute.xlu0 %93
  %97 = vset.pattern.permute.xlu0 0
  %98 = vperm.xlu0 %97, %v40
  %v99 = vpop.permute.xlu0 %98
  %v101 = vmul.f32 %v44, %v17
  %v102 = vmul.f32 %v49, %v18
  %v103 = vmul.f32 %v54, %v19
  %v104 = vmul.f32 %v59, %v20
  %v105 = vmul.f32 %v64, %v21
  %v106 = vmul.f32 %v69, %v22
  %v107 = vmul.f32 %v74, %v23
  %v108 = vmul.f32 %v79, %v24
  %v109 = vmul.f32 %v84, %v25
  %v110 = vmul.f32 %v89, %v26
  %v111 = vmul.f32 %v94, %v27
  %v112 = vmul.f32 %v99, %v28
  %113 = vset.pattern.permute.xlu0 3
  %114 = vperm.xlu0 %113, %v29
  %v115 = vpop.permute.xlu0 %114
  %117 = vset.pattern.permute.xlu0 3
  %118 = vperm.xlu0 %117, %v30
  %v119 = vpop.permute.xlu0 %118
  %121 = vset.pattern.permute.xlu0 3
  %122 = vperm.xlu0 %121, %v31
  %v123 = vpop.permute.xlu0 %122
  %125 = vset.pattern.permute.xlu0 3
  %126 = vperm.xlu0 %125, %v32
  %v127 = vpop.permute.xlu0 %126
  %129 = vset.pattern.permute.xlu0 3
  %130 = vperm.xlu0 %129, %v33
  %v131 = vpop.permute.xlu0 %130
  %133 = vset.pattern.permute.xlu0 3
  %134 = vperm.xlu0 %133, %v34
  %v135 = vpop.permute.xlu0 %134
  %137 = vset.pattern.permute.xlu0 3
  %138 = vperm.xlu0 %137, %v35
  %v139 = vpop.permute.xlu0 %138
  %141 = vset.pattern.permute.xlu0 3
  %142 = vperm.xlu0 %141, %v36
  %v143 = vpop.permute.xlu0 %142
  %145 = vset.pattern.permute.xlu0 3
  %146 = vperm.xlu0 %145, %v37
  %v147 = vpop.permute.xlu0 %146
  %149 = vset.pattern.permute.xlu0 3
  %150 = vperm.xlu0 %149, %v38
  %v151 = vpop.permute.xlu0 %150
  %153 = vset.pattern.permute.xlu0 3
  %154 = vperm.xlu0 %153, %v39
  %v155 = vpop.permute.xlu0 %154
  %157 = vset.pattern.permute.xlu0 3
  %158 = vperm.xlu0 %157, %v40
  %v159 = vpop.permute.xlu0 %158
  %v161 = vadd.f32 %v115, %v101
  %v162 = vadd.f32 %v119, %v102
  %v163 = vadd.f32 %v123, %v103
  %v164 = vadd.f32 %v127, %v104
  %v165 = vadd.f32 %v131, %v105
  %v166 = vadd.f32 %v135, %v106
  %v167 = vadd.f32 %v139, %v107
  %v168 = vadd.f32 %v143, %v108
  %v169 = vadd.f32 %v147, %v109
  %v170 = vadd.f32 %v151, %v110
  %v171 = vadd.f32 %v155, %v111
  %v172 = vadd.f32 %v159, %v112
  %173 = vset.pattern.permute.xlu0 1
  %174 = vperm.xlu0 %173, %v29
  %v175 = vpop.permute.xlu0 %174
  %177 = vset.pattern.permute.xlu0 1
  %178 = vperm.xlu0 %177, %v30
  %v179 = vpop.permute.xlu0 %178
  %181 = vset.pattern.permute.xlu0 1
  %182 = vperm.xlu0 %181, %v31
  %v183 = vpop.permute.xlu0 %182
  %185 = vset.pattern.permute.xlu0 1
  %186 = vperm.xlu0 %185, %v32
  %v187 = vpop.permute.xlu0 %186
  %189 = vset.pattern.permute.xlu0 1
  %190 = vperm.xlu0 %189, %v33
  %v191 = vpop.permute.xlu0 %190
  %193 = vset.pattern.permute.xlu0 1
  %194 = vperm.xlu0 %193, %v34
  %v195 = vpop.permute.xlu0 %194
  %197 = vset.pattern.permute.xlu0 1
  %198 = vperm.xlu0 %197, %v35
  %v199 = vpop.permute.xlu0 %198
  %201 = vset.pattern.permute.xlu0 1
  %202 = vperm.xlu0 %201, %v36
  %v203 = vpop.permute.xlu0 %202
  %205 = vset.pattern.permute.xlu0 1
  %206 = vperm.xlu0 %205, %v37
  %v207 = vpop.permute.xlu0 %206
  %209 = vset.pattern.permute.xlu0 1
  %210 = vperm.xlu0 %209, %v38
  %v211 = vpop.permute.xlu0 %210
  %213 = vset.pattern.permute.xlu0 1
  %214 = vperm.xlu0 %213, %v39
  %v215 = vpop.permute.xlu0 %214
  %217 = vset.pattern.permute.xlu0 1
  %218 = vperm.xlu0 %217, %v40
  %v219 = vpop.permute.xlu0 %218
  %v221 = vmul.f32 %v175, %v17
  %v222 = vmul.f32 %v179, %v18
  %v223 = vmul.f32 %v183, %v19
  %v224 = vmul.f32 %v187, %v20
  %v225 = vmul.f32 %v191, %v21
  %v226 = vmul.f32 %v195, %v22
  %v227 = vmul.f32 %v199, %v23
  %v228 = vmul.f32 %v203, %v24
  %v229 = vmul.f32 %v207, %v25
  %v230 = vmul.f32 %v211, %v26
  %v231 = vmul.f32 %v215, %v27
  %v232 = vmul.f32 %v219, %v28
  %233 = vset.pattern.permute.xlu0 4
  %234 = vperm.xlu0 %233, %v29
  %v235 = vpop.permute.xlu0 %234
  %237 = vset.pattern.permute.xlu0 4
  %238 = vperm.xlu0 %237, %v30
  %v239 = vpop.permute.xlu0 %238
  %241 = vset.pattern.permute.xlu0 4
  %242 = vperm.xlu0 %241, %v31
  %v243 = vpop.permute.xlu0 %242
  %245 = vset.pattern.permute.xlu0 4
  %246 = vperm.xlu0 %245, %v32
  %v247 = vpop.permute.xlu0 %246
  %249 = vset.pattern.permute.xlu0 4
  %250 = vperm.xlu0 %249, %v33
  %v251 = vpop.permute.xlu0 %250
  %253 = vset.pattern.permute.xlu0 4
  %254 = vperm.xlu0 %253, %v34
  %v255 = vpop.permute.xlu0 %254
  %257 = vset.pattern.permute.xlu0 4
  %258 = vperm.xlu0 %257, %v35
  %v259 = vpop.permute.xlu0 %258
  %261 = vset.pattern.permute.xlu0 4
  %262 = vperm.xlu0 %261, %v36
  %v263 = vpop.permute.xlu0 %262
  %265 = vset.pattern.permute.xlu0 4
  %266 = vperm.xlu0 %265, %v37
  %v267 = vpop.permute.xlu0 %266
  %269 = vset.pattern.permute.xlu0 4
  %270 = vperm.xlu0 %269, %v38
  %v271 = vpop.permute.xlu0 %270
  %273 = vset.pattern.permute.xlu0 4
  %274 = vperm.xlu0 %273, %v39
  %v275 = vpop.permute.xlu0 %274
  %277 = vset.pattern.permute.xlu0 4
  %278 = vperm.xlu0 %277, %v40
  %v279 = vpop.permute.xlu0 %278
  %v281 = vadd.f32 %v235, %v221
  %v282 = vadd.f32 %v239, %v222
  %v283 = vadd.f32 %v243, %v223
  %v284 = vadd.f32 %v247, %v224
  %v285 = vadd.f32 %v251, %v225
  %v286 = vadd.f32 %v255, %v226
  %v287 = vadd.f32 %v259, %v227
  %v288 = vadd.f32 %v263, %v228
  %v289 = vadd.f32 %v267, %v229
  %v290 = vadd.f32 %v271, %v230
  %v291 = vadd.f32 %v275, %v231
  %v292 = vadd.f32 %v279, %v232
  %293 = vset.pattern.permute.xlu0 2
  %294 = vperm.xlu0 %293, %v29
  %v295 = vpop.permute.xlu0 %294
  %297 = vset.pattern.permute.xlu0 2
  %298 = vperm.xlu0 %297, %v30
  %v299 = vpop.permute.xlu0 %298
  %301 = vset.pattern.permute.xlu0 2
  %302 = vperm.xlu0 %301, %v31
  %v303 = vpop.permute.xlu0 %302
  %305 = vset.pattern.permute.xlu0 2
  %306 = vperm.xlu0 %305, %v32
  %v307 = vpop.permute.xlu0 %306
  %309 = vset.pattern.permute.xlu0 2
  %310 = vperm.xlu0 %309, %v33
  %v311 = vpop.permute.xlu0 %310
  %313 = vset.pattern.permute.xlu0 2
  %314 = vperm.xlu0 %313, %v34
  %v315 = vpop.permute.xlu0 %314
  %317 = vset.pattern.permute.xlu0 2
  %318 = vperm.xlu0 %317, %v35
  %v319 = vpop.permute.xlu0 %318
  %321 = vset.pattern.permute.xlu0 2
  %322 = vperm.xlu0 %321, %v36
  %v323 = vpop.permute.xlu0 %322
  %325 = vset.pattern.permute.xlu0 2
  %326 = vperm.xlu0 %325, %v37
  %v327 = vpop.permute.xlu0 %326
  %329 = vset.pattern.permute.xlu0 2
  %330 = vperm.xlu0 %329, %v38
  %v331 = vpop.permute.xlu0 %330
  %333 = vset.pattern.permute.xlu0 2
  %334 = vperm.xlu0 %333, %v39
  %v335 = vpop.permute.xlu0 %334
  %337 = vset.pattern.permute.xlu0 2
  %338 = vperm.xlu0 %337, %v40
  %v339 = vpop.permute.xlu0 %338
  %v341 = vmul.f32 %v295, %v17
  %v342 = vmul.f32 %v299, %v18
  %v343 = vmul.f32 %v303, %v19
  %v344 = vmul.f32 %v307, %v20
  %v345 = vmul.f32 %v311, %v21
  %v346 = vmul.f32 %v315, %v22
  %v347 = vmul.f32 %v319, %v23
  %v348 = vmul.f32 %v323, %v24
  %v349 = vmul.f32 %v327, %v25
  %v350 = vmul.f32 %v331, %v26
  %v351 = vmul.f32 %v335, %v27
  %v352 = vmul.f32 %v339, %v28
  %353 = vset.pattern.permute.xlu0 5
  %354 = vperm.xlu0 %353, %v29
  %v355 = vpop.permute.xlu0 %354
  %357 = vset.pattern.permute.xlu0 5
  %358 = vperm.xlu0 %357, %v30
  %v359 = vpop.permute.xlu0 %358
  %361 = vset.pattern.permute.xlu0 5
  %362 = vperm.xlu0 %361, %v31
  %v363 = vpop.permute.xlu0 %362
  %365 = vset.pattern.permute.xlu0 5
  %366 = vperm.xlu0 %365, %v32
  %v367 = vpop.permute.xlu0 %366
  %369 = vset.pattern.permute.xlu0 5
  %370 = vperm.xlu0 %369, %v33
  %v371 = vpop.permute.xlu0 %370
  %373 = vset.pattern.permute.xlu0 5
  %374 = vperm.xlu0 %373, %v34
  %v375 = vpop.permute.xlu0 %374
  %377 = vset.pattern.permute.xlu0 5
  %378 = vperm.xlu0 %377, %v35
  %v379 = vpop.permute.xlu0 %378
  %381 = vset.pattern.permute.xlu0 5
  %382 = vperm.xlu0 %381, %v36
  %v383 = vpop.permute.xlu0 %382
  %385 = vset.pattern.permute.xlu0 5
  %386 = vperm.xlu0 %385, %v37
  %v387 = vpop.permute.xlu0 %386
  %389 = vset.pattern.permute.xlu0 5
  %390 = vperm.xlu0 %389, %v38
  %v391 = vpop.permute.xlu0 %390
  %393 = vset.pattern.permute.xlu0 5
  %394 = vperm.xlu0 %393, %v39
  %v395 = vpop.permute.xlu0 %394
  %397 = vset.pattern.permute.xlu0 5
  %398 = vperm.xlu0 %397, %v40
  %v399 = vpop.permute.xlu0 %398
  %v401 = vadd.f32 %v355, %v341
  %v402 = vadd.f32 %v359, %v342
  %v403 = vadd.f32 %v363, %v343
  %v404 = vadd.f32 %v367, %v344
  %v405 = vadd.f32 %v371, %v345
  %v406 = vadd.f32 %v375, %v346
  %v407 = vadd.f32 %v379, %v347
  %v408 = vadd.f32 %v383, %v348
  %v409 = vadd.f32 %v387, %v349
  %v410 = vadd.f32 %v391, %v350
  %v411 = vadd.f32 %v395, %v351
  %v412 = vadd.f32 %v399, %v352
  %v413 = vtanh.pop %v161
  %v414 = vtanh.pop %v162
  %v415 = vtanh.pop %v163
  %v416 = vtanh.pop %v164
  %v417 = vtanh.pop %v165
  %v418 = vtanh.pop %v166
  %v419 = vtanh.pop %v167
  %v420 = vtanh.pop %v168
  %v421 = vtanh.pop %v169
  %v422 = vtanh.pop %v170
  %v423 = vtanh.pop %v171
  %v424 = vtanh.pop %v172
  %425 = vset.pattern.permute.xlu0 6
  %426 = vperm.xlu0 %425, %v29
  %v427 = vpop.permute.xlu0 %426
  %429 = vset.pattern.permute.xlu0 6
  %430 = vperm.xlu0 %429, %v30
  %v431 = vpop.permute.xlu0 %430
  %433 = vset.pattern.permute.xlu0 6
  %434 = vperm.xlu0 %433, %v31
  %v435 = vpop.permute.xlu0 %434
  %437 = vset.pattern.permute.xlu0 6
  %438 = vperm.xlu0 %437, %v32
  %v439 = vpop.permute.xlu0 %438
  %441 = vset.pattern.permute.xlu0 6
  %442 = vperm.xlu0 %441, %v33
  %v443 = vpop.permute.xlu0 %442
  %445 = vset.pattern.permute.xlu0 6
  %446 = vperm.xlu0 %445, %v34
  %v447 = vpop.permute.xlu0 %446
  %449 = vset.pattern.permute.xlu0 6
  %450 = vperm.xlu0 %449, %v35
  %v451 = vpop.permute.xlu0 %450
  %453 = vset.pattern.permute.xlu0 6
  %454 = vperm.xlu0 %453, %v36
  %v455 = vpop.permute.xlu0 %454
  %457 = vset.pattern.permute.xlu0 6
  %458 = vperm.xlu0 %457, %v37
  %v459 = vpop.permute.xlu0 %458
  %461 = vset.pattern.permute.xlu0 6
  %462 = vperm.xlu0 %461, %v38
  %v463 = vpop.permute.xlu0 %462
  %465 = vset.pattern.permute.xlu0 6
  %466 = vperm.xlu0 %465, %v39
  %v467 = vpop.permute.xlu0 %466
  %469 = vset.pattern.permute.xlu0 6
  %470 = vperm.xlu0 %469, %v40
  %v471 = vpop.permute.xlu0 %470
  %v473 = vmul.f32 %v427, %v413
  %v474 = vmul.f32 %v431, %v414
  %v475 = vmul.f32 %v435, %v415
  %v476 = vmul.f32 %v439, %v416
  %v477 = vmul.f32 %v443, %v417
  %v478 = vmul.f32 %v447, %v418
  %v479 = vmul.f32 %v451, %v419
  %v480 = vmul.f32 %v455, %v420
  %v481 = vmul.f32 %v459, %v421
  %v482 = vmul.f32 %v463, %v422
  %v483 = vmul.f32 %v467, %v423
  %v484 = vmul.f32 %v471, %v424
  %v485 = vadd.f32 %v161, %v473
  %v486 = vadd.f32 %v162, %v474
  %v487 = vadd.f32 %v163, %v475
  %v488 = vadd.f32 %v164, %v476
  %v489 = vadd.f32 %v165, %v477
  %v490 = vadd.f32 %v166, %v478
  %v491 = vadd.f32 %v167, %v479
  %v492 = vadd.f32 %v168, %v480
  %v493 = vadd.f32 %v169, %v481
  %v494 = vadd.f32 %v170, %v482
  %v495 = vadd.f32 %v171, %v483
  %v496 = vadd.f32 %v172, %v484
  %v497 = vtanh.pop %v281
  %v498 = vtanh.pop %v282
  %v499 = vtanh.pop %v283
  %v500 = vtanh.pop %v284
  %v501 = vtanh.pop %v285
  %v502 = vtanh.pop %v286
  %v503 = vtanh.pop %v287
  %v504 = vtanh.pop %v288
  %v505 = vtanh.pop %v289
  %v506 = vtanh.pop %v290
  %v507 = vtanh.pop %v291
  %v508 = vtanh.pop %v292
  %509 = vset.pattern.permute.xlu0 7
  %510 = vperm.xlu0 %509, %v29
  %v511 = vpop.permute.xlu0 %510
  %513 = vset.pattern.permute.xlu0 7
  %514 = vperm.xlu0 %513, %v30
  %v515 = vpop.permute.xlu0 %514
  %517 = vset.pattern.permute.xlu0 7
  %518 = vperm.xlu0 %517, %v31
  %v519 = vpop.permute.xlu0 %518
  %521 = vset.pattern.permute.xlu0 7
  %522 = vperm.xlu0 %521, %v32
  %v523 = vpop.permute.xlu0 %522
  %525 = vset.pattern.permute.xlu0 7
  %526 = vperm.xlu0 %525, %v33
  %v527 = vpop.permute.xlu0 %526
  %529 = vset.pattern.permute.xlu0 7
  %530 = vperm.xlu0 %529, %v34
  %v531 = vpop.permute.xlu0 %530
  %533 = vset.pattern.permute.xlu0 7
  %534 = vperm.xlu0 %533, %v35
  %v535 = vpop.permute.xlu0 %534
  %537 = vset.pattern.permute.xlu0 7
  %538 = vperm.xlu0 %537, %v36
  %v539 = vpop.permute.xlu0 %538
  %541 = vset.pattern.permute.xlu0 7
  %542 = vperm.xlu0 %541, %v37
  %v543 = vpop.permute.xlu0 %542
  %545 = vset.pattern.permute.xlu0 7
  %546 = vperm.xlu0 %545, %v38
  %v547 = vpop.permute.xlu0 %546
  %549 = vset.pattern.permute.xlu0 7
  %550 = vperm.xlu0 %549, %v39
  %v551 = vpop.permute.xlu0 %550
  %553 = vset.pattern.permute.xlu0 7
  %554 = vperm.xlu0 %553, %v40
  %v555 = vpop.permute.xlu0 %554
  %v557 = vmul.f32 %v511, %v497
  %v558 = vmul.f32 %v515, %v498
  %v559 = vmul.f32 %v519, %v499
  %v560 = vmul.f32 %v523, %v500
  %v561 = vmul.f32 %v527, %v501
  %v562 = vmul.f32 %v531, %v502
  %v563 = vmul.f32 %v535, %v503
  %v564 = vmul.f32 %v539, %v504
  %v565 = vmul.f32 %v543, %v505
  %v566 = vmul.f32 %v547, %v506
  %v567 = vmul.f32 %v551, %v507
  %v568 = vmul.f32 %v555, %v508
  %v569 = vadd.f32 %v281, %v557
  %v570 = vadd.f32 %v282, %v558
  %v571 = vadd.f32 %v283, %v559
  %v572 = vadd.f32 %v284, %v560
  %v573 = vadd.f32 %v285, %v561
  %v574 = vadd.f32 %v286, %v562
  %v575 = vadd.f32 %v287, %v563
  %v576 = vadd.f32 %v288, %v564
  %v577 = vadd.f32 %v289, %v565
  %v578 = vadd.f32 %v290, %v566
  %v579 = vadd.f32 %v291, %v567
  %v580 = vadd.f32 %v292, %v568
  %v581 = vtanh.pop %v401
  %v582 = vtanh.pop %v402
  %v583 = vtanh.pop %v403
  %v584 = vtanh.pop %v404
  %v585 = vtanh.pop %v405
  %v586 = vtanh.pop %v406
  %v587 = vtanh.pop %v407
  %v588 = vtanh.pop %v408
  %v589 = vtanh.pop %v409
  %v590 = vtanh.pop %v410
  %v591 = vtanh.pop %v411
  %v592 = vtanh.pop %v412
  %593 = vset.pattern.permute.xlu0 8
  %594 = vperm.xlu0 %593, %v29
  %v595 = vpop.permute.xlu0 %594
  %597 = vset.pattern.permute.xlu0 8
  %598 = vperm.xlu0 %597, %v30
  %v599 = vpop.permute.xlu0 %598
  %601 = vset.pattern.permute.xlu0 8
  %602 = vperm.xlu0 %601, %v31
  %v603 = vpop.permute.xlu0 %602
  %605 = vset.pattern.permute.xlu0 8
  %606 = vperm.xlu0 %605, %v32
  %v607 = vpop.permute.xlu0 %606
  %609 = vset.pattern.permute.xlu0 8
  %610 = vperm.xlu0 %609, %v33
  %v611 = vpop.permute.xlu0 %610
  %613 = vset.pattern.permute.xlu0 8
  %614 = vperm.xlu0 %613, %v34
  %v615 = vpop.permute.xlu0 %614
  %617 = vset.pattern.permute.xlu0 8
  %618 = vperm.xlu0 %617, %v35
  %v619 = vpop.permute.xlu0 %618
  %621 = vset.pattern.permute.xlu0 8
  %622 = vperm.xlu0 %621, %v36
  %v623 = vpop.permute.xlu0 %622
  %625 = vset.pattern.permute.xlu0 8
  %626 = vperm.xlu0 %625, %v37
  %v627 = vpop.permute.xlu0 %626
  %629 = vset.pattern.permute.xlu0 8
  %630 = vperm.xlu0 %629, %v38
  %v631 = vpop.permute.xlu0 %630
  %633 = vset.pattern.permute.xlu0 8
  %634 = vperm.xlu0 %633, %v39
  %v635 = vpop.permute.xlu0 %634
  %637 = vset.pattern.permute.xlu0 8
  %638 = vperm.xlu0 %637, %v40
  %v639 = vpop.permute.xlu0 %638
  %v641 = vmul.f32 %v595, %v581
  %v642 = vmul.f32 %v599, %v582
  %v643 = vmul.f32 %v603, %v583
  %v644 = vmul.f32 %v607, %v584
  %v645 = vmul.f32 %v611, %v585
  %v646 = vmul.f32 %v615, %v586
  %v647 = vmul.f32 %v619, %v587
  %v648 = vmul.f32 %v623, %v588
  %v649 = vmul.f32 %v627, %v589
  %v650 = vmul.f32 %v631, %v590
  %v651 = vmul.f32 %v635, %v591
  %v652 = vmul.f32 %v639, %v592
  %v653 = vadd.f32 %v401, %v641
  %v654 = vadd.f32 %v402, %v642
  %v655 = vadd.f32 %v403, %v643
  %v656 = vadd.f32 %v404, %v644
  %v657 = vadd.f32 %v405, %v645
  %v658 = vadd.f32 %v406, %v646
  %v659 = vadd.f32 %v407, %v647
  %v660 = vadd.f32 %v408, %v648
  %v661 = vadd.f32 %v409, %v649
  %v662 = vadd.f32 %v410, %v650
  %v663 = vadd.f32 %v411, %v651
  %v664 = vadd.f32 %v412, %v652
  %665 = vset.pattern.permute.xlu0 9
  %666 = vperm.xlu0 %665, %v29
  %v667 = vpop.permute.xlu0 %666
  %669 = vset.pattern.permute.xlu0 9
  %670 = vperm.xlu0 %669, %v30
  %v671 = vpop.permute.xlu0 %670
  %673 = vset.pattern.permute.xlu0 9
  %674 = vperm.xlu0 %673, %v31
  %v675 = vpop.permute.xlu0 %674
  %677 = vset.pattern.permute.xlu0 9
  %678 = vperm.xlu0 %677, %v32
  %v679 = vpop.permute.xlu0 %678
  %681 = vset.pattern.permute.xlu0 9
  %682 = vperm.xlu0 %681, %v33
  %v683 = vpop.permute.xlu0 %682
  %685 = vset.pattern.permute.xlu0 9
  %686 = vperm.xlu0 %685, %v34
  %v687 = vpop.permute.xlu0 %686
  %689 = vset.pattern.permute.xlu0 9
  %690 = vperm.xlu0 %689, %v35
  %v691 = vpop.permute.xlu0 %690
  %693 = vset.pattern.permute.xlu0 9
  %694 = vperm.xlu0 %693, %v36
  %v695 = vpop.permute.xlu0 %694
  %697 = vset.pattern.permute.xlu0 9
  %698 = vperm.xlu0 %697, %v37
  %v699 = vpop.permute.xlu0 %698
  %701 = vset.pattern.permute.xlu0 9
  %702 = vperm.xlu0 %701, %v38
  %v703 = vpop.permute.xlu0 %702
  %705 = vset.pattern.permute.xlu0 9
  %706 = vperm.xlu0 %705, %v39
  %v707 = vpop.permute.xlu0 %706
  %709 = vset.pattern.permute.xlu0 9
  %710 = vperm.xlu0 %709, %v40
  %v711 = vpop.permute.xlu0 %710
  %v713 = vmul.f32 %v667, %v485
  %v714 = vmul.f32 %v671, %v486
  %v715 = vmul.f32 %v675, %v487
  %v716 = vmul.f32 %v679, %v488
  %v717 = vmul.f32 %v683, %v489
  %v718 = vmul.f32 %v687, %v490
  %v719 = vmul.f32 %v691, %v491
  %v720 = vmul.f32 %v695, %v492
  %v721 = vmul.f32 %v699, %v493
  %v722 = vmul.f32 %v703, %v494
  %v723 = vmul.f32 %v707, %v495
  %v724 = vmul.f32 %v711, %v496
  %725 = vset.pattern.permute.xlu0 18
  %726 = vperm.xlu0 %725, %v29
  %v727 = vpop.permute.xlu0 %726
  %729 = vset.pattern.permute.xlu0 18
  %730 = vperm.xlu0 %729, %v30
  %v731 = vpop.permute.xlu0 %730
  %733 = vset.pattern.permute.xlu0 18
  %734 = vperm.xlu0 %733, %v31
  %v735 = vpop.permute.xlu0 %734
  %737 = vset.pattern.permute.xlu0 18
  %738 = vperm.xlu0 %737, %v32
  %v739 = vpop.permute.xlu0 %738
  %741 = vset.pattern.permute.xlu0 18
  %742 = vperm.xlu0 %741, %v33
  %v743 = vpop.permute.xlu0 %742
  %745 = vset.pattern.permute.xlu0 18
  %746 = vperm.xlu0 %745, %v34
  %v747 = vpop.permute.xlu0 %746
  %749 = vset.pattern.permute.xlu0 18
  %750 = vperm.xlu0 %749, %v35
  %v751 = vpop.permute.xlu0 %750
  %753 = vset.pattern.permute.xlu0 18
  %754 = vperm.xlu0 %753, %v36
  %v755 = vpop.permute.xlu0 %754
  %757 = vset.pattern.permute.xlu0 18
  %758 = vperm.xlu0 %757, %v37
  %v759 = vpop.permute.xlu0 %758
  %761 = vset.pattern.permute.xlu0 18
  %762 = vperm.xlu0 %761, %v38
  %v763 = vpop.permute.xlu0 %762
  %765 = vset.pattern.permute.xlu0 18
  %766 = vperm.xlu0 %765, %v39
  %v767 = vpop.permute.xlu0 %766
  %769 = vset.pattern.permute.xlu0 18
  %770 = vperm.xlu0 %769, %v40
  %v771 = vpop.permute.xlu0 %770
  %v773 = vadd.f32 %v727, %v713
  %v774 = vadd.f32 %v731, %v714
  %v775 = vadd.f32 %v735, %v715
  %v776 = vadd.f32 %v739, %v716
  %v777 = vadd.f32 %v743, %v717
  %v778 = vadd.f32 %v747, %v718
  %v779 = vadd.f32 %v751, %v719
  %v780 = vadd.f32 %v755, %v720
  %v781 = vadd.f32 %v759, %v721
  %v782 = vadd.f32 %v763, %v722
  %v783 = vadd.f32 %v767, %v723
  %v784 = vadd.f32 %v771, %v724
  %785 = vset.pattern.permute.xlu0 10
  %786 = vperm.xlu0 %785, %v29
  %v787 = vpop.permute.xlu0 %786
  %789 = vset.pattern.permute.xlu0 10
  %790 = vperm.xlu0 %789, %v30
  %v791 = vpop.permute.xlu0 %790
  %793 = vset.pattern.permute.xlu0 10
  %794 = vperm.xlu0 %793, %v31
  %v795 = vpop.permute.xlu0 %794
  %797 = vset.pattern.permute.xlu0 10
  %798 = vperm.xlu0 %797, %v32
  %v799 = vpop.permute.xlu0 %798
  %801 = vset.pattern.permute.xlu0 10
  %802 = vperm.xlu0 %801, %v33
  %v803 = vpop.permute.xlu0 %802
  %805 = vset.pattern.permute.xlu0 10
  %806 = vperm.xlu0 %805, %v34
  %v807 = vpop.permute.xlu0 %806
  %809 = vset.pattern.permute.xlu0 10
  %810 = vperm.xlu0 %809, %v35
  %v811 = vpop.permute.xlu0 %810
  %813 = vset.pattern.permute.xlu0 10
  %814 = vperm.xlu0 %813, %v36
  %v815 = vpop.permute.xlu0 %814
  %817 = vset.pattern.permute.xlu0 10
  %818 = vperm.xlu0 %817, %v37
  %v819 = vpop.permute.xlu0 %818
  %821 = vset.pattern.permute.xlu0 10
  %822 = vperm.xlu0 %821, %v38
  %v823 = vpop.permute.xlu0 %822
  %825 = vset.pattern.permute.xlu0 10
  %826 = vperm.xlu0 %825, %v39
  %v827 = vpop.permute.xlu0 %826
  %829 = vset.pattern.permute.xlu0 10
  %830 = vperm.xlu0 %829, %v40
  %v831 = vpop.permute.xlu0 %830
  %v833 = vmul.f32 %v787, %v569
  %v834 = vmul.f32 %v791, %v570
  %v835 = vmul.f32 %v795, %v571
  %v836 = vmul.f32 %v799, %v572
  %v837 = vmul.f32 %v803, %v573
  %v838 = vmul.f32 %v807, %v574
  %v839 = vmul.f32 %v811, %v575
  %v840 = vmul.f32 %v815, %v576
  %v841 = vmul.f32 %v819, %v577
  %v842 = vmul.f32 %v823, %v578
  %v843 = vmul.f32 %v827, %v579
  %v844 = vmul.f32 %v831, %v580
  %v845 = vadd.f32 %v773, %v833
  %v846 = vadd.f32 %v774, %v834
  %v847 = vadd.f32 %v775, %v835
  %v848 = vadd.f32 %v776, %v836
  %v849 = vadd.f32 %v777, %v837
  %v850 = vadd.f32 %v778, %v838
  %v851 = vadd.f32 %v779, %v839
  %v852 = vadd.f32 %v780, %v840
  %v853 = vadd.f32 %v781, %v841
  %v854 = vadd.f32 %v782, %v842
  %v855 = vadd.f32 %v783, %v843
  %v856 = vadd.f32 %v784, %v844
  %857 = vset.pattern.permute.xlu0 11
  %858 = vperm.xlu0 %857, %v29
  %v859 = vpop.permute.xlu0 %858
  %861 = vset.pattern.permute.xlu0 11
  %862 = vperm.xlu0 %861, %v30
  %v863 = vpop.permute.xlu0 %862
  %865 = vset.pattern.permute.xlu0 11
  %866 = vperm.xlu0 %865, %v31
  %v867 = vpop.permute.xlu0 %866
  %869 = vset.pattern.permute.xlu0 11
  %870 = vperm.xlu0 %869, %v32
  %v871 = vpop.permute.xlu0 %870
  %873 = vset.pattern.permute.xlu0 11
  %874 = vperm.xlu0 %873, %v33
  %v875 = vpop.permute.xlu0 %874
  %877 = vset.pattern.permute.xlu0 11
  %878 = vperm.xlu0 %877, %v34
  %v879 = vpop.permute.xlu0 %878
  %881 = vset.pattern.permute.xlu0 11
  %882 = vperm.xlu0 %881, %v35
  %v883 = vpop.permute.xlu0 %882
  %885 = vset.pattern.permute.xlu0 11
  %886 = vperm.xlu0 %885, %v36
  %v887 = vpop.permute.xlu0 %886
  %889 = vset.pattern.permute.xlu0 11
  %890 = vperm.xlu0 %889, %v37
  %v891 = vpop.permute.xlu0 %890
  %893 = vset.pattern.permute.xlu0 11
  %894 = vperm.xlu0 %893, %v38
  %v895 = vpop.permute.xlu0 %894
  %897 = vset.pattern.permute.xlu0 11
  %898 = vperm.xlu0 %897, %v39
  %v899 = vpop.permute.xlu0 %898
  %901 = vset.pattern.permute.xlu0 11
  %902 = vperm.xlu0 %901, %v40
  %v903 = vpop.permute.xlu0 %902
  %v905 = vmul.f32 %v859, %v653
  %v906 = vmul.f32 %v863, %v654
  %v907 = vmul.f32 %v867, %v655
  %v908 = vmul.f32 %v871, %v656
  %v909 = vmul.f32 %v875, %v657
  %v910 = vmul.f32 %v879, %v658
  %v911 = vmul.f32 %v883, %v659
  %v912 = vmul.f32 %v887, %v660
  %v913 = vmul.f32 %v891, %v661
  %v914 = vmul.f32 %v895, %v662
  %v915 = vmul.f32 %v899, %v663
  %v916 = vmul.f32 %v903, %v664
  %v917 = vadd.f32 %v845, %v905
  %v918 = vadd.f32 %v846, %v906
  %v919 = vadd.f32 %v847, %v907
  %v920 = vadd.f32 %v848, %v908
  %v921 = vadd.f32 %v849, %v909
  %v922 = vadd.f32 %v850, %v910
  %v923 = vadd.f32 %v851, %v911
  %v924 = vadd.f32 %v852, %v912
  %v925 = vadd.f32 %v853, %v913
  %v926 = vadd.f32 %v854, %v914
  %v927 = vadd.f32 %v855, %v915
  %v928 = vadd.f32 %v856, %v916
  %929 = vset.pattern.permute.xlu0 12
  %930 = vperm.xlu0 %929, %v29
  %v931 = vpop.permute.xlu0 %930
  %933 = vset.pattern.permute.xlu0 12
  %934 = vperm.xlu0 %933, %v30
  %v935 = vpop.permute.xlu0 %934
  %937 = vset.pattern.permute.xlu0 12
  %938 = vperm.xlu0 %937, %v31
  %v939 = vpop.permute.xlu0 %938
  %941 = vset.pattern.permute.xlu0 12
  %942 = vperm.xlu0 %941, %v32
  %v943 = vpop.permute.xlu0 %942
  %945 = vset.pattern.permute.xlu0 12
  %946 = vperm.xlu0 %945, %v33
  %v947 = vpop.permute.xlu0 %946
  %949 = vset.pattern.permute.xlu0 12
  %950 = vperm.xlu0 %949, %v34
  %v951 = vpop.permute.xlu0 %950
  %953 = vset.pattern.permute.xlu0 12
  %954 = vperm.xlu0 %953, %v35
  %v955 = vpop.permute.xlu0 %954
  %957 = vset.pattern.permute.xlu0 12
  %958 = vperm.xlu0 %957, %v36
  %v959 = vpop.permute.xlu0 %958
  %961 = vset.pattern.permute.xlu0 12
  %962 = vperm.xlu0 %961, %v37
  %v963 = vpop.permute.xlu0 %962
  %965 = vset.pattern.permute.xlu0 12
  %966 = vperm.xlu0 %965, %v38
  %v967 = vpop.permute.xlu0 %966
  %969 = vset.pattern.permute.xlu0 12
  %970 = vperm.xlu0 %969, %v39
  %v971 = vpop.permute.xlu0 %970
  %973 = vset.pattern.permute.xlu0 12
  %974 = vperm.xlu0 %973, %v40
  %v975 = vpop.permute.xlu0 %974
  %v977 = vmul.f32 %v931, %v485
  %v978 = vmul.f32 %v935, %v486
  %v979 = vmul.f32 %v939, %v487
  %v980 = vmul.f32 %v943, %v488
  %v981 = vmul.f32 %v947, %v489
  %v982 = vmul.f32 %v951, %v490
  %v983 = vmul.f32 %v955, %v491
  %v984 = vmul.f32 %v959, %v492
  %v985 = vmul.f32 %v963, %v493
  %v986 = vmul.f32 %v967, %v494
  %v987 = vmul.f32 %v971, %v495
  %v988 = vmul.f32 %v975, %v496
  %989 = vset.pattern.permute.xlu0 19
  %990 = vperm.xlu0 %989, %v29
  %v991 = vpop.permute.xlu0 %990
  %993 = vset.pattern.permute.xlu0 19
  %994 = vperm.xlu0 %993, %v30
  %v995 = vpop.permute.xlu0 %994
  %997 = vset.pattern.permute.xlu0 19
  %998 = vperm.xlu0 %997, %v31
  %v999 = vpop.permute.xlu0 %998
  %1001 = vset.pattern.permute.xlu0 19
  %1002 = vperm.xlu0 %1001, %v32
  %v1003 = vpop.permute.xlu0 %1002
  %1005 = vset.pattern.permute.xlu0 19
  %1006 = vperm.xlu0 %1005, %v33
  %v1007 = vpop.permute.xlu0 %1006
  %1009 = vset.pattern.permute.xlu0 19
  %1010 = vperm.xlu0 %1009, %v34
  %v1011 = vpop.permute.xlu0 %1010
  %1013 = vset.pattern.permute.xlu0 19
  %1014 = vperm.xlu0 %1013, %v35
  %v1015 = vpop.permute.xlu0 %1014
  %1017 = vset.pattern.permute.xlu0 19
  %1018 = vperm.xlu0 %1017, %v36
  %v1019 = vpop.permute.xlu0 %1018
  %1021 = vset.pattern.permute.xlu0 19
  %1022 = vperm.xlu0 %1021, %v37
  %v1023 = vpop.permute.xlu0 %1022
  %1025 = vset.pattern.permute.xlu0 19
  %1026 = vperm.xlu0 %1025, %v38
  %v1027 = vpop.permute.xlu0 %1026
  %1029 = vset.pattern.permute.xlu0 19
  %1030 = vperm.xlu0 %1029, %v39
  %v1031 = vpop.permute.xlu0 %1030
  %1033 = vset.pattern.permute.xlu0 19
  %1034 = vperm.xlu0 %1033, %v40
  %v1035 = vpop.permute.xlu0 %1034
  %v1037 = vadd.f32 %v991, %v977
  %v1038 = vadd.f32 %v995, %v978
  %v1039 = vadd.f32 %v999, %v979
  %v1040 = vadd.f32 %v1003, %v980
  %v1041 = vadd.f32 %v1007, %v981
  %v1042 = vadd.f32 %v1011, %v982
  %v1043 = vadd.f32 %v1015, %v983
  %v1044 = vadd.f32 %v1019, %v984
  %v1045 = vadd.f32 %v1023, %v985
  %v1046 = vadd.f32 %v1027, %v986
  %v1047 = vadd.f32 %v1031, %v987
  %v1048 = vadd.f32 %v1035, %v988
  %1049 = vset.pattern.permute.xlu0 13
  %1050 = vperm.xlu0 %1049, %v29
  %v1051 = vpop.permute.xlu0 %1050
  %1053 = vset.pattern.permute.xlu0 13
  %1054 = vperm.xlu0 %1053, %v30
  %v1055 = vpop.permute.xlu0 %1054
  %1057 = vset.pattern.permute.xlu0 13
  %1058 = vperm.xlu0 %1057, %v31
  %v1059 = vpop.permute.xlu0 %1058
  %1061 = vset.pattern.permute.xlu0 13
  %1062 = vperm.xlu0 %1061, %v32
  %v1063 = vpop.permute.xlu0 %1062
  %1065 = vset.pattern.permute.xlu0 13
  %1066 = vperm.xlu0 %1065, %v33
  %v1067 = vpop.permute.xlu0 %1066
  %1069 = vset.pattern.permute.xlu0 13
  %1070 = vperm.xlu0 %1069, %v34
  %v1071 = vpop.permute.xlu0 %1070
  %1073 = vset.pattern.permute.xlu0 13
  %1074 = vperm.xlu0 %1073, %v35
  %v1075 = vpop.permute.xlu0 %1074
  %1077 = vset.pattern.permute.xlu0 13
  %1078 = vperm.xlu0 %1077, %v36
  %v1079 = vpop.permute.xlu0 %1078
  %1081 = vset.pattern.permute.xlu0 13
  %1082 = vperm.xlu0 %1081, %v37
  %v1083 = vpop.permute.xlu0 %1082
  %1085 = vset.pattern.permute.xlu0 13
  %1086 = vperm.xlu0 %1085, %v38
  %v1087 = vpop.permute.xlu0 %1086
  %1089 = vset.pattern.permute.xlu0 13
  %1090 = vperm.xlu0 %1089, %v39
  %v1091 = vpop.permute.xlu0 %1090
  %1093 = vset.pattern.permute.xlu0 13
  %1094 = vperm.xlu0 %1093, %v40
  %v1095 = vpop.permute.xlu0 %1094
  %v1097 = vmul.f32 %v1051, %v569
  %v1098 = vmul.f32 %v1055, %v570
  %v1099 = vmul.f32 %v1059, %v571
  %v1100 = vmul.f32 %v1063, %v572
  %v1101 = vmul.f32 %v1067, %v573
  %v1102 = vmul.f32 %v1071, %v574
  %v1103 = vmul.f32 %v1075, %v575
  %v1104 = vmul.f32 %v1079, %v576
  %v1105 = vmul.f32 %v1083, %v577
  %v1106 = vmul.f32 %v1087, %v578
  %v1107 = vmul.f32 %v1091, %v579
  %v1108 = vmul.f32 %v1095, %v580
  %v1109 = vadd.f32 %v1037, %v1097
  %v1110 = vadd.f32 %v1038, %v1098
  %v1111 = vadd.f32 %v1039, %v1099
  %v1112 = vadd.f32 %v1040, %v1100
  %v1113 = vadd.f32 %v1041, %v1101
  %v1114 = vadd.f32 %v1042, %v1102
  %v1115 = vadd.f32 %v1043, %v1103
  %v1116 = vadd.f32 %v1044, %v1104
  %v1117 = vadd.f32 %v1045, %v1105
  %v1118 = vadd.f32 %v1046, %v1106
  %v1119 = vadd.f32 %v1047, %v1107
  %v1120 = vadd.f32 %v1048, %v1108
  %1121 = vset.pattern.permute.xlu0 14
  %1122 = vperm.xlu0 %1121, %v29
  %v1123 = vpop.permute.xlu0 %1122
  %1125 = vset.pattern.permute.xlu0 14
  %1126 = vperm.xlu0 %1125, %v30
  %v1127 = vpop.permute.xlu0 %1126
  %1129 = vset.pattern.permute.xlu0 14
  %1130 = vperm.xlu0 %1129, %v31
  %v1131 = vpop.permute.xlu0 %1130
  %1133 = vset.pattern.permute.xlu0 14
  %1134 = vperm.xlu0 %1133, %v32
  %v1135 = vpop.permute.xlu0 %1134
  %1137 = vset.pattern.permute.xlu0 14
  %1138 = vperm.xlu0 %1137, %v33
  %v1139 = vpop.permute.xlu0 %1138
  %1141 = vset.pattern.permute.xlu0 14
  %1142 = vperm.xlu0 %1141, %v34
  %v1143 = vpop.permute.xlu0 %1142
  %1145 = vset.pattern.permute.xlu0 14
  %1146 = vperm.xlu0 %1145, %v35
  %v1147 = vpop.permute.xlu0 %1146
  %1149 = vset.pattern.permute.xlu0 14
  %1150 = vperm.xlu0 %1149, %v36
  %v1151 = vpop.permute.xlu0 %1150
  %1153 = vset.pattern.permute.xlu0 14
  %1154 = vperm.xlu0 %1153, %v37
  %v1155 = vpop.permute.xlu0 %1154
  %1157 = vset.pattern.permute.xlu0 14
  %1158 = vperm.xlu0 %1157, %v38
  %v1159 = vpop.permute.xlu0 %1158
  %1161 = vset.pattern.permute.xlu0 14
  %1162 = vperm.xlu0 %1161, %v39
  %v1163 = vpop.permute.xlu0 %1162
  %1165 = vset.pattern.permute.xlu0 14
  %1166 = vperm.xlu0 %1165, %v40
  %v1167 = vpop.permute.xlu0 %1166
  %v1169 = vmul.f32 %v1123, %v653
  %v1170 = vmul.f32 %v1127, %v654
  %v1171 = vmul.f32 %v1131, %v655
  %v1172 = vmul.f32 %v1135, %v656
  %v1173 = vmul.f32 %v1139, %v657
  %v1174 = vmul.f32 %v1143, %v658
  %v1175 = vmul.f32 %v1147, %v659
  %v1176 = vmul.f32 %v1151, %v660
  %v1177 = vmul.f32 %v1155, %v661
  %v1178 = vmul.f32 %v1159, %v662
  %v1179 = vmul.f32 %v1163, %v663
  %v1180 = vmul.f32 %v1167, %v664
  %v1181 = vadd.f32 %v1109, %v1169
  %v1182 = vadd.f32 %v1110, %v1170
  %v1183 = vadd.f32 %v1111, %v1171
  %v1184 = vadd.f32 %v1112, %v1172
  %v1185 = vadd.f32 %v1113, %v1173
  %v1186 = vadd.f32 %v1114, %v1174
  %v1187 = vadd.f32 %v1115, %v1175
  %v1188 = vadd.f32 %v1116, %v1176
  %v1189 = vadd.f32 %v1117, %v1177
  %v1190 = vadd.f32 %v1118, %v1178
  %v1191 = vadd.f32 %v1119, %v1179
  %v1192 = vadd.f32 %v1120, %v1180
  %1193 = vset.pattern.permute.xlu0 15
  %1194 = vperm.xlu0 %1193, %v29
  %v1195 = vpop.permute.xlu0 %1194
  %1197 = vset.pattern.permute.xlu0 15
  %1198 = vperm.xlu0 %1197, %v30
  %v1199 = vpop.permute.xlu0 %1198
  %1201 = vset.pattern.permute.xlu0 15
  %1202 = vperm.xlu0 %1201, %v31
  %v1203 = vpop.permute.xlu0 %1202
  %1205 = vset.pattern.permute.xlu0 15
  %1206 = vperm.xlu0 %1205, %v32
  %v1207 = vpop.permute.xlu0 %1206
  %1209 = vset.pattern.permute.xlu0 15
  %1210 = vperm.xlu0 %1209, %v33
  %v1211 = vpop.permute.xlu0 %1210
  %1213 = vset.pattern.permute.xlu0 15
  %1214 = vperm.xlu0 %1213, %v34
  %v1215 = vpop.permute.xlu0 %1214
  %1217 = vset.pattern.permute.xlu0 15
  %1218 = vperm.xlu0 %1217, %v35
  %v1219 = vpop.permute.xlu0 %1218
  %1221 = vset.pattern.permute.xlu0 15
  %1222 = vperm.xlu0 %1221, %v36
  %v1223 = vpop.permute.xlu0 %1222
  %1225 = vset.pattern.permute.xlu0 15
  %1226 = vperm.xlu0 %1225, %v37
  %v1227 = vpop.permute.xlu0 %1226
  %1229 = vset.pattern.permute.xlu0 15
  %1230 = vperm.xlu0 %1229, %v38
  %v1231 = vpop.permute.xlu0 %1230
  %1233 = vset.pattern.permute.xlu0 15
  %1234 = vperm.xlu0 %1233, %v39
  %v1235 = vpop.permute.xlu0 %1234
  %1237 = vset.pattern.permute.xlu0 15
  %1238 = vperm.xlu0 %1237, %v40
  %v1239 = vpop.permute.xlu0 %1238
  %v1241 = vmul.f32 %v1195, %v485
  %v1242 = vmul.f32 %v1199, %v486
  %v1243 = vmul.f32 %v1203, %v487
  %v1244 = vmul.f32 %v1207, %v488
  %v1245 = vmul.f32 %v1211, %v489
  %v1246 = vmul.f32 %v1215, %v490
  %v1247 = vmul.f32 %v1219, %v491
  %v1248 = vmul.f32 %v1223, %v492
  %v1249 = vmul.f32 %v1227, %v493
  %v1250 = vmul.f32 %v1231, %v494
  %v1251 = vmul.f32 %v1235, %v495
  %v1252 = vmul.f32 %v1239, %v496
  %1253 = vset.pattern.permute.xlu0 20
  %1254 = vperm.xlu0 %1253, %v29
  %v1255 = vpop.permute.xlu0 %1254
  %1257 = vset.pattern.permute.xlu0 20
  %1258 = vperm.xlu0 %1257, %v30
  %v1259 = vpop.permute.xlu0 %1258
  %1261 = vset.pattern.permute.xlu0 20
  %1262 = vperm.xlu0 %1261, %v31
  %v1263 = vpop.permute.xlu0 %1262
  %1265 = vset.pattern.permute.xlu0 20
  %1266 = vperm.xlu0 %1265, %v32
  %v1267 = vpop.permute.xlu0 %1266
  %1269 = vset.pattern.permute.xlu0 20
  %1270 = vperm.xlu0 %1269, %v33
  %v1271 = vpop.permute.xlu0 %1270
  %1273 = vset.pattern.permute.xlu0 20
  %1274 = vperm.xlu0 %1273, %v34
  %v1275 = vpop.permute.xlu0 %1274
  %1277 = vset.pattern.permute.xlu0 20
  %1278 = vperm.xlu0 %1277, %v35
  %v1279 = vpop.permute.xlu0 %1278
  %1281 = vset.pattern.permute.xlu0 20
  %1282 = vperm.xlu0 %1281, %v36
  %v1283 = vpop.permute.xlu0 %1282
  %1285 = vset.pattern.permute.xlu0 20
  %1286 = vperm.xlu0 %1285, %v37
  %v1287 = vpop.permute.xlu0 %1286
  %1289 = vset.pattern.permute.xlu0 20
  %1290 = vperm.xlu0 %1289, %v38
  %v1291 = vpop.permute.xlu0 %1290
  %1293 = vset.pattern.permute.xlu0 20
  %1294 = vperm.xlu0 %1293, %v39
  %v1295 = vpop.permute.xlu0 %1294
  %1297 = vset.pattern.permute.xlu0 20
  %1298 = vperm.xlu0 %1297, %v40
  %v1299 = vpop.permute.xlu0 %1298
  %v1301 = vadd.f32 %v1255, %v1241
  %v1302 = vadd.f32 %v1259, %v1242
  %v1303 = vadd.f32 %v1263, %v1243
  %v1304 = vadd.f32 %v1267, %v1244
  %v1305 = vadd.f32 %v1271, %v1245
  %v1306 = vadd.f32 %v1275, %v1246
  %v1307 = vadd.f32 %v1279, %v1247
  %v1308 = vadd.f32 %v1283, %v1248
  %v1309 = vadd.f32 %v1287, %v1249
  %v1310 = vadd.f32 %v1291, %v1250
  %v1311 = vadd.f32 %v1295, %v1251
  %v1312 = vadd.f32 %v1299, %v1252
  %1313 = vset.pattern.permute.xlu0 16
  %1314 = vperm.xlu0 %1313, %v29
  %v1315 = vpop.permute.xlu0 %1314
  %1317 = vset.pattern.permute.xlu0 16
  %1318 = vperm.xlu0 %1317, %v30
  %v1319 = vpop.permute.xlu0 %1318
  %1321 = vset.pattern.permute.xlu0 16
  %1322 = vperm.xlu0 %1321, %v31
  %v1323 = vpop.permute.xlu0 %1322
  %1325 = vset.pattern.permute.xlu0 16
  %1326 = vperm.xlu0 %1325, %v32
  %v1327 = vpop.permute.xlu0 %1326
  %1329 = vset.pattern.permute.xlu0 16
  %1330 = vperm.xlu0 %1329, %v33
  %v1331 = vpop.permute.xlu0 %1330
  %1333 = vset.pattern.permute.xlu0 16
  %1334 = vperm.xlu0 %1333, %v34
  %v1335 = vpop.permute.xlu0 %1334
  %1337 = vset.pattern.permute.xlu0 16
  %1338 = vperm.xlu0 %1337, %v35
  %v1339 = vpop.permute.xlu0 %1338
  %1341 = vset.pattern.permute.xlu0 16
  %1342 = vperm.xlu0 %1341, %v36
  %v1343 = vpop.permute.xlu0 %1342
  %1345 = vset.pattern.permute.xlu0 16
  %1346 = vperm.xlu0 %1345, %v37
  %v1347 = vpop.permute.xlu0 %1346
  %1349 = vset.pattern.permute.xlu0 16
  %1350 = vperm.xlu0 %1349, %v38
  %v1351 = vpop.permute.xlu0 %1350
  %1353 = vset.pattern.permute.xlu0 16
  %1354 = vperm.xlu0 %1353, %v39
  %v1355 = vpop.permute.xlu0 %1354
  %1357 = vset.pattern.permute.xlu0 16
  %1358 = vperm.xlu0 %1357, %v40
  %v1359 = vpop.permute.xlu0 %1358
  %v1361 = vmul.f32 %v1315, %v569
  %v1362 = vmul.f32 %v1319, %v570
  %v1363 = vmul.f32 %v1323, %v571
  %v1364 = vmul.f32 %v1327, %v572
  %v1365 = vmul.f32 %v1331, %v573
  %v1366 = vmul.f32 %v1335, %v574
  %v1367 = vmul.f32 %v1339, %v575
  %v1368 = vmul.f32 %v1343, %v576
  %v1369 = vmul.f32 %v1347, %v577
  %v1370 = vmul.f32 %v1351, %v578
  %v1371 = vmul.f32 %v1355, %v579
  %v1372 = vmul.f32 %v1359, %v580
  %v1373 = vadd.f32 %v1301, %v1361
  %v1374 = vadd.f32 %v1302, %v1362
  %v1375 = vadd.f32 %v1303, %v1363
  %v1376 = vadd.f32 %v1304, %v1364
  %v1377 = vadd.f32 %v1305, %v1365
  %v1378 = vadd.f32 %v1306, %v1366
  %v1379 = vadd.f32 %v1307, %v1367
  %v1380 = vadd.f32 %v1308, %v1368
  %v1381 = vadd.f32 %v1309, %v1369
  %v1382 = vadd.f32 %v1310, %v1370
  %v1383 = vadd.f32 %v1311, %v1371
  %v1384 = vadd.f32 %v1312, %v1372
  %1385 = vset.pattern.permute.xlu0 17
  %1386 = vperm.xlu0 %1385, %v29
  %v1387 = vpop.permute.xlu0 %1386
  %1389 = vset.pattern.permute.xlu0 17
  %1390 = vperm.xlu0 %1389, %v30
  %v1391 = vpop.permute.xlu0 %1390
  %1393 = vset.pattern.permute.xlu0 17
  %1394 = vperm.xlu0 %1393, %v31
  %v1395 = vpop.permute.xlu0 %1394
  %1397 = vset.pattern.permute.xlu0 17
  %1398 = vperm.xlu0 %1397, %v32
  %v1399 = vpop.permute.xlu0 %1398
  %1401 = vset.pattern.permute.xlu0 17
  %1402 = vperm.xlu0 %1401, %v33
  %v1403 = vpop.permute.xlu0 %1402
  %1405 = vset.pattern.permute.xlu0 17
  %1406 = vperm.xlu0 %1405, %v34
  %v1407 = vpop.permute.xlu0 %1406
  %1409 = vset.pattern.permute.xlu0 17
  %1410 = vperm.xlu0 %1409, %v35
  %v1411 = vpop.permute.xlu0 %1410
  %1413 = vset.pattern.permute.xlu0 17
  %1414 = vperm.xlu0 %1413, %v36
  %v1415 = vpop.permute.xlu0 %1414
  %1417 = vset.pattern.permute.xlu0 17
  %1418 = vperm.xlu0 %1417, %v37
  %v1419 = vpop.permute.xlu0 %1418
  %1421 = vset.pattern.permute.xlu0 17
  %1422 = vperm.xlu0 %1421, %v38
  %v1423 = vpop.permute.xlu0 %1422
  %1425 = vset.pattern.permute.xlu0 17
  %1426 = vperm.xlu0 %1425, %v39
  %v1427 = vpop.permute.xlu0 %1426
  %1429 = vset.pattern.permute.xlu0 17
  %1430 = vperm.xlu0 %1429, %v40
  %v1431 = vpop.permute.xlu0 %1430
  %v1433 = vmul.f32 %v1387, %v653
  %v1434 = vmul.f32 %v1391, %v654
  %v1435 = vmul.f32 %v1395, %v655
  %v1436 = vmul.f32 %v1399, %v656
  %v1437 = vmul.f32 %v1403, %v657
  %v1438 = vmul.f32 %v1407, %v658
  %v1439 = vmul.f32 %v1411, %v659
  %v1440 = vmul.f32 %v1415, %v660
  %v1441 = vmul.f32 %v1419, %v661
  %v1442 = vmul.f32 %v1423, %v662
  %v1443 = vmul.f32 %v1427, %v663
  %v1444 = vmul.f32 %v1431, %v664
  %v1445 = vadd.f32 %v1373, %v1433
  %v1446 = vadd.f32 %v1374, %v1434
  %v1447 = vadd.f32 %v1375, %v1435
  %v1448 = vadd.f32 %v1376, %v1436
  %v1449 = vadd.f32 %v1377, %v1437
  %v1450 = vadd.f32 %v1378, %v1438
  %v1451 = vadd.f32 %v1379, %v1439
  %v1452 = vadd.f32 %v1380, %v1440
  %v1453 = vadd.f32 %v1381, %v1441
  %v1454 = vadd.f32 %v1382, %v1442
  %v1455 = vadd.f32 %v1383, %v1443
  %v1456 = vadd.f32 %v1384, %v1444
  %v1457 = vtanh.pop %v917
  %v1458 = vtanh.pop %v918
  %v1459 = vtanh.pop %v919
  %v1460 = vtanh.pop %v920
  %v1461 = vtanh.pop %v921
  %v1462 = vtanh.pop %v922
  %v1463 = vtanh.pop %v923
  %v1464 = vtanh.pop %v924
  %v1465 = vtanh.pop %v925
  %v1466 = vtanh.pop %v926
  %v1467 = vtanh.pop %v927
  %v1468 = vtanh.pop %v928
  %1469 = vset.pattern.permute.xlu0 21
  %1470 = vperm.xlu0 %1469, %v29
  %v1471 = vpop.permute.xlu0 %1470
  %1473 = vset.pattern.permute.xlu0 21
  %1474 = vperm.xlu0 %1473, %v30
  %v1475 = vpop.permute.xlu0 %1474
  %1477 = vset.pattern.permute.xlu0 21
  %1478 = vperm.xlu0 %1477, %v31
  %v1479 = vpop.permute.xlu0 %1478
  %1481 = vset.pattern.permute.xlu0 21
  %1482 = vperm.xlu0 %1481, %v32
  %v1483 = vpop.permute.xlu0 %1482
  %1485 = vset.pattern.permute.xlu0 21
  %1486 = vperm.xlu0 %1485, %v33
  %v1487 = vpop.permute.xlu0 %1486
  %1489 = vset.pattern.permute.xlu0 21
  %1490 = vperm.xlu0 %1489, %v34
  %v1491 = vpop.permute.xlu0 %1490
  %1493 = vset.pattern.permute.xlu0 21
  %1494 = vperm.xlu0 %1493, %v35
  %v1495 = vpop.permute.xlu0 %1494
  %1497 = vset.pattern.permute.xlu0 21
  %1498 = vperm.xlu0 %1497, %v36
  %v1499 = vpop.permute.xlu0 %1498
  %1501 = vset.pattern.permute.xlu0 21
  %1502 = vperm.xlu0 %1501, %v37
  %v1503 = vpop.permute.xlu0 %1502
  %1505 = vset.pattern.permute.xlu0 21
  %1506 = vperm.xlu0 %1505, %v38
  %v1507 = vpop.permute.xlu0 %1506
  %1509 = vset.pattern.permute.xlu0 21
  %1510 = vperm.xlu0 %1509, %v39
  %v1511 = vpop.permute.xlu0 %1510
  %1513 = vset.pattern.permute.xlu0 21
  %1514 = vperm.xlu0 %1513, %v40
  %v1515 = vpop.permute.xlu0 %1514
  %v1517 = vmul.f32 %v1471, %v1457
  %v1518 = vmul.f32 %v1475, %v1458
  %v1519 = vmul.f32 %v1479, %v1459
  %v1520 = vmul.f32 %v1483, %v1460
  %v1521 = vmul.f32 %v1487, %v1461
  %v1522 = vmul.f32 %v1491, %v1462
  %v1523 = vmul.f32 %v1495, %v1463
  %v1524 = vmul.f32 %v1499, %v1464
  %v1525 = vmul.f32 %v1503, %v1465
  %v1526 = vmul.f32 %v1507, %v1466
  %v1527 = vmul.f32 %v1511, %v1467
  %v1528 = vmul.f32 %v1515, %v1468
  %v1529 = vadd.f32 %v917, %v1517
  %v1530 = vadd.f32 %v918, %v1518
  %v1531 = vadd.f32 %v919, %v1519
  %v1532 = vadd.f32 %v920, %v1520
  %v1533 = vadd.f32 %v921, %v1521
  %v1534 = vadd.f32 %v922, %v1522
  %v1535 = vadd.f32 %v923, %v1523
  %v1536 = vadd.f32 %v924, %v1524
  %v1537 = vadd.f32 %v925, %v1525
  %v1538 = vadd.f32 %v926, %v1526
  %v1539 = vadd.f32 %v927, %v1527
  %v1540 = vadd.f32 %v928, %v1528
  %v1541 = vtanh.pop %v1181
  %v1542 = vtanh.pop %v1182
  %v1543 = vtanh.pop %v1183
  %v1544 = vtanh.pop %v1184
  %v1545 = vtanh.pop %v1185
  %v1546 = vtanh.pop %v1186
  %v1547 = vtanh.pop %v1187
  %v1548 = vtanh.pop %v1188
  %v1549 = vtanh.pop %v1189
  %v1550 = vtanh.pop %v1190
  %v1551 = vtanh.pop %v1191
  %v1552 = vtanh.pop %v1192
  %1553 = vset.pattern.permute.xlu0 22
  %1554 = vperm.xlu0 %1553, %v29
  %v1555 = vpop.permute.xlu0 %1554
  %1557 = vset.pattern.permute.xlu0 22
  %1558 = vperm.xlu0 %1557, %v30
  %v1559 = vpop.permute.xlu0 %1558
  %1561 = vset.pattern.permute.xlu0 22
  %1562 = vperm.xlu0 %1561, %v31
  %v1563 = vpop.permute.xlu0 %1562
  %1565 = vset.pattern.permute.xlu0 22
  %1566 = vperm.xlu0 %1565, %v32
  %v1567 = vpop.permute.xlu0 %1566
  %1569 = vset.pattern.permute.xlu0 22
  %1570 = vperm.xlu0 %1569, %v33
  %v1571 = vpop.permute.xlu0 %1570
  %1573 = vset.pattern.permute.xlu0 22
  %1574 = vperm.xlu0 %1573, %v34
  %v1575 = vpop.permute.xlu0 %1574
  %1577 = vset.pattern.permute.xlu0 22
  %1578 = vperm.xlu0 %1577, %v35
  %v1579 = vpop.permute.xlu0 %1578
  %1581 = vset.pattern.permute.xlu0 22
  %1582 = vperm.xlu0 %1581, %v36
  %v1583 = vpop.permute.xlu0 %1582
  %1585 = vset.pattern.permute.xlu0 22
  %1586 = vperm.xlu0 %1585, %v37
  %v1587 = vpop.permute.xlu0 %1586
  %1589 = vset.pattern.permute.xlu0 22
  %1590 = vperm.xlu0 %1589, %v38
  %v1591 = vpop.permute.xlu0 %1590
  %1593 = vset.pattern.permute.xlu0 22
  %1594 = vperm.xlu0 %1593, %v39
  %v1595 = vpop.permute.xlu0 %1594
  %1597 = vset.pattern.permute.xlu0 22
  %1598 = vperm.xlu0 %1597, %v40
  %v1599 = vpop.permute.xlu0 %1598
  %v1601 = vmul.f32 %v1555, %v1541
  %v1602 = vmul.f32 %v1559, %v1542
  %v1603 = vmul.f32 %v1563, %v1543
  %v1604 = vmul.f32 %v1567, %v1544
  %v1605 = vmul.f32 %v1571, %v1545
  %v1606 = vmul.f32 %v1575, %v1546
  %v1607 = vmul.f32 %v1579, %v1547
  %v1608 = vmul.f32 %v1583, %v1548
  %v1609 = vmul.f32 %v1587, %v1549
  %v1610 = vmul.f32 %v1591, %v1550
  %v1611 = vmul.f32 %v1595, %v1551
  %v1612 = vmul.f32 %v1599, %v1552
  %v1613 = vadd.f32 %v1181, %v1601
  %v1614 = vadd.f32 %v1182, %v1602
  %v1615 = vadd.f32 %v1183, %v1603
  %v1616 = vadd.f32 %v1184, %v1604
  %v1617 = vadd.f32 %v1185, %v1605
  %v1618 = vadd.f32 %v1186, %v1606
  %v1619 = vadd.f32 %v1187, %v1607
  %v1620 = vadd.f32 %v1188, %v1608
  %v1621 = vadd.f32 %v1189, %v1609
  %v1622 = vadd.f32 %v1190, %v1610
  %v1623 = vadd.f32 %v1191, %v1611
  %v1624 = vadd.f32 %v1192, %v1612
  %v1625 = vtanh.pop %v1445
  %v1626 = vtanh.pop %v1446
  %v1627 = vtanh.pop %v1447
  %v1628 = vtanh.pop %v1448
  %v1629 = vtanh.pop %v1449
  %v1630 = vtanh.pop %v1450
  %v1631 = vtanh.pop %v1451
  %v1632 = vtanh.pop %v1452
  %v1633 = vtanh.pop %v1453
  %v1634 = vtanh.pop %v1454
  %v1635 = vtanh.pop %v1455
  %v1636 = vtanh.pop %v1456
  %1637 = vset.pattern.permute.xlu0 23
  %1638 = vperm.xlu0 %1637, %v29
  %v1639 = vpop.permute.xlu0 %1638
  %1641 = vset.pattern.permute.xlu0 23
  %1642 = vperm.xlu0 %1641, %v30
  %v1643 = vpop.permute.xlu0 %1642
  %1645 = vset.pattern.permute.xlu0 23
  %1646 = vperm.xlu0 %1645, %v31
  %v1647 = vpop.permute.xlu0 %1646
  %1649 = vset.pattern.permute.xlu0 23
  %1650 = vperm.xlu0 %1649, %v32
  %v1651 = vpop.permute.xlu0 %1650
  %1653 = vset.pattern.permute.xlu0 23
  %1654 = vperm.xlu0 %1653, %v33
  %v1655 = vpop.permute.xlu0 %1654
  %1657 = vset.pattern.permute.xlu0 23
  %1658 = vperm.xlu0 %1657, %v34
  %v1659 = vpop.permute.xlu0 %1658
  %1661 = vset.pattern.permute.xlu0 23
  %1662 = vperm.xlu0 %1661, %v35
  %v1663 = vpop.permute.xlu0 %1662
  %1665 = vset.pattern.permute.xlu0 23
  %1666 = vperm.xlu0 %1665, %v36
  %v1667 = vpop.permute.xlu0 %1666
  %1669 = vset.pattern.permute.xlu0 23
  %1670 = vperm.xlu0 %1669, %v37
  %v1671 = vpop.permute.xlu0 %1670
  %1673 = vset.pattern.permute.xlu0 23
  %1674 = vperm.xlu0 %1673, %v38
  %v1675 = vpop.permute.xlu0 %1674
  %1677 = vset.pattern.permute.xlu0 23
  %1678 = vperm.xlu0 %1677, %v39
  %v1679 = vpop.permute.xlu0 %1678
  %1681 = vset.pattern.permute.xlu0 23
  %1682 = vperm.xlu0 %1681, %v40
  %v1683 = vpop.permute.xlu0 %1682
  %v1685 = vmul.f32 %v1639, %v1625
  %v1686 = vmul.f32 %v1643, %v1626
  %v1687 = vmul.f32 %v1647, %v1627
  %v1688 = vmul.f32 %v1651, %v1628
  %v1689 = vmul.f32 %v1655, %v1629
  %v1690 = vmul.f32 %v1659, %v1630
  %v1691 = vmul.f32 %v1663, %v1631
  %v1692 = vmul.f32 %v1667, %v1632
  %v1693 = vmul.f32 %v1671, %v1633
  %v1694 = vmul.f32 %v1675, %v1634
  %v1695 = vmul.f32 %v1679, %v1635
  %v1696 = vmul.f32 %v1683, %v1636
  %v1697 = vadd.f32 %v1445, %v1685
  %v1698 = vadd.f32 %v1446, %v1686
  %v1699 = vadd.f32 %v1447, %v1687
  %v1700 = vadd.f32 %v1448, %v1688
  %v1701 = vadd.f32 %v1449, %v1689
  %v1702 = vadd.f32 %v1450, %v1690
  %v1703 = vadd.f32 %v1451, %v1691
  %v1704 = vadd.f32 %v1452, %v1692
  %v1705 = vadd.f32 %v1453, %v1693
  %v1706 = vadd.f32 %v1454, %v1694
  %v1707 = vadd.f32 %v1455, %v1695
  %v1708 = vadd.f32 %v1456, %v1696
  %1709 = vset.pattern.permute.xlu0 24
  %1710 = vperm.xlu0 %1709, %v29
  %v1711 = vpop.permute.xlu0 %1710
  %1713 = vset.pattern.permute.xlu0 24
  %1714 = vperm.xlu0 %1713, %v30
  %v1715 = vpop.permute.xlu0 %1714
  %1717 = vset.pattern.permute.xlu0 24
  %1718 = vperm.xlu0 %1717, %v31
  %v1719 = vpop.permute.xlu0 %1718
  %1721 = vset.pattern.permute.xlu0 24
  %1722 = vperm.xlu0 %1721, %v32
  %v1723 = vpop.permute.xlu0 %1722
  %1725 = vset.pattern.permute.xlu0 24
  %1726 = vperm.xlu0 %1725, %v33
  %v1727 = vpop.permute.xlu0 %1726
  %1729 = vset.pattern.permute.xlu0 24
  %1730 = vperm.xlu0 %1729, %v34
  %v1731 = vpop.permute.xlu0 %1730
  %1733 = vset.pattern.permute.xlu0 24
  %1734 = vperm.xlu0 %1733, %v35
  %v1735 = vpop.permute.xlu0 %1734
  %1737 = vset.pattern.permute.xlu0 24
  %1738 = vperm.xlu0 %1737, %v36
  %v1739 = vpop.permute.xlu0 %1738
  %1741 = vset.pattern.permute.xlu0 24
  %1742 = vperm.xlu0 %1741, %v37
  %v1743 = vpop.permute.xlu0 %1742
  %1745 = vset.pattern.permute.xlu0 24
  %1746 = vperm.xlu0 %1745, %v38
  %v1747 = vpop.permute.xlu0 %1746
  %1749 = vset.pattern.permute.xlu0 24
  %1750 = vperm.xlu0 %1749, %v39
  %v1751 = vpop.permute.xlu0 %1750
  %1753 = vset.pattern.permute.xlu0 24
  %1754 = vperm.xlu0 %1753, %v40
  %v1755 = vpop.permute.xlu0 %1754
  %v1757 = vmul.f32 %v1711, %v1529
  %v1758 = vmul.f32 %v1715, %v1530
  %v1759 = vmul.f32 %v1719, %v1531
  %v1760 = vmul.f32 %v1723, %v1532
  %v1761 = vmul.f32 %v1727, %v1533
  %v1762 = vmul.f32 %v1731, %v1534
  %v1763 = vmul.f32 %v1735, %v1535
  %v1764 = vmul.f32 %v1739, %v1536
  %v1765 = vmul.f32 %v1743, %v1537
  %v1766 = vmul.f32 %v1747, %v1538
  %v1767 = vmul.f32 %v1751, %v1539
  %v1768 = vmul.f32 %v1755, %v1540
  %1769 = vset.pattern.permute.xlu0 33
  %1770 = vperm.xlu0 %1769, %v29
  %v1771 = vpop.permute.xlu0 %1770
  %1773 = vset.pattern.permute.xlu0 33
  %1774 = vperm.xlu0 %1773, %v30
  %v1775 = vpop.permute.xlu0 %1774
  %1777 = vset.pattern.permute.xlu0 33
  %1778 = vperm.xlu0 %1777, %v31
  %v1779 = vpop.permute.xlu0 %1778
  %1781 = vset.pattern.permute.xlu0 33
  %1782 = vperm.xlu0 %1781, %v32
  %v1783 = vpop.permute.xlu0 %1782
  %1785 = vset.pattern.permute.xlu0 33
  %1786 = vperm.xlu0 %1785, %v33
  %v1787 = vpop.permute.xlu0 %1786
  %1789 = vset.pattern.permute.xlu0 33
  %1790 = vperm.xlu0 %1789, %v34
  %v1791 = vpop.permute.xlu0 %1790
  %1793 = vset.pattern.permute.xlu0 33
  %1794 = vperm.xlu0 %1793, %v35
  %v1795 = vpop.permute.xlu0 %1794
  %1797 = vset.pattern.permute.xlu0 33
  %1798 = vperm.xlu0 %1797, %v36
  %v1799 = vpop.permute.xlu0 %1798
  %1801 = vset.pattern.permute.xlu0 33
  %1802 = vperm.xlu0 %1801, %v37
  %v1803 = vpop.permute.xlu0 %1802
  %1805 = vset.pattern.permute.xlu0 33
  %1806 = vperm.xlu0 %1805, %v38
  %v1807 = vpop.permute.xlu0 %1806
  %1809 = vset.pattern.permute.xlu0 33
  %1810 = vperm.xlu0 %1809, %v39
  %v1811 = vpop.permute.xlu0 %1810
  %1813 = vset.pattern.permute.xlu0 33
  %1814 = vperm.xlu0 %1813, %v40
  %v1815 = vpop.permute.xlu0 %1814
  %v1817 = vadd.f32 %v1771, %v1757
  %v1818 = vadd.f32 %v1775, %v1758
  %v1819 = vadd.f32 %v1779, %v1759
  %v1820 = vadd.f32 %v1783, %v1760
  %v1821 = vadd.f32 %v1787, %v1761
  %v1822 = vadd.f32 %v1791, %v1762
  %v1823 = vadd.f32 %v1795, %v1763
  %v1824 = vadd.f32 %v1799, %v1764
  %v1825 = vadd.f32 %v1803, %v1765
  %v1826 = vadd.f32 %v1807, %v1766
  %v1827 = vadd.f32 %v1811, %v1767
  %v1828 = vadd.f32 %v1815, %v1768
  %1829 = vset.pattern.permute.xlu0 25
  %1830 = vperm.xlu0 %1829, %v29
  %v1831 = vpop.permute.xlu0 %1830
  %1833 = vset.pattern.permute.xlu0 25
  %1834 = vperm.xlu0 %1833, %v30
  %v1835 = vpop.permute.xlu0 %1834
  %1837 = vset.pattern.permute.xlu0 25
  %1838 = vperm.xlu0 %1837, %v31
  %v1839 = vpop.permute.xlu0 %1838
  %1841 = vset.pattern.permute.xlu0 25
  %1842 = vperm.xlu0 %1841, %v32
  %v1843 = vpop.permute.xlu0 %1842
  %1845 = vset.pattern.permute.xlu0 25
  %1846 = vperm.xlu0 %1845, %v33
  %v1847 = vpop.permute.xlu0 %1846
  %1849 = vset.pattern.permute.xlu0 25
  %1850 = vperm.xlu0 %1849, %v34
  %v1851 = vpop.permute.xlu0 %1850
  %1853 = vset.pattern.permute.xlu0 25
  %1854 = vperm.xlu0 %1853, %v35
  %v1855 = vpop.permute.xlu0 %1854
  %1857 = vset.pattern.permute.xlu0 25
  %1858 = vperm.xlu0 %1857, %v36
  %v1859 = vpop.permute.xlu0 %1858
  %1861 = vset.pattern.permute.xlu0 25
  %1862 = vperm.xlu0 %1861, %v37
  %v1863 = vpop.permute.xlu0 %1862
  %1865 = vset.pattern.permute.xlu0 25
  %1866 = vperm.xlu0 %1865, %v38
  %v1867 = vpop.permute.xlu0 %1866
  %1869 = vset.pattern.permute.xlu0 25
  %1870 = vperm.xlu0 %1869, %v39
  %v1871 = vpop.permute.xlu0 %1870
  %1873 = vset.pattern.permute.xlu0 25
  %1874 = vperm.xlu0 %1873, %v40
  %v1875 = vpop.permute.xlu0 %1874
  %v1877 = vmul.f32 %v1831, %v1613
  %v1878 = vmul.f32 %v1835, %v1614
  %v1879 = vmul.f32 %v1839, %v1615
  %v1880 = vmul.f32 %v1843, %v1616
  %v1881 = vmul.f32 %v1847, %v1617
  %v1882 = vmul.f32 %v1851, %v1618
  %v1883 = vmul.f32 %v1855, %v1619
  %v1884 = vmul.f32 %v1859, %v1620
  %v1885 = vmul.f32 %v1863, %v1621
  %v1886 = vmul.f32 %v1867, %v1622
  %v1887 = vmul.f32 %v1871, %v1623
  %v1888 = vmul.f32 %v1875, %v1624
  %v1889 = vadd.f32 %v1817, %v1877
  %v1890 = vadd.f32 %v1818, %v1878
  %v1891 = vadd.f32 %v1819, %v1879
  %v1892 = vadd.f32 %v1820, %v1880
  %v1893 = vadd.f32 %v1821, %v1881
  %v1894 = vadd.f32 %v1822, %v1882
  %v1895 = vadd.f32 %v1823, %v1883
  %v1896 = vadd.f32 %v1824, %v1884
  %v1897 = vadd.f32 %v1825, %v1885
  %v1898 = vadd.f32 %v1826, %v1886
  %v1899 = vadd.f32 %v1827, %v1887
  %v1900 = vadd.f32 %v1828, %v1888
  %1901 = vset.pattern.permute.xlu0 26
  %1902 = vperm.xlu0 %1901, %v29
  %v1903 = vpop.permute.xlu0 %1902
  %1905 = vset.pattern.permute.xlu0 26
  %1906 = vperm.xlu0 %1905, %v30
  %v1907 = vpop.permute.xlu0 %1906
  %1909 = vset.pattern.permute.xlu0 26
  %1910 = vperm.xlu0 %1909, %v31
  %v1911 = vpop.permute.xlu0 %1910
  %1913 = vset.pattern.permute.xlu0 26
  %1914 = vperm.xlu0 %1913, %v32
  %v1915 = vpop.permute.xlu0 %1914
  %1917 = vset.pattern.permute.xlu0 26
  %1918 = vperm.xlu0 %1917, %v33
  %v1919 = vpop.permute.xlu0 %1918
  %1921 = vset.pattern.permute.xlu0 26
  %1922 = vperm.xlu0 %1921, %v34
  %v1923 = vpop.permute.xlu0 %1922
  %1925 = vset.pattern.permute.xlu0 26
  %1926 = vperm.xlu0 %1925, %v35
  %v1927 = vpop.permute.xlu0 %1926
  %1929 = vset.pattern.permute.xlu0 26
  %1930 = vperm.xlu0 %1929, %v36
  %v1931 = vpop.permute.xlu0 %1930
  %1933 = vset.pattern.permute.xlu0 26
  %1934 = vperm.xlu0 %1933, %v37
  %v1935 = vpop.permute.xlu0 %1934
  %1937 = vset.pattern.permute.xlu0 26
  %1938 = vperm.xlu0 %1937, %v38
  %v1939 = vpop.permute.xlu0 %1938
  %1941 = vset.pattern.permute.xlu0 26
  %1942 = vperm.xlu0 %1941, %v39
  %v1943 = vpop.permute.xlu0 %1942
  %1945 = vset.pattern.permute.xlu0 26
  %1946 = vperm.xlu0 %1945, %v40
  %v1947 = vpop.permute.xlu0 %1946
  %v1949 = vmul.f32 %v1903, %v1697
  %v1950 = vmul.f32 %v1907, %v1698
  %v1951 = vmul.f32 %v1911, %v1699
  %v1952 = vmul.f32 %v1915, %v1700
  %v1953 = vmul.f32 %v1919, %v1701
  %v1954 = vmul.f32 %v1923, %v1702
  %v1955 = vmul.f32 %v1927, %v1703
  %v1956 = vmul.f32 %v1931, %v1704
  %v1957 = vmul.f32 %v1935, %v1705
  %v1958 = vmul.f32 %v1939, %v1706
  %v1959 = vmul.f32 %v1943, %v1707
  %v1960 = vmul.f32 %v1947, %v1708
  %v1961 = vadd.f32 %v1889, %v1949
  %v1962 = vadd.f32 %v1890, %v1950
  %v1963 = vadd.f32 %v1891, %v1951
  %v1964 = vadd.f32 %v1892, %v1952
  %v1965 = vadd.f32 %v1893, %v1953
  %v1966 = vadd.f32 %v1894, %v1954
  %v1967 = vadd.f32 %v1895, %v1955
  %v1968 = vadd.f32 %v1896, %v1956
  %v1969 = vadd.f32 %v1897, %v1957
  %v1970 = vadd.f32 %v1898, %v1958
  %v1971 = vadd.f32 %v1899, %v1959
  %v1972 = vadd.f32 %v1900, %v1960
  %1973 = vset.pattern.permute.xlu0 27
  %1974 = vperm.xlu0 %1973, %v29
  %v1975 = vpop.permute.xlu0 %1974
  %1977 = vset.pattern.permute.xlu0 27
  %1978 = vperm.xlu0 %1977, %v30
  %v1979 = vpop.permute.xlu0 %1978
  %1981 = vset.pattern.permute.xlu0 27
  %1982 = vperm.xlu0 %1981, %v31
  %v1983 = vpop.permute.xlu0 %1982
  %1985 = vset.pattern.permute.xlu0 27
  %1986 = vperm.xlu0 %1985, %v32
  %v1987 = vpop.permute.xlu0 %1986
  %1989 = vset.pattern.permute.xlu0 27
  %1990 = vperm.xlu0 %1989, %v33
  %v1991 = vpop.permute.xlu0 %1990
  %1993 = vset.pattern.permute.xlu0 27
  %1994 = vperm.xlu0 %1993, %v34
  %v1995 = vpop.permute.xlu0 %1994
  %1997 = vset.pattern.permute.xlu0 27
  %1998 = vperm.xlu0 %1997, %v35
  %v1999 = vpop.permute.xlu0 %1998
  %2001 = vset.pattern.permute.xlu0 27
  %2002 = vperm.xlu0 %2001, %v36
  %v2003 = vpop.permute.xlu0 %2002
  %2005 = vset.pattern.permute.xlu0 27
  %2006 = vperm.xlu0 %2005, %v37
  %v2007 = vpop.permute.xlu0 %2006
  %2009 = vset.pattern.permute.xlu0 27
  %2010 = vperm.xlu0 %2009, %v38
  %v2011 = vpop.permute.xlu0 %2010
  %2013 = vset.pattern.permute.xlu0 27
  %2014 = vperm.xlu0 %2013, %v39
  %v2015 = vpop.permute.xlu0 %2014
  %2017 = vset.pattern.permute.xlu0 27
  %2018 = vperm.xlu0 %2017, %v40
  %v2019 = vpop.permute.xlu0 %2018
  %v2021 = vmul.f32 %v1975, %v1529
  %v2022 = vmul.f32 %v1979, %v1530
  %v2023 = vmul.f32 %v1983, %v1531
  %v2024 = vmul.f32 %v1987, %v1532
  %v2025 = vmul.f32 %v1991, %v1533
  %v2026 = vmul.f32 %v1995, %v1534
  %v2027 = vmul.f32 %v1999, %v1535
  %v2028 = vmul.f32 %v2003, %v1536
  %v2029 = vmul.f32 %v2007, %v1537
  %v2030 = vmul.f32 %v2011, %v1538
  %v2031 = vmul.f32 %v2015, %v1539
  %v2032 = vmul.f32 %v2019, %v1540
  %2033 = vset.pattern.permute.xlu0 34
  %2034 = vperm.xlu0 %2033, %v29
  %v2035 = vpop.permute.xlu0 %2034
  %2037 = vset.pattern.permute.xlu0 34
  %2038 = vperm.xlu0 %2037, %v30
  %v2039 = vpop.permute.xlu0 %2038
  %2041 = vset.pattern.permute.xlu0 34
  %2042 = vperm.xlu0 %2041, %v31
  %v2043 = vpop.permute.xlu0 %2042
  %2045 = vset.pattern.permute.xlu0 34
  %2046 = vperm.xlu0 %2045, %v32
  %v2047 = vpop.permute.xlu0 %2046
  %2049 = vset.pattern.permute.xlu0 34
  %2050 = vperm.xlu0 %2049, %v33
  %v2051 = vpop.permute.xlu0 %2050
  %2053 = vset.pattern.permute.xlu0 34
  %2054 = vperm.xlu0 %2053, %v34
  %v2055 = vpop.permute.xlu0 %2054
  %2057 = vset.pattern.permute.xlu0 34
  %2058 = vperm.xlu0 %2057, %v35
  %v2059 = vpop.permute.xlu0 %2058
  %2061 = vset.pattern.permute.xlu0 34
  %2062 = vperm.xlu0 %2061, %v36
  %v2063 = vpop.permute.xlu0 %2062
  %2065 = vset.pattern.permute.xlu0 34
  %2066 = vperm.xlu0 %2065, %v37
  %v2067 = vpop.permute.xlu0 %2066
  %2069 = vset.pattern.permute.xlu0 34
  %2070 = vperm.xlu0 %2069, %v38
  %v2071 = vpop.permute.xlu0 %2070
  %2073 = vset.pattern.permute.xlu0 34
  %2074 = vperm.xlu0 %2073, %v39
  %v2075 = vpop.permute.xlu0 %2074
  %2077 = vset.pattern.permute.xlu0 34
  %2078 = vperm.xlu0 %2077, %v40
  %v2079 = vpop.permute.xlu0 %2078
  %v2081 = vadd.f32 %v2035, %v2021
  %v2082 = vadd.f32 %v2039, %v2022
  %v2083 = vadd.f32 %v2043, %v2023
  %v2084 = vadd.f32 %v2047, %v2024
  %v2085 = vadd.f32 %v2051, %v2025
  %v2086 = vadd.f32 %v2055, %v2026
  %v2087 = vadd.f32 %v2059, %v2027
  %v2088 = vadd.f32 %v2063, %v2028
  %v2089 = vadd.f32 %v2067, %v2029
  %v2090 = vadd.f32 %v2071, %v2030
  %v2091 = vadd.f32 %v2075, %v2031
  %v2092 = vadd.f32 %v2079, %v2032
  %2093 = vset.pattern.permute.xlu0 28
  %2094 = vperm.xlu0 %2093, %v29
  %v2095 = vpop.permute.xlu0 %2094
  %2097 = vset.pattern.permute.xlu0 28
  %2098 = vperm.xlu0 %2097, %v30
  %v2099 = vpop.permute.xlu0 %2098
  %2101 = vset.pattern.permute.xlu0 28
  %2102 = vperm.xlu0 %2101, %v31
  %v2103 = vpop.permute.xlu0 %2102
  %2105 = vset.pattern.permute.xlu0 28
  %2106 = vperm.xlu0 %2105, %v32
  %v2107 = vpop.permute.xlu0 %2106
  %2109 = vset.pattern.permute.xlu0 28
  %2110 = vperm.xlu0 %2109, %v33
  %v2111 = vpop.permute.xlu0 %2110
  %2113 = vset.pattern.permute.xlu0 28
  %2114 = vperm.xlu0 %2113, %v34
  %v2115 = vpop.permute.xlu0 %2114
  %2117 = vset.pattern.permute.xlu0 28
  %2118 = vperm.xlu0 %2117, %v35
  %v2119 = vpop.permute.xlu0 %2118
  %2121 = vset.pattern.permute.xlu0 28
  %2122 = vperm.xlu0 %2121, %v36
  %v2123 = vpop.permute.xlu0 %2122
  %2125 = vset.pattern.permute.xlu0 28
  %2126 = vperm.xlu0 %2125, %v37
  %v2127 = vpop.permute.xlu0 %2126
  %2129 = vset.pattern.permute.xlu0 28
  %2130 = vperm.xlu0 %2129, %v38
  %v2131 = vpop.permute.xlu0 %2130
  %2133 = vset.pattern.permute.xlu0 28
  %2134 = vperm.xlu0 %2133, %v39
  %v2135 = vpop.permute.xlu0 %2134
  %2137 = vset.pattern.permute.xlu0 28
  %2138 = vperm.xlu0 %2137, %v40
  %v2139 = vpop.permute.xlu0 %2138
  %v2141 = vmul.f32 %v2095, %v1613
  %v2142 = vmul.f32 %v2099, %v1614
  %v2143 = vmul.f32 %v2103, %v1615
  %v2144 = vmul.f32 %v2107, %v1616
  %v2145 = vmul.f32 %v2111, %v1617
  %v2146 = vmul.f32 %v2115, %v1618
  %v2147 = vmul.f32 %v2119, %v1619
  %v2148 = vmul.f32 %v2123, %v1620
  %v2149 = vmul.f32 %v2127, %v1621
  %v2150 = vmul.f32 %v2131, %v1622
  %v2151 = vmul.f32 %v2135, %v1623
  %v2152 = vmul.f32 %v2139, %v1624
  %v2153 = vadd.f32 %v2081, %v2141
  %v2154 = vadd.f32 %v2082, %v2142
  %v2155 = vadd.f32 %v2083, %v2143
  %v2156 = vadd.f32 %v2084, %v2144
  %v2157 = vadd.f32 %v2085, %v2145
  %v2158 = vadd.f32 %v2086, %v2146
  %v2159 = vadd.f32 %v2087, %v2147
  %v2160 = vadd.f32 %v2088, %v2148
  %v2161 = vadd.f32 %v2089, %v2149
  %v2162 = vadd.f32 %v2090, %v2150
  %v2163 = vadd.f32 %v2091, %v2151
  %v2164 = vadd.f32 %v2092, %v2152
  %2165 = vset.pattern.permute.xlu0 29
  %2166 = vperm.xlu0 %2165, %v29
  %v2167 = vpop.permute.xlu0 %2166
  %2169 = vset.pattern.permute.xlu0 29
  %2170 = vperm.xlu0 %2169, %v30
  %v2171 = vpop.permute.xlu0 %2170
  %2173 = vset.pattern.permute.xlu0 29
  %2174 = vperm.xlu0 %2173, %v31
  %v2175 = vpop.permute.xlu0 %2174
  %2177 = vset.pattern.permute.xlu0 29
  %2178 = vperm.xlu0 %2177, %v32
  %v2179 = vpop.permute.xlu0 %2178
  %2181 = vset.pattern.permute.xlu0 29
  %2182 = vperm.xlu0 %2181, %v33
  %v2183 = vpop.permute.xlu0 %2182
  %2185 = vset.pattern.permute.xlu0 29
  %2186 = vperm.xlu0 %2185, %v34
  %v2187 = vpop.permute.xlu0 %2186
  %2189 = vset.pattern.permute.xlu0 29
  %2190 = vperm.xlu0 %2189, %v35
  %v2191 = vpop.permute.xlu0 %2190
  %2193 = vset.pattern.permute.xlu0 29
  %2194 = vperm.xlu0 %2193, %v36
  %v2195 = vpop.permute.xlu0 %2194
  %2197 = vset.pattern.permute.xlu0 29
  %2198 = vperm.xlu0 %2197, %v37
  %v2199 = vpop.permute.xlu0 %2198
  %2201 = vset.pattern.permute.xlu0 29
  %2202 = vperm.xlu0 %2201, %v38
  %v2203 = vpop.permute.xlu0 %2202
  %2205 = vset.pattern.permute.xlu0 29
  %2206 = vperm.xlu0 %2205, %v39
  %v2207 = vpop.permute.xlu0 %2206
  %2209 = vset.pattern.permute.xlu0 29
  %2210 = vperm.xlu0 %2209, %v40
  %v2211 = vpop.permute.xlu0 %2210
  %v2213 = vmul.f32 %v2167, %v1697
  %v2214 = vmul.f32 %v2171, %v1698
  %v2215 = vmul.f32 %v2175, %v1699
  %v2216 = vmul.f32 %v2179, %v1700
  %v2217 = vmul.f32 %v2183, %v1701
  %v2218 = vmul.f32 %v2187, %v1702
  %v2219 = vmul.f32 %v2191, %v1703
  %v2220 = vmul.f32 %v2195, %v1704
  %v2221 = vmul.f32 %v2199, %v1705
  %v2222 = vmul.f32 %v2203, %v1706
  %v2223 = vmul.f32 %v2207, %v1707
  %v2224 = vmul.f32 %v2211, %v1708
  %v2225 = vadd.f32 %v2153, %v2213
  %v2226 = vadd.f32 %v2154, %v2214
  %v2227 = vadd.f32 %v2155, %v2215
  %v2228 = vadd.f32 %v2156, %v2216
  %v2229 = vadd.f32 %v2157, %v2217
  %v2230 = vadd.f32 %v2158, %v2218
  %v2231 = vadd.f32 %v2159, %v2219
  %v2232 = vadd.f32 %v2160, %v2220
  %v2233 = vadd.f32 %v2161, %v2221
  %v2234 = vadd.f32 %v2162, %v2222
  %v2235 = vadd.f32 %v2163, %v2223
  %v2236 = vadd.f32 %v2164, %v2224
  %2237 = vset.pattern.permute.xlu0 30
  %2238 = vperm.xlu0 %2237, %v29
  %v2239 = vpop.permute.xlu0 %2238
  %2241 = vset.pattern.permute.xlu0 30
  %2242 = vperm.xlu0 %2241, %v30
  %v2243 = vpop.permute.xlu0 %2242
  %2245 = vset.pattern.permute.xlu0 30
  %2246 = vperm.xlu0 %2245, %v31
  %v2247 = vpop.permute.xlu0 %2246
  %2249 = vset.pattern.permute.xlu0 30
  %2250 = vperm.xlu0 %2249, %v32
  %v2251 = vpop.permute.xlu0 %2250
  %2253 = vset.pattern.permute.xlu0 30
  %2254 = vperm.xlu0 %2253, %v33
  %v2255 = vpop.permute.xlu0 %2254
  %2257 = vset.pattern.permute.xlu0 30
  %2258 = vperm.xlu0 %2257, %v34
  %v2259 = vpop.permute.xlu0 %2258
  %2261 = vset.pattern.permute.xlu0 30
  %2262 = vperm.xlu0 %2261, %v35
  %v2263 = vpop.permute.xlu0 %2262
  %2265 = vset.pattern.permute.xlu0 30
  %2266 = vperm.xlu0 %2265, %v36
  %v2267 = vpop.permute.xlu0 %2266
  %2269 = vset.pattern.permute.xlu0 30
  %2270 = vperm.xlu0 %2269, %v37
  %v2271 = vpop.permute.xlu0 %2270
  %2273 = vset.pattern.permute.xlu0 30
  %2274 = vperm.xlu0 %2273, %v38
  %v2275 = vpop.permute.xlu0 %2274
  %2277 = vset.pattern.permute.xlu0 30
  %2278 = vperm.xlu0 %2277, %v39
  %v2279 = vpop.permute.xlu0 %2278
  %2281 = vset.pattern.permute.xlu0 30
  %2282 = vperm.xlu0 %2281, %v40
  %v2283 = vpop.permute.xlu0 %2282
  %v2285 = vmul.f32 %v2239, %v1529
  %v2286 = vmul.f32 %v2243, %v1530
  %v2287 = vmul.f32 %v2247, %v1531
  %v2288 = vmul.f32 %v2251, %v1532
  %v2289 = vmul.f32 %v2255, %v1533
  %v2290 = vmul.f32 %v2259, %v1534
  %v2291 = vmul.f32 %v2263, %v1535
  %v2292 = vmul.f32 %v2267, %v1536
  %v2293 = vmul.f32 %v2271, %v1537
  %v2294 = vmul.f32 %v2275, %v1538
  %v2295 = vmul.f32 %v2279, %v1539
  %v2296 = vmul.f32 %v2283, %v1540
  %2297 = vset.pattern.permute.xlu0 35
  %2298 = vperm.xlu0 %2297, %v29
  %v2299 = vpop.permute.xlu0 %2298
  %2301 = vset.pattern.permute.xlu0 35
  %2302 = vperm.xlu0 %2301, %v30
  %v2303 = vpop.permute.xlu0 %2302
  %2305 = vset.pattern.permute.xlu0 35
  %2306 = vperm.xlu0 %2305, %v31
  %v2307 = vpop.permute.xlu0 %2306
  %2309 = vset.pattern.permute.xlu0 35
  %2310 = vperm.xlu0 %2309, %v32
  %v2311 = vpop.permute.xlu0 %2310
  %2313 = vset.pattern.permute.xlu0 35
  %2314 = vperm.xlu0 %2313, %v33
  %v2315 = vpop.permute.xlu0 %2314
  %2317 = vset.pattern.permute.xlu0 35
  %2318 = vperm.xlu0 %2317, %v34
  %v2319 = vpop.permute.xlu0 %2318
  %2321 = vset.pattern.permute.xlu0 35
  %2322 = vperm.xlu0 %2321, %v35
  %v2323 = vpop.permute.xlu0 %2322
  %2325 = vset.pattern.permute.xlu0 35
  %2326 = vperm.xlu0 %2325, %v36
  %v2327 = vpop.permute.xlu0 %2326
  %2329 = vset.pattern.permute.xlu0 35
  %2330 = vperm.xlu0 %2329, %v37
  %v2331 = vpop.permute.xlu0 %2330
  %2333 = vset.pattern.permute.xlu0 35
  %2334 = vperm.xlu0 %2333, %v38
  %v2335 = vpop.permute.xlu0 %2334
  %2337 = vset.pattern.permute.xlu0 35
  %2338 = vperm.xlu0 %2337, %v39
  %v2339 = vpop.permute.xlu0 %2338
  %2341 = vset.pattern.permute.xlu0 35
  %2342 = vperm.xlu0 %2341, %v40
  %v2343 = vpop.permute.xlu0 %2342
  %v2345 = vadd.f32 %v2299, %v2285
  %v2346 = vadd.f32 %v2303, %v2286
  %v2347 = vadd.f32 %v2307, %v2287
  %v2348 = vadd.f32 %v2311, %v2288
  %v2349 = vadd.f32 %v2315, %v2289
  %v2350 = vadd.f32 %v2319, %v2290
  %v2351 = vadd.f32 %v2323, %v2291
  %v2352 = vadd.f32 %v2327, %v2292
  %v2353 = vadd.f32 %v2331, %v2293
  %v2354 = vadd.f32 %v2335, %v2294
  %v2355 = vadd.f32 %v2339, %v2295
  %v2356 = vadd.f32 %v2343, %v2296
  %2357 = vset.pattern.permute.xlu0 31
  %2358 = vperm.xlu0 %2357, %v29
  %v2359 = vpop.permute.xlu0 %2358
  %2361 = vset.pattern.permute.xlu0 31
  %2362 = vperm.xlu0 %2361, %v30
  %v2363 = vpop.permute.xlu0 %2362
  %2365 = vset.pattern.permute.xlu0 31
  %2366 = vperm.xlu0 %2365, %v31
  %v2367 = vpop.permute.xlu0 %2366
  %2369 = vset.pattern.permute.xlu0 31
  %2370 = vperm.xlu0 %2369, %v32
  %v2371 = vpop.permute.xlu0 %2370
  %2373 = vset.pattern.permute.xlu0 31
  %2374 = vperm.xlu0 %2373, %v33
  %v2375 = vpop.permute.xlu0 %2374
  %2377 = vset.pattern.permute.xlu0 31
  %2378 = vperm.xlu0 %2377, %v34
  %v2379 = vpop.permute.xlu0 %2378
  %2381 = vset.pattern.permute.xlu0 31
  %2382 = vperm.xlu0 %2381, %v35
  %v2383 = vpop.permute.xlu0 %2382
  %2385 = vset.pattern.permute.xlu0 31
  %2386 = vperm.xlu0 %2385, %v36
  %v2387 = vpop.permute.xlu0 %2386
  %2389 = vset.pattern.permute.xlu0 31
  %2390 = vperm.xlu0 %2389, %v37
  %v2391 = vpop.permute.xlu0 %2390
  %2393 = vset.pattern.permute.xlu0 31
  %2394 = vperm.xlu0 %2393, %v38
  %v2395 = vpop.permute.xlu0 %2394
  %2397 = vset.pattern.permute.xlu0 31
  %2398 = vperm.xlu0 %2397, %v39
  %v2399 = vpop.permute.xlu0 %2398
  %2401 = vset.pattern.permute.xlu0 31
  %2402 = vperm.xlu0 %2401, %v40
  %v2403 = vpop.permute.xlu0 %2402
  %v2405 = vmul.f32 %v2359, %v1613
  %v2406 = vmul.f32 %v2363, %v1614
  %v2407 = vmul.f32 %v2367, %v1615
  %v2408 = vmul.f32 %v2371, %v1616
  %v2409 = vmul.f32 %v2375, %v1617
  %v2410 = vmul.f32 %v2379, %v1618
  %v2411 = vmul.f32 %v2383, %v1619
  %v2412 = vmul.f32 %v2387, %v1620
  %v2413 = vmul.f32 %v2391, %v1621
  %v2414 = vmul.f32 %v2395, %v1622
  %v2415 = vmul.f32 %v2399, %v1623
  %v2416 = vmul.f32 %v2403, %v1624
  %v2417 = vadd.f32 %v2345, %v2405
  %v2418 = vadd.f32 %v2346, %v2406
  %v2419 = vadd.f32 %v2347, %v2407
  %v2420 = vadd.f32 %v2348, %v2408
  %v2421 = vadd.f32 %v2349, %v2409
  %v2422 = vadd.f32 %v2350, %v2410
  %v2423 = vadd.f32 %v2351, %v2411
  %v2424 = vadd.f32 %v2352, %v2412
  %v2425 = vadd.f32 %v2353, %v2413
  %v2426 = vadd.f32 %v2354, %v2414
  %v2427 = vadd.f32 %v2355, %v2415
  %v2428 = vadd.f32 %v2356, %v2416
  %2429 = vset.pattern.permute.xlu0 32
  %2430 = vperm.xlu0 %2429, %v29
  %v2431 = vpop.permute.xlu0 %2430
  %2433 = vset.pattern.permute.xlu0 32
  %2434 = vperm.xlu0 %2433, %v30
  %v2435 = vpop.permute.xlu0 %2434
  %2437 = vset.pattern.permute.xlu0 32
  %2438 = vperm.xlu0 %2437, %v31
  %v2439 = vpop.permute.xlu0 %2438
  %2441 = vset.pattern.permute.xlu0 32
  %2442 = vperm.xlu0 %2441, %v32
  %v2443 = vpop.permute.xlu0 %2442
  %2445 = vset.pattern.permute.xlu0 32
  %2446 = vperm.xlu0 %2445, %v33
  %v2447 = vpop.permute.xlu0 %2446
  %2449 = vset.pattern.permute.xlu0 32
  %2450 = vperm.xlu0 %2449, %v34
  %v2451 = vpop.permute.xlu0 %2450
  %2453 = vset.pattern.permute.xlu0 32
  %2454 = vperm.xlu0 %2453, %v35
  %v2455 = vpop.permute.xlu0 %2454
  %2457 = vset.pattern.permute.xlu0 32
  %2458 = vperm.xlu0 %2457, %v36
  %v2459 = vpop.permute.xlu0 %2458
  %2461 = vset.pattern.permute.xlu0 32
  %2462 = vperm.xlu0 %2461, %v37
  %v2463 = vpop.permute.xlu0 %2462
  %2465 = vset.pattern.permute.xlu0 32
  %2466 = vperm.xlu0 %2465, %v38
  %v2467 = vpop.permute.xlu0 %2466
  %2469 = vset.pattern.permute.xlu0 32
  %2470 = vperm.xlu0 %2469, %v39
  %v2471 = vpop.permute.xlu0 %2470
  %2473 = vset.pattern.permute.xlu0 32
  %2474 = vperm.xlu0 %2473, %v40
  %v2475 = vpop.permute.xlu0 %2474
  %v2477 = vmul.f32 %v2431, %v1697
  %v2478 = vmul.f32 %v2435, %v1698
  %v2479 = vmul.f32 %v2439, %v1699
  %v2480 = vmul.f32 %v2443, %v1700
  %v2481 = vmul.f32 %v2447, %v1701
  %v2482 = vmul.f32 %v2451, %v1702
  %v2483 = vmul.f32 %v2455, %v1703
  %v2484 = vmul.f32 %v2459, %v1704
  %v2485 = vmul.f32 %v2463, %v1705
  %v2486 = vmul.f32 %v2467, %v1706
  %v2487 = vmul.f32 %v2471, %v1707
  %v2488 = vmul.f32 %v2475, %v1708
  %v2489 = vadd.f32 %v2417, %v2477
  %v2490 = vadd.f32 %v2418, %v2478
  %v2491 = vadd.f32 %v2419, %v2479
  %v2492 = vadd.f32 %v2420, %v2480
  %v2493 = vadd.f32 %v2421, %v2481
  %v2494 = vadd.f32 %v2422, %v2482
  %v2495 = vadd.f32 %v2423, %v2483
  %v2496 = vadd.f32 %v2424, %v2484
  %v2497 = vadd.f32 %v2425, %v2485
  %v2498 = vadd.f32 %v2426, %v2486
  %v2499 = vadd.f32 %v2427, %v2487
  %v2500 = vadd.f32 %v2428, %v2488
  %v2501 = vtanh.pop %v1961
  %v2502 = vtanh.pop %v1962
  %v2503 = vtanh.pop %v1963
  %v2504 = vtanh.pop %v1964
  %v2505 = vtanh.pop %v1965
  %v2506 = vtanh.pop %v1966
  %v2507 = vtanh.pop %v1967
  %v2508 = vtanh.pop %v1968
  %v2509 = vtanh.pop %v1969
  %v2510 = vtanh.pop %v1970
  %v2511 = vtanh.pop %v1971
  %v2512 = vtanh.pop %v1972
  %2513 = vset.pattern.permute.xlu0 36
  %2514 = vperm.xlu0 %2513, %v29
  %v2515 = vpop.permute.xlu0 %2514
  %2517 = vset.pattern.permute.xlu0 36
  %2518 = vperm.xlu0 %2517, %v30
  %v2519 = vpop.permute.xlu0 %2518
  %2521 = vset.pattern.permute.xlu0 36
  %2522 = vperm.xlu0 %2521, %v31
  %v2523 = vpop.permute.xlu0 %2522
  %2525 = vset.pattern.permute.xlu0 36
  %2526 = vperm.xlu0 %2525, %v32
  %v2527 = vpop.permute.xlu0 %2526
  %2529 = vset.pattern.permute.xlu0 36
  %2530 = vperm.xlu0 %2529, %v33
  %v2531 = vpop.permute.xlu0 %2530
  %2533 = vset.pattern.permute.xlu0 36
  %2534 = vperm.xlu0 %2533, %v34
  %v2535 = vpop.permute.xlu0 %2534
  %2537 = vset.pattern.permute.xlu0 36
  %2538 = vperm.xlu0 %2537, %v35
  %v2539 = vpop.permute.xlu0 %2538
  %2541 = vset.pattern.permute.xlu0 36
  %2542 = vperm.xlu0 %2541, %v36
  %v2543 = vpop.permute.xlu0 %2542
  %2545 = vset.pattern.permute.xlu0 36
  %2546 = vperm.xlu0 %2545, %v37
  %v2547 = vpop.permute.xlu0 %2546
  %2549 = vset.pattern.permute.xlu0 36
  %2550 = vperm.xlu0 %2549, %v38
  %v2551 = vpop.permute.xlu0 %2550
  %2553 = vset.pattern.permute.xlu0 36
  %2554 = vperm.xlu0 %2553, %v39
  %v2555 = vpop.permute.xlu0 %2554
  %2557 = vset.pattern.permute.xlu0 36
  %2558 = vperm.xlu0 %2557, %v40
  %v2559 = vpop.permute.xlu0 %2558
  %v2561 = vmul.f32 %v2515, %v2501
  %v2562 = vmul.f32 %v2519, %v2502
  %v2563 = vmul.f32 %v2523, %v2503
  %v2564 = vmul.f32 %v2527, %v2504
  %v2565 = vmul.f32 %v2531, %v2505
  %v2566 = vmul.f32 %v2535, %v2506
  %v2567 = vmul.f32 %v2539, %v2507
  %v2568 = vmul.f32 %v2543, %v2508
  %v2569 = vmul.f32 %v2547, %v2509
  %v2570 = vmul.f32 %v2551, %v2510
  %v2571 = vmul.f32 %v2555, %v2511
  %v2572 = vmul.f32 %v2559, %v2512
  %v2573 = vadd.f32 %v1961, %v2561
  %v2574 = vadd.f32 %v1962, %v2562
  %v2575 = vadd.f32 %v1963, %v2563
  %v2576 = vadd.f32 %v1964, %v2564
  %v2577 = vadd.f32 %v1965, %v2565
  %v2578 = vadd.f32 %v1966, %v2566
  %v2579 = vadd.f32 %v1967, %v2567
  %v2580 = vadd.f32 %v1968, %v2568
  %v2581 = vadd.f32 %v1969, %v2569
  %v2582 = vadd.f32 %v1970, %v2570
  %v2583 = vadd.f32 %v1971, %v2571
  %v2584 = vadd.f32 %v1972, %v2572
  %v2585 = vtanh.pop %v2225
  %v2586 = vtanh.pop %v2226
  %v2587 = vtanh.pop %v2227
  %v2588 = vtanh.pop %v2228
  %v2589 = vtanh.pop %v2229
  %v2590 = vtanh.pop %v2230
  %v2591 = vtanh.pop %v2231
  %v2592 = vtanh.pop %v2232
  %v2593 = vtanh.pop %v2233
  %v2594 = vtanh.pop %v2234
  %v2595 = vtanh.pop %v2235
  %v2596 = vtanh.pop %v2236
  %2597 = vset.pattern.permute.xlu0 37
  %2598 = vperm.xlu0 %2597, %v29
  %v2599 = vpop.permute.xlu0 %2598
  %2601 = vset.pattern.permute.xlu0 37
  %2602 = vperm.xlu0 %2601, %v30
  %v2603 = vpop.permute.xlu0 %2602
  %2605 = vset.pattern.permute.xlu0 37
  %2606 = vperm.xlu0 %2605, %v31
  %v2607 = vpop.permute.xlu0 %2606
  %2609 = vset.pattern.permute.xlu0 37
  %2610 = vperm.xlu0 %2609, %v32
  %v2611 = vpop.permute.xlu0 %2610
  %2613 = vset.pattern.permute.xlu0 37
  %2614 = vperm.xlu0 %2613, %v33
  %v2615 = vpop.permute.xlu0 %2614
  %2617 = vset.pattern.permute.xlu0 37
  %2618 = vperm.xlu0 %2617, %v34
  %v2619 = vpop.permute.xlu0 %2618
  %2621 = vset.pattern.permute.xlu0 37
  %2622 = vperm.xlu0 %2621, %v35
  %v2623 = vpop.permute.xlu0 %2622
  %2625 = vset.pattern.permute.xlu0 37
  %2626 = vperm.xlu0 %2625, %v36
  %v2627 = vpop.permute.xlu0 %2626
  %2629 = vset.pattern.permute.xlu0 37
  %2630 = vperm.xlu0 %2629, %v37
  %v2631 = vpop.permute.xlu0 %2630
  %2633 = vset.pattern.permute.xlu0 37
  %2634 = vperm.xlu0 %2633, %v38
  %v2635 = vpop.permute.xlu0 %2634
  %2637 = vset.pattern.permute.xlu0 37
  %2638 = vperm.xlu0 %2637, %v39
  %v2639 = vpop.permute.xlu0 %2638
  %2641 = vset.pattern.permute.xlu0 37
  %2642 = vperm.xlu0 %2641, %v40
  %v2643 = vpop.permute.xlu0 %2642
  %v2645 = vmul.f32 %v2599, %v2585
  %v2646 = vmul.f32 %v2603, %v2586
  %v2647 = vmul.f32 %v2607, %v2587
  %v2648 = vmul.f32 %v2611, %v2588
  %v2649 = vmul.f32 %v2615, %v2589
  %v2650 = vmul.f32 %v2619, %v2590
  %v2651 = vmul.f32 %v2623, %v2591
  %v2652 = vmul.f32 %v2627, %v2592
  %v2653 = vmul.f32 %v2631, %v2593
  %v2654 = vmul.f32 %v2635, %v2594
  %v2655 = vmul.f32 %v2639, %v2595
  %v2656 = vmul.f32 %v2643, %v2596
  %v2657 = vadd.f32 %v2225, %v2645
  %v2658 = vadd.f32 %v2226, %v2646
  %v2659 = vadd.f32 %v2227, %v2647
  %v2660 = vadd.f32 %v2228, %v2648
  %v2661 = vadd.f32 %v2229, %v2649
  %v2662 = vadd.f32 %v2230, %v2650
  %v2663 = vadd.f32 %v2231, %v2651
  %v2664 = vadd.f32 %v2232, %v2652
  %v2665 = vadd.f32 %v2233, %v2653
  %v2666 = vadd.f32 %v2234, %v2654
  %v2667 = vadd.f32 %v2235, %v2655
  %v2668 = vadd.f32 %v2236, %v2656
  %v2669 = vtanh.pop %v2489
  %v2670 = vtanh.pop %v2490
  %v2671 = vtanh.pop %v2491
  %v2672 = vtanh.pop %v2492
  %v2673 = vtanh.pop %v2493
  %v2674 = vtanh.pop %v2494
  %v2675 = vtanh.pop %v2495
  %v2676 = vtanh.pop %v2496
  %v2677 = vtanh.pop %v2497
  %v2678 = vtanh.pop %v2498
  %v2679 = vtanh.pop %v2499
  %v2680 = vtanh.pop %v2500
  %2681 = vset.pattern.permute.xlu0 38
  %2682 = vperm.xlu0 %2681, %v29
  %v2683 = vpop.permute.xlu0 %2682
  %2685 = vset.pattern.permute.xlu0 38
  %2686 = vperm.xlu0 %2685, %v30
  %v2687 = vpop.permute.xlu0 %2686
  %2689 = vset.pattern.permute.xlu0 38
  %2690 = vperm.xlu0 %2689, %v31
  %v2691 = vpop.permute.xlu0 %2690
  %2693 = vset.pattern.permute.xlu0 38
  %2694 = vperm.xlu0 %2693, %v32
  %v2695 = vpop.permute.xlu0 %2694
  %2697 = vset.pattern.permute.xlu0 38
  %2698 = vperm.xlu0 %2697, %v33
  %v2699 = vpop.permute.xlu0 %2698
  %2701 = vset.pattern.permute.xlu0 38
  %2702 = vperm.xlu0 %2701, %v34
  %v2703 = vpop.permute.xlu0 %2702
  %2705 = vset.pattern.permute.xlu0 38
  %2706 = vperm.xlu0 %2705, %v35
  %v2707 = vpop.permute.xlu0 %2706
  %2709 = vset.pattern.permute.xlu0 38
  %2710 = vperm.xlu0 %2709, %v36
  %v2711 = vpop.permute.xlu0 %2710
  %2713 = vset.pattern.permute.xlu0 38
  %2714 = vperm.xlu0 %2713, %v37
  %v2715 = vpop.permute.xlu0 %2714
  %2717 = vset.pattern.permute.xlu0 38
  %2718 = vperm.xlu0 %2717, %v38
  %v2719 = vpop.permute.xlu0 %2718
  %2721 = vset.pattern.permute.xlu0 38
  %2722 = vperm.xlu0 %2721, %v39
  %v2723 = vpop.permute.xlu0 %2722
  %2725 = vset.pattern.permute.xlu0 38
  %2726 = vperm.xlu0 %2725, %v40
  %v2727 = vpop.permute.xlu0 %2726
  %v2729 = vmul.f32 %v2683, %v2669
  %v2730 = vmul.f32 %v2687, %v2670
  %v2731 = vmul.f32 %v2691, %v2671
  %v2732 = vmul.f32 %v2695, %v2672
  %v2733 = vmul.f32 %v2699, %v2673
  %v2734 = vmul.f32 %v2703, %v2674
  %v2735 = vmul.f32 %v2707, %v2675
  %v2736 = vmul.f32 %v2711, %v2676
  %v2737 = vmul.f32 %v2715, %v2677
  %v2738 = vmul.f32 %v2719, %v2678
  %v2739 = vmul.f32 %v2723, %v2679
  %v2740 = vmul.f32 %v2727, %v2680
  %v2741 = vadd.f32 %v2489, %v2729
  %v2742 = vadd.f32 %v2490, %v2730
  %v2743 = vadd.f32 %v2491, %v2731
  %v2744 = vadd.f32 %v2492, %v2732
  %v2745 = vadd.f32 %v2493, %v2733
  %v2746 = vadd.f32 %v2494, %v2734
  %v2747 = vadd.f32 %v2495, %v2735
  %v2748 = vadd.f32 %v2496, %v2736
  %v2749 = vadd.f32 %v2497, %v2737
  %v2750 = vadd.f32 %v2498, %v2738
  %v2751 = vadd.f32 %v2499, %v2739
  %v2752 = vadd.f32 %v2500, %v2740
  %2753 = vset.pattern.permute.xlu0 39
  %2754 = vperm.xlu0 %2753, %v29
  %v2755 = vpop.permute.xlu0 %2754
  %2757 = vset.pattern.permute.xlu0 39
  %2758 = vperm.xlu0 %2757, %v30
  %v2759 = vpop.permute.xlu0 %2758
  %2761 = vset.pattern.permute.xlu0 39
  %2762 = vperm.xlu0 %2761, %v31
  %v2763 = vpop.permute.xlu0 %2762
  %2765 = vset.pattern.permute.xlu0 39
  %2766 = vperm.xlu0 %2765, %v32
  %v2767 = vpop.permute.xlu0 %2766
  %2769 = vset.pattern.permute.xlu0 39
  %2770 = vperm.xlu0 %2769, %v33
  %v2771 = vpop.permute.xlu0 %2770
  %2773 = vset.pattern.permute.xlu0 39
  %2774 = vperm.xlu0 %2773, %v34
  %v2775 = vpop.permute.xlu0 %2774
  %2777 = vset.pattern.permute.xlu0 39
  %2778 = vperm.xlu0 %2777, %v35
  %v2779 = vpop.permute.xlu0 %2778
  %2781 = vset.pattern.permute.xlu0 39
  %2782 = vperm.xlu0 %2781, %v36
  %v2783 = vpop.permute.xlu0 %2782
  %2785 = vset.pattern.permute.xlu0 39
  %2786 = vperm.xlu0 %2785, %v37
  %v2787 = vpop.permute.xlu0 %2786
  %2789 = vset.pattern.permute.xlu0 39
  %2790 = vperm.xlu0 %2789, %v38
  %v2791 = vpop.permute.xlu0 %2790
  %2793 = vset.pattern.permute.xlu0 39
  %2794 = vperm.xlu0 %2793, %v39
  %v2795 = vpop.permute.xlu0 %2794
  %2797 = vset.pattern.permute.xlu0 39
  %2798 = vperm.xlu0 %2797, %v40
  %v2799 = vpop.permute.xlu0 %2798
  %v2801 = vmul.f32 %v2755, %v2573
  %v2802 = vmul.f32 %v2759, %v2574
  %v2803 = vmul.f32 %v2763, %v2575
  %v2804 = vmul.f32 %v2767, %v2576
  %v2805 = vmul.f32 %v2771, %v2577
  %v2806 = vmul.f32 %v2775, %v2578
  %v2807 = vmul.f32 %v2779, %v2579
  %v2808 = vmul.f32 %v2783, %v2580
  %v2809 = vmul.f32 %v2787, %v2581
  %v2810 = vmul.f32 %v2791, %v2582
  %v2811 = vmul.f32 %v2795, %v2583
  %v2812 = vmul.f32 %v2799, %v2584
  %2813 = vset.pattern.permute.xlu0 48
  %2814 = vperm.xlu0 %2813, %v29
  %v2815 = vpop.permute.xlu0 %2814
  %2817 = vset.pattern.permute.xlu0 48
  %2818 = vperm.xlu0 %2817, %v30
  %v2819 = vpop.permute.xlu0 %2818
  %2821 = vset.pattern.permute.xlu0 48
  %2822 = vperm.xlu0 %2821, %v31
  %v2823 = vpop.permute.xlu0 %2822
  %2825 = vset.pattern.permute.xlu0 48
  %2826 = vperm.xlu0 %2825, %v32
  %v2827 = vpop.permute.xlu0 %2826
  %2829 = vset.pattern.permute.xlu0 48
  %2830 = vperm.xlu0 %2829, %v33
  %v2831 = vpop.permute.xlu0 %2830
  %2833 = vset.pattern.permute.xlu0 48
  %2834 = vperm.xlu0 %2833, %v34
  %v2835 = vpop.permute.xlu0 %2834
  %2837 = vset.pattern.permute.xlu0 48
  %2838 = vperm.xlu0 %2837, %v35
  %v2839 = vpop.permute.xlu0 %2838
  %2841 = vset.pattern.permute.xlu0 48
  %2842 = vperm.xlu0 %2841, %v36
  %v2843 = vpop.permute.xlu0 %2842
  %2845 = vset.pattern.permute.xlu0 48
  %2846 = vperm.xlu0 %2845, %v37
  %v2847 = vpop.permute.xlu0 %2846
  %2849 = vset.pattern.permute.xlu0 48
  %2850 = vperm.xlu0 %2849, %v38
  %v2851 = vpop.permute.xlu0 %2850
  %2853 = vset.pattern.permute.xlu0 48
  %2854 = vperm.xlu0 %2853, %v39
  %v2855 = vpop.permute.xlu0 %2854
  %2857 = vset.pattern.permute.xlu0 48
  %2858 = vperm.xlu0 %2857, %v40
  %v2859 = vpop.permute.xlu0 %2858
  %v2861 = vadd.f32 %v2815, %v2801
  %v2862 = vadd.f32 %v2819, %v2802
  %v2863 = vadd.f32 %v2823, %v2803
  %v2864 = vadd.f32 %v2827, %v2804
  %v2865 = vadd.f32 %v2831, %v2805
  %v2866 = vadd.f32 %v2835, %v2806
  %v2867 = vadd.f32 %v2839, %v2807
  %v2868 = vadd.f32 %v2843, %v2808
  %v2869 = vadd.f32 %v2847, %v2809
  %v2870 = vadd.f32 %v2851, %v2810
  %v2871 = vadd.f32 %v2855, %v2811
  %v2872 = vadd.f32 %v2859, %v2812
  %2873 = vset.pattern.permute.xlu0 40
  %2874 = vperm.xlu0 %2873, %v29
  %v2875 = vpop.permute.xlu0 %2874
  %2877 = vset.pattern.permute.xlu0 40
  %2878 = vperm.xlu0 %2877, %v30
  %v2879 = vpop.permute.xlu0 %2878
  %2881 = vset.pattern.permute.xlu0 40
  %2882 = vperm.xlu0 %2881, %v31
  %v2883 = vpop.permute.xlu0 %2882
  %2885 = vset.pattern.permute.xlu0 40
  %2886 = vperm.xlu0 %2885, %v32
  %v2887 = vpop.permute.xlu0 %2886
  %2889 = vset.pattern.permute.xlu0 40
  %2890 = vperm.xlu0 %2889, %v33
  %v2891 = vpop.permute.xlu0 %2890
  %2893 = vset.pattern.permute.xlu0 40
  %2894 = vperm.xlu0 %2893, %v34
  %v2895 = vpop.permute.xlu0 %2894
  %2897 = vset.pattern.permute.xlu0 40
  %2898 = vperm.xlu0 %2897, %v35
  %v2899 = vpop.permute.xlu0 %2898
  %2901 = vset.pattern.permute.xlu0 40
  %2902 = vperm.xlu0 %2901, %v36
  %v2903 = vpop.permute.xlu0 %2902
  %2905 = vset.pattern.permute.xlu0 40
  %2906 = vperm.xlu0 %2905, %v37
  %v2907 = vpop.permute.xlu0 %2906
  %2909 = vset.pattern.permute.xlu0 40
  %2910 = vperm.xlu0 %2909, %v38
  %v2911 = vpop.permute.xlu0 %2910
  %2913 = vset.pattern.permute.xlu0 40
  %2914 = vperm.xlu0 %2913, %v39
  %v2915 = vpop.permute.xlu0 %2914
  %2917 = vset.pattern.permute.xlu0 40
  %2918 = vperm.xlu0 %2917, %v40
  %v2919 = vpop.permute.xlu0 %2918
  %v2921 = vmul.f32 %v2875, %v2657
  %v2922 = vmul.f32 %v2879, %v2658
  %v2923 = vmul.f32 %v2883, %v2659
  %v2924 = vmul.f32 %v2887, %v2660
  %v2925 = vmul.f32 %v2891, %v2661
  %v2926 = vmul.f32 %v2895, %v2662
  %v2927 = vmul.f32 %v2899, %v2663
  %v2928 = vmul.f32 %v2903, %v2664
  %v2929 = vmul.f32 %v2907, %v2665
  %v2930 = vmul.f32 %v2911, %v2666
  %v2931 = vmul.f32 %v2915, %v2667
  %v2932 = vmul.f32 %v2919, %v2668
  %v2933 = vadd.f32 %v2861, %v2921
  %v2934 = vadd.f32 %v2862, %v2922
  %v2935 = vadd.f32 %v2863, %v2923
  %v2936 = vadd.f32 %v2864, %v2924
  %v2937 = vadd.f32 %v2865, %v2925
  %v2938 = vadd.f32 %v2866, %v2926
  %v2939 = vadd.f32 %v2867, %v2927
  %v2940 = vadd.f32 %v2868, %v2928
  %v2941 = vadd.f32 %v2869, %v2929
  %v2942 = vadd.f32 %v2870, %v2930
  %v2943 = vadd.f32 %v2871, %v2931
  %v2944 = vadd.f32 %v2872, %v2932
  %2945 = vset.pattern.permute.xlu0 41
  %2946 = vperm.xlu0 %2945, %v29
  %v2947 = vpop.permute.xlu0 %2946
  %2949 = vset.pattern.permute.xlu0 41
  %2950 = vperm.xlu0 %2949, %v30
  %v2951 = vpop.permute.xlu0 %2950
  %2953 = vset.pattern.permute.xlu0 41
  %2954 = vperm.xlu0 %2953, %v31
  %v2955 = vpop.permute.xlu0 %2954
  %2957 = vset.pattern.permute.xlu0 41
  %2958 = vperm.xlu0 %2957, %v32
  %v2959 = vpop.permute.xlu0 %2958
  %2961 = vset.pattern.permute.xlu0 41
  %2962 = vperm.xlu0 %2961, %v33
  %v2963 = vpop.permute.xlu0 %2962
  %2965 = vset.pattern.permute.xlu0 41
  %2966 = vperm.xlu0 %2965, %v34
  %v2967 = vpop.permute.xlu0 %2966
  %2969 = vset.pattern.permute.xlu0 41
  %2970 = vperm.xlu0 %2969, %v35
  %v2971 = vpop.permute.xlu0 %2970
  %2973 = vset.pattern.permute.xlu0 41
  %2974 = vperm.xlu0 %2973, %v36
  %v2975 = vpop.permute.xlu0 %2974
  %2977 = vset.pattern.permute.xlu0 41
  %2978 = vperm.xlu0 %2977, %v37
  %v2979 = vpop.permute.xlu0 %2978
  %2981 = vset.pattern.permute.xlu0 41
  %2982 = vperm.xlu0 %2981, %v38
  %v2983 = vpop.permute.xlu0 %2982
  %2985 = vset.pattern.permute.xlu0 41
  %2986 = vperm.xlu0 %2985, %v39
  %v2987 = vpop.permute.xlu0 %2986
  %2989 = vset.pattern.permute.xlu0 41
  %2990 = vperm.xlu0 %2989, %v40
  %v2991 = vpop.permute.xlu0 %2990
  %v2993 = vmul.f32 %v2947, %v2741
  %v2994 = vmul.f32 %v2951, %v2742
  %v2995 = vmul.f32 %v2955, %v2743
  %v2996 = vmul.f32 %v2959, %v2744
  %v2997 = vmul.f32 %v2963, %v2745
  %v2998 = vmul.f32 %v2967, %v2746
  %v2999 = vmul.f32 %v2971, %v2747
  %v3000 = vmul.f32 %v2975, %v2748
  %v3001 = vmul.f32 %v2979, %v2749
  %v3002 = vmul.f32 %v2983, %v2750
  %v3003 = vmul.f32 %v2987, %v2751
  %v3004 = vmul.f32 %v2991, %v2752
  %v3005 = vadd.f32 %v2933, %v2993
  %v3006 = vadd.f32 %v2934, %v2994
  %v3007 = vadd.f32 %v2935, %v2995
  %v3008 = vadd.f32 %v2936, %v2996
  %v3009 = vadd.f32 %v2937, %v2997
  %v3010 = vadd.f32 %v2938, %v2998
  %v3011 = vadd.f32 %v2939, %v2999
  %v3012 = vadd.f32 %v2940, %v3000
  %v3013 = vadd.f32 %v2941, %v3001
  %v3014 = vadd.f32 %v2942, %v3002
  %v3015 = vadd.f32 %v2943, %v3003
  %v3016 = vadd.f32 %v2944, %v3004
  %3017 = vset.pattern.permute.xlu0 42
  %3018 = vperm.xlu0 %3017, %v29
  %v3019 = vpop.permute.xlu0 %3018
  %3021 = vset.pattern.permute.xlu0 42
  %3022 = vperm.xlu0 %3021, %v30
  %v3023 = vpop.permute.xlu0 %3022
  %3025 = vset.pattern.permute.xlu0 42
  %3026 = vperm.xlu0 %3025, %v31
  %v3027 = vpop.permute.xlu0 %3026
  %3029 = vset.pattern.permute.xlu0 42
  %3030 = vperm.xlu0 %3029, %v32
  %v3031 = vpop.permute.xlu0 %3030
  %3033 = vset.pattern.permute.xlu0 42
  %3034 = vperm.xlu0 %3033, %v33
  %v3035 = vpop.permute.xlu0 %3034
  %3037 = vset.pattern.permute.xlu0 42
  %3038 = vperm.xlu0 %3037, %v34
  %v3039 = vpop.permute.xlu0 %3038
  %3041 = vset.pattern.permute.xlu0 42
  %3042 = vperm.xlu0 %3041, %v35
  %v3043 = vpop.permute.xlu0 %3042
  %3045 = vset.pattern.permute.xlu0 42
  %3046 = vperm.xlu0 %3045, %v36
  %v3047 = vpop.permute.xlu0 %3046
  %3049 = vset.pattern.permute.xlu0 42
  %3050 = vperm.xlu0 %3049, %v37
  %v3051 = vpop.permute.xlu0 %3050
  %3053 = vset.pattern.permute.xlu0 42
  %3054 = vperm.xlu0 %3053, %v38
  %v3055 = vpop.permute.xlu0 %3054
  %3057 = vset.pattern.permute.xlu0 42
  %3058 = vperm.xlu0 %3057, %v39
  %v3059 = vpop.permute.xlu0 %3058
  %3061 = vset.pattern.permute.xlu0 42
  %3062 = vperm.xlu0 %3061, %v40
  %v3063 = vpop.permute.xlu0 %3062
  %v3065 = vmul.f32 %v3019, %v2573
  %v3066 = vmul.f32 %v3023, %v2574
  %v3067 = vmul.f32 %v3027, %v2575
  %v3068 = vmul.f32 %v3031, %v2576
  %v3069 = vmul.f32 %v3035, %v2577
  %v3070 = vmul.f32 %v3039, %v2578
  %v3071 = vmul.f32 %v3043, %v2579
  %v3072 = vmul.f32 %v3047, %v2580
  %v3073 = vmul.f32 %v3051, %v2581
  %v3074 = vmul.f32 %v3055, %v2582
  %v3075 = vmul.f32 %v3059, %v2583
  %v3076 = vmul.f32 %v3063, %v2584
  %3077 = vset.pattern.permute.xlu0 49
  %3078 = vperm.xlu0 %3077, %v29
  %v3079 = vpop.permute.xlu0 %3078
  %3081 = vset.pattern.permute.xlu0 49
  %3082 = vperm.xlu0 %3081, %v30
  %v3083 = vpop.permute.xlu0 %3082
  %3085 = vset.pattern.permute.xlu0 49
  %3086 = vperm.xlu0 %3085, %v31
  %v3087 = vpop.permute.xlu0 %3086
  %3089 = vset.pattern.permute.xlu0 49
  %3090 = vperm.xlu0 %3089, %v32
  %v3091 = vpop.permute.xlu0 %3090
  %3093 = vset.pattern.permute.xlu0 49
  %3094 = vperm.xlu0 %3093, %v33
  %v3095 = vpop.permute.xlu0 %3094
  %3097 = vset.pattern.permute.xlu0 49
  %3098 = vperm.xlu0 %3097, %v34
  %v3099 = vpop.permute.xlu0 %3098
  %3101 = vset.pattern.permute.xlu0 49
  %3102 = vperm.xlu0 %3101, %v35
  %v3103 = vpop.permute.xlu0 %3102
  %3105 = vset.pattern.permute.xlu0 49
  %3106 = vperm.xlu0 %3105, %v36
  %v3107 = vpop.permute.xlu0 %3106
  %3109 = vset.pattern.permute.xlu0 49
  %3110 = vperm.xlu0 %3109, %v37
  %v3111 = vpop.permute.xlu0 %3110
  %3113 = vset.pattern.permute.xlu0 49
  %3114 = vperm.xlu0 %3113, %v38
  %v3115 = vpop.permute.xlu0 %3114
  %3117 = vset.pattern.permute.xlu0 49
  %3118 = vperm.xlu0 %3117, %v39
  %v3119 = vpop.permute.xlu0 %3118
  %3121 = vset.pattern.permute.xlu0 49
  %3122 = vperm.xlu0 %3121, %v40
  %v3123 = vpop.permute.xlu0 %3122
  %v3125 = vadd.f32 %v3079, %v3065
  %v3126 = vadd.f32 %v3083, %v3066
  %v3127 = vadd.f32 %v3087, %v3067
  %v3128 = vadd.f32 %v3091, %v3068
  %v3129 = vadd.f32 %v3095, %v3069
  %v3130 = vadd.f32 %v3099, %v3070
  %v3131 = vadd.f32 %v3103, %v3071
  %v3132 = vadd.f32 %v3107, %v3072
  %v3133 = vadd.f32 %v3111, %v3073
  %v3134 = vadd.f32 %v3115, %v3074
  %v3135 = vadd.f32 %v3119, %v3075
  %v3136 = vadd.f32 %v3123, %v3076
  %3137 = vset.pattern.permute.xlu0 43
  %3138 = vperm.xlu0 %3137, %v29
  %v3139 = vpop.permute.xlu0 %3138
  %3141 = vset.pattern.permute.xlu0 43
  %3142 = vperm.xlu0 %3141, %v30
  %v3143 = vpop.permute.xlu0 %3142
  %3145 = vset.pattern.permute.xlu0 43
  %3146 = vperm.xlu0 %3145, %v31
  %v3147 = vpop.permute.xlu0 %3146
  %3149 = vset.pattern.permute.xlu0 43
  %3150 = vperm.xlu0 %3149, %v32
  %v3151 = vpop.permute.xlu0 %3150
  %3153 = vset.pattern.permute.xlu0 43
  %3154 = vperm.xlu0 %3153, %v33
  %v3155 = vpop.permute.xlu0 %3154
  %3157 = vset.pattern.permute.xlu0 43
  %3158 = vperm.xlu0 %3157, %v34
  %v3159 = vpop.permute.xlu0 %3158
  %3161 = vset.pattern.permute.xlu0 43
  %3162 = vperm.xlu0 %3161, %v35
  %v3163 = vpop.permute.xlu0 %3162
  %3165 = vset.pattern.permute.xlu0 43
  %3166 = vperm.xlu0 %3165, %v36
  %v3167 = vpop.permute.xlu0 %3166
  %3169 = vset.pattern.permute.xlu0 43
  %3170 = vperm.xlu0 %3169, %v37
  %v3171 = vpop.permute.xlu0 %3170
  %3173 = vset.pattern.permute.xlu0 43
  %3174 = vperm.xlu0 %3173, %v38
  %v3175 = vpop.permute.xlu0 %3174
  %3177 = vset.pattern.permute.xlu0 43
  %3178 = vperm.xlu0 %3177, %v39
  %v3179 = vpop.permute.xlu0 %3178
  %3181 = vset.pattern.permute.xlu0 43
  %3182 = vperm.xlu0 %3181, %v40
  %v3183 = vpop.permute.xlu0 %3182
  %v3185 = vmul.f32 %v3139, %v2657
  %v3186 = vmul.f32 %v3143, %v2658
  %v3187 = vmul.f32 %v3147, %v2659
  %v3188 = vmul.f32 %v3151, %v2660
  %v3189 = vmul.f32 %v3155, %v2661
  %v3190 = vmul.f32 %v3159, %v2662
  %v3191 = vmul.f32 %v3163, %v2663
  %v3192 = vmul.f32 %v3167, %v2664
  %v3193 = vmul.f32 %v3171, %v2665
  %v3194 = vmul.f32 %v3175, %v2666
  %v3195 = vmul.f32 %v3179, %v2667
  %v3196 = vmul.f32 %v3183, %v2668
  %v3197 = vadd.f32 %v3125, %v3185
  %v3198 = vadd.f32 %v3126, %v3186
  %v3199 = vadd.f32 %v3127, %v3187
  %v3200 = vadd.f32 %v3128, %v3188
  %v3201 = vadd.f32 %v3129, %v3189
  %v3202 = vadd.f32 %v3130, %v3190
  %v3203 = vadd.f32 %v3131, %v3191
  %v3204 = vadd.f32 %v3132, %v3192
  %v3205 = vadd.f32 %v3133, %v3193
  %v3206 = vadd.f32 %v3134, %v3194
  %v3207 = vadd.f32 %v3135, %v3195
  %v3208 = vadd.f32 %v3136, %v3196
  %3209 = vset.pattern.permute.xlu0 44
  %3210 = vperm.xlu0 %3209, %v29
  %v3211 = vpop.permute.xlu0 %3210
  %3213 = vset.pattern.permute.xlu0 44
  %3214 = vperm.xlu0 %3213, %v30
  %v3215 = vpop.permute.xlu0 %3214
  %3217 = vset.pattern.permute.xlu0 44
  %3218 = vperm.xlu0 %3217, %v31
  %v3219 = vpop.permute.xlu0 %3218
  %3221 = vset.pattern.permute.xlu0 44
  %3222 = vperm.xlu0 %3221, %v32
  %v3223 = vpop.permute.xlu0 %3222
  %3225 = vset.pattern.permute.xlu0 44
  %3226 = vperm.xlu0 %3225, %v33
  %v3227 = vpop.permute.xlu0 %3226
  %3229 = vset.pattern.permute.xlu0 44
  %3230 = vperm.xlu0 %3229, %v34
  %v3231 = vpop.permute.xlu0 %3230
  %3233 = vset.pattern.permute.xlu0 44
  %3234 = vperm.xlu0 %3233, %v35
  %v3235 = vpop.permute.xlu0 %3234
  %3237 = vset.pattern.permute.xlu0 44
  %3238 = vperm.xlu0 %3237, %v36
  %v3239 = vpop.permute.xlu0 %3238
  %3241 = vset.pattern.permute.xlu0 44
  %3242 = vperm.xlu0 %3241, %v37
  %v3243 = vpop.permute.xlu0 %3242
  %3245 = vset.pattern.permute.xlu0 44
  %3246 = vperm.xlu0 %3245, %v38
  %v3247 = vpop.permute.xlu0 %3246
  %3249 = vset.pattern.permute.xlu0 44
  %3250 = vperm.xlu0 %3249, %v39
  %v3251 = vpop.permute.xlu0 %3250
  %3253 = vset.pattern.permute.xlu0 44
  %3254 = vperm.xlu0 %3253, %v40
  %v3255 = vpop.permute.xlu0 %3254
  %v3257 = vmul.f32 %v3211, %v2741
  %v3258 = vmul.f32 %v3215, %v2742
  %v3259 = vmul.f32 %v3219, %v2743
  %v3260 = vmul.f32 %v3223, %v2744
  %v3261 = vmul.f32 %v3227, %v2745
  %v3262 = vmul.f32 %v3231, %v2746
  %v3263 = vmul.f32 %v3235, %v2747
  %v3264 = vmul.f32 %v3239, %v2748
  %v3265 = vmul.f32 %v3243, %v2749
  %v3266 = vmul.f32 %v3247, %v2750
  %v3267 = vmul.f32 %v3251, %v2751
  %v3268 = vmul.f32 %v3255, %v2752
  %v3269 = vadd.f32 %v3197, %v3257
  %v3270 = vadd.f32 %v3198, %v3258
  %v3271 = vadd.f32 %v3199, %v3259
  %v3272 = vadd.f32 %v3200, %v3260
  %v3273 = vadd.f32 %v3201, %v3261
  %v3274 = vadd.f32 %v3202, %v3262
  %v3275 = vadd.f32 %v3203, %v3263
  %v3276 = vadd.f32 %v3204, %v3264
  %v3277 = vadd.f32 %v3205, %v3265
  %v3278 = vadd.f32 %v3206, %v3266
  %v3279 = vadd.f32 %v3207, %v3267
  %v3280 = vadd.f32 %v3208, %v3268
  %3281 = vset.pattern.permute.xlu0 45
  %3282 = vperm.xlu0 %3281, %v29
  %v3283 = vpop.permute.xlu0 %3282
  %3285 = vset.pattern.permute.xlu0 45
  %3286 = vperm.xlu0 %3285, %v30
  %v3287 = vpop.permute.xlu0 %3286
  %3289 = vset.pattern.permute.xlu0 45
  %3290 = vperm.xlu0 %3289, %v31
  %v3291 = vpop.permute.xlu0 %3290
  %3293 = vset.pattern.permute.xlu0 45
  %3294 = vperm.xlu0 %3293, %v32
  %v3295 = vpop.permute.xlu0 %3294
  %3297 = vset.pattern.permute.xlu0 45
  %3298 = vperm.xlu0 %3297, %v33
  %v3299 = vpop.permute.xlu0 %3298
  %3301 = vset.pattern.permute.xlu0 45
  %3302 = vperm.xlu0 %3301, %v34
  %v3303 = vpop.permute.xlu0 %3302
  %3305 = vset.pattern.permute.xlu0 45
  %3306 = vperm.xlu0 %3305, %v35
  %v3307 = vpop.permute.xlu0 %3306
  %3309 = vset.pattern.permute.xlu0 45
  %3310 = vperm.xlu0 %3309, %v36
  %v3311 = vpop.permute.xlu0 %3310
  %3313 = vset.pattern.permute.xlu0 45
  %3314 = vperm.xlu0 %3313, %v37
  %v3315 = vpop.permute.xlu0 %3314
  %3317 = vset.pattern.permute.xlu0 45
  %3318 = vperm.xlu0 %3317, %v38
  %v3319 = vpop.permute.xlu0 %3318
  %3321 = vset.pattern.permute.xlu0 45
  %3322 = vperm.xlu0 %3321, %v39
  %v3323 = vpop.permute.xlu0 %3322
  %3325 = vset.pattern.permute.xlu0 45
  %3326 = vperm.xlu0 %3325, %v40
  %v3327 = vpop.permute.xlu0 %3326
  %v3329 = vmul.f32 %v3283, %v2573
  %v3330 = vmul.f32 %v3287, %v2574
  %v3331 = vmul.f32 %v3291, %v2575
  %v3332 = vmul.f32 %v3295, %v2576
  %v3333 = vmul.f32 %v3299, %v2577
  %v3334 = vmul.f32 %v3303, %v2578
  %v3335 = vmul.f32 %v3307, %v2579
  %v3336 = vmul.f32 %v3311, %v2580
  %v3337 = vmul.f32 %v3315, %v2581
  %v3338 = vmul.f32 %v3319, %v2582
  %v3339 = vmul.f32 %v3323, %v2583
  %v3340 = vmul.f32 %v3327, %v2584
  %3341 = vset.pattern.permute.xlu0 50
  %3342 = vperm.xlu0 %3341, %v29
  %v3343 = vpop.permute.xlu0 %3342
  %3345 = vset.pattern.permute.xlu0 50
  %3346 = vperm.xlu0 %3345, %v30
  %v3347 = vpop.permute.xlu0 %3346
  %3349 = vset.pattern.permute.xlu0 50
  %3350 = vperm.xlu0 %3349, %v31
  %v3351 = vpop.permute.xlu0 %3350
  %3353 = vset.pattern.permute.xlu0 50
  %3354 = vperm.xlu0 %3353, %v32
  %v3355 = vpop.permute.xlu0 %3354
  %3357 = vset.pattern.permute.xlu0 50
  %3358 = vperm.xlu0 %3357, %v33
  %v3359 = vpop.permute.xlu0 %3358
  %3361 = vset.pattern.permute.xlu0 50
  %3362 = vperm.xlu0 %3361, %v34
  %v3363 = vpop.permute.xlu0 %3362
  %3365 = vset.pattern.permute.xlu0 50
  %3366 = vperm.xlu0 %3365, %v35
  %v3367 = vpop.permute.xlu0 %3366
  %3369 = vset.pattern.permute.xlu0 50
  %3370 = vperm.xlu0 %3369, %v36
  %v3371 = vpop.permute.xlu0 %3370
  %3373 = vset.pattern.permute.xlu0 50
  %3374 = vperm.xlu0 %3373, %v37
  %v3375 = vpop.permute.xlu0 %3374
  %3377 = vset.pattern.permute.xlu0 50
  %3378 = vperm.xlu0 %3377, %v38
  %v3379 = vpop.permute.xlu0 %3378
  %3381 = vset.pattern.permute.xlu0 50
  %3382 = vperm.xlu0 %3381, %v39
  %v3383 = vpop.permute.xlu0 %3382
  %3385 = vset.pattern.permute.xlu0 50
  %3386 = vperm.xlu0 %3385, %v40
  %v3387 = vpop.permute.xlu0 %3386
  %v3389 = vadd.f32 %v3343, %v3329
  %v3390 = vadd.f32 %v3347, %v3330
  %v3391 = vadd.f32 %v3351, %v3331
  %v3392 = vadd.f32 %v3355, %v3332
  %v3393 = vadd.f32 %v3359, %v3333
  %v3394 = vadd.f32 %v3363, %v3334
  %v3395 = vadd.f32 %v3367, %v3335
  %v3396 = vadd.f32 %v3371, %v3336
  %v3397 = vadd.f32 %v3375, %v3337
  %v3398 = vadd.f32 %v3379, %v3338
  %v3399 = vadd.f32 %v3383, %v3339
  %v3400 = vadd.f32 %v3387, %v3340
  %3401 = vset.pattern.permute.xlu0 46
  %3402 = vperm.xlu0 %3401, %v29
  %v3403 = vpop.permute.xlu0 %3402
  %3405 = vset.pattern.permute.xlu0 46
  %3406 = vperm.xlu0 %3405, %v30
  %v3407 = vpop.permute.xlu0 %3406
  %3409 = vset.pattern.permute.xlu0 46
  %3410 = vperm.xlu0 %3409, %v31
  %v3411 = vpop.permute.xlu0 %3410
  %3413 = vset.pattern.permute.xlu0 46
  %3414 = vperm.xlu0 %3413, %v32
  %v3415 = vpop.permute.xlu0 %3414
  %3417 = vset.pattern.permute.xlu0 46
  %3418 = vperm.xlu0 %3417, %v33
  %v3419 = vpop.permute.xlu0 %3418
  %3421 = vset.pattern.permute.xlu0 46
  %3422 = vperm.xlu0 %3421, %v34
  %v3423 = vpop.permute.xlu0 %3422
  %3425 = vset.pattern.permute.xlu0 46
  %3426 = vperm.xlu0 %3425, %v35
  %v3427 = vpop.permute.xlu0 %3426
  %3429 = vset.pattern.permute.xlu0 46
  %3430 = vperm.xlu0 %3429, %v36
  %v3431 = vpop.permute.xlu0 %3430
  %3433 = vset.pattern.permute.xlu0 46
  %3434 = vperm.xlu0 %3433, %v37
  %v3435 = vpop.permute.xlu0 %3434
  %3437 = vset.pattern.permute.xlu0 46
  %3438 = vperm.xlu0 %3437, %v38
  %v3439 = vpop.permute.xlu0 %3438
  %3441 = vset.pattern.permute.xlu0 46
  %3442 = vperm.xlu0 %3441, %v39
  %v3443 = vpop.permute.xlu0 %3442
  %3445 = vset.pattern.permute.xlu0 46
  %3446 = vperm.xlu0 %3445, %v40
  %v3447 = vpop.permute.xlu0 %3446
  %v3449 = vmul.f32 %v3403, %v2657
  %v3450 = vmul.f32 %v3407, %v2658
  %v3451 = vmul.f32 %v3411, %v2659
  %v3452 = vmul.f32 %v3415, %v2660
  %v3453 = vmul.f32 %v3419, %v2661
  %v3454 = vmul.f32 %v3423, %v2662
  %v3455 = vmul.f32 %v3427, %v2663
  %v3456 = vmul.f32 %v3431, %v2664
  %v3457 = vmul.f32 %v3435, %v2665
  %v3458 = vmul.f32 %v3439, %v2666
  %v3459 = vmul.f32 %v3443, %v2667
  %v3460 = vmul.f32 %v3447, %v2668
  %v3461 = vadd.f32 %v3389, %v3449
  %v3462 = vadd.f32 %v3390, %v3450
  %v3463 = vadd.f32 %v3391, %v3451
  %v3464 = vadd.f32 %v3392, %v3452
  %v3465 = vadd.f32 %v3393, %v3453
  %v3466 = vadd.f32 %v3394, %v3454
  %v3467 = vadd.f32 %v3395, %v3455
  %v3468 = vadd.f32 %v3396, %v3456
  %v3469 = vadd.f32 %v3397, %v3457
  %v3470 = vadd.f32 %v3398, %v3458
  %v3471 = vadd.f32 %v3399, %v3459
  %v3472 = vadd.f32 %v3400, %v3460
  %3473 = vset.pattern.permute.xlu0 47
  %3474 = vperm.xlu0 %3473, %v29
  %v3475 = vpop.permute.xlu0 %3474
  %3477 = vset.pattern.permute.xlu0 47
  %3478 = vperm.xlu0 %3477, %v30
  %v3479 = vpop.permute.xlu0 %3478
  %3481 = vset.pattern.permute.xlu0 47
  %3482 = vperm.xlu0 %3481, %v31
  %v3483 = vpop.permute.xlu0 %3482
  %3485 = vset.pattern.permute.xlu0 47
  %3486 = vperm.xlu0 %3485, %v32
  %v3487 = vpop.permute.xlu0 %3486
  %3489 = vset.pattern.permute.xlu0 47
  %3490 = vperm.xlu0 %3489, %v33
  %v3491 = vpop.permute.xlu0 %3490
  %3493 = vset.pattern.permute.xlu0 47
  %3494 = vperm.xlu0 %3493, %v34
  %v3495 = vpop.permute.xlu0 %3494
  %3497 = vset.pattern.permute.xlu0 47
  %3498 = vperm.xlu0 %3497, %v35
  %v3499 = vpop.permute.xlu0 %3498
  %3501 = vset.pattern.permute.xlu0 47
  %3502 = vperm.xlu0 %3501, %v36
  %v3503 = vpop.permute.xlu0 %3502
  %3505 = vset.pattern.permute.xlu0 47
  %3506 = vperm.xlu0 %3505, %v37
  %v3507 = vpop.permute.xlu0 %3506
  %3509 = vset.pattern.permute.xlu0 47
  %3510 = vperm.xlu0 %3509, %v38
  %v3511 = vpop.permute.xlu0 %3510
  %3513 = vset.pattern.permute.xlu0 47
  %3514 = vperm.xlu0 %3513, %v39
  %v3515 = vpop.permute.xlu0 %3514
  %3517 = vset.pattern.permute.xlu0 47
  %3518 = vperm.xlu0 %3517, %v40
  %v3519 = vpop.permute.xlu0 %3518
  %v3521 = vmul.f32 %v3475, %v2741
  %v3522 = vmul.f32 %v3479, %v2742
  %v3523 = vmul.f32 %v3483, %v2743
  %v3524 = vmul.f32 %v3487, %v2744
  %v3525 = vmul.f32 %v3491, %v2745
  %v3526 = vmul.f32 %v3495, %v2746
  %v3527 = vmul.f32 %v3499, %v2747
  %v3528 = vmul.f32 %v3503, %v2748
  %v3529 = vmul.f32 %v3507, %v2749
  %v3530 = vmul.f32 %v3511, %v2750
  %v3531 = vmul.f32 %v3515, %v2751
  %v3532 = vmul.f32 %v3519, %v2752
  %v3533 = vadd.f32 %v3461, %v3521
  %v3534 = vadd.f32 %v3462, %v3522
  %v3535 = vadd.f32 %v3463, %v3523
  %v3536 = vadd.f32 %v3464, %v3524
  %v3537 = vadd.f32 %v3465, %v3525
  %v3538 = vadd.f32 %v3466, %v3526
  %v3539 = vadd.f32 %v3467, %v3527
  %v3540 = vadd.f32 %v3468, %v3528
  %v3541 = vadd.f32 %v3469, %v3529
  %v3542 = vadd.f32 %v3470, %v3530
  %v3543 = vadd.f32 %v3471, %v3531
  %v3544 = vadd.f32 %v3472, %v3532
  %v3545 = vtanh.pop %v3005
  %v3546 = vtanh.pop %v3006
  %v3547 = vtanh.pop %v3007
  %v3548 = vtanh.pop %v3008
  %v3549 = vtanh.pop %v3009
  %v3550 = vtanh.pop %v3010
  %v3551 = vtanh.pop %v3011
  %v3552 = vtanh.pop %v3012
  %v3553 = vtanh.pop %v3013
  %v3554 = vtanh.pop %v3014
  %v3555 = vtanh.pop %v3015
  %v3556 = vtanh.pop %v3016
  %3557 = vset.pattern.permute.xlu0 51
  %3558 = vperm.xlu0 %3557, %v29
  %v3559 = vpop.permute.xlu0 %3558
  %3561 = vset.pattern.permute.xlu0 51
  %3562 = vperm.xlu0 %3561, %v30
  %v3563 = vpop.permute.xlu0 %3562
  %3565 = vset.pattern.permute.xlu0 51
  %3566 = vperm.xlu0 %3565, %v31
  %v3567 = vpop.permute.xlu0 %3566
  %3569 = vset.pattern.permute.xlu0 51
  %3570 = vperm.xlu0 %3569, %v32
  %v3571 = vpop.permute.xlu0 %3570
  %3573 = vset.pattern.permute.xlu0 51
  %3574 = vperm.xlu0 %3573, %v33
  %v3575 = vpop.permute.xlu0 %3574
  %3577 = vset.pattern.permute.xlu0 51
  %3578 = vperm.xlu0 %3577, %v34
  %v3579 = vpop.permute.xlu0 %3578
  %3581 = vset.pattern.permute.xlu0 51
  %3582 = vperm.xlu0 %3581, %v35
  %v3583 = vpop.permute.xlu0 %3582
  %3585 = vset.pattern.permute.xlu0 51
  %3586 = vperm.xlu0 %3585, %v36
  %v3587 = vpop.permute.xlu0 %3586
  %3589 = vset.pattern.permute.xlu0 51
  %3590 = vperm.xlu0 %3589, %v37
  %v3591 = vpop.permute.xlu0 %3590
  %3593 = vset.pattern.permute.xlu0 51
  %3594 = vperm.xlu0 %3593, %v38
  %v3595 = vpop.permute.xlu0 %3594
  %3597 = vset.pattern.permute.xlu0 51
  %3598 = vperm.xlu0 %3597, %v39
  %v3599 = vpop.permute.xlu0 %3598
  %3601 = vset.pattern.permute.xlu0 51
  %3602 = vperm.xlu0 %3601, %v40
  %v3603 = vpop.permute.xlu0 %3602
  %v3605 = vmul.f32 %v3559, %v3545
  %v3606 = vmul.f32 %v3563, %v3546
  %v3607 = vmul.f32 %v3567, %v3547
  %v3608 = vmul.f32 %v3571, %v3548
  %v3609 = vmul.f32 %v3575, %v3549
  %v3610 = vmul.f32 %v3579, %v3550
  %v3611 = vmul.f32 %v3583, %v3551
  %v3612 = vmul.f32 %v3587, %v3552
  %v3613 = vmul.f32 %v3591, %v3553
  %v3614 = vmul.f32 %v3595, %v3554
  %v3615 = vmul.f32 %v3599, %v3555
  %v3616 = vmul.f32 %v3603, %v3556
  %v3617 = vadd.f32 %v3005, %v3605
  %v3618 = vadd.f32 %v3006, %v3606
  %v3619 = vadd.f32 %v3007, %v3607
  %v3620 = vadd.f32 %v3008, %v3608
  %v3621 = vadd.f32 %v3009, %v3609
  %v3622 = vadd.f32 %v3010, %v3610
  %v3623 = vadd.f32 %v3011, %v3611
  %v3624 = vadd.f32 %v3012, %v3612
  %v3625 = vadd.f32 %v3013, %v3613
  %v3626 = vadd.f32 %v3014, %v3614
  %v3627 = vadd.f32 %v3015, %v3615
  %v3628 = vadd.f32 %v3016, %v3616
  %v3629 = vtanh.pop %v3269
  %v3630 = vtanh.pop %v3270
  %v3631 = vtanh.pop %v3271
  %v3632 = vtanh.pop %v3272
  %v3633 = vtanh.pop %v3273
  %v3634 = vtanh.pop %v3274
  %v3635 = vtanh.pop %v3275
  %v3636 = vtanh.pop %v3276
  %v3637 = vtanh.pop %v3277
  %v3638 = vtanh.pop %v3278
  %v3639 = vtanh.pop %v3279
  %v3640 = vtanh.pop %v3280
  %3641 = vset.pattern.permute.xlu0 52
  %3642 = vperm.xlu0 %3641, %v29
  %v3643 = vpop.permute.xlu0 %3642
  %3645 = vset.pattern.permute.xlu0 52
  %3646 = vperm.xlu0 %3645, %v30
  %v3647 = vpop.permute.xlu0 %3646
  %3649 = vset.pattern.permute.xlu0 52
  %3650 = vperm.xlu0 %3649, %v31
  %v3651 = vpop.permute.xlu0 %3650
  %3653 = vset.pattern.permute.xlu0 52
  %3654 = vperm.xlu0 %3653, %v32
  %v3655 = vpop.permute.xlu0 %3654
  %3657 = vset.pattern.permute.xlu0 52
  %3658 = vperm.xlu0 %3657, %v33
  %v3659 = vpop.permute.xlu0 %3658
  %3661 = vset.pattern.permute.xlu0 52
  %3662 = vperm.xlu0 %3661, %v34
  %v3663 = vpop.permute.xlu0 %3662
  %3665 = vset.pattern.permute.xlu0 52
  %3666 = vperm.xlu0 %3665, %v35
  %v3667 = vpop.permute.xlu0 %3666
  %3669 = vset.pattern.permute.xlu0 52
  %3670 = vperm.xlu0 %3669, %v36
  %v3671 = vpop.permute.xlu0 %3670
  %3673 = vset.pattern.permute.xlu0 52
  %3674 = vperm.xlu0 %3673, %v37
  %v3675 = vpop.permute.xlu0 %3674
  %3677 = vset.pattern.permute.xlu0 52
  %3678 = vperm.xlu0 %3677, %v38
  %v3679 = vpop.permute.xlu0 %3678
  %3681 = vset.pattern.permute.xlu0 52
  %3682 = vperm.xlu0 %3681, %v39
  %v3683 = vpop.permute.xlu0 %3682
  %3685 = vset.pattern.permute.xlu0 52
  %3686 = vperm.xlu0 %3685, %v40
  %v3687 = vpop.permute.xlu0 %3686
  %v3689 = vmul.f32 %v3643, %v3629
  %v3690 = vmul.f32 %v3647, %v3630
  %v3691 = vmul.f32 %v3651, %v3631
  %v3692 = vmul.f32 %v3655, %v3632
  %v3693 = vmul.f32 %v3659, %v3633
  %v3694 = vmul.f32 %v3663, %v3634
  %v3695 = vmul.f32 %v3667, %v3635
  %v3696 = vmul.f32 %v3671, %v3636
  %v3697 = vmul.f32 %v3675, %v3637
  %v3698 = vmul.f32 %v3679, %v3638
  %v3699 = vmul.f32 %v3683, %v3639
  %v3700 = vmul.f32 %v3687, %v3640
  %v3701 = vadd.f32 %v3269, %v3689
  %v3702 = vadd.f32 %v3270, %v3690
  %v3703 = vadd.f32 %v3271, %v3691
  %v3704 = vadd.f32 %v3272, %v3692
  %v3705 = vadd.f32 %v3273, %v3693
  %v3706 = vadd.f32 %v3274, %v3694
  %v3707 = vadd.f32 %v3275, %v3695
  %v3708 = vadd.f32 %v3276, %v3696
  %v3709 = vadd.f32 %v3277, %v3697
  %v3710 = vadd.f32 %v3278, %v3698
  %v3711 = vadd.f32 %v3279, %v3699
  %v3712 = vadd.f32 %v3280, %v3700
  %v3713 = vtanh.pop %v3533
  %v3714 = vtanh.pop %v3534
  %v3715 = vtanh.pop %v3535
  %v3716 = vtanh.pop %v3536
  %v3717 = vtanh.pop %v3537
  %v3718 = vtanh.pop %v3538
  %v3719 = vtanh.pop %v3539
  %v3720 = vtanh.pop %v3540
  %v3721 = vtanh.pop %v3541
  %v3722 = vtanh.pop %v3542
  %v3723 = vtanh.pop %v3543
  %v3724 = vtanh.pop %v3544
  %3725 = vset.pattern.permute.xlu0 53
  %3726 = vperm.xlu0 %3725, %v29
  %v3727 = vpop.permute.xlu0 %3726
  %3729 = vset.pattern.permute.xlu0 53
  %3730 = vperm.xlu0 %3729, %v30
  %v3731 = vpop.permute.xlu0 %3730
  %3733 = vset.pattern.permute.xlu0 53
  %3734 = vperm.xlu0 %3733, %v31
  %v3735 = vpop.permute.xlu0 %3734
  %3737 = vset.pattern.permute.xlu0 53
  %3738 = vperm.xlu0 %3737, %v32
  %v3739 = vpop.permute.xlu0 %3738
  %3741 = vset.pattern.permute.xlu0 53
  %3742 = vperm.xlu0 %3741, %v33
  %v3743 = vpop.permute.xlu0 %3742
  %3745 = vset.pattern.permute.xlu0 53
  %3746 = vperm.xlu0 %3745, %v34
  %v3747 = vpop.permute.xlu0 %3746
  %3749 = vset.pattern.permute.xlu0 53
  %3750 = vperm.xlu0 %3749, %v35
  %v3751 = vpop.permute.xlu0 %3750
  %3753 = vset.pattern.permute.xlu0 53
  %3754 = vperm.xlu0 %3753, %v36
  %v3755 = vpop.permute.xlu0 %3754
  %3757 = vset.pattern.permute.xlu0 53
  %3758 = vperm.xlu0 %3757, %v37
  %v3759 = vpop.permute.xlu0 %3758
  %3761 = vset.pattern.permute.xlu0 53
  %3762 = vperm.xlu0 %3761, %v38
  %v3763 = vpop.permute.xlu0 %3762
  %3765 = vset.pattern.permute.xlu0 53
  %3766 = vperm.xlu0 %3765, %v39
  %v3767 = vpop.permute.xlu0 %3766
  %3769 = vset.pattern.permute.xlu0 53
  %3770 = vperm.xlu0 %3769, %v40
  %v3771 = vpop.permute.xlu0 %3770
  %v3773 = vmul.f32 %v3727, %v3713
  %v3774 = vmul.f32 %v3731, %v3714
  %v3775 = vmul.f32 %v3735, %v3715
  %v3776 = vmul.f32 %v3739, %v3716
  %v3777 = vmul.f32 %v3743, %v3717
  %v3778 = vmul.f32 %v3747, %v3718
  %v3779 = vmul.f32 %v3751, %v3719
  %v3780 = vmul.f32 %v3755, %v3720
  %v3781 = vmul.f32 %v3759, %v3721
  %v3782 = vmul.f32 %v3763, %v3722
  %v3783 = vmul.f32 %v3767, %v3723
  %v3784 = vmul.f32 %v3771, %v3724
  %v3785 = vadd.f32 %v3533, %v3773
  %v3786 = vadd.f32 %v3534, %v3774
  %v3787 = vadd.f32 %v3535, %v3775
  %v3788 = vadd.f32 %v3536, %v3776
  %v3789 = vadd.f32 %v3537, %v3777
  %v3790 = vadd.f32 %v3538, %v3778
  %v3791 = vadd.f32 %v3539, %v3779
  %v3792 = vadd.f32 %v3540, %v3780
  %v3793 = vadd.f32 %v3541, %v3781
  %v3794 = vadd.f32 %v3542, %v3782
  %v3795 = vadd.f32 %v3543, %v3783
  %v3796 = vadd.f32 %v3544, %v3784
  %3797 = vset.pattern.permute.xlu0 54
  %3798 = vperm.xlu0 %3797, %v29
  %v3799 = vpop.permute.xlu0 %3798
  %3801 = vset.pattern.permute.xlu0 54
  %3802 = vperm.xlu0 %3801, %v30
  %v3803 = vpop.permute.xlu0 %3802
  %3805 = vset.pattern.permute.xlu0 54
  %3806 = vperm.xlu0 %3805, %v31
  %v3807 = vpop.permute.xlu0 %3806
  %3809 = vset.pattern.permute.xlu0 54
  %3810 = vperm.xlu0 %3809, %v32
  %v3811 = vpop.permute.xlu0 %3810
  %3813 = vset.pattern.permute.xlu0 54
  %3814 = vperm.xlu0 %3813, %v33
  %v3815 = vpop.permute.xlu0 %3814
  %3817 = vset.pattern.permute.xlu0 54
  %3818 = vperm.xlu0 %3817, %v34
  %v3819 = vpop.permute.xlu0 %3818
  %3821 = vset.pattern.permute.xlu0 54
  %3822 = vperm.xlu0 %3821, %v35
  %v3823 = vpop.permute.xlu0 %3822
  %3825 = vset.pattern.permute.xlu0 54
  %3826 = vperm.xlu0 %3825, %v36
  %v3827 = vpop.permute.xlu0 %3826
  %3829 = vset.pattern.permute.xlu0 54
  %3830 = vperm.xlu0 %3829, %v37
  %v3831 = vpop.permute.xlu0 %3830
  %3833 = vset.pattern.permute.xlu0 54
  %3834 = vperm.xlu0 %3833, %v38
  %v3835 = vpop.permute.xlu0 %3834
  %3837 = vset.pattern.permute.xlu0 54
  %3838 = vperm.xlu0 %3837, %v39
  %v3839 = vpop.permute.xlu0 %3838
  %3841 = vset.pattern.permute.xlu0 54
  %3842 = vperm.xlu0 %3841, %v40
  %v3843 = vpop.permute.xlu0 %3842
  %v3845 = vmul.f32 %v3799, %v3617
  %v3846 = vmul.f32 %v3803, %v3618
  %v3847 = vmul.f32 %v3807, %v3619
  %v3848 = vmul.f32 %v3811, %v3620
  %v3849 = vmul.f32 %v3815, %v3621
  %v3850 = vmul.f32 %v3819, %v3622
  %v3851 = vmul.f32 %v3823, %v3623
  %v3852 = vmul.f32 %v3827, %v3624
  %v3853 = vmul.f32 %v3831, %v3625
  %v3854 = vmul.f32 %v3835, %v3626
  %v3855 = vmul.f32 %v3839, %v3627
  %v3856 = vmul.f32 %v3843, %v3628
  %3857 = vset.pattern.permute.xlu0 57
  %3858 = vperm.xlu0 %3857, %v29
  %v3859 = vpop.permute.xlu0 %3858
  %3861 = vset.pattern.permute.xlu0 57
  %3862 = vperm.xlu0 %3861, %v30
  %v3863 = vpop.permute.xlu0 %3862
  %3865 = vset.pattern.permute.xlu0 57
  %3866 = vperm.xlu0 %3865, %v31
  %v3867 = vpop.permute.xlu0 %3866
  %3869 = vset.pattern.permute.xlu0 57
  %3870 = vperm.xlu0 %3869, %v32
  %v3871 = vpop.permute.xlu0 %3870
  %3873 = vset.pattern.permute.xlu0 57
  %3874 = vperm.xlu0 %3873, %v33
  %v3875 = vpop.permute.xlu0 %3874
  %3877 = vset.pattern.permute.xlu0 57
  %3878 = vperm.xlu0 %3877, %v34
  %v3879 = vpop.permute.xlu0 %3878
  %3881 = vset.pattern.permute.xlu0 57
  %3882 = vperm.xlu0 %3881, %v35
  %v3883 = vpop.permute.xlu0 %3882
  %3885 = vset.pattern.permute.xlu0 57
  %3886 = vperm.xlu0 %3885, %v36
  %v3887 = vpop.permute.xlu0 %3886
  %3889 = vset.pattern.permute.xlu0 57
  %3890 = vperm.xlu0 %3889, %v37
  %v3891 = vpop.permute.xlu0 %3890
  %3893 = vset.pattern.permute.xlu0 57
  %3894 = vperm.xlu0 %3893, %v38
  %v3895 = vpop.permute.xlu0 %3894
  %3897 = vset.pattern.permute.xlu0 57
  %3898 = vperm.xlu0 %3897, %v39
  %v3899 = vpop.permute.xlu0 %3898
  %3901 = vset.pattern.permute.xlu0 57
  %3902 = vperm.xlu0 %3901, %v40
  %v3903 = vpop.permute.xlu0 %3902
  %v3905 = vadd.f32 %v3859, %v3845
  %v3906 = vadd.f32 %v3863, %v3846
  %v3907 = vadd.f32 %v3867, %v3847
  %v3908 = vadd.f32 %v3871, %v3848
  %v3909 = vadd.f32 %v3875, %v3849
  %v3910 = vadd.f32 %v3879, %v3850
  %v3911 = vadd.f32 %v3883, %v3851
  %v3912 = vadd.f32 %v3887, %v3852
  %v3913 = vadd.f32 %v3891, %v3853
  %v3914 = vadd.f32 %v3895, %v3854
  %v3915 = vadd.f32 %v3899, %v3855
  %v3916 = vadd.f32 %v3903, %v3856
  %3917 = vset.pattern.permute.xlu0 55
  %3918 = vperm.xlu0 %3917, %v29
  %v3919 = vpop.permute.xlu0 %3918
  %3921 = vset.pattern.permute.xlu0 55
  %3922 = vperm.xlu0 %3921, %v30
  %v3923 = vpop.permute.xlu0 %3922
  %3925 = vset.pattern.permute.xlu0 55
  %3926 = vperm.xlu0 %3925, %v31
  %v3927 = vpop.permute.xlu0 %3926
  %3929 = vset.pattern.permute.xlu0 55
  %3930 = vperm.xlu0 %3929, %v32
  %v3931 = vpop.permute.xlu0 %3930
  %3933 = vset.pattern.permute.xlu0 55
  %3934 = vperm.xlu0 %3933, %v33
  %v3935 = vpop.permute.xlu0 %3934
  %3937 = vset.pattern.permute.xlu0 55
  %3938 = vperm.xlu0 %3937, %v34
  %v3939 = vpop.permute.xlu0 %3938
  %3941 = vset.pattern.permute.xlu0 55
  %3942 = vperm.xlu0 %3941, %v35
  %v3943 = vpop.permute.xlu0 %3942
  %3945 = vset.pattern.permute.xlu0 55
  %3946 = vperm.xlu0 %3945, %v36
  %v3947 = vpop.permute.xlu0 %3946
  %3949 = vset.pattern.permute.xlu0 55
  %3950 = vperm.xlu0 %3949, %v37
  %v3951 = vpop.permute.xlu0 %3950
  %3953 = vset.pattern.permute.xlu0 55
  %3954 = vperm.xlu0 %3953, %v38
  %v3955 = vpop.permute.xlu0 %3954
  %3957 = vset.pattern.permute.xlu0 55
  %3958 = vperm.xlu0 %3957, %v39
  %v3959 = vpop.permute.xlu0 %3958
  %3961 = vset.pattern.permute.xlu0 55
  %3962 = vperm.xlu0 %3961, %v40
  %v3963 = vpop.permute.xlu0 %3962
  %v3965 = vmul.f32 %v3919, %v3701
  %v3966 = vmul.f32 %v3923, %v3702
  %v3967 = vmul.f32 %v3927, %v3703
  %v3968 = vmul.f32 %v3931, %v3704
  %v3969 = vmul.f32 %v3935, %v3705
  %v3970 = vmul.f32 %v3939, %v3706
  %v3971 = vmul.f32 %v3943, %v3707
  %v3972 = vmul.f32 %v3947, %v3708
  %v3973 = vmul.f32 %v3951, %v3709
  %v3974 = vmul.f32 %v3955, %v3710
  %v3975 = vmul.f32 %v3959, %v3711
  %v3976 = vmul.f32 %v3963, %v3712
  %v3977 = vadd.f32 %v3905, %v3965
  %v3978 = vadd.f32 %v3906, %v3966
  %v3979 = vadd.f32 %v3907, %v3967
  %v3980 = vadd.f32 %v3908, %v3968
  %v3981 = vadd.f32 %v3909, %v3969
  %v3982 = vadd.f32 %v3910, %v3970
  %v3983 = vadd.f32 %v3911, %v3971
  %v3984 = vadd.f32 %v3912, %v3972
  %v3985 = vadd.f32 %v3913, %v3973
  %v3986 = vadd.f32 %v3914, %v3974
  %v3987 = vadd.f32 %v3915, %v3975
  %v3988 = vadd.f32 %v3916, %v3976
  %3989 = vset.pattern.permute.xlu0 56
  %3990 = vperm.xlu0 %3989, %v29
  %v3991 = vpop.permute.xlu0 %3990
  %3993 = vset.pattern.permute.xlu0 56
  %3994 = vperm.xlu0 %3993, %v30
  %v3995 = vpop.permute.xlu0 %3994
  %3997 = vset.pattern.permute.xlu0 56
  %3998 = vperm.xlu0 %3997, %v31
  %v3999 = vpop.permute.xlu0 %3998
  %4001 = vset.pattern.permute.xlu0 56
  %4002 = vperm.xlu0 %4001, %v32
  %v4003 = vpop.permute.xlu0 %4002
  %4005 = vset.pattern.permute.xlu0 56
  %4006 = vperm.xlu0 %4005, %v33
  %v4007 = vpop.permute.xlu0 %4006
  %4009 = vset.pattern.permute.xlu0 56
  %4010 = vperm.xlu0 %4009, %v34
  %v4011 = vpop.permute.xlu0 %4010
  %4013 = vset.pattern.permute.xlu0 56
  %4014 = vperm.xlu0 %4013, %v35
  %v4015 = vpop.permute.xlu0 %4014
  %4017 = vset.pattern.permute.xlu0 56
  %4018 = vperm.xlu0 %4017, %v36
  %v4019 = vpop.permute.xlu0 %4018
  %4021 = vset.pattern.permute.xlu0 56
  %4022 = vperm.xlu0 %4021, %v37
  %v4023 = vpop.permute.xlu0 %4022
  %4025 = vset.pattern.permute.xlu0 56
  %4026 = vperm.xlu0 %4025, %v38
  %v4027 = vpop.permute.xlu0 %4026
  %4029 = vset.pattern.permute.xlu0 56
  %4030 = vperm.xlu0 %4029, %v39
  %v4031 = vpop.permute.xlu0 %4030
  %4033 = vset.pattern.permute.xlu0 56
  %4034 = vperm.xlu0 %4033, %v40
  %v4035 = vpop.permute.xlu0 %4034
  %v4037 = vmul.f32 %v3991, %v3785
  %v4038 = vmul.f32 %v3995, %v3786
  %v4039 = vmul.f32 %v3999, %v3787
  %v4040 = vmul.f32 %v4003, %v3788
  %v4041 = vmul.f32 %v4007, %v3789
  %v4042 = vmul.f32 %v4011, %v3790
  %v4043 = vmul.f32 %v4015, %v3791
  %v4044 = vmul.f32 %v4019, %v3792
  %v4045 = vmul.f32 %v4023, %v3793
  %v4046 = vmul.f32 %v4027, %v3794
  %v4047 = vmul.f32 %v4031, %v3795
  %v4048 = vmul.f32 %v4035, %v3796
  %v4049 = vadd.f32 %v3977, %v4037
  %v4050 = vadd.f32 %v3978, %v4038
  %v4051 = vadd.f32 %v3979, %v4039
  %v4052 = vadd.f32 %v3980, %v4040
  %v4053 = vadd.f32 %v3981, %v4041
  %v4054 = vadd.f32 %v3982, %v4042
  %v4055 = vadd.f32 %v3983, %v4043
  %v4056 = vadd.f32 %v3984, %v4044
  %v4057 = vadd.f32 %v3985, %v4045
  %v4058 = vadd.f32 %v3986, %v4046
  %v4059 = vadd.f32 %v3987, %v4047
  %v4060 = vadd.f32 %v3988, %v4048
  %v4061 = vxor.u32 %v4049, 2147483648
  %v4062 = vxor.u32 %v4050, 2147483648
  %v4063 = vxor.u32 %v4051, 2147483648
  %v4064 = vxor.u32 %v4052, 2147483648
  %v4065 = vxor.u32 %v4053, 2147483648
  %v4066 = vxor.u32 %v4054, 2147483648
  %v4067 = vxor.u32 %v4055, 2147483648
  %v4068 = vxor.u32 %v4056, 2147483648
  %v4069 = vxor.u32 %v4057, 2147483648
  %v4070 = vxor.u32 %v4058, 2147483648
  %v4071 = vxor.u32 %v4059, 2147483648
  %v4072 = vxor.u32 %v4060, 2147483648
  %v4073 = vmul.f32 %v4061, 1.442695
  %v4074 = vpow.pop %v4073
  %v4075 = vmul.f32 %v4062, 1.442695
  %v4076 = vpow.pop %v4075
  %v4077 = vmul.f32 %v4063, 1.442695
  %v4078 = vpow.pop %v4077
  %v4079 = vmul.f32 %v4064, 1.442695
  %v4080 = vpow.pop %v4079
  %v4081 = vmul.f32 %v4065, 1.442695
  %v4082 = vpow.pop %v4081
  %v4083 = vmul.f32 %v4066, 1.442695
  %v4084 = vpow.pop %v4083
  %v4085 = vmul.f32 %v4067, 1.442695
  %v4086 = vpow.pop %v4085
  %v4087 = vmul.f32 %v4068, 1.442695
  %v4088 = vpow.pop %v4087
  %v4089 = vmul.f32 %v4069, 1.442695
  %v4090 = vpow.pop %v4089
  %v4091 = vmul.f32 %v4070, 1.442695
  %v4092 = vpow.pop %v4091
  %v4093 = vmul.f32 %v4071, 1.442695
  %v4094 = vpow.pop %v4093
  %v4095 = vmul.f32 %v4072, 1.442695
  %v4096 = vpow.pop %v4095
  %v4097 = vadd.f32 %v4074, 1.0
  %v4098 = vadd.f32 %v4076, 1.0
  %v4099 = vadd.f32 %v4078, 1.0
  %v4100 = vadd.f32 %v4080, 1.0
  %v4101 = vadd.f32 %v4082, 1.0
  %v4102 = vadd.f32 %v4084, 1.0
  %v4103 = vadd.f32 %v4086, 1.0
  %v4104 = vadd.f32 %v4088, 1.0
  %v4105 = vadd.f32 %v4090, 1.0
  %v4106 = vadd.f32 %v4092, 1.0
  %v4107 = vadd.f32 %v4094, 1.0
  %v4108 = vadd.f32 %v4096, 1.0
  %v4109 = vrcp.pop %v4097
  %v4110 = vmul.f32 %v4097, %v4109
  %v4111 = vsub.f32 1.0, %v4110
  %v4112 = vmul.f32 %v4109, %v4111
  %v4113 = vadd.f32 %v4109, %v4112
  %vm4114 = vweird.f32 %v4097
  %vm4115 = vweird.f32 %v4109
  %vm4116 = vmor %vm4114, %vm4115
  %v4117 = vsel %vm4116, %v4109, %v4113
  %v4118 = vand.u32 2147483647, %v4097
  %vm4119 = vcmp.eq.f32.partialorder %v4118, 8.507059e+37
  %v4120 = vand.u32 %v4097, 2147483648
  %v4121 = vor.u32 1.1754944e-38, %v4120
  %v4122 = vsel %vm4119, %v4121, %v4117
  %v4123 = vmul.f32 1.0, %v4122
  %v4124 = vrcp.pop %v4098
  %v4125 = vmul.f32 %v4098, %v4124
  %v4126 = vsub.f32 1.0, %v4125
  %v4127 = vmul.f32 %v4124, %v4126
  %v4128 = vadd.f32 %v4124, %v4127
  %vm4129 = vweird.f32 %v4098
  %vm4130 = vweird.f32 %v4124
  %vm4131 = vmor %vm4129, %vm4130
  %v4132 = vsel %vm4131, %v4124, %v4128
  %v4133 = vand.u32 2147483647, %v4098
  %vm4134 = vcmp.eq.f32.partialorder %v4133, 8.507059e+37
  %v4135 = vand.u32 %v4098, 2147483648
  %v4136 = vor.u32 1.1754944e-38, %v4135
  %v4137 = vsel %vm4134, %v4136, %v4132
  %v4138 = vmul.f32 1.0, %v4137
  %v4139 = vrcp.pop %v4099
  %v4140 = vmul.f32 %v4099, %v4139
  %v4141 = vsub.f32 1.0, %v4140
  %v4142 = vmul.f32 %v4139, %v4141
  %v4143 = vadd.f32 %v4139, %v4142
  %vm4144 = vweird.f32 %v4099
  %vm4145 = vweird.f32 %v4139
  %vm4146 = vmor %vm4144, %vm4145
  %v4147 = vsel %vm4146, %v4139, %v4143
  %v4148 = vand.u32 2147483647, %v4099
  %vm4149 = vcmp.eq.f32.partialorder %v4148, 8.507059e+37
  %v4150 = vand.u32 %v4099, 2147483648
  %v4151 = vor.u32 1.1754944e-38, %v4150
  %v4152 = vsel %vm4149, %v4151, %v4147
  %v4153 = vmul.f32 1.0, %v4152
  %v4154 = vrcp.pop %v4100
  %v4155 = vmul.f32 %v4100, %v4154
  %v4156 = vsub.f32 1.0, %v4155
  %v4157 = vmul.f32 %v4154, %v4156
  %v4158 = vadd.f32 %v4154, %v4157
  %vm4159 = vweird.f32 %v4100
  %vm4160 = vweird.f32 %v4154
  %vm4161 = vmor %vm4159, %vm4160
  %v4162 = vsel %vm4161, %v4154, %v4158
  %v4163 = vand.u32 2147483647, %v4100
  %vm4164 = vcmp.eq.f32.partialorder %v4163, 8.507059e+37
  %v4165 = vand.u32 %v4100, 2147483648
  %v4166 = vor.u32 1.1754944e-38, %v4165
  %v4167 = vsel %vm4164, %v4166, %v4162
  %v4168 = vmul.f32 1.0, %v4167
  %v4169 = vrcp.pop %v4101
  %v4170 = vmul.f32 %v4101, %v4169
  %v4171 = vsub.f32 1.0, %v4170
  %v4172 = vmul.f32 %v4169, %v4171
  %v4173 = vadd.f32 %v4169, %v4172
  %vm4174 = vweird.f32 %v4101
  %vm4175 = vweird.f32 %v4169
  %vm4176 = vmor %vm4174, %vm4175
  %v4177 = vsel %vm4176, %v4169, %v4173
  %v4178 = vand.u32 2147483647, %v4101
  %vm4179 = vcmp.eq.f32.partialorder %v4178, 8.507059e+37
  %v4180 = vand.u32 %v4101, 2147483648
  %v4181 = vor.u32 1.1754944e-38, %v4180
  %v4182 = vsel %vm4179, %v4181, %v4177
  %v4183 = vmul.f32 1.0, %v4182
  %v4184 = vrcp.pop %v4102
  %v4185 = vmul.f32 %v4102, %v4184
  %v4186 = vsub.f32 1.0, %v4185
  %v4187 = vmul.f32 %v4184, %v4186
  %v4188 = vadd.f32 %v4184, %v4187
  %vm4189 = vweird.f32 %v4102
  %vm4190 = vweird.f32 %v4184
  %vm4191 = vmor %vm4189, %vm4190
  %v4192 = vsel %vm4191, %v4184, %v4188
  %v4193 = vand.u32 2147483647, %v4102
  %vm4194 = vcmp.eq.f32.partialorder %v4193, 8.507059e+37
  %v4195 = vand.u32 %v4102, 2147483648
  %v4196 = vor.u32 1.1754944e-38, %v4195
  %v4197 = vsel %vm4194, %v4196, %v4192
  %v4198 = vmul.f32 1.0, %v4197
  %v4199 = vrcp.pop %v4103
  %v4200 = vmul.f32 %v4103, %v4199
  %v4201 = vsub.f32 1.0, %v4200
  %v4202 = vmul.f32 %v4199, %v4201
  %v4203 = vadd.f32 %v4199, %v4202
  %vm4204 = vweird.f32 %v4103
  %vm4205 = vweird.f32 %v4199
  %vm4206 = vmor %vm4204, %vm4205
  %v4207 = vsel %vm4206, %v4199, %v4203
  %v4208 = vand.u32 2147483647, %v4103
  %vm4209 = vcmp.eq.f32.partialorder %v4208, 8.507059e+37
  %v4210 = vand.u32 %v4103, 2147483648
  %v4211 = vor.u32 1.1754944e-38, %v4210
  %v4212 = vsel %vm4209, %v4211, %v4207
  %v4213 = vmul.f32 1.0, %v4212
  %v4214 = vrcp.pop %v4104
  %v4215 = vmul.f32 %v4104, %v4214
  %v4216 = vsub.f32 1.0, %v4215
  %v4217 = vmul.f32 %v4214, %v4216
  %v4218 = vadd.f32 %v4214, %v4217
  %vm4219 = vweird.f32 %v4104
  %vm4220 = vweird.f32 %v4214
  %vm4221 = vmor %vm4219, %vm4220
  %v4222 = vsel %vm4221, %v4214, %v4218
  %v4223 = vand.u32 2147483647, %v4104
  %vm4224 = vcmp.eq.f32.partialorder %v4223, 8.507059e+37
  %v4225 = vand.u32 %v4104, 2147483648
  %v4226 = vor.u32 1.1754944e-38, %v4225
  %v4227 = vsel %vm4224, %v4226, %v4222
  %v4228 = vmul.f32 1.0, %v4227
  %v4229 = vrcp.pop %v4105
  %v4230 = vmul.f32 %v4105, %v4229
  %v4231 = vsub.f32 1.0, %v4230
  %v4232 = vmul.f32 %v4229, %v4231
  %v4233 = vadd.f32 %v4229, %v4232
  %vm4234 = vweird.f32 %v4105
  %vm4235 = vweird.f32 %v4229
  %vm4236 = vmor %vm4234, %vm4235
  %v4237 = vsel %vm4236, %v4229, %v4233
  %v4238 = vand.u32 2147483647, %v4105
  %vm4239 = vcmp.eq.f32.partialorder %v4238, 8.507059e+37
  %v4240 = vand.u32 %v4105, 2147483648
  %v4241 = vor.u32 1.1754944e-38, %v4240
  %v4242 = vsel %vm4239, %v4241, %v4237
  %v4243 = vmul.f32 1.0, %v4242
  %v4244 = vrcp.pop %v4106
  %v4245 = vmul.f32 %v4106, %v4244
  %v4246 = vsub.f32 1.0, %v4245
  %v4247 = vmul.f32 %v4244, %v4246
  %v4248 = vadd.f32 %v4244, %v4247
  %vm4249 = vweird.f32 %v4106
  %vm4250 = vweird.f32 %v4244
  %vm4251 = vmor %vm4249, %vm4250
  %v4252 = vsel %vm4251, %v4244, %v4248
  %v4253 = vand.u32 2147483647, %v4106
  %vm4254 = vcmp.eq.f32.partialorder %v4253, 8.507059e+37
  %v4255 = vand.u32 %v4106, 2147483648
  %v4256 = vor.u32 1.1754944e-38, %v4255
  %v4257 = vsel %vm4254, %v4256, %v4252
  %v4258 = vmul.f32 1.0, %v4257
  %v4259 = vrcp.pop %v4107
  %v4260 = vmul.f32 %v4107, %v4259
  %v4261 = vsub.f32 1.0, %v4260
  %v4262 = vmul.f32 %v4259, %v4261
  %v4263 = vadd.f32 %v4259, %v4262
  %vm4264 = vweird.f32 %v4107
  %vm4265 = vweird.f32 %v4259
  %vm4266 = vmor %vm4264, %vm4265
  %v4267 = vsel %vm4266, %v4259, %v4263
  %v4268 = vand.u32 2147483647, %v4107
  %vm4269 = vcmp.eq.f32.partialorder %v4268, 8.507059e+37
  %v4270 = vand.u32 %v4107, 2147483648
  %v4271 = vor.u32 1.1754944e-38, %v4270
  %v4272 = vsel %vm4269, %v4271, %v4267
  %v4273 = vmul.f32 1.0, %v4272
  %v4274 = vrcp.pop %v4108
  %v4275 = vmul.f32 %v4108, %v4274
  %v4276 = vsub.f32 1.0, %v4275
  %v4277 = vmul.f32 %v4274, %v4276
  %v4278 = vadd.f32 %v4274, %v4277
  %vm4279 = vweird.f32 %v4108
  %vm4280 = vweird.f32 %v4274
  %vm4281 = vmor %vm4279, %vm4280
  %v4282 = vsel %vm4281, %v4274, %v4278
  %v4283 = vand.u32 2147483647, %v4108
  %vm4284 = vcmp.eq.f32.partialorder %v4283, 8.507059e+37
  %v4285 = vand.u32 %v4108, 2147483648
  %v4286 = vor.u32 1.1754944e-38, %v4285
  %v4287 = vsel %vm4284, %v4286, %v4282
  %v4288 = vmul.f32 1.0, %v4287
  %v4289 = vsub.f32 %v4123, %v4213
  %v4290 = vsub.f32 %v4138, %v4228
  %v4291 = vsub.f32 %v4153, %v4243
  %v4292 = vsub.f32 %v4168, %v4258
  %v4293 = vsub.f32 %v4183, %v4273
  %v4294 = vsub.f32 %v4198, %v4288
  %v4295 = vand.u32 2147483647, %v4289
  %v4296 = vand.u32 2147483647, %v4290
  %v4297 = vand.u32 2147483647, %v4291
  %v4298 = vand.u32 2147483647, %v4292
  %v4299 = vand.u32 2147483647, %v4293
  %v4300 = vand.u32 2147483647, %v4294
  %v4301 = vmax.f32 %v4295, 1e-09
  %v4302 = vmax.f32 %v4296, 1e-09
  %v4303 = vmax.f32 %v4297, 1e-09
  %v4304 = vmax.f32 %v4298, 1e-09
  %v4305 = vmax.f32 %v4299, 1e-09
  %v4306 = vmax.f32 %v4300, 1e-09
  %4307 = vst [vmem:[%s2] sm:$0xff] %v4301
  %4308 = vst [vmem:[%s2 + $0x8] sm:$0xff] %v4302
  %4309 = vst [vmem:[%s2 + $0x10] sm:$0xff] %v4303
  %4310 = vst [vmem:[%s2 + $0x18] sm:$0xff] %v4304
  %4311 = vst [vmem:[%s2 + $0x20] sm:$0xff] %v4305
  %4312 = vst [vmem:[%s2 + $0x28] sm:$0xff] %v4306
  // Predicated region
  $region10: #{forward.13} parent=0 // pred_check
    _
  $region11: #{forward.13} parent=0 // pred_check_branch
    %4314 = sbr.rel (0) target = $region13
  $region12: #{forward.13} parent=0 // pred_region
    _
  $region13: #{forward.13} parent=0 // pred_fallthru
    _
  // Predicated region
  $region14: #{forward.13} parent=0 // pred_check
    _
  $region15: #{forward.13} parent=0 // pred_check_branch
    %4316 = sbr.rel (0) target = $region17
  $region16: #{forward.13} parent=0 // pred_region
    _
  $region17: #{forward.13} parent=0 // pred_fallthru
    _

</llo_original>
